<compile_context>
chip_gen: v5e
topology: v5e:2x2
jax: 0.10.0
libtpu: 0.0.40
codegen_flags: <defaults>
</compile_context>

<pallas_src>
import functools

import numpy as np
import jax
import jax.numpy as jnp
from jax.experimental import pallas as pl
from jax.experimental.pallas import tpu as pltpu


# -----------------------------------------------------------------------------
# helpers
# -----------------------------------------------------------------------------
def _round_up(x, m):
    return ((x + m - 1) // m) * m


def _pick_tile(dim, max_tile, align):
    """Largest tile <= max_tile that divides `dim` and is a multiple of
    `align`, else the full dimension (full-extent blocks are always legal)."""
    if dim <= max_tile:
        return dim
    t = (max_tile // align) * align
    while t >= align:
        if dim % t == 0:
            return t
        t -= align
    return dim


def _vmem_limit_bytes():
    # ~3/4 of physical VMEM, capped at 96 MiB (v5e/v6e: 96 of 128 MiB;
    # v7x: 48 of 64 MiB).  Conservative fallback if the query is unavailable.
    try:
        cap = int(pltpu.get_tpu_info().vmem_capacity_bytes)
        return min(96 * 1024 * 1024, (cap * 3) // 4)
    except Exception:
        return 48 * 1024 * 1024


_VMEM_LIMIT = _vmem_limit_bytes()
# double-buffered operand bytes allowed for a single-K-step matmul
_MM_K_BUDGET = 20 * 1024 * 1024


# -----------------------------------------------------------------------------
# Pallas kernels: fused matmul (im2col path, 1x1 convs, stride-2 convs, stem)
# -----------------------------------------------------------------------------
def _mm_kernel(x_ref, w_ref, s_ref, b_ref, o_ref, acc_ref, *, relu):
    k = pl.program_id(2)

    @pl.when(k == 0)
    def _():
        acc_ref[...] = jnp.dot(x_ref[...], w_ref[...],
                               preferred_element_type=jnp.float32)

    @pl.when(k > 0)
    def _():
        acc_ref[...] += jnp.dot(x_ref[...], w_ref[...],
                                preferred_element_type=jnp.float32)

    @pl.when(k == pl.num_programs(2) - 1)
    def _():
        y = acc_ref[...] * s_ref[...] + b_ref[...]
        if relu:
            y = jnp.maximum(y, 0.0)
        o_ref[...] = y.astype(o_ref.dtype)


def _mm_res_kernel(x_ref, w_ref, s_ref, b_ref, r_ref, o_ref, acc_ref, *, relu):
    """Same as _mm_kernel, with the bottleneck residual add fused in the
    epilogue (saves a separate elementwise pass over HBM)."""
    k = pl.program_id(2)

    @pl.when(k == 0)
    def _():
        acc_ref[...] = jnp.dot(x_ref[...], w_ref[...],
                               preferred_element_type=jnp.float32)

    @pl.when(k > 0)
    def _():
        acc_ref[...] += jnp.dot(x_ref[...], w_ref[...],
                                preferred_element_type=jnp.float32)

    @pl.when(k == pl.num_programs(2) - 1)
    def _():
        y = acc_ref[...] * s_ref[...] + b_ref[...] + r_ref[...].astype(jnp.float32)
        if relu:
            y = jnp.maximum(y, 0.0)
        o_ref[...] = y.astype(o_ref.dtype)


def pallas_matmul_affine(x, w, scale, bias, residual=None, *, relu=False):
    """y = (x @ w) * scale + bias (+ residual) [, ReLU], bf16 output.

    x: (M, K) bf16, w: (K, N) bf16, scale/bias: (N,) f32,
    residual: (M, N) bf16 or None.  Returns (M, N) bf16.
    """
    M, K = x.shape
    _, N = w.shape

    # Pad only what is cheap: K up to the bf16 sublane granule (stem only) and
    # small cout up to a lane-dense 128 (unmasked vst, full MXU lanes).
    if K % 16:
        Kp = _round_up(K, 16)
        x = jnp.pad(x, ((0, 0), (0, Kp - K)))
        w = jnp.pad(w, ((0, Kp - K), (0, 0)))
        K = Kp
    Np = N
    if N < 128:
        Np = 128
        w = jnp.pad(w, ((0, 0), (0, Np - N)))
        scale = jnp.pad(scale, (0, Np - N))
        bias = jnp.pad(bias, (0, Np - N))
        if residual is not None:
            residual = jnp.pad(residual, ((0, 0), (0, Np - N)))

    tm = _pick_tile(M, 1024, 128)      # 128-aligned (bf16 granule / MXU rows)
    tn = _pick_tile(Np, 512, 128)
    # tiny-M deep layers: make sure the parallel (i, j) grid has >= 2 points so
    # v7x's two TensorCores both get work.
    if M // tm == 1 and Np // tn == 1 and Np % 256 == 0:
        tn = Np // 2
    # single reduction step when the K-resident operands fit the VMEM budget
    if 2 * K * (tm + tn) * 2 <= _MM_K_BUDGET:
        tk = K
    else:
        tk = _pick_tile(K, 1024, 128)

    s2 = scale.reshape(1, Np).astype(jnp.float32)
    b2 = bias.reshape(1, Np).astype(jnp.float32)

    grid = (M // tm, Np // tn, K // tk)

    x_spec = pl.BlockSpec((tm, tk), lambda i, j, k: (i, k))
    w_spec = pl.BlockSpec((tk, tn), lambda i, j, k: (k, j))
    sb_spec = pl.BlockSpec((1, tn), lambda i, j, k: (0, j))
    o_spec = pl.BlockSpec((tm, tn), lambda i, j, k: (i, j))

    if residual is None:
        kernel = functools.partial(_mm_kernel, relu=relu)
        in_specs = [x_spec, w_spec, sb_spec, sb_spec]
        operands = (x, w, s2, b2)
    else:
        kernel = functools.partial(_mm_res_kernel, relu=relu)
        in_specs = [x_spec, w_spec, sb_spec, sb_spec,
                    pl.BlockSpec((tm, tn), lambda i, j, k: (i, j))]
        operands = (x, w, s2, b2, residual)

    flops = 2 * M * K * Np
    bytes_accessed = 2 * (M * K + K * Np + M * Np * (2 if residual is not None else 1)) + 8 * Np

    out = pl.pallas_call(
        kernel,
        out_shape=jax.ShapeDtypeStruct((M, Np), jnp.bfloat16),
        grid_spec=pltpu.PrefetchScalarGridSpec(
            num_scalar_prefetch=0,
            grid=grid,
            in_specs=in_specs,
            out_specs=o_spec,
            scratch_shapes=[pltpu.VMEM((tm, tn), jnp.float32)],
        ),
        compiler_params=pltpu.CompilerParams(
            dimension_semantics=("parallel", "parallel", "arbitrary"),
            vmem_limit_bytes=_VMEM_LIMIT,
            allow_input_fusion=[True] * len(operands),
        ),
        cost_estimate=pl.CostEstimate(flops=flops, transcendentals=0,
                                      bytes_accessed=bytes_accessed),
    )(*operands)
    return out if Np == N else out[:, :N]


# -----------------------------------------------------------------------------
# Pallas kernel: direct 3x3 / stride-1 conv (no im2col), 9-tap shift+dot
# -----------------------------------------------------------------------------
def _conv3x3_kernel(xa_ref, xb_ref, w_ref, s_ref, b_ref, o_ref, acc_ref, *, relu):
    # xa_ref: (1, th, Wp, tk)   row tile of the padded input
    # xb_ref: (1, 2,  Wp, tk)   2-row halo below the tile
    # w_ref : (3, 3, tk, tn)    HWIO weights
    # o_ref : (1, th, W, tn) bf16 ; acc_ref: (th*W, tn) f32
    c = pl.program_id(3)
    th = o_ref.shape[1]
    w_out = o_ref.shape[2]

    x = jnp.concatenate([xa_ref[0], xb_ref[0]], axis=0)   # (th+2, Wp, tk)

    def tap(di, dj):
        win = x[di:di + th, dj:dj + w_out, :]
        return jnp.dot(win.reshape(th * w_out, -1), w_ref[di, dj],
                       preferred_element_type=jnp.float32)

    @pl.when(c == 0)
    def _():
        acc_ref[...] = tap(0, 0)          # first tap of first K step: plain write

    @pl.when(c > 0)
    def _():
        acc_ref[...] += tap(0, 0)

    for di in range(3):
        for dj in range(3):
            if di == 0 and dj == 0:
                continue
            acc_ref[...] += tap(di, dj)

    @pl.when(c == pl.num_programs(3) - 1)
    def _():
        y = acc_ref[...] * s_ref[...] + b_ref[...]
        if relu:
            y = jnp.maximum(y, 0.0)
        o_ref[...] = y.reshape(o_ref.shape).astype(o_ref.dtype)


def pallas_conv3x3(x, w, scale, bias, *, relu):
    """Direct NHWC 3x3 stride-1 pad-1 conv with folded BN (+ReLU), bf16 out."""
    N, H, W, Cin = x.shape
    Cout = w.shape[-1]

    th = _pick_tile(H, max(2, 512 // W), 2)      # even row tile dividing H
    tn = _pick_tile(Cout, 256, 128)
    tk = Cin if Cin <= 1024 else _pick_tile(Cin, 512, 128)
    Wp = W + 2
    half = th // 2

    xp = jnp.pad(x, ((0, 0), (1, 1), (1, 1), (0, 0)))      # zero conv padding
    s2 = scale.reshape(1, Cout).astype(jnp.float32)
    b2 = bias.reshape(1, Cout).astype(jnp.float32)

    grid = (N, H // th, Cout // tn, Cin // tk)

    xa_spec = pl.BlockSpec((1, th, Wp, tk), lambda b, r, j, c: (b, r, 0, c))
    # 2-row halo below the tile, addressed in 2-row blocks: rows [r*th+th, +2)
    xb_spec = pl.BlockSpec((1, 2, Wp, tk), lambda b, r, j, c: (b, (r + 1) * half, 0, c))
    w_spec = pl.BlockSpec((3, 3, tk, tn), lambda b, r, j, c: (0, 0, c, j))
    sb_spec = pl.BlockSpec((1, tn), lambda b, r, j, c: (0, j))
    o_spec = pl.BlockSpec((1, th, W, tn), lambda b, r, j, c: (b, r, 0, j))

    operands = (xp, xp, w, s2, b2)
    flops = 2 * N * H * W * 9 * Cin * Cout
    bytes_accessed = 2 * (N * (H + 2) * Wp * Cin + 9 * Cin * Cout + N * H * W * Cout)

    return pl.pallas_call(
        functools.partial(_conv3x3_kernel, relu=relu),
        out_shape=jax.ShapeDtypeStruct((N, H, W, Cout), jnp.bfloat16),
        grid_spec=pltpu.PrefetchScalarGridSpec(
            num_scalar_prefetch=0,
            grid=grid,
            in_specs=[xa_spec, xb_spec, w_spec, sb_spec, sb_spec],
            out_specs=o_spec,
            scratch_shapes=[pltpu.VMEM((th * W, tn), jnp.float32)],
        ),
        compiler_params=pltpu.CompilerParams(
            dimension_semantics=("parallel", "parallel", "parallel", "arbitrary"),
            vmem_limit_bytes=_VMEM_LIMIT,
            allow_input_fusion=[True] * len(operands),
        ),
        cost_estimate=pl.CostEstimate(flops=flops, transcendentals=0,
                                      bytes_accessed=bytes_accessed),
    )(*operands)


# -----------------------------------------------------------------------------
# Pallas kernel: 2x2 max-pool (single input, no materialized strided slices)
# -----------------------------------------------------------------------------
def _pool2x2_kernel(x_ref, o_ref):
    # x_ref: (tr, 2, W2, 2C) ; o_ref: (tr, W2, C)
    m = jnp.maximum(x_ref[:, 0], x_ref[:, 1])          # row-pair max
    c = o_ref.shape[-1]
    o_ref[...] = jnp.maximum(m[:, :, :c], m[:, :, c:])  # column-pair max


@jax.jit
def maxpool2x2(x):
    # MaxPool2d(2, 2, ceil_mode=True); spatial dims here are even, so ceil mode
    # equals floor mode.
    # TODO(synk): pad with -inf for odd spatial dims and fuse the pool into the
    # preceding stem conv epilogue to save one more HBM round trip.
    N, H, W, C = x.shape
    assert H % 2 == 0 and W % 2 == 0
    H2, W2 = H // 2, W // 2
    xv = x.reshape(N * H2, 2, W2, 2 * C)                # metadata-only reshape
    row_bytes = 2 * W2 * 2 * C * x.dtype.itemsize
    tr = _pick_tile(N * H2, max(1, (8 << 20) // row_bytes), 1)
    out = pl.pallas_call(
        _pool2x2_kernel,
        out_shape=jax.ShapeDtypeStruct((N * H2, W2, C), x.dtype),
        grid_spec=pltpu.PrefetchScalarGridSpec(
            num_scalar_prefetch=0,
            grid=((N * H2) // tr,),
            in_specs=[pl.BlockSpec((tr, 2, W2, 2 * C), lambda r: (r, 0, 0, 0))],
            out_specs=pl.BlockSpec((tr, W2, C), lambda r: (r, 0, 0)),
        ),
        compiler_params=pltpu.CompilerParams(
            dimension_semantics=("parallel",),
            vmem_limit_bytes=_VMEM_LIMIT,
        ),
    )(xv)
    return out.reshape(N, H2, W2, C)


# -----------------------------------------------------------------------------
# Plain-JAX glue: im2col (fallback convs only), bilinear upsample matrices
# -----------------------------------------------------------------------------
def extract_patches(x, k, stride, pad):
    """x: (N,H,W,C) -> (N*Ho*Wo, k*k*C) with (kh,kw,C) ordering along K."""
    N, H, W, C = x.shape
    if pad:
        x = jnp.pad(x, ((0, 0), (pad, pad), (pad, pad), (0, 0)))
    Ho = (H + 2 * pad - k) // stride + 1
    Wo = (W + 2 * pad - k) // stride + 1
    if k == 1 and stride == 1:
        return x.reshape(N * Ho * Wo, C), (N, Ho, Wo)
    cols = []
    for i in range(k):
        for j in range(k):
            cols.append(x[:, i:i + stride * Ho:stride,
                          j:j + stride * Wo:stride, :])
    patches = jnp.concatenate(cols, axis=-1)
    return patches.reshape(N * Ho * Wo, k * k * C), (N, Ho, Wo)


def _bilinear_matrix(h_in, h_out):
    """Interpolation matrix for nn.Upsample(bilinear, align_corners=True)."""
    m = np.zeros((h_out, h_in), np.float32)
    if h_in == 1:
        m[:, 0] = 1.0
        return jnp.asarray(m)
    pos = np.arange(h_out) * (h_in - 1) / (h_out - 1)
    p0 = np.clip(np.floor(pos).astype(np.int64), 0, h_in - 2)
    frac = (pos - p0).astype(np.float32)
    m[np.arange(h_out), p0] += 1.0 - frac
    m[np.arange(h_out), p0 + 1] += frac
    return jnp.asarray(m)


@jax.jit
def bilinear_upsample_x2(x):
    # small interpolation matrices; kept as plain-JAX glue, bf16 result
    N, H, W, C = x.shape
    Wh = _bilinear_matrix(H, 2 * H)
    Ww = _bilinear_matrix(W, 2 * W)
    y = jnp.einsum('ip,jq,npqc->nijc', Wh, Ww, x.astype(jnp.float32))
    return y.astype(jnp.bfloat16)


# -----------------------------------------------------------------------------
# Parameters (deterministic synthetic init)
# -----------------------------------------------------------------------------
class ParamGen:
    def __init__(self, seed=0):
        self._key = jax.random.PRNGKey(seed)
        self._n = 0

    def key(self):
        self._n += 1
        return jax.random.fold_in(self._key, self._n)


def make_conv(pg, cin, cout, k, bias=True):
    fan_in = k * k * cin
    w = jax.random.normal(pg.key(), (k, k, cin, cout), jnp.float32) * np.sqrt(2.0 / fan_in)
    b = (0.01 * jax.random.normal(pg.key(), (cout,), jnp.float32)
         if bias else jnp.zeros((cout,), jnp.float32))
    return {'w': w, 'b': b}


def make_bn(pg, c):
    return {
        'gamma': 1.0 + 0.05 * jax.random.normal(pg.key(), (c,), jnp.float32),
        'beta': 0.05 * jax.random.normal(pg.key(), (c,), jnp.float32),
        'mean': 0.05 * jax.random.normal(pg.key(), (c,), jnp.float32),
        'var': 0.5 + jax.random.uniform(pg.key(), (c,), jnp.float32),
    }


def make_conv_block(pg, cin, cout):
    return {'conv1': make_conv(pg, cin, cout, 3, bias=True), 'bn1': make_bn(pg, cout),
            'conv2': make_conv(pg, cout, cout, 3, bias=True), 'bn2': make_bn(pg, cout)}


def make_layer(pg, cin, width, nblocks):
    blocks = []
    for i in range(nblocks):
        bin_c = cin if i == 0 else width * 4
        blk = {
            'conv1': make_conv(pg, bin_c, width, 1, bias=False), 'bn1': make_bn(pg, width),
            'conv2': make_conv(pg, width, width, 3, bias=False), 'bn2': make_bn(pg, width),
            'conv3': make_conv(pg, width, width * 4, 1, bias=False), 'bn3': make_bn(pg, width * 4),
        }
        if i == 0:
            blk['down_conv'] = make_conv(pg, bin_c, width * 4, 1, bias=False)
            blk['down_bn'] = make_bn(pg, width * 4)
        blocks.append(blk)
    return blocks


def init_unet_params(pg, out_c):
    return {
        'conv1': make_conv(pg, 3, 64, 3, bias=True), 'bn1': make_bn(pg, 64),
        'layer1': make_layer(pg, 64, 64, 3),
        'layer2': make_layer(pg, 256, 128, 4),
        'layer3': make_layer(pg, 512, 256, 6),
        'layer4': make_layer(pg, 1024, 512, 3),
        'b1': make_conv_block(pg, 2048, 256),
        'c1': make_conv_block(pg, 256 + 1024, 512),
        'c2': make_conv_block(pg, 512 + 512, 256),
        'c3': make_conv_block(pg, 256 + 256, 64),
        'c4': make_conv_block(pg, 64 + 64, 32),
        'out': make_conv(pg, 32, out_c, 1, bias=True),
    }


# -----------------------------------------------------------------------------
# Forward pass
# -----------------------------------------------------------------------------
_BN_EPS = 1e-5


def _fold_bn(conv, bn):
    if bn is None:
        return jnp.ones_like(conv['b']), conv['b']
    scale = bn['gamma'] / jnp.sqrt(bn['var'] + _BN_EPS)
    bias = scale * (conv['b'] - bn['mean']) + bn['beta']
    return scale, bias


@functools.partial(jax.jit, static_argnames=("relu", "stride"))
def conv_bn_act(x, conv, bn=None, residual=None, *, relu=False, stride=1):
    """NHWC conv with folded BN (+ optional residual, ReLU), bf16 output.

    Stride-1 3x3 convs with lane-friendly widths use the direct Pallas conv
    kernel (no im2col); everything else (1x1, stride-2, 3-channel stem, tiny
    spatial maps) falls back to im2col + the fused Pallas matmul.
    """
    k = conv['w'].shape[0]
    cin = x.shape[-1]
    cout = conv['w'].shape[-1]
    H, W = x.shape[1], x.shape[2]
    scale, bias = _fold_bn(conv, bn)
    xb = x.astype(jnp.bfloat16)

    use_direct = (k == 3 and stride == 1 and residual is None
                  and cin % 8 == 0 and W % 8 == 0 and H % 2 == 0)
    if use_direct:
        return pallas_conv3x3(xb, conv['w'].astype(jnp.bfloat16), scale, bias,
                              relu=relu)

    # TODO(synk): direct-conv path for the remaining stride-2 / small-W convs.
    pad = k // 2
    patches, (N, Ho, Wo) = extract_patches(xb, k, stride, pad)
    wmat = conv['w'].reshape(k * k * cin, cout).astype(jnp.bfloat16)
    res2 = (None if residual is None
            else residual.astype(jnp.bfloat16).reshape(N * Ho * Wo, cout))
    y = pallas_matmul_affine(patches, wmat, scale, bias, res2, relu=relu)
    return y.reshape(N, Ho, Wo, cout)


def bottleneck_forward(x, blk, stride):
    out = conv_bn_act(x, blk['conv1'], blk['bn1'], relu=True, stride=1)
    out = conv_bn_act(out, blk['conv2'], blk['bn2'], relu=True, stride=stride)
    if 'down_conv' in blk:
        identity = conv_bn_act(x, blk['down_conv'], blk['down_bn'],
                               relu=False, stride=stride)
    else:
        identity = x
    # residual add + ReLU fused into the conv3 matmul epilogue
    return conv_bn_act(out, blk['conv3'], blk['bn3'], residual=identity,
                       relu=True, stride=1)


def resnet_layer(x, blocks, stride):
    for i, blk in enumerate(blocks):
        x = bottleneck_forward(x, blk, stride if i == 0 else 1)
    return x


def conv_block_forward(x, cb):
    x = conv_bn_act(x, cb['conv1'], cb['bn1'], relu=True)
    x = conv_bn_act(x, cb['conv2'], cb['bn2'], relu=True)
    return x


def unet_resnet50_forward(params, x_nchw):
    x = jnp.transpose(x_nchw, (0, 2, 3, 1)).astype(jnp.float32)   # NCHW -> NHWC

    # encoder (ResNet50 with 3x3 stem and 2x2 max-pool)
    x = conv_bn_act(x, params['conv1'], params['bn1'], relu=True)
    skip_full = x                              # 64 ch, full resolution (bf16)
    x0 = maxpool2x2(x)
    x1 = resnet_layer(x0, params['layer1'], stride=1)   # 256 ch
    x2 = resnet_layer(x1, params['layer2'], stride=2)   # 512 ch
    x3 = resnet_layer(x2, params['layer3'], stride=2)   # 1024 ch
    x4 = resnet_layer(x3, params['layer4'], stride=2)   # 2048 ch

    # bridge b1 = conv_block(2048, 256)
    d = conv_block_forward(x4, params['b1'])

    # decoder
    # TODO(synk): split each decoder conv1 weight by channel group (upsampled
    # part + skip part accumulated into one output) to avoid materializing the
    # concatenated tensors in HBM.
    d = bilinear_upsample_x2(d)
    d = jnp.concatenate([d, x3], axis=-1)
    d = conv_block_forward(d, params['c1'])
    d = bilinear_upsample_x2(d)
    d = jnp.concatenate([d, x2], axis=-1)
    d = conv_block_forward(d, params['c2'])
    d = bilinear_upsample_x2(d)
    d = jnp.concatenate([d, x1], axis=-1)
    d = conv_block_forward(d, params['c3'])
    d = bilinear_upsample_x2(d)
    d = jnp.concatenate([d, skip_full], axis=-1)
    d = conv_block_forward(d, params['c4'])

    # output head: 1x1 conv, no BN, no activation (sigmoid never applied in forward())
    out = conv_bn_act(d, params['out'], None, relu=False)
    return jnp.transpose(out, (0, 3, 1, 2)).astype(jnp.float32)   # NHWC -> NCHW


if __name__ == "__main__":
    OUT_C = 1
    pg = ParamGen(seed=0)
    params = init_unet_params(pg, OUT_C)

    key = jax.random.PRNGKey(0)
    x = jax.random.normal(key, (2, 3, 32, 32), jnp.float32)   # NCHW, like PyTorch

    y = unet_resnet50_forward(params, x)
    y = jax.block_until_ready(y)

    assert y.shape == (2, OUT_C, 32, 32), y.shape
    assert bool(jnp.all(jnp.isfinite(y)))
    print("KERNEL_OK")
</pallas_src>

<mosaic_0001>
module attributes {stable_mosaic.version = 11 : i64} {
  func.func @_mm_kernel(%arg0: i32, %arg1: i32, %arg2: i32, %arg3: memref<1024x32xbf16, #tpu.memory_space<vmem>>, %arg4: memref<32x128xbf16, #tpu.memory_space<vmem>>, %arg5: memref<1x128xf32, #tpu.memory_space<vmem>>, %arg6: memref<1x128xf32, #tpu.memory_space<vmem>>, %arg7: memref<1024x128xbf16, #tpu.memory_space<vmem>>, %arg8: memref<1024x128xf32, #tpu.memory_space<vmem>>) attributes {dimension_semantics = [#tpu.dimension_semantics<parallel>, #tpu.dimension_semantics<parallel>, #tpu.dimension_semantics<arbitrary>], iteration_bounds = array<i64: 2, 1, 1>, scalar_prefetch = 0 : i64, scratch_operands = 1 : i64, tpu.core_type = #tpu.core_type<tc>, window_params = [{transform_indices = @transform_0, window_bounds = array<i64: 1024, 32>}, {transform_indices = @transform_1, window_bounds = array<i64: 32, 128>}, {transform_indices = @transform_2, window_bounds = array<i64: 1, 128>}, {transform_indices = @transform_3, window_bounds = array<i64: 1, 128>}, {transform_indices = @transform_4, window_bounds = array<i64: 1024, 128>}]} {
    %c0_i32 = arith.constant 0 : i32
    %0 = arith.cmpi eq, %arg2, %c0_i32 : i32
    %1 = arith.extui %0 : i1 to i32
    %c0_i32_0 = arith.constant 0 : i32
    %2 = arith.cmpi ne, %1, %c0_i32_0 : i32
    scf.if %2 {
      %c0 = arith.constant 0 : index
      %c0_5 = arith.constant 0 : index
      %9 = vector.load %arg3[%c0, %c0_5] : memref<1024x32xbf16, #tpu.memory_space<vmem>>, vector<1024x32xbf16>
      %c0_6 = arith.constant 0 : index
      %c0_7 = arith.constant 0 : index
      %10 = vector.load %arg4[%c0_6, %c0_7] : memref<32x128xbf16, #tpu.memory_space<vmem>>, vector<32x128xbf16>
      %cst = arith.constant dense<0.000000e+00> : vector<1024x128xf32>
      %11 = tpu.matmul %9, %10, %cst {dimension_numbers = #tpu.dot_dimension_numbers<[1], [0], [0], [1], [0, 0, 1, 1], [], []>} : vector<1024x32xbf16>, vector<32x128xbf16>, vector<1024x128xf32> -> vector<1024x128xf32>
      %c0_8 = arith.constant 0 : index
      %c0_9 = arith.constant 0 : index
      %12 = vector.load %arg8[%c0_8, %c0_9] : memref<1024x128xf32, #tpu.memory_space<vmem>>, vector<1024x128xf32>
      tpu.vector_store %arg8[%c0_8, %c0_9], %11 {strides = array<i32>} : memref<1024x128xf32, #tpu.memory_space<vmem>>, vector<1024x128xf32>,
    } else {
    }
    %c0_i32_1 = arith.constant 0 : i32
    %3 = arith.cmpi sgt, %arg2, %c0_i32_1 : i32
    %4 = arith.extui %3 : i1 to i32
    %c0_i32_2 = arith.constant 0 : i32
    %5 = arith.cmpi ne, %4, %c0_i32_2 : i32
    scf.if %5 {
      %c0 = arith.constant 0 : index
      %c0_5 = arith.constant 0 : index
      %9 = vector.load %arg8[%c0, %c0_5] : memref<1024x128xf32, #tpu.memory_space<vmem>>, vector<1024x128xf32>
      %c0_6 = arith.constant 0 : index
      %c0_7 = arith.constant 0 : index
      %10 = vector.load %arg3[%c0_6, %c0_7] : memref<1024x32xbf16, #tpu.memory_space<vmem>>, vector<1024x32xbf16>
      %c0_8 = arith.constant 0 : index
      %c0_9 = arith.constant 0 : index
      %11 = vector.load %arg4[%c0_8, %c0_9] : memref<32x128xbf16, #tpu.memory_space<vmem>>, vector<32x128xbf16>
      %cst = arith.constant dense<0.000000e+00> : vector<1024x128xf32>
      %12 = tpu.matmul %10, %11, %cst {dimension_numbers = #tpu.dot_dimension_numbers<[1], [0], [0], [1], [0, 0, 1, 1], [], []>} : vector<1024x32xbf16>, vector<32x128xbf16>, vector<1024x128xf32> -> vector<1024x128xf32>
      %13 = arith.addf %9, %12 : vector<1024x128xf32>
      %c0_10 = arith.constant 0 : index
      %c0_11 = arith.constant 0 : index
      %14 = vector.load %arg8[%c0_10, %c0_11] : memref<1024x128xf32, #tpu.memory_space<vmem>>, vector<1024x128xf32>
      tpu.vector_store %arg8[%c0_10, %c0_11], %13 {strides = array<i32>} : memref<1024x128xf32, #tpu.memory_space<vmem>>, vector<1024x128xf32>,
    } else {
    }
    %c0_i32_3 = arith.constant 0 : i32
    %6 = arith.cmpi eq, %arg2, %c0_i32_3 : i32
    %7 = arith.extui %6 : i1 to i32
    %c0_i32_4 = arith.constant 0 : i32
    %8 = arith.cmpi ne, %7, %c0_i32_4 : i32
    scf.if %8 {
      %c0 = arith.constant 0 : index
      %c0_5 = arith.constant 0 : index
      %9 = vector.load %arg8[%c0, %c0_5] : memref<1024x128xf32, #tpu.memory_space<vmem>>, vector<1024x128xf32>
      %c0_6 = arith.constant 0 : index
      %c0_7 = arith.constant 0 : index
      %10 = vector.load %arg5[%c0_6, %c0_7] : memref<1x128xf32, #tpu.memory_space<vmem>>, vector<1x128xf32>
      %11 = vector.broadcast %10 : vector<1x128xf32> to vector<1024x128xf32>
      %12 = arith.mulf %9, %11 : vector<1024x128xf32>
      %c0_8 = arith.constant 0 : index
      %c0_9 = arith.constant 0 : index
      %13 = vector.load %arg6[%c0_8, %c0_9] : memref<1x128xf32, #tpu.memory_space<vmem>>, vector<1x128xf32>
      %14 = vector.broadcast %13 : vector<1x128xf32> to vector<1024x128xf32>
      %15 = arith.addf %12, %14 : vector<1024x128xf32>
      %cst = arith.constant 0.000000e+00 : f32
      %16 = vector.broadcast %cst : f32 to vector<1024x128xf32>
      %17 = arith.maximumf %15, %16 : vector<1024x128xf32>
      %18 = arith.truncf %17 : vector<1024x128xf32> to vector<1024x128xbf16>
      %c0_10 = arith.constant 0 : index
      %c0_11 = arith.constant 0 : index
      %19 = vector.load %arg7[%c0_10, %c0_11] : memref<1024x128xbf16, #tpu.memory_space<vmem>>, vector<1024x128xbf16>
      tpu.vector_store %arg7[%c0_10, %c0_11], %18 {strides = array<i32>} : memref<1024x128xbf16, #tpu.memory_space<vmem>>, vector<1024x128xbf16>,
    } else {
    }
    return
  }
  func.func @transform_0(%arg0: i32, %arg1: i32, %arg2: i32) -> (i32, i32) {
    %c0_i32 = arith.constant 0 : i32
    return %arg0, %arg2 : i32, i32
  }
  func.func @transform_1(%arg0: i32, %arg1: i32, %arg2: i32) -> (i32, i32) {
    %c0_i32 = arith.constant 0 : i32
    return %arg2, %arg1 : i32, i32
  }
  func.func @transform_2(%arg0: i32, %arg1: i32, %arg2: i32) -> (i32, i32) {
    %c0_i32 = arith.constant 0 : i32
    %c0_i32_0 = arith.constant 0 : i32
    return %c0_i32, %arg1 : i32, i32
  }
  func.func @transform_3(%arg0: i32, %arg1: i32, %arg2: i32) -> (i32, i32) {
    %c0_i32 = arith.constant 0 : i32
    %c0_i32_0 = arith.constant 0 : i32
    return %c0_i32, %arg1 : i32, i32
  }
  func.func @transform_4(%arg0: i32, %arg1: i32, %arg2: i32) -> (i32, i32) {
    %c0_i32 = arith.constant 0 : i32
    return %arg0, %arg1 : i32, i32
  }
}

</mosaic_0001>

<llo_original>
// kernel: conv_bn_act.2
$region0: #{conv_bn_act.2}
  #allocation0 [shape = 'u32[]', space=smem, size = 0x4, offset = 0x4, fixed_abs, tag = 'smem constant byte address 0x4 - core index']
  #allocation1 [shape = 'u32[72,128]{1,0:T(1,128)}', space=vmem, size = 0x9000, scoped, tag = 'internal scratch']
  #allocation2 [shape = 'f32[1024,128]{1,0:T(8,128)}', space=vmem, size = 0x80000, scoped, tag = 'scratch operand']
  #allocation3 [shape = 'u32[2048]{0}', space=vmem, size = 0x2000, scoped, tag = 'scoped memory for conv_bn_act.2']
  #allocation4 [shape = 'u32[2048]{0}', space=vmem, size = 0x2000, scoped, tag = 'scoped memory for conv_bn_act.2']
  #allocation5 [shape = 'u32[2048]{0}', space=vmem, size = 0x2000, scoped, tag = 'scoped memory for conv_bn_act.2']
  #allocation6 [shape = 'u32[2048]{0}', space=vmem, size = 0x2000, scoped, tag = 'scoped memory for conv_bn_act.2']
  #allocation7 [shape = 'u32[2048]{0}', space=vmem, size = 0x2000, scoped, tag = 'scoped memory for conv_bn_act.2']
  #allocation8 [shape = 'u32[2048]{0}', space=vmem, size = 0x2000, scoped, tag = 'scoped memory for conv_bn_act.2']
  #allocation9 [shape = 'u32[2048]{0}', space=vmem, size = 0x2000, scoped, tag = 'scoped memory for conv_bn_act.2']
  #allocation10 [shape = 'u32[2048]{0}', space=vmem, size = 0x2000, scoped, tag = 'scoped memory for conv_bn_act.2']
  #allocation11 [shape = 'u32[2048]{0}', space=vmem, size = 0x2000, scoped, tag = 'scoped memory for conv_bn_act.2']
  #allocation12 [shape = 'u32[2048]{0}', space=vmem, size = 0x2000, scoped, tag = 'scoped memory for conv_bn_act.2']
  #allocation13 [shape = 'u32[2048]{0}', space=vmem, size = 0x2000, scoped, tag = 'scoped memory for conv_bn_act.2']
  #allocation14 [shape = 'u32[2048]{0}', space=vmem, size = 0x2000, scoped, tag = 'scoped memory for conv_bn_act.2']
  #allocation15 [shape = 'u32[2048]{0}', space=vmem, size = 0x2000, scoped, tag = 'scoped memory for conv_bn_act.2']
  #allocation16 [shape = 'u32[2048]{0}', space=vmem, size = 0x2000, scoped, tag = 'scoped memory for conv_bn_act.2']
  #allocation17 [shape = 'u32[2048]{0}', space=vmem, size = 0x2000, scoped, tag = 'scoped memory for conv_bn_act.2']
  #allocation18 [shape = 'u32[2048]{0}', space=vmem, size = 0x2000, scoped, tag = 'scoped memory for conv_bn_act.2']
  #allocation19 [shape = 'u32[2048]{0}', space=vmem, size = 0x2000, scoped, tag = 'scoped memory for conv_bn_act.2']
  #allocation20 [shape = 'u32[2048]{0}', space=vmem, size = 0x2000, scoped, tag = 'scoped memory for conv_bn_act.2']
  #allocation21 [shape = 'u32[2048]{0}', space=vmem, size = 0x2000, scoped, tag = 'scoped memory for conv_bn_act.2']
  #allocation22 [shape = 'u32[2048]{0}', space=vmem, size = 0x2000, scoped, tag = 'scoped memory for conv_bn_act.2']
  %s0 = inlined_call_operand.vmem [shape: bf16[2048,27], index: 0, kind: input, shape index: {}]
  %s1 = inlined_call_operand.<no memory space> [shape: bf16[], index: 1, kind: input, shape index: {}]
  %s2 = inlined_call_operand.vmem [shape: bf16[27,64], index: 2, kind: input, shape index: {}]
  %s3 = inlined_call_operand.vmem [shape: f32[64], index: 3, kind: input, shape index: {}]
  %s4 = inlined_call_operand.<no memory space> [shape: f32[], index: 4, kind: input, shape index: {}]
  %s5 = inlined_call_operand.vmem [shape: f32[64], index: 5, kind: input, shape index: {}]
  %s6 = inlined_call_operand.hbm [shape: bf16[2048,128], index: 6, kind: output, shape index: {}]
  %s7 = sld [smem:[#allocation0]]
  $region61: #{conv_bn_act.2} parent=0
    _
  %s9 = ssub.s32 1, %s7
  %s10 = scalar_select 0, %s9, %s7
  %v11 = vstv %s1
  %v12 = vunpack.i.l.bf16 %v11
  %v14 = vunpack.i.h.bf16 %v11
  %v16 = vstv %s1
  %v17 = vunpack.i.l.bf16 %v16
  %v19 = vunpack.i.h.bf16 %v16
  %v21 = vstv %s4
  %v22 = vstv %s4
  $region1: #{conv_bn_act.2} parent=0
    #allocation23 [shape = 'u8[524288]{0}', space=vmem, size = 0x80000, scoped, tag = 'output window, operand 0']
    #allocation24 [shape = 's32[2]{0}', space=sflag, size = 0x8, scoped, tag = 'scoped memory for conv_bn_act.2']
    %23 = vsyncpa [#allocation24], 0
    %s24 = scalar_lea.sflag [#allocation24], 1
    %25 = vsyncpa %s24, 0
    loop: start=0, step=1, limit=4
    $region2: #{conv_bn_act.2} parent=1 // loop_pre_header
      _
    $region3: #{conv_bn_act.2} parent=1 // loop_header
      %s27 = sphi 0, %s31
      %p28 = scmp.ge.s32.totalorder %s27, 4
      %s34 = sphi 0, %s53
      %s35 = sphi 0, %s49
      %s36 = sphi 0, %s45
      %s37 = sphi 0, %s34
      %s38 = sphi 0, %s35
      %s39 = sphi 0, %s36
      %s40 = sphi 0, %s37
      %s41 = sphi 0, %s38
      %s42 = sphi 0, %s39
      %s58 = sphi 0, %s60
      %s61 = sphi 0, %s58
      %s62 = sphi 0, %s61
      %s78 = sphi 0, %s62
      %s86 = sphi 0, %s88
      %s89 = sphi 0, %s86
      %s90 = sphi 0, %s89
      %s106 = sphi 0, %s90
      %s110 = sphi 0, %s110
      %s112 = sphi 0, %s110
      %s113 = sphi 0, %s112
      %s127 = sphi 0, %s113
      %s131 = sphi 0, %s131
      %s133 = sphi 0, %s131
      %s134 = sphi 0, %s133
      %s148 = sphi 0, %s134
      %s156 = sphi 0, %s158
      %s159 = sphi 0, %s156
      %s160 = sphi 0, %s159
      %s176 = sphi 0, %s160
    $region4: #{conv_bn_act.2} parent=1 // loop_header_branch
      %30 = sbr.rel (%p28) target = $region8
    $region5: #{conv_bn_act.2} parent=1 // loop_body
      %s32 = ssub.s32 %s27, 1
      %s33 = ssub.s32 %s27, 2
      %s43 = sadd.s32 1, %s36
      %p44 = scmp.ge.s32.totalorder %s43, 1
      %s45 = scalar_select %p44, 0, %s43
      %s46 = sadd.s32 1, %s35
      %s47 = scalar_select %p44, %s46, %s35
      %p48 = scmp.ge.s32.totalorder %s47, 1
      %s49 = scalar_select %p48, 0, %s47
      %s50 = sadd.s32 1, %s34
      %s51 = scalar_select %p48, %s50, %s34
      %p52 = scmp.ge.s32.totalorder %s51, 2
      %s53 = scalar_select %p52, 0, %s51
      %s54 = ssub.s32 %s34, %s53
      %s55 = ssub.s32 %s36, %s45
      %s56 = sor.u32 %s54, %s55
      %p57 = scmp.eq.s32.totalorder %s56, 0
      %s59 = sadd.s32 %s58, 1
      %s60 = scalar_select %p57, %s58, %s59
      %p63 = pneg %p57
      %p64 = scmp.eq.s32.totalorder %s27, 1
      %p65 = por %p63, %p64
      %p66 = scmp.ne.s32.totalorder %s58, %s61
      %p67 = scmp.eq.s32.totalorder %s27, 0
      %p68 = por %p66, %p67
      %p69 = scmp.ne.s32.totalorder %s58, %s61
      %p70 = scmp.eq.s32.totalorder %s32, 1
      %p71 = por %p69, %p70
      %p72 = scmp.ne.s32.totalorder %s61, %s62
      %p73 = scmp.eq.s32.totalorder %s32, 0
      %p74 = por %p72, %p73
      %p75 = scmp.ne.s32.totalorder %s61, %s62
      %p76 = scmp.eq.s32.totalorder %s33, 1
      %p77 = por %p75, %p76
      %p79 = scmp.ne.s32.totalorder %s62, %s78
      %p80 = scmp.eq.s32.totalorder %s33, 0
      %p81 = por %p79, %p80
      %s82 = ssub.s32 %s36, %s45
      %s83 = ssub.s32 %s35, %s49
      %s84 = sor.u32 %s82, %s83
      %p85 = scmp.eq.s32.totalorder %s84, 0
      %s87 = sadd.s32 %s86, 1
      %s88 = scalar_select %p85, %s86, %s87
      %p91 = pneg %p85
      %p92 = scmp.eq.s32.totalorder %s27, 1
      %p93 = por %p91, %p92
      %p94 = scmp.ne.s32.totalorder %s86, %s89
      %p95 = scmp.eq.s32.totalorder %s27, 0
      %p96 = por %p94, %p95
      %p97 = scmp.ne.s32.totalorder %s86, %s89
      %p98 = scmp.eq.s32.totalorder %s32, 1
      %p99 = por %p97, %p98
      %p100 = scmp.ne.s32.totalorder %s89, %s90
      %p101 = scmp.eq.s32.totalorder %s32, 0
      %p102 = por %p100, %p101
      %p103 = scmp.ne.s32.totalorder %s89, %s90
      %p104 = scmp.eq.s32.totalorder %s33, 1
      %p105 = por %p103, %p104
      %p107 = scmp.ne.s32.totalorder %s90, %s106
      %p108 = scmp.eq.s32.totalorder %s33, 0
      %p109 = por %p107, %p108
      %s111 = sadd.s32 %s110, 1
      %p114 = scmp.eq.s32.totalorder %s27, 1
      %p115 = scmp.ne.s32.totalorder %s110, %s112
      %p116 = scmp.eq.s32.totalorder %s27, 0
      %p117 = por %p115, %p116
      %p118 = scmp.ne.s32.totalorder %s110, %s112
      %p119 = scmp.eq.s32.totalorder %s32, 1
      %p120 = por %p118, %p119
      %p121 = scmp.ne.s32.totalorder %s112, %s113
      %p122 = scmp.eq.s32.totalorder %s32, 0
      %p123 = por %p121, %p122
      %p124 = scmp.ne.s32.totalorder %s112, %s113
      %p125 = scmp.eq.s32.totalorder %s33, 1
      %p126 = por %p124, %p125
      %p128 = scmp.ne.s32.totalorder %s113, %s127
      %p129 = scmp.eq.s32.totalorder %s33, 0
      %p130 = por %p128, %p129
      %s132 = sadd.s32 %s131, 1
      %p135 = scmp.eq.s32.totalorder %s27, 1
      %p136 = scmp.ne.s32.totalorder %s131, %s133
      %p137 = scmp.eq.s32.totalorder %s27, 0
      %p138 = por %p136, %p137
      %p139 = scmp.ne.s32.totalorder %s131, %s133
      %p140 = scmp.eq.s32.totalorder %s32, 1
      %p141 = por %p139, %p140
      %p142 = scmp.ne.s32.totalorder %s133, %s134
      %p143 = scmp.eq.s32.totalorder %s32, 0
      %p144 = por %p142, %p143
      %p145 = scmp.ne.s32.totalorder %s133, %s134
      %p146 = scmp.eq.s32.totalorder %s33, 1
      %p147 = por %p145, %p146
      %p149 = scmp.ne.s32.totalorder %s134, %s148
      %p150 = scmp.eq.s32.totalorder %s33, 0
      %p151 = por %p149, %p150
      %s152 = ssub.s32 %s34, %s53
      %s153 = ssub.s32 %s35, %s49
      %s154 = sor.u32 %s152, %s153
      %p155 = scmp.eq.s32.totalorder %s154, 0
      %s157 = sadd.s32 %s156, 1
      %s158 = scalar_select %p155, %s156, %s157
      %p161 = pneg %p155
      %p162 = scmp.eq.s32.totalorder %s27, 1
      %p163 = por %p161, %p162
      %p164 = scmp.ne.s32.totalorder %s156, %s159
      %p165 = scmp.eq.s32.totalorder %s27, 0
      %p166 = por %p164, %p165
      %p167 = scmp.ne.s32.totalorder %s156, %s159
      %p168 = scmp.eq.s32.totalorder %s32, 1
      %p169 = por %p167, %p168
      %p170 = scmp.ne.s32.totalorder %s159, %s160
      %p171 = scmp.eq.s32.totalorder %s32, 0
      %p172 = por %p170, %p171
      %p173 = scmp.ne.s32.totalorder %s159, %s160
      %p174 = scmp.eq.s32.totalorder %s33, 1
      %p175 = por %p173, %p174
      %p177 = scmp.ne.s32.totalorder %s160, %s176
      %p178 = scmp.eq.s32.totalorder %s33, 0
      %p179 = por %p177, %p178
      %p180 = scmp.le.s32.totalorder 1, %s27
      %p181 = scmp.lt.s32.totalorder %s27, 3
      %p182 = pnand %p180, %p181
      %p183 = pneg %p182
      // Predicated region
      $region9: #{conv_bn_act.2} parent=5 // pred_check
        _
      $region10: #{conv_bn_act.2} parent=5 // pred_check_branch
        %185 = sbr.rel (%p182) target = $region12
      $region11: #{conv_bn_act.2} parent=5 // pred_region
        %s186 = ssub.s32 %s27, 1
        // Predicated region
        $region13: #{conv_bn_act.2} parent=11 // pred_check
          %p187 = pneg %p102
        $region14: #{conv_bn_act.2} parent=11 // pred_check_branch
          %189 = sbr.rel (%p187) target = $region16
        $region15: #{conv_bn_act.2} parent=11 // pred_region
          %s190 = smul.u32 4, %s39
          %s191 = ssub.s32 4, %s190
          %s192 = smul.u32 4, %s191
          %s193 = ssub.s32 1, %s38
          %s194 = smul.u32 %s192, %s193
          %p195 = scmp.lt.s32.totalorder %s190, 3
          %s196 = scalar_select %p195, %s190, 3
          %p197 = scmp.lt.s32.totalorder %s38, 0
          %s198 = scalar_select %p197, %s38, 0
          %s199 = sadd.s32 %s198, %s196
          %s200 = smul.addr %s199, 4
          %s201 = scalar_lea.vmem %s2, %s200
          %s202 = smul.u32 4, %s39
          %s203 = ssub.s32 4, %s202
          %s204 = smul.u32 4, %s203
          %s205 = ssub.s32 1, %s38
          %s206 = smul.u32 %s204, %s205
        $region16: #{conv_bn_act.2} parent=11 // pred_fallthru
          _
        // Predicated region
        $region17: #{conv_bn_act.2} parent=11 // pred_check
          %p207 = pneg %p123
        $region18: #{conv_bn_act.2} parent=11 // pred_check_branch
          %209 = sbr.rel (%p207) target = $region20
        $region19: #{conv_bn_act.2} parent=11 // pred_region
          _
        $region20: #{conv_bn_act.2} parent=11 // pred_fallthru
          _
        // Predicated region
        $region21: #{conv_bn_act.2} parent=11 // pred_check
          %p210 = pneg %p144
        $region22: #{conv_bn_act.2} parent=11 // pred_check_branch
          %212 = sbr.rel (%p210) target = $region24
        $region23: #{conv_bn_act.2} parent=11 // pred_region
          _
        $region24: #{conv_bn_act.2} parent=11 // pred_fallthru
          _
      $region12: #{conv_bn_act.2} parent=5 // pred_fallthru
        _
      %p213 = scmp.lt.s32.totalorder %s27, 2
      // Predicated region
      $region25: #{conv_bn_act.2} parent=5 // pred_check
        %p214 = pneg %p213
      $region26: #{conv_bn_act.2} parent=5 // pred_check_branch
        %216 = sbr.rel (%p214) target = $region28
      $region27: #{conv_bn_act.2} parent=5 // pred_region
        // Predicated region
        $region29: #{conv_bn_act.2} parent=27 // pred_check
          %p217 = pneg %p68
        $region30: #{conv_bn_act.2} parent=27 // pred_check_branch
          %219 = sbr.rel (%p217) target = $region32
        $region31: #{conv_bn_act.2} parent=27 // pred_region
          %s220 = smul.u32 128, %s34
          %s221 = ssub.s32 1, %s36
          %s222 = smul.u32 512, %s221
          %p223 = scmp.lt.s32.totalorder %s220, 255
          %s224 = scalar_select %p223, %s220, 255
          %p225 = scmp.lt.s32.totalorder %s36, 0
          %s226 = scalar_select %p225, %s36, 0
          %s227 = sadd.s32 %s226, %s224
          %s228 = smul.addr %s227, 4
          %s229 = scalar_lea.vmem %s0, %s228
          %s230 = smul.u32 128, %s34
          %s231 = ssub.s32 1, %s36
          %s232 = smul.u32 512, %s231
        $region32: #{conv_bn_act.2} parent=27 // pred_fallthru
          _
      $region28: #{conv_bn_act.2} parent=5 // pred_fallthru
        _
      %p233 = scmp.le.s32.totalorder 1, %s27
      %p234 = scmp.lt.s32.totalorder %s27, 3
      %p235 = pnand %p233, %p234
      %p236 = pneg %p235
      // Predicated region
      $region33: #{conv_bn_act.2} parent=5 // pred_check
        _
      $region34: #{conv_bn_act.2} parent=5 // pred_check_branch
        %238 = sbr.rel (%p235) target = $region36
      $region35: #{conv_bn_act.2} parent=5 // pred_region
        #allocation25 [shape = 'u8[262144]{0}', space=vmem, size = 0x40000, dematerialized = true, scoped, tag = 'FusionAdapter Buffer %fusion.1 = bf16[2048,32]{1,0:T(8,128)(2,1)} fusion(%param_0.39, %param_1.54), kind=kLoop, calls=%fused_computation.1.clone, metadata={op_name="jit(conv_bn_act)/jit(_pad)/pad" stack_frame_id=23}']
        #allocation26 [shape = 'u8[8192]{0}', space=vmem, size = 0x2000, dematerialized = true, scoped, tag = 'FusionAdapter Buffer %fusion.10 = bf16[32,128]{1,0:T(8,128)(2,1)} fusion(%param_2.38, %param_1.54), kind=kLoop, calls=%fused_computation.19.clone, metadata={op_name="jit(conv_bn_act)/jit(_pad)/pad" stack_frame_id=25}']
        #allocation27 [shape = 'u8[512]{0}', space=vmem, size = 0x400, dematerialized = true, scoped, tag = 'FusionAdapter Buffer %fusion.12 = f32[1,128]{1,0:T(1,128)} fusion(%param_5.1, %param_4.12), kind=kLoop, calls=%fused_computation.21.clone, metadata={op_name="jit(conv_bn_act)/reshape" stack_frame_id=29}']
        #allocation28 [shape = 'u8[512]{0}', space=vmem, size = 0x400, dematerialized = true, scoped, tag = 'FusionAdapter Buffer %fusion.11 = f32[1,128]{1,0:T(1,128)} fusion(%param_3.36, %param_4.12), kind=kLoop, calls=%fused_computation.20.clone, metadata={op_name="jit(conv_bn_act)/reshape" stack_frame_id=30}']
        %s239 = ssub.s32 %s27, 1
        %s240 = smul.u32 128, %s37
        %s241 = ssub.s32 1, %s39
        %s242 = smul.u32 512, %s241
        %p243 = scmp.lt.s32.totalorder %s240, 255
        %s244 = scalar_select %p243, %s240, 255
        %p245 = scmp.lt.s32.totalorder %s39, 0
        %s246 = scalar_select %p245, %s39, 0
        %s247 = sadd.s32 %s246, %s244
        %s248 = smul.addr %s247, 4
        %s249 = scalar_lea.vmem %s0, %s248
        %p250 = pneg %p74
        %p251 = pneg %p71
        %s252 = smul.u32 4, %s39
        %s253 = ssub.s32 4, %s252
        %s254 = smul.u32 4, %s253
        %s255 = ssub.s32 1, %s38
        %s256 = smul.u32 %s254, %s255
        %p257 = scmp.lt.s32.totalorder %s252, 3
        %s258 = scalar_select %p257, %s252, 3
        %p259 = scmp.lt.s32.totalorder %s38, 0
        %s260 = scalar_select %p259, %s38, 0
        %s261 = sadd.s32 %s260, %s258
        %s262 = smul.addr %s261, 4
        %s263 = scalar_lea.vmem %s2, %s262
        %p264 = pneg %p102
        %p265 = pneg %p99
        %p266 = pneg %p123
        %p267 = pneg %p120
        %p268 = pneg %p144
        %p269 = pneg %p141
        %p270 = pneg %p172
        %p271 = pneg %p169
        %s272 = sand.u32 %s159, 1
        %s273 = scalar_lea.sflag [#allocation24], %s272
        %s274 = sand.u32 %s159, 1
        %s275 = smul.addr %s274, 512
        %s276 = scalar_lea.vmem [#allocation23], %s275
        %s277 = smul.u32 128, %s37
        %s278 = ssub.s32 1, %s39
        %s279 = smul.u32 512, %s278
        %p280 = scmp.lt.s32.totalorder %s277, 255
        %s281 = scalar_select %p280, %s277, 255
        %p282 = scmp.lt.s32.totalorder %s39, 0
        %s283 = scalar_select %p282, %s39, 0
        %s284 = sadd.s32 %s283, %s281
        %s285 = smul.addr %s284, 4
        %s286 = scalar_lea.vmem %s0, %s285
        %s287 = smul.u32 128, %s37
        %s288 = ssub.s32 1, %s39
        %s289 = smul.u32 512, %s288
        %s290 = smul.u32 4, %s39
        %s291 = ssub.s32 4, %s290
        %s292 = smul.u32 4, %s291
        %s293 = ssub.s32 1, %s38
        %s294 = smul.u32 %s292, %s293
        %p295 = scmp.lt.s32.totalorder %s290, 3
        %s296 = scalar_select %p295, %s290, 3
        %p297 = scmp.lt.s32.totalorder %s38, 0
        %s298 = scalar_select %p297, %s38, 0
        %s299 = sadd.s32 %s298, %s296
        %s300 = smul.addr %s299, 4
        %s301 = scalar_lea.vmem %s2, %s300
        %s302 = smul.u32 4, %s39
        %s303 = ssub.s32 4, %s302
        %s304 = smul.u32 4, %s303
        %s305 = ssub.s32 1, %s38
        %s306 = smul.u32 %s304, %s305
        %s307 = smul.u32 128, %s37
        %s308 = ssub.s32 0, %s39
        %p309 = scmp.lt.s32.totalorder %s308, 0
        %s310 = scalar_select %p309, 0, 255
        %s311 = sshrl.u32 %s310, 1
        %s312 = sor.u32 %s310, %s311
        %s313 = sand.u32 %s312, 85
        %s314 = sshrl.u32 %s313, 1
        %s315 = sor.u32 %s313, %s314
        %s316 = sand.u32 51, %s315
        %s317 = sshrl.u32 %s316, 2
        %s318 = sor.u32 %s316, %s317
        %s319 = sand.u32 15, %s318
        %v320 = vld [vmem:[%s286] sm:%s319]
        %v321 = vunpack.c.l.bf16 %v320
        %v322 = vunpack.c.h.bf16 %v320
        %s323 = ssub.s32 0, %s39
        %v324 = vstv %s323
        %vm325 = vcmp.lt.s32.totalorder %v324, 0
        %v326 = vsel %vm325, %v12, %v321
        %s327 = smul.addr %s39, 128
        %v328 = vlaneseq
        %v329 = vand.u32 %v328, 127
        %v330 = vstv %s327
        %v331 = vadd.s32 %v329, %v330
        %vm332 = vcmp.lt.s32.totalorder %v331, 27
        %v333 = vsel %vm332, %v326, %v12
        %v334 = vpack.c.bf16 0.0, %v333
        %s336 = ssub.s32 16, 1
        %337 = vst [vmem:[#allocation25] sm:%s336] %v334
        %s338 = scalar_lea.vmem %s286, 4
        %s339 = ssub.s32 0, %s39
        %p340 = scmp.lt.s32.totalorder %s339, 0
        %s341 = scalar_select %p340, 0, 255
        %s342 = sshrl.u32 %s341, 1
        %s343 = sor.u32 %s341, %s342
        %s344 = sand.u32 %s343, 85
        %s345 = sshrl.u32 %s344, 1
        %s346 = sor.u32 %s344, %s345
        %s347 = sand.u32 51, %s346
        %s348 = sshrl.u32 %s347, 2
        %s349 = sor.u32 %s347, %s348
        %s350 = sand.u32 15, %s349
        %v351 = vld [vmem:[%s338] sm:%s350]
        %v352 = vunpack.c.l.bf16 %v351
        %v353 = vunpack.c.h.bf16 %v351
        %s354 = ssub.s32 0, %s39
        %v355 = vstv %s354
        %vm356 = vcmp.lt.s32.totalorder %v355, 0
        %v357 = vsel %vm356, %v12, %v352
        %s358 = smul.addr %s39, 128
        %v359 = vlaneseq
        %v360 = vand.u32 %v359, 127
        %v361 = vstv %s358
        %v362 = vadd.s32 %v360, %v361
        %vm363 = vcmp.lt.s32.totalorder %v362, 27
        %v364 = vsel %vm363, %v357, %v12
        %s365 = scalar_lea.vmem [#allocation25], 4
        %v366 = vpack.c.bf16 0.0, %v364
        %s368 = ssub.s32 16, 1
        %369 = vst [vmem:[%s365] sm:%s368] %v366
        %s370 = scalar_lea.vmem %s286, 8
        %s371 = ssub.s32 0, %s39
        %p372 = scmp.lt.s32.totalorder %s371, 0
        %s373 = scalar_select %p372, 0, 255
        %s374 = sshrl.u32 %s373, 1
        %s375 = sor.u32 %s373, %s374
        %s376 = sand.u32 %s375, 85
        %s377 = sshrl.u32 %s376, 1
        %s378 = sor.u32 %s376, %s377
        %s379 = sand.u32 51, %s378
        %s380 = sshrl.u32 %s379, 2
        %s381 = sor.u32 %s379, %s380
        %s382 = sand.u32 15, %s381
        %v383 = vld [vmem:[%s370] sm:%s382]
        %v384 = vunpack.c.l.bf16 %v383
        %v385 = vunpack.c.h.bf16 %v383
        %s386 = ssub.s32 0, %s39
        %v387 = vstv %s386
        %vm388 = vcmp.lt.s32.totalorder %v387, 0
        %v389 = vsel %vm388, %v12, %v384
        %s390 = smul.addr %s39, 128
        %v391 = vlaneseq
        %v392 = vand.u32 %v391, 127
        %v393 = vstv %s390
        %v394 = vadd.s32 %v392, %v393
        %vm395 = vcmp.lt.s32.totalorder %v394, 27
        %v396 = vsel %vm395, %v389, %v12
        %s397 = scalar_lea.vmem [#allocation25], 8
        %v398 = vpack.c.bf16 0.0, %v396
        %s400 = ssub.s32 16, 1
        %401 = vst [vmem:[%s397] sm:%s400] %v398
        %s402 = scalar_lea.vmem %s286, 12
        %s403 = ssub.s32 0, %s39
        %p404 = scmp.lt.s32.totalorder %s403, 0
        %s405 = scalar_select %p404, 0, 255
        %s406 = sshrl.u32 %s405, 1
        %s407 = sor.u32 %s405, %s406
        %s408 = sand.u32 %s407, 85
        %s409 = sshrl.u32 %s408, 1
        %s410 = sor.u32 %s408, %s409
        %s411 = sand.u32 51, %s410
        %s412 = sshrl.u32 %s411, 2
        %s413 = sor.u32 %s411, %s412
        %s414 = sand.u32 15, %s413
        %v415 = vld [vmem:[%s402] sm:%s414]
        %v416 = vunpack.c.l.bf16 %v415
        %v417 = vunpack.c.h.bf16 %v415
        %s418 = ssub.s32 0, %s39
        %v419 = vstv %s418
        %vm420 = vcmp.lt.s32.totalorder %v419, 0
        %v421 = vsel %vm420, %v12, %v416
        %s422 = smul.addr %s39, 128
        %v423 = vlaneseq
        %v424 = vand.u32 %v423, 127
        %v425 = vstv %s422
        %v426 = vadd.s32 %v424, %v425
        %vm427 = vcmp.lt.s32.totalorder %v426, 27
        %v428 = vsel %vm427, %v421, %v12
        %s429 = scalar_lea.vmem [#allocation25], 12
        %v430 = vpack.c.bf16 0.0, %v428
        %s432 = ssub.s32 16, 1
        %433 = vst [vmem:[%s429] sm:%s432] %v430
        %s434 = scalar_lea.vmem %s286, 16
        %s435 = ssub.s32 0, %s39
        %p436 = scmp.lt.s32.totalorder %s435, 0
        %s437 = scalar_select %p436, 0, 255
        %s438 = sshrl.u32 %s437, 1
        %s439 = sor.u32 %s437, %s438
        %s440 = sand.u32 %s439, 85
        %s441 = sshrl.u32 %s440, 1
        %s442 = sor.u32 %s440, %s441
        %s443 = sand.u32 51, %s442
        %s444 = sshrl.u32 %s443, 2
        %s445 = sor.u32 %s443, %s444
        %s446 = sand.u32 15, %s445
        %v447 = vld [vmem:[%s434] sm:%s446]
        %v448 = vunpack.c.l.bf16 %v447
        %v449 = vunpack.c.h.bf16 %v447
        %s450 = ssub.s32 0, %s39
        %v451 = vstv %s450
        %vm452 = vcmp.lt.s32.totalorder %v451, 0
        %v453 = vsel %vm452, %v12, %v448
        %s454 = smul.addr %s39, 128
        %v455 = vlaneseq
        %v456 = vand.u32 %v455, 127
        %v457 = vstv %s454
        %v458 = vadd.s32 %v456, %v457
        %vm459 = vcmp.lt.s32.totalorder %v458, 27
        %v460 = vsel %vm459, %v453, %v12
        %s461 = scalar_lea.vmem [#allocation25], 16
        %v462 = vpack.c.bf16 0.0, %v460
        %s464 = ssub.s32 16, 1
        %465 = vst [vmem:[%s461] sm:%s464] %v462
        %s466 = scalar_lea.vmem %s286, 20
        %s467 = ssub.s32 0, %s39
        %p468 = scmp.lt.s32.totalorder %s467, 0
        %s469 = scalar_select %p468, 0, 255
        %s470 = sshrl.u32 %s469, 1
        %s471 = sor.u32 %s469, %s470
        %s472 = sand.u32 %s471, 85
        %s473 = sshrl.u32 %s472, 1
        %s474 = sor.u32 %s472, %s473
        %s475 = sand.u32 51, %s474
        %s476 = sshrl.u32 %s475, 2
        %s477 = sor.u32 %s475, %s476
        %s478 = sand.u32 15, %s477
        %v479 = vld [vmem:[%s466] sm:%s478]
        %v480 = vunpack.c.l.bf16 %v479
        %v481 = vunpack.c.h.bf16 %v479
        %s482 = ssub.s32 0, %s39
        %v483 = vstv %s482
        %vm484 = vcmp.lt.s32.totalorder %v483, 0
        %v485 = vsel %vm484, %v12, %v480
        %s486 = smul.addr %s39, 128
        %v487 = vlaneseq
        %v488 = vand.u32 %v487, 127
        %v489 = vstv %s486
        %v490 = vadd.s32 %v488, %v489
        %vm491 = vcmp.lt.s32.totalorder %v490, 27
        %v492 = vsel %vm491, %v485, %v12
        %s493 = scalar_lea.vmem [#allocation25], 20
        %v494 = vpack.c.bf16 0.0, %v492
        %s496 = ssub.s32 16, 1
        %497 = vst [vmem:[%s493] sm:%s496] %v494
        %s498 = scalar_lea.vmem %s286, 24
        %s499 = ssub.s32 0, %s39
        %p500 = scmp.lt.s32.totalorder %s499, 0
        %s501 = scalar_select %p500, 0, 255
        %s502 = sshrl.u32 %s501, 1
        %s503 = sor.u32 %s501, %s502
        %s504 = sand.u32 %s503, 85
        %s505 = sshrl.u32 %s504, 1
        %s506 = sor.u32 %s504, %s505
        %s507 = sand.u32 51, %s506
        %s508 = sshrl.u32 %s507, 2
        %s509 = sor.u32 %s507, %s508
        %s510 = sand.u32 15, %s509
        %v511 = vld [vmem:[%s498] sm:%s510]
        %v512 = vunpack.c.l.bf16 %v511
        %v513 = vunpack.c.h.bf16 %v511
        %s514 = ssub.s32 0, %s39
        %v515 = vstv %s514
        %vm516 = vcmp.lt.s32.totalorder %v515, 0
        %v517 = vsel %vm516, %v12, %v512
        %s518 = smul.addr %s39, 128
        %v519 = vlaneseq
        %v520 = vand.u32 %v519, 127
        %v521 = vstv %s518
        %v522 = vadd.s32 %v520, %v521
        %vm523 = vcmp.lt.s32.totalorder %v522, 27
        %v524 = vsel %vm523, %v517, %v12
        %s525 = scalar_lea.vmem [#allocation25], 24
        %v526 = vpack.c.bf16 0.0, %v524
        %s528 = ssub.s32 16, 1
        %529 = vst [vmem:[%s525] sm:%s528] %v526
        %s530 = scalar_lea.vmem %s286, 28
        %s531 = ssub.s32 0, %s39
        %p532 = scmp.lt.s32.totalorder %s531, 0
        %s533 = scalar_select %p532, 0, 255
        %s534 = sshrl.u32 %s533, 1
        %s535 = sor.u32 %s533, %s534
        %s536 = sand.u32 %s535, 85
        %s537 = sshrl.u32 %s536, 1
        %s538 = sor.u32 %s536, %s537
        %s539 = sand.u32 51, %s538
        %s540 = sshrl.u32 %s539, 2
        %s541 = sor.u32 %s539, %s540
        %s542 = sand.u32 15, %s541
        %v543 = vld [vmem:[%s530] sm:%s542]
        %v544 = vunpack.c.l.bf16 %v543
        %v545 = vunpack.c.h.bf16 %v543
        %s546 = ssub.s32 0, %s39
        %v547 = vstv %s546
        %vm548 = vcmp.lt.s32.totalorder %v547, 0
        %v549 = vsel %vm548, %v12, %v544
        %s550 = smul.addr %s39, 128
        %v551 = vlaneseq
        %v552 = vand.u32 %v551, 127
        %v553 = vstv %s550
        %v554 = vadd.s32 %v552, %v553
        %vm555 = vcmp.lt.s32.totalorder %v554, 27
        %v556 = vsel %vm555, %v549, %v12
        %s557 = scalar_lea.vmem [#allocation25], 28
        %v558 = vpack.c.bf16 0.0, %v556
        %s560 = ssub.s32 16, 1
        %561 = vst [vmem:[%s557] sm:%s560] %v558
        %s562 = scalar_lea.vmem %s286, 32
        %s563 = ssub.s32 0, %s39
        %p564 = scmp.lt.s32.totalorder %s563, 0
        %s565 = scalar_select %p564, 0, 255
        %s566 = sshrl.u32 %s565, 1
        %s567 = sor.u32 %s565, %s566
        %s568 = sand.u32 %s567, 85
        %s569 = sshrl.u32 %s568, 1
        %s570 = sor.u32 %s568, %s569
        %s571 = sand.u32 51, %s570
        %s572 = sshrl.u32 %s571, 2
        %s573 = sor.u32 %s571, %s572
        %s574 = sand.u32 15, %s573
        %v575 = vld [vmem:[%s562] sm:%s574]
        %v576 = vunpack.c.l.bf16 %v575
        %v577 = vunpack.c.h.bf16 %v575
        %s578 = ssub.s32 0, %s39
        %v579 = vstv %s578
        %vm580 = vcmp.lt.s32.totalorder %v579, 0
        %v581 = vsel %vm580, %v12, %v576
        %s582 = smul.addr %s39, 128
        %v583 = vlaneseq
        %v584 = vand.u32 %v583, 127
        %v585 = vstv %s582
        %v586 = vadd.s32 %v584, %v585
        %vm587 = vcmp.lt.s32.totalorder %v586, 27
        %v588 = vsel %vm587, %v581, %v12
        %s589 = scalar_lea.vmem [#allocation25], 32
        %v590 = vpack.c.bf16 0.0, %v588
        %s592 = ssub.s32 16, 1
        %593 = vst [vmem:[%s589] sm:%s592] %v590
        %s594 = scalar_lea.vmem %s286, 36
        %s595 = ssub.s32 0, %s39
        %p596 = scmp.lt.s32.totalorder %s595, 0
        %s597 = scalar_select %p596, 0, 255
        %s598 = sshrl.u32 %s597, 1
        %s599 = sor.u32 %s597, %s598
        %s600 = sand.u32 %s599, 85
        %s601 = sshrl.u32 %s600, 1
        %s602 = sor.u32 %s600, %s601
        %s603 = sand.u32 51, %s602
        %s604 = sshrl.u32 %s603, 2
        %s605 = sor.u32 %s603, %s604
        %s606 = sand.u32 15, %s605
        %v607 = vld [vmem:[%s594] sm:%s606]
        %v608 = vunpack.c.l.bf16 %v607
        %v609 = vunpack.c.h.bf16 %v607
        %s610 = ssub.s32 0, %s39
        %v611 = vstv %s610
        %vm612 = vcmp.lt.s32.totalorder %v611, 0
        %v613 = vsel %vm612, %v12, %v608
        %s614 = smul.addr %s39, 128
        %v615 = vlaneseq
        %v616 = vand.u32 %v615, 127
        %v617 = vstv %s614
        %v618 = vadd.s32 %v616, %v617
        %vm619 = vcmp.lt.s32.totalorder %v618, 27
        %v620 = vsel %vm619, %v613, %v12
        %s621 = scalar_lea.vmem [#allocation25], 36
        %v622 = vpack.c.bf16 0.0, %v620
        %s624 = ssub.s32 16, 1
        %625 = vst [vmem:[%s621] sm:%s624] %v622
        %s626 = scalar_lea.vmem %s286, 40
        %s627 = ssub.s32 0, %s39
        %p628 = scmp.lt.s32.totalorder %s627, 0
        %s629 = scalar_select %p628, 0, 255
        %s630 = sshrl.u32 %s629, 1
        %s631 = sor.u32 %s629, %s630
        %s632 = sand.u32 %s631, 85
        %s633 = sshrl.u32 %s632, 1
        %s634 = sor.u32 %s632, %s633
        %s635 = sand.u32 51, %s634
        %s636 = sshrl.u32 %s635, 2
        %s637 = sor.u32 %s635, %s636
        %s638 = sand.u32 15, %s637
        %v639 = vld [vmem:[%s626] sm:%s638]
        %v640 = vunpack.c.l.bf16 %v639
        %v641 = vunpack.c.h.bf16 %v639
        %s642 = ssub.s32 0, %s39
        %v643 = vstv %s642
        %vm644 = vcmp.lt.s32.totalorder %v643, 0
        %v645 = vsel %vm644, %v12, %v640
        %s646 = smul.addr %s39, 128
        %v647 = vlaneseq
        %v648 = vand.u32 %v647, 127
        %v649 = vstv %s646
        %v650 = vadd.s32 %v648, %v649
        %vm651 = vcmp.lt.s32.totalorder %v650, 27
        %v652 = vsel %vm651, %v645, %v12
        %s653 = scalar_lea.vmem [#allocation25], 40
        %v654 = vpack.c.bf16 0.0, %v652
        %s656 = ssub.s32 16, 1
        %657 = vst [vmem:[%s653] sm:%s656] %v654
        %s658 = scalar_lea.vmem %s286, 44
        %s659 = ssub.s32 0, %s39
        %p660 = scmp.lt.s32.totalorder %s659, 0
        %s661 = scalar_select %p660, 0, 255
        %s662 = sshrl.u32 %s661, 1
        %s663 = sor.u32 %s661, %s662
        %s664 = sand.u32 %s663, 85
        %s665 = sshrl.u32 %s664, 1
        %s666 = sor.u32 %s664, %s665
        %s667 = sand.u32 51, %s666
        %s668 = sshrl.u32 %s667, 2
        %s669 = sor.u32 %s667, %s668
        %s670 = sand.u32 15, %s669
        %v671 = vld [vmem:[%s658] sm:%s670]
        %v672 = vunpack.c.l.bf16 %v671
        %v673 = vunpack.c.h.bf16 %v671
        %s674 = ssub.s32 0, %s39
        %v675 = vstv %s674
        %vm676 = vcmp.lt.s32.totalorder %v675, 0
        %v677 = vsel %vm676, %v12, %v672
        %s678 = smul.addr %s39, 128
        %v679 = vlaneseq
        %v680 = vand.u32 %v679, 127
        %v681 = vstv %s678
        %v682 = vadd.s32 %v680, %v681
        %vm683 = vcmp.lt.s32.totalorder %v682, 27
        %v684 = vsel %vm683, %v677, %v12
        %s685 = scalar_lea.vmem [#allocation25], 44
        %v686 = vpack.c.bf16 0.0, %v684
        %s688 = ssub.s32 16, 1
        %689 = vst [vmem:[%s685] sm:%s688] %v686
        %s690 = scalar_lea.vmem %s286, 48
        %s691 = ssub.s32 0, %s39
        %p692 = scmp.lt.s32.totalorder %s691, 0
        %s693 = scalar_select %p692, 0, 255
        %s694 = sshrl.u32 %s693, 1
        %s695 = sor.u32 %s693, %s694
        %s696 = sand.u32 %s695, 85
        %s697 = sshrl.u32 %s696, 1
        %s698 = sor.u32 %s696, %s697
        %s699 = sand.u32 51, %s698
        %s700 = sshrl.u32 %s699, 2
        %s701 = sor.u32 %s699, %s700
        %s702 = sand.u32 15, %s701
        %v703 = vld [vmem:[%s690] sm:%s702]
        %v704 = vunpack.c.l.bf16 %v703
        %v705 = vunpack.c.h.bf16 %v703
        %s706 = ssub.s32 0, %s39
        %v707 = vstv %s706
        %vm708 = vcmp.lt.s32.totalorder %v707, 0
        %v709 = vsel %vm708, %v12, %v704
        %s710 = smul.addr %s39, 128
        %v711 = vlaneseq
        %v712 = vand.u32 %v711, 127
        %v713 = vstv %s710
        %v714 = vadd.s32 %v712, %v713
        %vm715 = vcmp.lt.s32.totalorder %v714, 27
        %v716 = vsel %vm715, %v709, %v12
        %s717 = scalar_lea.vmem [#allocation25], 48
        %v718 = vpack.c.bf16 0.0, %v716
        %s720 = ssub.s32 16, 1
        %721 = vst [vmem:[%s717] sm:%s720] %v718
        %s722 = scalar_lea.vmem %s286, 52
        %s723 = ssub.s32 0, %s39
        %p724 = scmp.lt.s32.totalorder %s723, 0
        %s725 = scalar_select %p724, 0, 255
        %s726 = sshrl.u32 %s725, 1
        %s727 = sor.u32 %s725, %s726
        %s728 = sand.u32 %s727, 85
        %s729 = sshrl.u32 %s728, 1
        %s730 = sor.u32 %s728, %s729
        %s731 = sand.u32 51, %s730
        %s732 = sshrl.u32 %s731, 2
        %s733 = sor.u32 %s731, %s732
        %s734 = sand.u32 15, %s733
        %v735 = vld [vmem:[%s722] sm:%s734]
        %v736 = vunpack.c.l.bf16 %v735
        %v737 = vunpack.c.h.bf16 %v735
        %s738 = ssub.s32 0, %s39
        %v739 = vstv %s738
        %vm740 = vcmp.lt.s32.totalorder %v739, 0
        %v741 = vsel %vm740, %v12, %v736
        %s742 = smul.addr %s39, 128
        %v743 = vlaneseq
        %v744 = vand.u32 %v743, 127
        %v745 = vstv %s742
        %v746 = vadd.s32 %v744, %v745
        %vm747 = vcmp.lt.s32.totalorder %v746, 27
        %v748 = vsel %vm747, %v741, %v12
        %s749 = scalar_lea.vmem [#allocation25], 52
        %v750 = vpack.c.bf16 0.0, %v748
        %s752 = ssub.s32 16, 1
        %753 = vst [vmem:[%s749] sm:%s752] %v750
        %s754 = scalar_lea.vmem %s286, 56
        %s755 = ssub.s32 0, %s39
        %p756 = scmp.lt.s32.totalorder %s755, 0
        %s757 = scalar_select %p756, 0, 255
        %s758 = sshrl.u32 %s757, 1
        %s759 = sor.u32 %s757, %s758
        %s760 = sand.u32 %s759, 85
        %s761 = sshrl.u32 %s760, 1
        %s762 = sor.u32 %s760, %s761
        %s763 = sand.u32 51, %s762
        %s764 = sshrl.u32 %s763, 2
        %s765 = sor.u32 %s763, %s764
        %s766 = sand.u32 15, %s765
        %v767 = vld [vmem:[%s754] sm:%s766]
        %v768 = vunpack.c.l.bf16 %v767
        %v769 = vunpack.c.h.bf16 %v767
        %s770 = ssub.s32 0, %s39
        %v771 = vstv %s770
        %vm772 = vcmp.lt.s32.totalorder %v771, 0
        %v773 = vsel %vm772, %v12, %v768
        %s774 = smul.addr %s39, 128
        %v775 = vlaneseq
        %v776 = vand.u32 %v775, 127
        %v777 = vstv %s774
        %v778 = vadd.s32 %v776, %v777
        %vm779 = vcmp.lt.s32.totalorder %v778, 27
        %v780 = vsel %vm779, %v773, %v12
        %s781 = scalar_lea.vmem [#allocation25], 56
        %v782 = vpack.c.bf16 0.0, %v780
        %s784 = ssub.s32 16, 1
        %785 = vst [vmem:[%s781] sm:%s784] %v782
        %s786 = scalar_lea.vmem %s286, 60
        %s787 = ssub.s32 0, %s39
        %p788 = scmp.lt.s32.totalorder %s787, 0
        %s789 = scalar_select %p788, 0, 255
        %s790 = sshrl.u32 %s789, 1
        %s791 = sor.u32 %s789, %s790
        %s792 = sand.u32 %s791, 85
        %s793 = sshrl.u32 %s792, 1
        %s794 = sor.u32 %s792, %s793
        %s795 = sand.u32 51, %s794
        %s796 = sshrl.u32 %s795, 2
        %s797 = sor.u32 %s795, %s796
        %s798 = sand.u32 15, %s797
        %v799 = vld [vmem:[%s786] sm:%s798]
        %v800 = vunpack.c.l.bf16 %v799
        %v801 = vunpack.c.h.bf16 %v799
        %s802 = ssub.s32 0, %s39
        %v803 = vstv %s802
        %vm804 = vcmp.lt.s32.totalorder %v803, 0
        %v805 = vsel %vm804, %v12, %v800
        %s806 = smul.addr %s39, 128
        %v807 = vlaneseq
        %v808 = vand.u32 %v807, 127
        %v809 = vstv %s806
        %v810 = vadd.s32 %v808, %v809
        %vm811 = vcmp.lt.s32.totalorder %v810, 27
        %v812 = vsel %vm811, %v805, %v12
        %s813 = scalar_lea.vmem [#allocation25], 60
        %v814 = vpack.c.bf16 0.0, %v812
        %s816 = ssub.s32 16, 1
        %817 = vst [vmem:[%s813] sm:%s816] %v814
        %s818 = scalar_lea.vmem %s286, 64
        %s819 = ssub.s32 0, %s39
        %p820 = scmp.lt.s32.totalorder %s819, 0
        %s821 = scalar_select %p820, 0, 255
        %s822 = sshrl.u32 %s821, 1
        %s823 = sor.u32 %s821, %s822
        %s824 = sand.u32 %s823, 85
        %s825 = sshrl.u32 %s824, 1
        %s826 = sor.u32 %s824, %s825
        %s827 = sand.u32 51, %s826
        %s828 = sshrl.u32 %s827, 2
        %s829 = sor.u32 %s827, %s828
        %s830 = sand.u32 15, %s829
        %v831 = vld [vmem:[%s818] sm:%s830]
        %v832 = vunpack.c.l.bf16 %v831
        %v833 = vunpack.c.h.bf16 %v831
        %s834 = ssub.s32 0, %s39
        %v835 = vstv %s834
        %vm836 = vcmp.lt.s32.totalorder %v835, 0
        %v837 = vsel %vm836, %v12, %v832
        %s838 = smul.addr %s39, 128
        %v839 = vlaneseq
        %v840 = vand.u32 %v839, 127
        %v841 = vstv %s838
        %v842 = vadd.s32 %v840, %v841
        %vm843 = vcmp.lt.s32.totalorder %v842, 27
        %v844 = vsel %vm843, %v837, %v12
        %s845 = scalar_lea.vmem [#allocation25], 64
        %v846 = vpack.c.bf16 0.0, %v844
        %s848 = ssub.s32 16, 1
        %849 = vst [vmem:[%s845] sm:%s848] %v846
        %s850 = scalar_lea.vmem %s286, 68
        %s851 = ssub.s32 0, %s39
        %p852 = scmp.lt.s32.totalorder %s851, 0
        %s853 = scalar_select %p852, 0, 255
        %s854 = sshrl.u32 %s853, 1
        %s855 = sor.u32 %s853, %s854
        %s856 = sand.u32 %s855, 85
        %s857 = sshrl.u32 %s856, 1
        %s858 = sor.u32 %s856, %s857
        %s859 = sand.u32 51, %s858
        %s860 = sshrl.u32 %s859, 2
        %s861 = sor.u32 %s859, %s860
        %s862 = sand.u32 15, %s861
        %v863 = vld [vmem:[%s850] sm:%s862]
        %v864 = vunpack.c.l.bf16 %v863
        %v865 = vunpack.c.h.bf16 %v863
        %s866 = ssub.s32 0, %s39
        %v867 = vstv %s866
        %vm868 = vcmp.lt.s32.totalorder %v867, 0
        %v869 = vsel %vm868, %v12, %v864
        %s870 = smul.addr %s39, 128
        %v871 = vlaneseq
        %v872 = vand.u32 %v871, 127
        %v873 = vstv %s870
        %v874 = vadd.s32 %v872, %v873
        %vm875 = vcmp.lt.s32.totalorder %v874, 27
        %v876 = vsel %vm875, %v869, %v12
        %s877 = scalar_lea.vmem [#allocation25], 68
        %v878 = vpack.c.bf16 0.0, %v876
        %s880 = ssub.s32 16, 1
        %881 = vst [vmem:[%s877] sm:%s880] %v878
        %s882 = scalar_lea.vmem %s286, 72
        %s883 = ssub.s32 0, %s39
        %p884 = scmp.lt.s32.totalorder %s883, 0
        %s885 = scalar_select %p884, 0, 255
        %s886 = sshrl.u32 %s885, 1
        %s887 = sor.u32 %s885, %s886
        %s888 = sand.u32 %s887, 85
        %s889 = sshrl.u32 %s888, 1
        %s890 = sor.u32 %s888, %s889
        %s891 = sand.u32 51, %s890
        %s892 = sshrl.u32 %s891, 2
        %s893 = sor.u32 %s891, %s892
        %s894 = sand.u32 15, %s893
        %v895 = vld [vmem:[%s882] sm:%s894]
        %v896 = vunpack.c.l.bf16 %v895
        %v897 = vunpack.c.h.bf16 %v895
        %s898 = ssub.s32 0, %s39
        %v899 = vstv %s898
        %vm900 = vcmp.lt.s32.totalorder %v899, 0
        %v901 = vsel %vm900, %v12, %v896
        %s902 = smul.addr %s39, 128
        %v903 = vlaneseq
        %v904 = vand.u32 %v903, 127
        %v905 = vstv %s902
        %v906 = vadd.s32 %v904, %v905
        %vm907 = vcmp.lt.s32.totalorder %v906, 27
        %v908 = vsel %vm907, %v901, %v12
        %s909 = scalar_lea.vmem [#allocation25], 72
        %v910 = vpack.c.bf16 0.0, %v908
        %s912 = ssub.s32 16, 1
        %913 = vst [vmem:[%s909] sm:%s912] %v910
        %s914 = scalar_lea.vmem %s286, 76
        %s915 = ssub.s32 0, %s39
        %p916 = scmp.lt.s32.totalorder %s915, 0
        %s917 = scalar_select %p916, 0, 255
        %s918 = sshrl.u32 %s917, 1
        %s919 = sor.u32 %s917, %s918
        %s920 = sand.u32 %s919, 85
        %s921 = sshrl.u32 %s920, 1
        %s922 = sor.u32 %s920, %s921
        %s923 = sand.u32 51, %s922
        %s924 = sshrl.u32 %s923, 2
        %s925 = sor.u32 %s923, %s924
        %s926 = sand.u32 15, %s925
        %v927 = vld [vmem:[%s914] sm:%s926]
        %v928 = vunpack.c.l.bf16 %v927
        %v929 = vunpack.c.h.bf16 %v927
        %s930 = ssub.s32 0, %s39
        %v931 = vstv %s930
        %vm932 = vcmp.lt.s32.totalorder %v931, 0
        %v933 = vsel %vm932, %v12, %v928
        %s934 = smul.addr %s39, 128
        %v935 = vlaneseq
        %v936 = vand.u32 %v935, 127
        %v937 = vstv %s934
        %v938 = vadd.s32 %v936, %v937
        %vm939 = vcmp.lt.s32.totalorder %v938, 27
        %v940 = vsel %vm939, %v933, %v12
        %s941 = scalar_lea.vmem [#allocation25], 76
        %v942 = vpack.c.bf16 0.0, %v940
        %s944 = ssub.s32 16, 1
        %945 = vst [vmem:[%s941] sm:%s944] %v942
        %s946 = scalar_lea.vmem %s286, 80
        %s947 = ssub.s32 0, %s39
        %p948 = scmp.lt.s32.totalorder %s947, 0
        %s949 = scalar_select %p948, 0, 255
        %s950 = sshrl.u32 %s949, 1
        %s951 = sor.u32 %s949, %s950
        %s952 = sand.u32 %s951, 85
        %s953 = sshrl.u32 %s952, 1
        %s954 = sor.u32 %s952, %s953
        %s955 = sand.u32 51, %s954
        %s956 = sshrl.u32 %s955, 2
        %s957 = sor.u32 %s955, %s956
        %s958 = sand.u32 15, %s957
        %v959 = vld [vmem:[%s946] sm:%s958]
        %v960 = vunpack.c.l.bf16 %v959
        %v961 = vunpack.c.h.bf16 %v959
        %s962 = ssub.s32 0, %s39
        %v963 = vstv %s962
        %vm964 = vcmp.lt.s32.totalorder %v963, 0
        %v965 = vsel %vm964, %v12, %v960
        %s966 = smul.addr %s39, 128
        %v967 = vlaneseq
        %v968 = vand.u32 %v967, 127
        %v969 = vstv %s966
        %v970 = vadd.s32 %v968, %v969
        %vm971 = vcmp.lt.s32.totalorder %v970, 27
        %v972 = vsel %vm971, %v965, %v12
        %s973 = scalar_lea.vmem [#allocation25], 80
        %v974 = vpack.c.bf16 0.0, %v972
        %s976 = ssub.s32 16, 1
        %977 = vst [vmem:[%s973] sm:%s976] %v974
        %s978 = scalar_lea.vmem %s286, 84
        %s979 = ssub.s32 0, %s39
        %p980 = scmp.lt.s32.totalorder %s979, 0
        %s981 = scalar_select %p980, 0, 255
        %s982 = sshrl.u32 %s981, 1
        %s983 = sor.u32 %s981, %s982
        %s984 = sand.u32 %s983, 85
        %s985 = sshrl.u32 %s984, 1
        %s986 = sor.u32 %s984, %s985
        %s987 = sand.u32 51, %s986
        %s988 = sshrl.u32 %s987, 2
        %s989 = sor.u32 %s987, %s988
        %s990 = sand.u32 15, %s989
        %v991 = vld [vmem:[%s978] sm:%s990]
        %v992 = vunpack.c.l.bf16 %v991
        %v993 = vunpack.c.h.bf16 %v991
        %s994 = ssub.s32 0, %s39
        %v995 = vstv %s994
        %vm996 = vcmp.lt.s32.totalorder %v995, 0
        %v997 = vsel %vm996, %v12, %v992
        %s998 = smul.addr %s39, 128
        %v999 = vlaneseq
        %v1000 = vand.u32 %v999, 127
        %v1001 = vstv %s998
        %v1002 = vadd.s32 %v1000, %v1001
        %vm1003 = vcmp.lt.s32.totalorder %v1002, 27
        %v1004 = vsel %vm1003, %v997, %v12
        %s1005 = scalar_lea.vmem [#allocation25], 84
        %v1006 = vpack.c.bf16 0.0, %v1004
        %s1008 = ssub.s32 16, 1
        %1009 = vst [vmem:[%s1005] sm:%s1008] %v1006
        %s1010 = scalar_lea.vmem %s286, 88
        %s1011 = ssub.s32 0, %s39
        %p1012 = scmp.lt.s32.totalorder %s1011, 0
        %s1013 = scalar_select %p1012, 0, 255
        %s1014 = sshrl.u32 %s1013, 1
        %s1015 = sor.u32 %s1013, %s1014
        %s1016 = sand.u32 %s1015, 85
        %s1017 = sshrl.u32 %s1016, 1
        %s1018 = sor.u32 %s1016, %s1017
        %s1019 = sand.u32 51, %s1018
        %s1020 = sshrl.u32 %s1019, 2
        %s1021 = sor.u32 %s1019, %s1020
        %s1022 = sand.u32 15, %s1021
        %v1023 = vld [vmem:[%s1010] sm:%s1022]
        %v1024 = vunpack.c.l.bf16 %v1023
        %v1025 = vunpack.c.h.bf16 %v1023
        %s1026 = ssub.s32 0, %s39
        %v1027 = vstv %s1026
        %vm1028 = vcmp.lt.s32.totalorder %v1027, 0
        %v1029 = vsel %vm1028, %v12, %v1024
        %s1030 = smul.addr %s39, 128
        %v1031 = vlaneseq
        %v1032 = vand.u32 %v1031, 127
        %v1033 = vstv %s1030
        %v1034 = vadd.s32 %v1032, %v1033
        %vm1035 = vcmp.lt.s32.totalorder %v1034, 27
        %v1036 = vsel %vm1035, %v1029, %v12
        %s1037 = scalar_lea.vmem [#allocation25], 88
        %v1038 = vpack.c.bf16 0.0, %v1036
        %s1040 = ssub.s32 16, 1
        %1041 = vst [vmem:[%s1037] sm:%s1040] %v1038
        %s1042 = scalar_lea.vmem %s286, 92
        %s1043 = ssub.s32 0, %s39
        %p1044 = scmp.lt.s32.totalorder %s1043, 0
        %s1045 = scalar_select %p1044, 0, 255
        %s1046 = sshrl.u32 %s1045, 1
        %s1047 = sor.u32 %s1045, %s1046
        %s1048 = sand.u32 %s1047, 85
        %s1049 = sshrl.u32 %s1048, 1
        %s1050 = sor.u32 %s1048, %s1049
        %s1051 = sand.u32 51, %s1050
        %s1052 = sshrl.u32 %s1051, 2
        %s1053 = sor.u32 %s1051, %s1052
        %s1054 = sand.u32 15, %s1053
        %v1055 = vld [vmem:[%s1042] sm:%s1054]
        %v1056 = vunpack.c.l.bf16 %v1055
        %v1057 = vunpack.c.h.bf16 %v1055
        %s1058 = ssub.s32 0, %s39
        %v1059 = vstv %s1058
        %vm1060 = vcmp.lt.s32.totalorder %v1059, 0
        %v1061 = vsel %vm1060, %v12, %v1056
        %s1062 = smul.addr %s39, 128
        %v1063 = vlaneseq
        %v1064 = vand.u32 %v1063, 127
        %v1065 = vstv %s1062
        %v1066 = vadd.s32 %v1064, %v1065
        %vm1067 = vcmp.lt.s32.totalorder %v1066, 27
        %v1068 = vsel %vm1067, %v1061, %v12
        %s1069 = scalar_lea.vmem [#allocation25], 92
        %v1070 = vpack.c.bf16 0.0, %v1068
        %s1072 = ssub.s32 16, 1
        %1073 = vst [vmem:[%s1069] sm:%s1072] %v1070
        %s1074 = scalar_lea.vmem %s286, 96
        %s1075 = ssub.s32 0, %s39
        %p1076 = scmp.lt.s32.totalorder %s1075, 0
        %s1077 = scalar_select %p1076, 0, 255
        %s1078 = sshrl.u32 %s1077, 1
        %s1079 = sor.u32 %s1077, %s1078
        %s1080 = sand.u32 %s1079, 85
        %s1081 = sshrl.u32 %s1080, 1
        %s1082 = sor.u32 %s1080, %s1081
        %s1083 = sand.u32 51, %s1082
        %s1084 = sshrl.u32 %s1083, 2
        %s1085 = sor.u32 %s1083, %s1084
        %s1086 = sand.u32 15, %s1085
        %v1087 = vld [vmem:[%s1074] sm:%s1086]
        %v1088 = vunpack.c.l.bf16 %v1087
        %v1089 = vunpack.c.h.bf16 %v1087
        %s1090 = ssub.s32 0, %s39
        %v1091 = vstv %s1090
        %vm1092 = vcmp.lt.s32.totalorder %v1091, 0
        %v1093 = vsel %vm1092, %v12, %v1088
        %s1094 = smul.addr %s39, 128
        %v1095 = vlaneseq
        %v1096 = vand.u32 %v1095, 127
        %v1097 = vstv %s1094
        %v1098 = vadd.s32 %v1096, %v1097
        %vm1099 = vcmp.lt.s32.totalorder %v1098, 27
        %v1100 = vsel %vm1099, %v1093, %v12
        %s1101 = scalar_lea.vmem [#allocation25], 96
        %v1102 = vpack.c.bf16 0.0, %v1100
        %s1104 = ssub.s32 16, 1
        %1105 = vst [vmem:[%s1101] sm:%s1104] %v1102
        %s1106 = scalar_lea.vmem %s286, 100
        %s1107 = ssub.s32 0, %s39
        %p1108 = scmp.lt.s32.totalorder %s1107, 0
        %s1109 = scalar_select %p1108, 0, 255
        %s1110 = sshrl.u32 %s1109, 1
        %s1111 = sor.u32 %s1109, %s1110
        %s1112 = sand.u32 %s1111, 85
        %s1113 = sshrl.u32 %s1112, 1
        %s1114 = sor.u32 %s1112, %s1113
        %s1115 = sand.u32 51, %s1114
        %s1116 = sshrl.u32 %s1115, 2
        %s1117 = sor.u32 %s1115, %s1116
        %s1118 = sand.u32 15, %s1117
        %v1119 = vld [vmem:[%s1106] sm:%s1118]
        %v1120 = vunpack.c.l.bf16 %v1119
        %v1121 = vunpack.c.h.bf16 %v1119
        %s1122 = ssub.s32 0, %s39
        %v1123 = vstv %s1122
        %vm1124 = vcmp.lt.s32.totalorder %v1123, 0
        %v1125 = vsel %vm1124, %v12, %v1120
        %s1126 = smul.addr %s39, 128
        %v1127 = vlaneseq
        %v1128 = vand.u32 %v1127, 127
        %v1129 = vstv %s1126
        %v1130 = vadd.s32 %v1128, %v1129
        %vm1131 = vcmp.lt.s32.totalorder %v1130, 27
        %v1132 = vsel %vm1131, %v1125, %v12
        %s1133 = scalar_lea.vmem [#allocation25], 100
        %v1134 = vpack.c.bf16 0.0, %v1132
        %s1136 = ssub.s32 16, 1
        %1137 = vst [vmem:[%s1133] sm:%s1136] %v1134
        %s1138 = scalar_lea.vmem %s286, 104
        %s1139 = ssub.s32 0, %s39
        %p1140 = scmp.lt.s32.totalorder %s1139, 0
        %s1141 = scalar_select %p1140, 0, 255
        %s1142 = sshrl.u32 %s1141, 1
        %s1143 = sor.u32 %s1141, %s1142
        %s1144 = sand.u32 %s1143, 85
        %s1145 = sshrl.u32 %s1144, 1
        %s1146 = sor.u32 %s1144, %s1145
        %s1147 = sand.u32 51, %s1146
        %s1148 = sshrl.u32 %s1147, 2
        %s1149 = sor.u32 %s1147, %s1148
        %s1150 = sand.u32 15, %s1149
        %v1151 = vld [vmem:[%s1138] sm:%s1150]
        %v1152 = vunpack.c.l.bf16 %v1151
        %v1153 = vunpack.c.h.bf16 %v1151
        %s1154 = ssub.s32 0, %s39
        %v1155 = vstv %s1154
        %vm1156 = vcmp.lt.s32.totalorder %v1155, 0
        %v1157 = vsel %vm1156, %v12, %v1152
        %s1158 = smul.addr %s39, 128
        %v1159 = vlaneseq
        %v1160 = vand.u32 %v1159, 127
        %v1161 = vstv %s1158
        %v1162 = vadd.s32 %v1160, %v1161
        %vm1163 = vcmp.lt.s32.totalorder %v1162, 27
        %v1164 = vsel %vm1163, %v1157, %v12
        %s1165 = scalar_lea.vmem [#allocation25], 104
        %v1166 = vpack.c.bf16 0.0, %v1164
        %s1168 = ssub.s32 16, 1
        %1169 = vst [vmem:[%s1165] sm:%s1168] %v1166
        %s1170 = scalar_lea.vmem %s286, 108
        %s1171 = ssub.s32 0, %s39
        %p1172 = scmp.lt.s32.totalorder %s1171, 0
        %s1173 = scalar_select %p1172, 0, 255
        %s1174 = sshrl.u32 %s1173, 1
        %s1175 = sor.u32 %s1173, %s1174
        %s1176 = sand.u32 %s1175, 85
        %s1177 = sshrl.u32 %s1176, 1
        %s1178 = sor.u32 %s1176, %s1177
        %s1179 = sand.u32 51, %s1178
        %s1180 = sshrl.u32 %s1179, 2
        %s1181 = sor.u32 %s1179, %s1180
        %s1182 = sand.u32 15, %s1181
        %v1183 = vld [vmem:[%s1170] sm:%s1182]
        %v1184 = vunpack.c.l.bf16 %v1183
        %v1185 = vunpack.c.h.bf16 %v1183
        %s1186 = ssub.s32 0, %s39
        %v1187 = vstv %s1186
        %vm1188 = vcmp.lt.s32.totalorder %v1187, 0
        %v1189 = vsel %vm1188, %v12, %v1184
        %s1190 = smul.addr %s39, 128
        %v1191 = vlaneseq
        %v1192 = vand.u32 %v1191, 127
        %v1193 = vstv %s1190
        %v1194 = vadd.s32 %v1192, %v1193
        %vm1195 = vcmp.lt.s32.totalorder %v1194, 27
        %v1196 = vsel %vm1195, %v1189, %v12
        %s1197 = scalar_lea.vmem [#allocation25], 108
        %v1198 = vpack.c.bf16 0.0, %v1196
        %s1200 = ssub.s32 16, 1
        %1201 = vst [vmem:[%s1197] sm:%s1200] %v1198
        %s1202 = scalar_lea.vmem %s286, 112
        %s1203 = ssub.s32 0, %s39
        %p1204 = scmp.lt.s32.totalorder %s1203, 0
        %s1205 = scalar_select %p1204, 0, 255
        %s1206 = sshrl.u32 %s1205, 1
        %s1207 = sor.u32 %s1205, %s1206
        %s1208 = sand.u32 %s1207, 85
        %s1209 = sshrl.u32 %s1208, 1
        %s1210 = sor.u32 %s1208, %s1209
        %s1211 = sand.u32 51, %s1210
        %s1212 = sshrl.u32 %s1211, 2
        %s1213 = sor.u32 %s1211, %s1212
        %s1214 = sand.u32 15, %s1213
        %v1215 = vld [vmem:[%s1202] sm:%s1214]
        %v1216 = vunpack.c.l.bf16 %v1215
        %v1217 = vunpack.c.h.bf16 %v1215
        %s1218 = ssub.s32 0, %s39
        %v1219 = vstv %s1218
        %vm1220 = vcmp.lt.s32.totalorder %v1219, 0
        %v1221 = vsel %vm1220, %v12, %v1216
        %s1222 = smul.addr %s39, 128
        %v1223 = vlaneseq
        %v1224 = vand.u32 %v1223, 127
        %v1225 = vstv %s1222
        %v1226 = vadd.s32 %v1224, %v1225
        %vm1227 = vcmp.lt.s32.totalorder %v1226, 27
        %v1228 = vsel %vm1227, %v1221, %v12
        %s1229 = scalar_lea.vmem [#allocation25], 112
        %v1230 = vpack.c.bf16 0.0, %v1228
        %s1232 = ssub.s32 16, 1
        %1233 = vst [vmem:[%s1229] sm:%s1232] %v1230
        %s1234 = scalar_lea.vmem %s286, 116
        %s1235 = ssub.s32 0, %s39
        %p1236 = scmp.lt.s32.totalorder %s1235, 0
        %s1237 = scalar_select %p1236, 0, 255
        %s1238 = sshrl.u32 %s1237, 1
        %s1239 = sor.u32 %s1237, %s1238
        %s1240 = sand.u32 %s1239, 85
        %s1241 = sshrl.u32 %s1240, 1
        %s1242 = sor.u32 %s1240, %s1241
        %s1243 = sand.u32 51, %s1242
        %s1244 = sshrl.u32 %s1243, 2
        %s1245 = sor.u32 %s1243, %s1244
        %s1246 = sand.u32 15, %s1245
        %v1247 = vld [vmem:[%s1234] sm:%s1246]
        %v1248 = vunpack.c.l.bf16 %v1247
        %v1249 = vunpack.c.h.bf16 %v1247
        %s1250 = ssub.s32 0, %s39
        %v1251 = vstv %s1250
        %vm1252 = vcmp.lt.s32.totalorder %v1251, 0
        %v1253 = vsel %vm1252, %v12, %v1248
        %s1254 = smul.addr %s39, 128
        %v1255 = vlaneseq
        %v1256 = vand.u32 %v1255, 127
        %v1257 = vstv %s1254
        %v1258 = vadd.s32 %v1256, %v1257
        %vm1259 = vcmp.lt.s32.totalorder %v1258, 27
        %v1260 = vsel %vm1259, %v1253, %v12
        %s1261 = scalar_lea.vmem [#allocation25], 116
        %v1262 = vpack.c.bf16 0.0, %v1260
        %s1264 = ssub.s32 16, 1
        %1265 = vst [vmem:[%s1261] sm:%s1264] %v1262
        %s1266 = scalar_lea.vmem %s286, 120
        %s1267 = ssub.s32 0, %s39
        %p1268 = scmp.lt.s32.totalorder %s1267, 0
        %s1269 = scalar_select %p1268, 0, 255
        %s1270 = sshrl.u32 %s1269, 1
        %s1271 = sor.u32 %s1269, %s1270
        %s1272 = sand.u32 %s1271, 85
        %s1273 = sshrl.u32 %s1272, 1
        %s1274 = sor.u32 %s1272, %s1273
        %s1275 = sand.u32 51, %s1274
        %s1276 = sshrl.u32 %s1275, 2
        %s1277 = sor.u32 %s1275, %s1276
        %s1278 = sand.u32 15, %s1277
        %v1279 = vld [vmem:[%s1266] sm:%s1278]
        %v1280 = vunpack.c.l.bf16 %v1279
        %v1281 = vunpack.c.h.bf16 %v1279
        %s1282 = ssub.s32 0, %s39
        %v1283 = vstv %s1282
        %vm1284 = vcmp.lt.s32.totalorder %v1283, 0
        %v1285 = vsel %vm1284, %v12, %v1280
        %s1286 = smul.addr %s39, 128
        %v1287 = vlaneseq
        %v1288 = vand.u32 %v1287, 127
        %v1289 = vstv %s1286
        %v1290 = vadd.s32 %v1288, %v1289
        %vm1291 = vcmp.lt.s32.totalorder %v1290, 27
        %v1292 = vsel %vm1291, %v1285, %v12
        %s1293 = scalar_lea.vmem [#allocation25], 120
        %v1294 = vpack.c.bf16 0.0, %v1292
        %s1296 = ssub.s32 16, 1
        %1297 = vst [vmem:[%s1293] sm:%s1296] %v1294
        %s1298 = scalar_lea.vmem %s286, 124
        %s1299 = ssub.s32 0, %s39
        %p1300 = scmp.lt.s32.totalorder %s1299, 0
        %s1301 = scalar_select %p1300, 0, 255
        %s1302 = sshrl.u32 %s1301, 1
        %s1303 = sor.u32 %s1301, %s1302
        %s1304 = sand.u32 %s1303, 85
        %s1305 = sshrl.u32 %s1304, 1
        %s1306 = sor.u32 %s1304, %s1305
        %s1307 = sand.u32 51, %s1306
        %s1308 = sshrl.u32 %s1307, 2
        %s1309 = sor.u32 %s1307, %s1308
        %s1310 = sand.u32 15, %s1309
        %v1311 = vld [vmem:[%s1298] sm:%s1310]
        %v1312 = vunpack.c.l.bf16 %v1311
        %v1313 = vunpack.c.h.bf16 %v1311
        %s1314 = ssub.s32 0, %s39
        %v1315 = vstv %s1314
        %vm1316 = vcmp.lt.s32.totalorder %v1315, 0
        %v1317 = vsel %vm1316, %v12, %v1312
        %s1318 = smul.addr %s39, 128
        %v1319 = vlaneseq
        %v1320 = vand.u32 %v1319, 127
        %v1321 = vstv %s1318
        %v1322 = vadd.s32 %v1320, %v1321
        %vm1323 = vcmp.lt.s32.totalorder %v1322, 27
        %v1324 = vsel %vm1323, %v1317, %v12
        %s1325 = scalar_lea.vmem [#allocation25], 124
        %v1326 = vpack.c.bf16 0.0, %v1324
        %s1328 = ssub.s32 16, 1
        %1329 = vst [vmem:[%s1325] sm:%s1328] %v1326
        %s1330 = scalar_lea.vmem %s286, 128
        %s1331 = ssub.s32 0, %s39
        %p1332 = scmp.lt.s32.totalorder %s1331, 0
        %s1333 = scalar_select %p1332, 0, 255
        %s1334 = sshrl.u32 %s1333, 1
        %s1335 = sor.u32 %s1333, %s1334
        %s1336 = sand.u32 %s1335, 85
        %s1337 = sshrl.u32 %s1336, 1
        %s1338 = sor.u32 %s1336, %s1337
        %s1339 = sand.u32 51, %s1338
        %s1340 = sshrl.u32 %s1339, 2
        %s1341 = sor.u32 %s1339, %s1340
        %s1342 = sand.u32 15, %s1341
        %v1343 = vld [vmem:[%s1330] sm:%s1342]
        %v1344 = vunpack.c.l.bf16 %v1343
        %v1345 = vunpack.c.h.bf16 %v1343
        %s1346 = ssub.s32 0, %s39
        %v1347 = vstv %s1346
        %vm1348 = vcmp.lt.s32.totalorder %v1347, 0
        %v1349 = vsel %vm1348, %v12, %v1344
        %s1350 = smul.addr %s39, 128
        %v1351 = vlaneseq
        %v1352 = vand.u32 %v1351, 127
        %v1353 = vstv %s1350
        %v1354 = vadd.s32 %v1352, %v1353
        %vm1355 = vcmp.lt.s32.totalorder %v1354, 27
        %v1356 = vsel %vm1355, %v1349, %v12
        %s1357 = scalar_lea.vmem [#allocation25], 128
        %v1358 = vpack.c.bf16 0.0, %v1356
        %s1360 = ssub.s32 16, 1
        %1361 = vst [vmem:[%s1357] sm:%s1360] %v1358
        %s1362 = scalar_lea.vmem %s286, 132
        %s1363 = ssub.s32 0, %s39
        %p1364 = scmp.lt.s32.totalorder %s1363, 0
        %s1365 = scalar_select %p1364, 0, 255
        %s1366 = sshrl.u32 %s1365, 1
        %s1367 = sor.u32 %s1365, %s1366
        %s1368 = sand.u32 %s1367, 85
        %s1369 = sshrl.u32 %s1368, 1
        %s1370 = sor.u32 %s1368, %s1369
        %s1371 = sand.u32 51, %s1370
        %s1372 = sshrl.u32 %s1371, 2
        %s1373 = sor.u32 %s1371, %s1372
        %s1374 = sand.u32 15, %s1373
        %v1375 = vld [vmem:[%s1362] sm:%s1374]
        %v1376 = vunpack.c.l.bf16 %v1375
        %v1377 = vunpack.c.h.bf16 %v1375
        %s1378 = ssub.s32 0, %s39
        %v1379 = vstv %s1378
        %vm1380 = vcmp.lt.s32.totalorder %v1379, 0
        %v1381 = vsel %vm1380, %v12, %v1376
        %s1382 = smul.addr %s39, 128
        %v1383 = vlaneseq
        %v1384 = vand.u32 %v1383, 127
        %v1385 = vstv %s1382
        %v1386 = vadd.s32 %v1384, %v1385
        %vm1387 = vcmp.lt.s32.totalorder %v1386, 27
        %v1388 = vsel %vm1387, %v1381, %v12
        %s1389 = scalar_lea.vmem [#allocation25], 132
        %v1390 = vpack.c.bf16 0.0, %v1388
        %s1392 = ssub.s32 16, 1
        %1393 = vst [vmem:[%s1389] sm:%s1392] %v1390
        %s1394 = scalar_lea.vmem %s286, 136
        %s1395 = ssub.s32 0, %s39
        %p1396 = scmp.lt.s32.totalorder %s1395, 0
        %s1397 = scalar_select %p1396, 0, 255
        %s1398 = sshrl.u32 %s1397, 1
        %s1399 = sor.u32 %s1397, %s1398
        %s1400 = sand.u32 %s1399, 85
        %s1401 = sshrl.u32 %s1400, 1
        %s1402 = sor.u32 %s1400, %s1401
        %s1403 = sand.u32 51, %s1402
        %s1404 = sshrl.u32 %s1403, 2
        %s1405 = sor.u32 %s1403, %s1404
        %s1406 = sand.u32 15, %s1405
        %v1407 = vld [vmem:[%s1394] sm:%s1406]
        %v1408 = vunpack.c.l.bf16 %v1407
        %v1409 = vunpack.c.h.bf16 %v1407
        %s1410 = ssub.s32 0, %s39
        %v1411 = vstv %s1410
        %vm1412 = vcmp.lt.s32.totalorder %v1411, 0
        %v1413 = vsel %vm1412, %v12, %v1408
        %s1414 = smul.addr %s39, 128
        %v1415 = vlaneseq
        %v1416 = vand.u32 %v1415, 127
        %v1417 = vstv %s1414
        %v1418 = vadd.s32 %v1416, %v1417
        %vm1419 = vcmp.lt.s32.totalorder %v1418, 27
        %v1420 = vsel %vm1419, %v1413, %v12
        %s1421 = scalar_lea.vmem [#allocation25], 136
        %v1422 = vpack.c.bf16 0.0, %v1420
        %s1424 = ssub.s32 16, 1
        %1425 = vst [vmem:[%s1421] sm:%s1424] %v1422
        %s1426 = scalar_lea.vmem %s286, 140
        %s1427 = ssub.s32 0, %s39
        %p1428 = scmp.lt.s32.totalorder %s1427, 0
        %s1429 = scalar_select %p1428, 0, 255
        %s1430 = sshrl.u32 %s1429, 1
        %s1431 = sor.u32 %s1429, %s1430
        %s1432 = sand.u32 %s1431, 85
        %s1433 = sshrl.u32 %s1432, 1
        %s1434 = sor.u32 %s1432, %s1433
        %s1435 = sand.u32 51, %s1434
        %s1436 = sshrl.u32 %s1435, 2
        %s1437 = sor.u32 %s1435, %s1436
        %s1438 = sand.u32 15, %s1437
        %v1439 = vld [vmem:[%s1426] sm:%s1438]
        %v1440 = vunpack.c.l.bf16 %v1439
        %v1441 = vunpack.c.h.bf16 %v1439
        %s1442 = ssub.s32 0, %s39
        %v1443 = vstv %s1442
        %vm1444 = vcmp.lt.s32.totalorder %v1443, 0
        %v1445 = vsel %vm1444, %v12, %v1440
        %s1446 = smul.addr %s39, 128
        %v1447 = vlaneseq
        %v1448 = vand.u32 %v1447, 127
        %v1449 = vstv %s1446
        %v1450 = vadd.s32 %v1448, %v1449
        %vm1451 = vcmp.lt.s32.totalorder %v1450, 27
        %v1452 = vsel %vm1451, %v1445, %v12
        %s1453 = scalar_lea.vmem [#allocation25], 140
        %v1454 = vpack.c.bf16 0.0, %v1452
        %s1456 = ssub.s32 16, 1
        %1457 = vst [vmem:[%s1453] sm:%s1456] %v1454
        %s1458 = scalar_lea.vmem %s286, 144
        %s1459 = ssub.s32 0, %s39
        %p1460 = scmp.lt.s32.totalorder %s1459, 0
        %s1461 = scalar_select %p1460, 0, 255
        %s1462 = sshrl.u32 %s1461, 1
        %s1463 = sor.u32 %s1461, %s1462
        %s1464 = sand.u32 %s1463, 85
        %s1465 = sshrl.u32 %s1464, 1
        %s1466 = sor.u32 %s1464, %s1465
        %s1467 = sand.u32 51, %s1466
        %s1468 = sshrl.u32 %s1467, 2
        %s1469 = sor.u32 %s1467, %s1468
        %s1470 = sand.u32 15, %s1469
        %v1471 = vld [vmem:[%s1458] sm:%s1470]
        %v1472 = vunpack.c.l.bf16 %v1471
        %v1473 = vunpack.c.h.bf16 %v1471
        %s1474 = ssub.s32 0, %s39
        %v1475 = vstv %s1474
        %vm1476 = vcmp.lt.s32.totalorder %v1475, 0
        %v1477 = vsel %vm1476, %v12, %v1472
        %s1478 = smul.addr %s39, 128
        %v1479 = vlaneseq
        %v1480 = vand.u32 %v1479, 127
        %v1481 = vstv %s1478
        %v1482 = vadd.s32 %v1480, %v1481
        %vm1483 = vcmp.lt.s32.totalorder %v1482, 27
        %v1484 = vsel %vm1483, %v1477, %v12
        %s1485 = scalar_lea.vmem [#allocation25], 144
        %v1486 = vpack.c.bf16 0.0, %v1484
        %s1488 = ssub.s32 16, 1
        %1489 = vst [vmem:[%s1485] sm:%s1488] %v1486
        %s1490 = scalar_lea.vmem %s286, 148
        %s1491 = ssub.s32 0, %s39
        %p1492 = scmp.lt.s32.totalorder %s1491, 0
        %s1493 = scalar_select %p1492, 0, 255
        %s1494 = sshrl.u32 %s1493, 1
        %s1495 = sor.u32 %s1493, %s1494
        %s1496 = sand.u32 %s1495, 85
        %s1497 = sshrl.u32 %s1496, 1
        %s1498 = sor.u32 %s1496, %s1497
        %s1499 = sand.u32 51, %s1498
        %s1500 = sshrl.u32 %s1499, 2
        %s1501 = sor.u32 %s1499, %s1500
        %s1502 = sand.u32 15, %s1501
        %v1503 = vld [vmem:[%s1490] sm:%s1502]
        %v1504 = vunpack.c.l.bf16 %v1503
        %v1505 = vunpack.c.h.bf16 %v1503
        %s1506 = ssub.s32 0, %s39
        %v1507 = vstv %s1506
        %vm1508 = vcmp.lt.s32.totalorder %v1507, 0
        %v1509 = vsel %vm1508, %v12, %v1504
        %s1510 = smul.addr %s39, 128
        %v1511 = vlaneseq
        %v1512 = vand.u32 %v1511, 127
        %v1513 = vstv %s1510
        %v1514 = vadd.s32 %v1512, %v1513
        %vm1515 = vcmp.lt.s32.totalorder %v1514, 27
        %v1516 = vsel %vm1515, %v1509, %v12
        %s1517 = scalar_lea.vmem [#allocation25], 148
        %v1518 = vpack.c.bf16 0.0, %v1516
        %s1520 = ssub.s32 16, 1
        %1521 = vst [vmem:[%s1517] sm:%s1520] %v1518
        %s1522 = scalar_lea.vmem %s286, 152
        %s1523 = ssub.s32 0, %s39
        %p1524 = scmp.lt.s32.totalorder %s1523, 0
        %s1525 = scalar_select %p1524, 0, 255
        %s1526 = sshrl.u32 %s1525, 1
        %s1527 = sor.u32 %s1525, %s1526
        %s1528 = sand.u32 %s1527, 85
        %s1529 = sshrl.u32 %s1528, 1
        %s1530 = sor.u32 %s1528, %s1529
        %s1531 = sand.u32 51, %s1530
        %s1532 = sshrl.u32 %s1531, 2
        %s1533 = sor.u32 %s1531, %s1532
        %s1534 = sand.u32 15, %s1533
        %v1535 = vld [vmem:[%s1522] sm:%s1534]
        %v1536 = vunpack.c.l.bf16 %v1535
        %v1537 = vunpack.c.h.bf16 %v1535
        %s1538 = ssub.s32 0, %s39
        %v1539 = vstv %s1538
        %vm1540 = vcmp.lt.s32.totalorder %v1539, 0
        %v1541 = vsel %vm1540, %v12, %v1536
        %s1542 = smul.addr %s39, 128
        %v1543 = vlaneseq
        %v1544 = vand.u32 %v1543, 127
        %v1545 = vstv %s1542
        %v1546 = vadd.s32 %v1544, %v1545
        %vm1547 = vcmp.lt.s32.totalorder %v1546, 27
        %v1548 = vsel %vm1547, %v1541, %v12
        %s1549 = scalar_lea.vmem [#allocation25], 152
        %v1550 = vpack.c.bf16 0.0, %v1548
        %s1552 = ssub.s32 16, 1
        %1553 = vst [vmem:[%s1549] sm:%s1552] %v1550
        %s1554 = scalar_lea.vmem %s286, 156
        %s1555 = ssub.s32 0, %s39
        %p1556 = scmp.lt.s32.totalorder %s1555, 0
        %s1557 = scalar_select %p1556, 0, 255
        %s1558 = sshrl.u32 %s1557, 1
        %s1559 = sor.u32 %s1557, %s1558
        %s1560 = sand.u32 %s1559, 85
        %s1561 = sshrl.u32 %s1560, 1
        %s1562 = sor.u32 %s1560, %s1561
        %s1563 = sand.u32 51, %s1562
        %s1564 = sshrl.u32 %s1563, 2
        %s1565 = sor.u32 %s1563, %s1564
        %s1566 = sand.u32 15, %s1565
        %v1567 = vld [vmem:[%s1554] sm:%s1566]
        %v1568 = vunpack.c.l.bf16 %v1567
        %v1569 = vunpack.c.h.bf16 %v1567
        %s1570 = ssub.s32 0, %s39
        %v1571 = vstv %s1570
        %vm1572 = vcmp.lt.s32.totalorder %v1571, 0
        %v1573 = vsel %vm1572, %v12, %v1568
        %s1574 = smul.addr %s39, 128
        %v1575 = vlaneseq
        %v1576 = vand.u32 %v1575, 127
        %v1577 = vstv %s1574
        %v1578 = vadd.s32 %v1576, %v1577
        %vm1579 = vcmp.lt.s32.totalorder %v1578, 27
        %v1580 = vsel %vm1579, %v1573, %v12
        %s1581 = scalar_lea.vmem [#allocation25], 156
        %v1582 = vpack.c.bf16 0.0, %v1580
        %s1584 = ssub.s32 16, 1
        %1585 = vst [vmem:[%s1581] sm:%s1584] %v1582
        %s1586 = scalar_lea.vmem %s286, 160
        %s1587 = ssub.s32 0, %s39
        %p1588 = scmp.lt.s32.totalorder %s1587, 0
        %s1589 = scalar_select %p1588, 0, 255
        %s1590 = sshrl.u32 %s1589, 1
        %s1591 = sor.u32 %s1589, %s1590
        %s1592 = sand.u32 %s1591, 85
        %s1593 = sshrl.u32 %s1592, 1
        %s1594 = sor.u32 %s1592, %s1593
        %s1595 = sand.u32 51, %s1594
        %s1596 = sshrl.u32 %s1595, 2
        %s1597 = sor.u32 %s1595, %s1596
        %s1598 = sand.u32 15, %s1597
        %v1599 = vld [vmem:[%s1586] sm:%s1598]
        %v1600 = vunpack.c.l.bf16 %v1599
        %v1601 = vunpack.c.h.bf16 %v1599
        %s1602 = ssub.s32 0, %s39
        %v1603 = vstv %s1602
        %vm1604 = vcmp.lt.s32.totalorder %v1603, 0
        %v1605 = vsel %vm1604, %v12, %v1600
        %s1606 = smul.addr %s39, 128
        %v1607 = vlaneseq
        %v1608 = vand.u32 %v1607, 127
        %v1609 = vstv %s1606
        %v1610 = vadd.s32 %v1608, %v1609
        %vm1611 = vcmp.lt.s32.totalorder %v1610, 27
        %v1612 = vsel %vm1611, %v1605, %v12
        %s1613 = scalar_lea.vmem [#allocation25], 160
        %v1614 = vpack.c.bf16 0.0, %v1612
        %s1616 = ssub.s32 16, 1
        %1617 = vst [vmem:[%s1613] sm:%s1616] %v1614
        %s1618 = scalar_lea.vmem %s286, 164
        %s1619 = ssub.s32 0, %s39
        %p1620 = scmp.lt.s32.totalorder %s1619, 0
        %s1621 = scalar_select %p1620, 0, 255
        %s1622 = sshrl.u32 %s1621, 1
        %s1623 = sor.u32 %s1621, %s1622
        %s1624 = sand.u32 %s1623, 85
        %s1625 = sshrl.u32 %s1624, 1
        %s1626 = sor.u32 %s1624, %s1625
        %s1627 = sand.u32 51, %s1626
        %s1628 = sshrl.u32 %s1627, 2
        %s1629 = sor.u32 %s1627, %s1628
        %s1630 = sand.u32 15, %s1629
        %v1631 = vld [vmem:[%s1618] sm:%s1630]
        %v1632 = vunpack.c.l.bf16 %v1631
        %v1633 = vunpack.c.h.bf16 %v1631
        %s1634 = ssub.s32 0, %s39
        %v1635 = vstv %s1634
        %vm1636 = vcmp.lt.s32.totalorder %v1635, 0
        %v1637 = vsel %vm1636, %v12, %v1632
        %s1638 = smul.addr %s39, 128
        %v1639 = vlaneseq
        %v1640 = vand.u32 %v1639, 127
        %v1641 = vstv %s1638
        %v1642 = vadd.s32 %v1640, %v1641
        %vm1643 = vcmp.lt.s32.totalorder %v1642, 27
        %v1644 = vsel %vm1643, %v1637, %v12
        %s1645 = scalar_lea.vmem [#allocation25], 164
        %v1646 = vpack.c.bf16 0.0, %v1644
        %s1648 = ssub.s32 16, 1
        %1649 = vst [vmem:[%s1645] sm:%s1648] %v1646
        %s1650 = scalar_lea.vmem %s286, 168
        %s1651 = ssub.s32 0, %s39
        %p1652 = scmp.lt.s32.totalorder %s1651, 0
        %s1653 = scalar_select %p1652, 0, 255
        %s1654 = sshrl.u32 %s1653, 1
        %s1655 = sor.u32 %s1653, %s1654
        %s1656 = sand.u32 %s1655, 85
        %s1657 = sshrl.u32 %s1656, 1
        %s1658 = sor.u32 %s1656, %s1657
        %s1659 = sand.u32 51, %s1658
        %s1660 = sshrl.u32 %s1659, 2
        %s1661 = sor.u32 %s1659, %s1660
        %s1662 = sand.u32 15, %s1661
        %v1663 = vld [vmem:[%s1650] sm:%s1662]
        %v1664 = vunpack.c.l.bf16 %v1663
        %v1665 = vunpack.c.h.bf16 %v1663
        %s1666 = ssub.s32 0, %s39
        %v1667 = vstv %s1666
        %vm1668 = vcmp.lt.s32.totalorder %v1667, 0
        %v1669 = vsel %vm1668, %v12, %v1664
        %s1670 = smul.addr %s39, 128
        %v1671 = vlaneseq
        %v1672 = vand.u32 %v1671, 127
        %v1673 = vstv %s1670
        %v1674 = vadd.s32 %v1672, %v1673
        %vm1675 = vcmp.lt.s32.totalorder %v1674, 27
        %v1676 = vsel %vm1675, %v1669, %v12
        %s1677 = scalar_lea.vmem [#allocation25], 168
        %v1678 = vpack.c.bf16 0.0, %v1676
        %s1680 = ssub.s32 16, 1
        %1681 = vst [vmem:[%s1677] sm:%s1680] %v1678
        %s1682 = scalar_lea.vmem %s286, 172
        %s1683 = ssub.s32 0, %s39
        %p1684 = scmp.lt.s32.totalorder %s1683, 0
        %s1685 = scalar_select %p1684, 0, 255
        %s1686 = sshrl.u32 %s1685, 1
        %s1687 = sor.u32 %s1685, %s1686
        %s1688 = sand.u32 %s1687, 85
        %s1689 = sshrl.u32 %s1688, 1
        %s1690 = sor.u32 %s1688, %s1689
        %s1691 = sand.u32 51, %s1690
        %s1692 = sshrl.u32 %s1691, 2
        %s1693 = sor.u32 %s1691, %s1692
        %s1694 = sand.u32 15, %s1693
        %v1695 = vld [vmem:[%s1682] sm:%s1694]
        %v1696 = vunpack.c.l.bf16 %v1695
        %v1697 = vunpack.c.h.bf16 %v1695
        %s1698 = ssub.s32 0, %s39
        %v1699 = vstv %s1698
        %vm1700 = vcmp.lt.s32.totalorder %v1699, 0
        %v1701 = vsel %vm1700, %v12, %v1696
        %s1702 = smul.addr %s39, 128
        %v1703 = vlaneseq
        %v1704 = vand.u32 %v1703, 127
        %v1705 = vstv %s1702
        %v1706 = vadd.s32 %v1704, %v1705
        %vm1707 = vcmp.lt.s32.totalorder %v1706, 27
        %v1708 = vsel %vm1707, %v1701, %v12
        %s1709 = scalar_lea.vmem [#allocation25], 172
        %v1710 = vpack.c.bf16 0.0, %v1708
        %s1712 = ssub.s32 16, 1
        %1713 = vst [vmem:[%s1709] sm:%s1712] %v1710
        %s1714 = scalar_lea.vmem %s286, 176
        %s1715 = ssub.s32 0, %s39
        %p1716 = scmp.lt.s32.totalorder %s1715, 0
        %s1717 = scalar_select %p1716, 0, 255
        %s1718 = sshrl.u32 %s1717, 1
        %s1719 = sor.u32 %s1717, %s1718
        %s1720 = sand.u32 %s1719, 85
        %s1721 = sshrl.u32 %s1720, 1
        %s1722 = sor.u32 %s1720, %s1721
        %s1723 = sand.u32 51, %s1722
        %s1724 = sshrl.u32 %s1723, 2
        %s1725 = sor.u32 %s1723, %s1724
        %s1726 = sand.u32 15, %s1725
        %v1727 = vld [vmem:[%s1714] sm:%s1726]
        %v1728 = vunpack.c.l.bf16 %v1727
        %v1729 = vunpack.c.h.bf16 %v1727
        %s1730 = ssub.s32 0, %s39
        %v1731 = vstv %s1730
        %vm1732 = vcmp.lt.s32.totalorder %v1731, 0
        %v1733 = vsel %vm1732, %v12, %v1728
        %s1734 = smul.addr %s39, 128
        %v1735 = vlaneseq
        %v1736 = vand.u32 %v1735, 127
        %v1737 = vstv %s1734
        %v1738 = vadd.s32 %v1736, %v1737
        %vm1739 = vcmp.lt.s32.totalorder %v1738, 27
        %v1740 = vsel %vm1739, %v1733, %v12
        %s1741 = scalar_lea.vmem [#allocation25], 176
        %v1742 = vpack.c.bf16 0.0, %v1740
        %s1744 = ssub.s32 16, 1
        %1745 = vst [vmem:[%s1741] sm:%s1744] %v1742
        %s1746 = scalar_lea.vmem %s286, 180
        %s1747 = ssub.s32 0, %s39
        %p1748 = scmp.lt.s32.totalorder %s1747, 0
        %s1749 = scalar_select %p1748, 0, 255
        %s1750 = sshrl.u32 %s1749, 1
        %s1751 = sor.u32 %s1749, %s1750
        %s1752 = sand.u32 %s1751, 85
        %s1753 = sshrl.u32 %s1752, 1
        %s1754 = sor.u32 %s1752, %s1753
        %s1755 = sand.u32 51, %s1754
        %s1756 = sshrl.u32 %s1755, 2
        %s1757 = sor.u32 %s1755, %s1756
        %s1758 = sand.u32 15, %s1757
        %v1759 = vld [vmem:[%s1746] sm:%s1758]
        %v1760 = vunpack.c.l.bf16 %v1759
        %v1761 = vunpack.c.h.bf16 %v1759
        %s1762 = ssub.s32 0, %s39
        %v1763 = vstv %s1762
        %vm1764 = vcmp.lt.s32.totalorder %v1763, 0
        %v1765 = vsel %vm1764, %v12, %v1760
        %s1766 = smul.addr %s39, 128
        %v1767 = vlaneseq
        %v1768 = vand.u32 %v1767, 127
        %v1769 = vstv %s1766
        %v1770 = vadd.s32 %v1768, %v1769
        %vm1771 = vcmp.lt.s32.totalorder %v1770, 27
        %v1772 = vsel %vm1771, %v1765, %v12
        %s1773 = scalar_lea.vmem [#allocation25], 180
        %v1774 = vpack.c.bf16 0.0, %v1772
        %s1776 = ssub.s32 16, 1
        %1777 = vst [vmem:[%s1773] sm:%s1776] %v1774
        %s1778 = scalar_lea.vmem %s286, 184
        %s1779 = ssub.s32 0, %s39
        %p1780 = scmp.lt.s32.totalorder %s1779, 0
        %s1781 = scalar_select %p1780, 0, 255
        %s1782 = sshrl.u32 %s1781, 1
        %s1783 = sor.u32 %s1781, %s1782
        %s1784 = sand.u32 %s1783, 85
        %s1785 = sshrl.u32 %s1784, 1
        %s1786 = sor.u32 %s1784, %s1785
        %s1787 = sand.u32 51, %s1786
        %s1788 = sshrl.u32 %s1787, 2
        %s1789 = sor.u32 %s1787, %s1788
        %s1790 = sand.u32 15, %s1789
        %v1791 = vld [vmem:[%s1778] sm:%s1790]
        %v1792 = vunpack.c.l.bf16 %v1791
        %v1793 = vunpack.c.h.bf16 %v1791
        %s1794 = ssub.s32 0, %s39
        %v1795 = vstv %s1794
        %vm1796 = vcmp.lt.s32.totalorder %v1795, 0
        %v1797 = vsel %vm1796, %v12, %v1792
        %s1798 = smul.addr %s39, 128
        %v1799 = vlaneseq
        %v1800 = vand.u32 %v1799, 127
        %v1801 = vstv %s1798
        %v1802 = vadd.s32 %v1800, %v1801
        %vm1803 = vcmp.lt.s32.totalorder %v1802, 27
        %v1804 = vsel %vm1803, %v1797, %v12
        %s1805 = scalar_lea.vmem [#allocation25], 184
        %v1806 = vpack.c.bf16 0.0, %v1804
        %s1808 = ssub.s32 16, 1
        %1809 = vst [vmem:[%s1805] sm:%s1808] %v1806
        %s1810 = scalar_lea.vmem %s286, 188
        %s1811 = ssub.s32 0, %s39
        %p1812 = scmp.lt.s32.totalorder %s1811, 0
        %s1813 = scalar_select %p1812, 0, 255
        %s1814 = sshrl.u32 %s1813, 1
        %s1815 = sor.u32 %s1813, %s1814
        %s1816 = sand.u32 %s1815, 85
        %s1817 = sshrl.u32 %s1816, 1
        %s1818 = sor.u32 %s1816, %s1817
        %s1819 = sand.u32 51, %s1818
        %s1820 = sshrl.u32 %s1819, 2
        %s1821 = sor.u32 %s1819, %s1820
        %s1822 = sand.u32 15, %s1821
        %v1823 = vld [vmem:[%s1810] sm:%s1822]
        %v1824 = vunpack.c.l.bf16 %v1823
        %v1825 = vunpack.c.h.bf16 %v1823
        %s1826 = ssub.s32 0, %s39
        %v1827 = vstv %s1826
        %vm1828 = vcmp.lt.s32.totalorder %v1827, 0
        %v1829 = vsel %vm1828, %v12, %v1824
        %s1830 = smul.addr %s39, 128
        %v1831 = vlaneseq
        %v1832 = vand.u32 %v1831, 127
        %v1833 = vstv %s1830
        %v1834 = vadd.s32 %v1832, %v1833
        %vm1835 = vcmp.lt.s32.totalorder %v1834, 27
        %v1836 = vsel %vm1835, %v1829, %v12
        %s1837 = scalar_lea.vmem [#allocation25], 188
        %v1838 = vpack.c.bf16 0.0, %v1836
        %s1840 = ssub.s32 16, 1
        %1841 = vst [vmem:[%s1837] sm:%s1840] %v1838
        %s1842 = scalar_lea.vmem %s286, 192
        %s1843 = ssub.s32 0, %s39
        %p1844 = scmp.lt.s32.totalorder %s1843, 0
        %s1845 = scalar_select %p1844, 0, 255
        %s1846 = sshrl.u32 %s1845, 1
        %s1847 = sor.u32 %s1845, %s1846
        %s1848 = sand.u32 %s1847, 85
        %s1849 = sshrl.u32 %s1848, 1
        %s1850 = sor.u32 %s1848, %s1849
        %s1851 = sand.u32 51, %s1850
        %s1852 = sshrl.u32 %s1851, 2
        %s1853 = sor.u32 %s1851, %s1852
        %s1854 = sand.u32 15, %s1853
        %v1855 = vld [vmem:[%s1842] sm:%s1854]
        %v1856 = vunpack.c.l.bf16 %v1855
        %v1857 = vunpack.c.h.bf16 %v1855
        %s1858 = ssub.s32 0, %s39
        %v1859 = vstv %s1858
        %vm1860 = vcmp.lt.s32.totalorder %v1859, 0
        %v1861 = vsel %vm1860, %v12, %v1856
        %s1862 = smul.addr %s39, 128
        %v1863 = vlaneseq
        %v1864 = vand.u32 %v1863, 127
        %v1865 = vstv %s1862
        %v1866 = vadd.s32 %v1864, %v1865
        %vm1867 = vcmp.lt.s32.totalorder %v1866, 27
        %v1868 = vsel %vm1867, %v1861, %v12
        %s1869 = scalar_lea.vmem [#allocation25], 192
        %v1870 = vpack.c.bf16 0.0, %v1868
        %s1872 = ssub.s32 16, 1
        %1873 = vst [vmem:[%s1869] sm:%s1872] %v1870
        %s1874 = scalar_lea.vmem %s286, 196
        %s1875 = ssub.s32 0, %s39
        %p1876 = scmp.lt.s32.totalorder %s1875, 0
        %s1877 = scalar_select %p1876, 0, 255
        %s1878 = sshrl.u32 %s1877, 1
        %s1879 = sor.u32 %s1877, %s1878
        %s1880 = sand.u32 %s1879, 85
        %s1881 = sshrl.u32 %s1880, 1
        %s1882 = sor.u32 %s1880, %s1881
        %s1883 = sand.u32 51, %s1882
        %s1884 = sshrl.u32 %s1883, 2
        %s1885 = sor.u32 %s1883, %s1884
        %s1886 = sand.u32 15, %s1885
        %v1887 = vld [vmem:[%s1874] sm:%s1886]
        %v1888 = vunpack.c.l.bf16 %v1887
        %v1889 = vunpack.c.h.bf16 %v1887
        %s1890 = ssub.s32 0, %s39
        %v1891 = vstv %s1890
        %vm1892 = vcmp.lt.s32.totalorder %v1891, 0
        %v1893 = vsel %vm1892, %v12, %v1888
        %s1894 = smul.addr %s39, 128
        %v1895 = vlaneseq
        %v1896 = vand.u32 %v1895, 127
        %v1897 = vstv %s1894
        %v1898 = vadd.s32 %v1896, %v1897
        %vm1899 = vcmp.lt.s32.totalorder %v1898, 27
        %v1900 = vsel %vm1899, %v1893, %v12
        %s1901 = scalar_lea.vmem [#allocation25], 196
        %v1902 = vpack.c.bf16 0.0, %v1900
        %s1904 = ssub.s32 16, 1
        %1905 = vst [vmem:[%s1901] sm:%s1904] %v1902
        %s1906 = scalar_lea.vmem %s286, 200
        %s1907 = ssub.s32 0, %s39
        %p1908 = scmp.lt.s32.totalorder %s1907, 0
        %s1909 = scalar_select %p1908, 0, 255
        %s1910 = sshrl.u32 %s1909, 1
        %s1911 = sor.u32 %s1909, %s1910
        %s1912 = sand.u32 %s1911, 85
        %s1913 = sshrl.u32 %s1912, 1
        %s1914 = sor.u32 %s1912, %s1913
        %s1915 = sand.u32 51, %s1914
        %s1916 = sshrl.u32 %s1915, 2
        %s1917 = sor.u32 %s1915, %s1916
        %s1918 = sand.u32 15, %s1917
        %v1919 = vld [vmem:[%s1906] sm:%s1918]
        %v1920 = vunpack.c.l.bf16 %v1919
        %v1921 = vunpack.c.h.bf16 %v1919
        %s1922 = ssub.s32 0, %s39
        %v1923 = vstv %s1922
        %vm1924 = vcmp.lt.s32.totalorder %v1923, 0
        %v1925 = vsel %vm1924, %v12, %v1920
        %s1926 = smul.addr %s39, 128
        %v1927 = vlaneseq
        %v1928 = vand.u32 %v1927, 127
        %v1929 = vstv %s1926
        %v1930 = vadd.s32 %v1928, %v1929
        %vm1931 = vcmp.lt.s32.totalorder %v1930, 27
        %v1932 = vsel %vm1931, %v1925, %v12
        %s1933 = scalar_lea.vmem [#allocation25], 200
        %v1934 = vpack.c.bf16 0.0, %v1932
        %s1936 = ssub.s32 16, 1
        %1937 = vst [vmem:[%s1933] sm:%s1936] %v1934
        %s1938 = scalar_lea.vmem %s286, 204
        %s1939 = ssub.s32 0, %s39
        %p1940 = scmp.lt.s32.totalorder %s1939, 0
        %s1941 = scalar_select %p1940, 0, 255
        %s1942 = sshrl.u32 %s1941, 1
        %s1943 = sor.u32 %s1941, %s1942
        %s1944 = sand.u32 %s1943, 85
        %s1945 = sshrl.u32 %s1944, 1
        %s1946 = sor.u32 %s1944, %s1945
        %s1947 = sand.u32 51, %s1946
        %s1948 = sshrl.u32 %s1947, 2
        %s1949 = sor.u32 %s1947, %s1948
        %s1950 = sand.u32 15, %s1949
        %v1951 = vld [vmem:[%s1938] sm:%s1950]
        %v1952 = vunpack.c.l.bf16 %v1951
        %v1953 = vunpack.c.h.bf16 %v1951
        %s1954 = ssub.s32 0, %s39
        %v1955 = vstv %s1954
        %vm1956 = vcmp.lt.s32.totalorder %v1955, 0
        %v1957 = vsel %vm1956, %v12, %v1952
        %s1958 = smul.addr %s39, 128
        %v1959 = vlaneseq
        %v1960 = vand.u32 %v1959, 127
        %v1961 = vstv %s1958
        %v1962 = vadd.s32 %v1960, %v1961
        %vm1963 = vcmp.lt.s32.totalorder %v1962, 27
        %v1964 = vsel %vm1963, %v1957, %v12
        %s1965 = scalar_lea.vmem [#allocation25], 204
        %v1966 = vpack.c.bf16 0.0, %v1964
        %s1968 = ssub.s32 16, 1
        %1969 = vst [vmem:[%s1965] sm:%s1968] %v1966
        %s1970 = scalar_lea.vmem %s286, 208
        %s1971 = ssub.s32 0, %s39
        %p1972 = scmp.lt.s32.totalorder %s1971, 0
        %s1973 = scalar_select %p1972, 0, 255
        %s1974 = sshrl.u32 %s1973, 1
        %s1975 = sor.u32 %s1973, %s1974
        %s1976 = sand.u32 %s1975, 85
        %s1977 = sshrl.u32 %s1976, 1
        %s1978 = sor.u32 %s1976, %s1977
        %s1979 = sand.u32 51, %s1978
        %s1980 = sshrl.u32 %s1979, 2
        %s1981 = sor.u32 %s1979, %s1980
        %s1982 = sand.u32 15, %s1981
        %v1983 = vld [vmem:[%s1970] sm:%s1982]
        %v1984 = vunpack.c.l.bf16 %v1983
        %v1985 = vunpack.c.h.bf16 %v1983
        %s1986 = ssub.s32 0, %s39
        %v1987 = vstv %s1986
        %vm1988 = vcmp.lt.s32.totalorder %v1987, 0
        %v1989 = vsel %vm1988, %v12, %v1984
        %s1990 = smul.addr %s39, 128
        %v1991 = vlaneseq
        %v1992 = vand.u32 %v1991, 127
        %v1993 = vstv %s1990
        %v1994 = vadd.s32 %v1992, %v1993
        %vm1995 = vcmp.lt.s32.totalorder %v1994, 27
        %v1996 = vsel %vm1995, %v1989, %v12
        %s1997 = scalar_lea.vmem [#allocation25], 208
        %v1998 = vpack.c.bf16 0.0, %v1996
        %s2000 = ssub.s32 16, 1
        %2001 = vst [vmem:[%s1997] sm:%s2000] %v1998
        %s2002 = scalar_lea.vmem %s286, 212
        %s2003 = ssub.s32 0, %s39
        %p2004 = scmp.lt.s32.totalorder %s2003, 0
        %s2005 = scalar_select %p2004, 0, 255
        %s2006 = sshrl.u32 %s2005, 1
        %s2007 = sor.u32 %s2005, %s2006
        %s2008 = sand.u32 %s2007, 85
        %s2009 = sshrl.u32 %s2008, 1
        %s2010 = sor.u32 %s2008, %s2009
        %s2011 = sand.u32 51, %s2010
        %s2012 = sshrl.u32 %s2011, 2
        %s2013 = sor.u32 %s2011, %s2012
        %s2014 = sand.u32 15, %s2013
        %v2015 = vld [vmem:[%s2002] sm:%s2014]
        %v2016 = vunpack.c.l.bf16 %v2015
        %v2017 = vunpack.c.h.bf16 %v2015
        %s2018 = ssub.s32 0, %s39
        %v2019 = vstv %s2018
        %vm2020 = vcmp.lt.s32.totalorder %v2019, 0
        %v2021 = vsel %vm2020, %v12, %v2016
        %s2022 = smul.addr %s39, 128
        %v2023 = vlaneseq
        %v2024 = vand.u32 %v2023, 127
        %v2025 = vstv %s2022
        %v2026 = vadd.s32 %v2024, %v2025
        %vm2027 = vcmp.lt.s32.totalorder %v2026, 27
        %v2028 = vsel %vm2027, %v2021, %v12
        %s2029 = scalar_lea.vmem [#allocation25], 212
        %v2030 = vpack.c.bf16 0.0, %v2028
        %s2032 = ssub.s32 16, 1
        %2033 = vst [vmem:[%s2029] sm:%s2032] %v2030
        %s2034 = scalar_lea.vmem %s286, 216
        %s2035 = ssub.s32 0, %s39
        %p2036 = scmp.lt.s32.totalorder %s2035, 0
        %s2037 = scalar_select %p2036, 0, 255
        %s2038 = sshrl.u32 %s2037, 1
        %s2039 = sor.u32 %s2037, %s2038
        %s2040 = sand.u32 %s2039, 85
        %s2041 = sshrl.u32 %s2040, 1
        %s2042 = sor.u32 %s2040, %s2041
        %s2043 = sand.u32 51, %s2042
        %s2044 = sshrl.u32 %s2043, 2
        %s2045 = sor.u32 %s2043, %s2044
        %s2046 = sand.u32 15, %s2045
        %v2047 = vld [vmem:[%s2034] sm:%s2046]
        %v2048 = vunpack.c.l.bf16 %v2047
        %v2049 = vunpack.c.h.bf16 %v2047
        %s2050 = ssub.s32 0, %s39
        %v2051 = vstv %s2050
        %vm2052 = vcmp.lt.s32.totalorder %v2051, 0
        %v2053 = vsel %vm2052, %v12, %v2048
        %s2054 = smul.addr %s39, 128
        %v2055 = vlaneseq
        %v2056 = vand.u32 %v2055, 127
        %v2057 = vstv %s2054
        %v2058 = vadd.s32 %v2056, %v2057
        %vm2059 = vcmp.lt.s32.totalorder %v2058, 27
        %v2060 = vsel %vm2059, %v2053, %v12
        %s2061 = scalar_lea.vmem [#allocation25], 216
        %v2062 = vpack.c.bf16 0.0, %v2060
        %s2064 = ssub.s32 16, 1
        %2065 = vst [vmem:[%s2061] sm:%s2064] %v2062
        %s2066 = scalar_lea.vmem %s286, 220
        %s2067 = ssub.s32 0, %s39
        %p2068 = scmp.lt.s32.totalorder %s2067, 0
        %s2069 = scalar_select %p2068, 0, 255
        %s2070 = sshrl.u32 %s2069, 1
        %s2071 = sor.u32 %s2069, %s2070
        %s2072 = sand.u32 %s2071, 85
        %s2073 = sshrl.u32 %s2072, 1
        %s2074 = sor.u32 %s2072, %s2073
        %s2075 = sand.u32 51, %s2074
        %s2076 = sshrl.u32 %s2075, 2
        %s2077 = sor.u32 %s2075, %s2076
        %s2078 = sand.u32 15, %s2077
        %v2079 = vld [vmem:[%s2066] sm:%s2078]
        %v2080 = vunpack.c.l.bf16 %v2079
        %v2081 = vunpack.c.h.bf16 %v2079
        %s2082 = ssub.s32 0, %s39
        %v2083 = vstv %s2082
        %vm2084 = vcmp.lt.s32.totalorder %v2083, 0
        %v2085 = vsel %vm2084, %v12, %v2080
        %s2086 = smul.addr %s39, 128
        %v2087 = vlaneseq
        %v2088 = vand.u32 %v2087, 127
        %v2089 = vstv %s2086
        %v2090 = vadd.s32 %v2088, %v2089
        %vm2091 = vcmp.lt.s32.totalorder %v2090, 27
        %v2092 = vsel %vm2091, %v2085, %v12
        %s2093 = scalar_lea.vmem [#allocation25], 220
        %v2094 = vpack.c.bf16 0.0, %v2092
        %s2096 = ssub.s32 16, 1
        %2097 = vst [vmem:[%s2093] sm:%s2096] %v2094
        %s2098 = scalar_lea.vmem %s286, 224
        %s2099 = ssub.s32 0, %s39
        %p2100 = scmp.lt.s32.totalorder %s2099, 0
        %s2101 = scalar_select %p2100, 0, 255
        %s2102 = sshrl.u32 %s2101, 1
        %s2103 = sor.u32 %s2101, %s2102
        %s2104 = sand.u32 %s2103, 85
        %s2105 = sshrl.u32 %s2104, 1
        %s2106 = sor.u32 %s2104, %s2105
        %s2107 = sand.u32 51, %s2106
        %s2108 = sshrl.u32 %s2107, 2
        %s2109 = sor.u32 %s2107, %s2108
        %s2110 = sand.u32 15, %s2109
        %v2111 = vld [vmem:[%s2098] sm:%s2110]
        %v2112 = vunpack.c.l.bf16 %v2111
        %v2113 = vunpack.c.h.bf16 %v2111
        %s2114 = ssub.s32 0, %s39
        %v2115 = vstv %s2114
        %vm2116 = vcmp.lt.s32.totalorder %v2115, 0
        %v2117 = vsel %vm2116, %v12, %v2112
        %s2118 = smul.addr %s39, 128
        %v2119 = vlaneseq
        %v2120 = vand.u32 %v2119, 127
        %v2121 = vstv %s2118
        %v2122 = vadd.s32 %v2120, %v2121
        %vm2123 = vcmp.lt.s32.totalorder %v2122, 27
        %v2124 = vsel %vm2123, %v2117, %v12
        %s2125 = scalar_lea.vmem [#allocation25], 224
        %v2126 = vpack.c.bf16 0.0, %v2124
        %s2128 = ssub.s32 16, 1
        %2129 = vst [vmem:[%s2125] sm:%s2128] %v2126
        %s2130 = scalar_lea.vmem %s286, 228
        %s2131 = ssub.s32 0, %s39
        %p2132 = scmp.lt.s32.totalorder %s2131, 0
        %s2133 = scalar_select %p2132, 0, 255
        %s2134 = sshrl.u32 %s2133, 1
        %s2135 = sor.u32 %s2133, %s2134
        %s2136 = sand.u32 %s2135, 85
        %s2137 = sshrl.u32 %s2136, 1
        %s2138 = sor.u32 %s2136, %s2137
        %s2139 = sand.u32 51, %s2138
        %s2140 = sshrl.u32 %s2139, 2
        %s2141 = sor.u32 %s2139, %s2140
        %s2142 = sand.u32 15, %s2141
        %v2143 = vld [vmem:[%s2130] sm:%s2142]
        %v2144 = vunpack.c.l.bf16 %v2143
        %v2145 = vunpack.c.h.bf16 %v2143
        %s2146 = ssub.s32 0, %s39
        %v2147 = vstv %s2146
        %vm2148 = vcmp.lt.s32.totalorder %v2147, 0
        %v2149 = vsel %vm2148, %v12, %v2144
        %s2150 = smul.addr %s39, 128
        %v2151 = vlaneseq
        %v2152 = vand.u32 %v2151, 127
        %v2153 = vstv %s2150
        %v2154 = vadd.s32 %v2152, %v2153
        %vm2155 = vcmp.lt.s32.totalorder %v2154, 27
        %v2156 = vsel %vm2155, %v2149, %v12
        %s2157 = scalar_lea.vmem [#allocation25], 228
        %v2158 = vpack.c.bf16 0.0, %v2156
        %s2160 = ssub.s32 16, 1
        %2161 = vst [vmem:[%s2157] sm:%s2160] %v2158
        %s2162 = scalar_lea.vmem %s286, 232
        %s2163 = ssub.s32 0, %s39
        %p2164 = scmp.lt.s32.totalorder %s2163, 0
        %s2165 = scalar_select %p2164, 0, 255
        %s2166 = sshrl.u32 %s2165, 1
        %s2167 = sor.u32 %s2165, %s2166
        %s2168 = sand.u32 %s2167, 85
        %s2169 = sshrl.u32 %s2168, 1
        %s2170 = sor.u32 %s2168, %s2169
        %s2171 = sand.u32 51, %s2170
        %s2172 = sshrl.u32 %s2171, 2
        %s2173 = sor.u32 %s2171, %s2172
        %s2174 = sand.u32 15, %s2173
        %v2175 = vld [vmem:[%s2162] sm:%s2174]
        %v2176 = vunpack.c.l.bf16 %v2175
        %v2177 = vunpack.c.h.bf16 %v2175
        %s2178 = ssub.s32 0, %s39
        %v2179 = vstv %s2178
        %vm2180 = vcmp.lt.s32.totalorder %v2179, 0
        %v2181 = vsel %vm2180, %v12, %v2176
        %s2182 = smul.addr %s39, 128
        %v2183 = vlaneseq
        %v2184 = vand.u32 %v2183, 127
        %v2185 = vstv %s2182
        %v2186 = vadd.s32 %v2184, %v2185
        %vm2187 = vcmp.lt.s32.totalorder %v2186, 27
        %v2188 = vsel %vm2187, %v2181, %v12
        %s2189 = scalar_lea.vmem [#allocation25], 232
        %v2190 = vpack.c.bf16 0.0, %v2188
        %s2192 = ssub.s32 16, 1
        %2193 = vst [vmem:[%s2189] sm:%s2192] %v2190
        %s2194 = scalar_lea.vmem %s286, 236
        %s2195 = ssub.s32 0, %s39
        %p2196 = scmp.lt.s32.totalorder %s2195, 0
        %s2197 = scalar_select %p2196, 0, 255
        %s2198 = sshrl.u32 %s2197, 1
        %s2199 = sor.u32 %s2197, %s2198
        %s2200 = sand.u32 %s2199, 85
        %s2201 = sshrl.u32 %s2200, 1
        %s2202 = sor.u32 %s2200, %s2201
        %s2203 = sand.u32 51, %s2202
        %s2204 = sshrl.u32 %s2203, 2
        %s2205 = sor.u32 %s2203, %s2204
        %s2206 = sand.u32 15, %s2205
        %v2207 = vld [vmem:[%s2194] sm:%s2206]
        %v2208 = vunpack.c.l.bf16 %v2207
        %v2209 = vunpack.c.h.bf16 %v2207
        %s2210 = ssub.s32 0, %s39
        %v2211 = vstv %s2210
        %vm2212 = vcmp.lt.s32.totalorder %v2211, 0
        %v2213 = vsel %vm2212, %v12, %v2208
        %s2214 = smul.addr %s39, 128
        %v2215 = vlaneseq
        %v2216 = vand.u32 %v2215, 127
        %v2217 = vstv %s2214
        %v2218 = vadd.s32 %v2216, %v2217
        %vm2219 = vcmp.lt.s32.totalorder %v2218, 27
        %v2220 = vsel %vm2219, %v2213, %v12
        %s2221 = scalar_lea.vmem [#allocation25], 236
        %v2222 = vpack.c.bf16 0.0, %v2220
        %s2224 = ssub.s32 16, 1
        %2225 = vst [vmem:[%s2221] sm:%s2224] %v2222
        %s2226 = scalar_lea.vmem %s286, 240
        %s2227 = ssub.s32 0, %s39
        %p2228 = scmp.lt.s32.totalorder %s2227, 0
        %s2229 = scalar_select %p2228, 0, 255
        %s2230 = sshrl.u32 %s2229, 1
        %s2231 = sor.u32 %s2229, %s2230
        %s2232 = sand.u32 %s2231, 85
        %s2233 = sshrl.u32 %s2232, 1
        %s2234 = sor.u32 %s2232, %s2233
        %s2235 = sand.u32 51, %s2234
        %s2236 = sshrl.u32 %s2235, 2
        %s2237 = sor.u32 %s2235, %s2236
        %s2238 = sand.u32 15, %s2237
        %v2239 = vld [vmem:[%s2226] sm:%s2238]
        %v2240 = vunpack.c.l.bf16 %v2239
        %v2241 = vunpack.c.h.bf16 %v2239
        %s2242 = ssub.s32 0, %s39
        %v2243 = vstv %s2242
        %vm2244 = vcmp.lt.s32.totalorder %v2243, 0
        %v2245 = vsel %vm2244, %v12, %v2240
        %s2246 = smul.addr %s39, 128
        %v2247 = vlaneseq
        %v2248 = vand.u32 %v2247, 127
        %v2249 = vstv %s2246
        %v2250 = vadd.s32 %v2248, %v2249
        %vm2251 = vcmp.lt.s32.totalorder %v2250, 27
        %v2252 = vsel %vm2251, %v2245, %v12
        %s2253 = scalar_lea.vmem [#allocation25], 240
        %v2254 = vpack.c.bf16 0.0, %v2252
        %s2256 = ssub.s32 16, 1
        %2257 = vst [vmem:[%s2253] sm:%s2256] %v2254
        %s2258 = scalar_lea.vmem %s286, 244
        %s2259 = ssub.s32 0, %s39
        %p2260 = scmp.lt.s32.totalorder %s2259, 0
        %s2261 = scalar_select %p2260, 0, 255
        %s2262 = sshrl.u32 %s2261, 1
        %s2263 = sor.u32 %s2261, %s2262
        %s2264 = sand.u32 %s2263, 85
        %s2265 = sshrl.u32 %s2264, 1
        %s2266 = sor.u32 %s2264, %s2265
        %s2267 = sand.u32 51, %s2266
        %s2268 = sshrl.u32 %s2267, 2
        %s2269 = sor.u32 %s2267, %s2268
        %s2270 = sand.u32 15, %s2269
        %v2271 = vld [vmem:[%s2258] sm:%s2270]
        %v2272 = vunpack.c.l.bf16 %v2271
        %v2273 = vunpack.c.h.bf16 %v2271
        %s2274 = ssub.s32 0, %s39
        %v2275 = vstv %s2274
        %vm2276 = vcmp.lt.s32.totalorder %v2275, 0
        %v2277 = vsel %vm2276, %v12, %v2272
        %s2278 = smul.addr %s39, 128
        %v2279 = vlaneseq
        %v2280 = vand.u32 %v2279, 127
        %v2281 = vstv %s2278
        %v2282 = vadd.s32 %v2280, %v2281
        %vm2283 = vcmp.lt.s32.totalorder %v2282, 27
        %v2284 = vsel %vm2283, %v2277, %v12
        %s2285 = scalar_lea.vmem [#allocation25], 244
        %v2286 = vpack.c.bf16 0.0, %v2284
        %s2288 = ssub.s32 16, 1
        %2289 = vst [vmem:[%s2285] sm:%s2288] %v2286
        %s2290 = scalar_lea.vmem %s286, 248
        %s2291 = ssub.s32 0, %s39
        %p2292 = scmp.lt.s32.totalorder %s2291, 0
        %s2293 = scalar_select %p2292, 0, 255
        %s2294 = sshrl.u32 %s2293, 1
        %s2295 = sor.u32 %s2293, %s2294
        %s2296 = sand.u32 %s2295, 85
        %s2297 = sshrl.u32 %s2296, 1
        %s2298 = sor.u32 %s2296, %s2297
        %s2299 = sand.u32 51, %s2298
        %s2300 = sshrl.u32 %s2299, 2
        %s2301 = sor.u32 %s2299, %s2300
        %s2302 = sand.u32 15, %s2301
        %v2303 = vld [vmem:[%s2290] sm:%s2302]
        %v2304 = vunpack.c.l.bf16 %v2303
        %v2305 = vunpack.c.h.bf16 %v2303
        %s2306 = ssub.s32 0, %s39
        %v2307 = vstv %s2306
        %vm2308 = vcmp.lt.s32.totalorder %v2307, 0
        %v2309 = vsel %vm2308, %v12, %v2304
        %s2310 = smul.addr %s39, 128
        %v2311 = vlaneseq
        %v2312 = vand.u32 %v2311, 127
        %v2313 = vstv %s2310
        %v2314 = vadd.s32 %v2312, %v2313
        %vm2315 = vcmp.lt.s32.totalorder %v2314, 27
        %v2316 = vsel %vm2315, %v2309, %v12
        %s2317 = scalar_lea.vmem [#allocation25], 248
        %v2318 = vpack.c.bf16 0.0, %v2316
        %s2320 = ssub.s32 16, 1
        %2321 = vst [vmem:[%s2317] sm:%s2320] %v2318
        %s2322 = scalar_lea.vmem %s286, 252
        %s2323 = ssub.s32 0, %s39
        %p2324 = scmp.lt.s32.totalorder %s2323, 0
        %s2325 = scalar_select %p2324, 0, 255
        %s2326 = sshrl.u32 %s2325, 1
        %s2327 = sor.u32 %s2325, %s2326
        %s2328 = sand.u32 %s2327, 85
        %s2329 = sshrl.u32 %s2328, 1
        %s2330 = sor.u32 %s2328, %s2329
        %s2331 = sand.u32 51, %s2330
        %s2332 = sshrl.u32 %s2331, 2
        %s2333 = sor.u32 %s2331, %s2332
        %s2334 = sand.u32 15, %s2333
        %v2335 = vld [vmem:[%s2322] sm:%s2334]
        %v2336 = vunpack.c.l.bf16 %v2335
        %v2337 = vunpack.c.h.bf16 %v2335
        %s2338 = ssub.s32 0, %s39
        %v2339 = vstv %s2338
        %vm2340 = vcmp.lt.s32.totalorder %v2339, 0
        %v2341 = vsel %vm2340, %v12, %v2336
        %s2342 = smul.addr %s39, 128
        %v2343 = vlaneseq
        %v2344 = vand.u32 %v2343, 127
        %v2345 = vstv %s2342
        %v2346 = vadd.s32 %v2344, %v2345
        %vm2347 = vcmp.lt.s32.totalorder %v2346, 27
        %v2348 = vsel %vm2347, %v2341, %v12
        %s2349 = scalar_lea.vmem [#allocation25], 252
        %v2350 = vpack.c.bf16 0.0, %v2348
        %s2352 = ssub.s32 16, 1
        %2353 = vst [vmem:[%s2349] sm:%s2352] %v2350
        %s2354 = scalar_lea.vmem %s286, 256
        %s2355 = ssub.s32 0, %s39
        %p2356 = scmp.lt.s32.totalorder %s2355, 0
        %s2357 = scalar_select %p2356, 0, 255
        %s2358 = sshrl.u32 %s2357, 1
        %s2359 = sor.u32 %s2357, %s2358
        %s2360 = sand.u32 %s2359, 85
        %s2361 = sshrl.u32 %s2360, 1
        %s2362 = sor.u32 %s2360, %s2361
        %s2363 = sand.u32 51, %s2362
        %s2364 = sshrl.u32 %s2363, 2
        %s2365 = sor.u32 %s2363, %s2364
        %s2366 = sand.u32 15, %s2365
        %v2367 = vld [vmem:[%s2354] sm:%s2366]
        %v2368 = vunpack.c.l.bf16 %v2367
        %v2369 = vunpack.c.h.bf16 %v2367
        %s2370 = ssub.s32 0, %s39
        %v2371 = vstv %s2370
        %vm2372 = vcmp.lt.s32.totalorder %v2371, 0
        %v2373 = vsel %vm2372, %v12, %v2368
        %s2374 = smul.addr %s39, 128
        %v2375 = vlaneseq
        %v2376 = vand.u32 %v2375, 127
        %v2377 = vstv %s2374
        %v2378 = vadd.s32 %v2376, %v2377
        %vm2379 = vcmp.lt.s32.totalorder %v2378, 27
        %v2380 = vsel %vm2379, %v2373, %v12
        %s2381 = scalar_lea.vmem [#allocation25], 256
        %v2382 = vpack.c.bf16 0.0, %v2380
        %s2384 = ssub.s32 16, 1
        %2385 = vst [vmem:[%s2381] sm:%s2384] %v2382
        %s2386 = scalar_lea.vmem %s286, 260
        %s2387 = ssub.s32 0, %s39
        %p2388 = scmp.lt.s32.totalorder %s2387, 0
        %s2389 = scalar_select %p2388, 0, 255
        %s2390 = sshrl.u32 %s2389, 1
        %s2391 = sor.u32 %s2389, %s2390
        %s2392 = sand.u32 %s2391, 85
        %s2393 = sshrl.u32 %s2392, 1
        %s2394 = sor.u32 %s2392, %s2393
        %s2395 = sand.u32 51, %s2394
        %s2396 = sshrl.u32 %s2395, 2
        %s2397 = sor.u32 %s2395, %s2396
        %s2398 = sand.u32 15, %s2397
        %v2399 = vld [vmem:[%s2386] sm:%s2398]
        %v2400 = vunpack.c.l.bf16 %v2399
        %v2401 = vunpack.c.h.bf16 %v2399
        %s2402 = ssub.s32 0, %s39
        %v2403 = vstv %s2402
        %vm2404 = vcmp.lt.s32.totalorder %v2403, 0
        %v2405 = vsel %vm2404, %v12, %v2400
        %s2406 = smul.addr %s39, 128
        %v2407 = vlaneseq
        %v2408 = vand.u32 %v2407, 127
        %v2409 = vstv %s2406
        %v2410 = vadd.s32 %v2408, %v2409
        %vm2411 = vcmp.lt.s32.totalorder %v2410, 27
        %v2412 = vsel %vm2411, %v2405, %v12
        %s2413 = scalar_lea.vmem [#allocation25], 260
        %v2414 = vpack.c.bf16 0.0, %v2412
        %s2416 = ssub.s32 16, 1
        %2417 = vst [vmem:[%s2413] sm:%s2416] %v2414
        %s2418 = scalar_lea.vmem %s286, 264
        %s2419 = ssub.s32 0, %s39
        %p2420 = scmp.lt.s32.totalorder %s2419, 0
        %s2421 = scalar_select %p2420, 0, 255
        %s2422 = sshrl.u32 %s2421, 1
        %s2423 = sor.u32 %s2421, %s2422
        %s2424 = sand.u32 %s2423, 85
        %s2425 = sshrl.u32 %s2424, 1
        %s2426 = sor.u32 %s2424, %s2425
        %s2427 = sand.u32 51, %s2426
        %s2428 = sshrl.u32 %s2427, 2
        %s2429 = sor.u32 %s2427, %s2428
        %s2430 = sand.u32 15, %s2429
        %v2431 = vld [vmem:[%s2418] sm:%s2430]
        %v2432 = vunpack.c.l.bf16 %v2431
        %v2433 = vunpack.c.h.bf16 %v2431
        %s2434 = ssub.s32 0, %s39
        %v2435 = vstv %s2434
        %vm2436 = vcmp.lt.s32.totalorder %v2435, 0
        %v2437 = vsel %vm2436, %v12, %v2432
        %s2438 = smul.addr %s39, 128
        %v2439 = vlaneseq
        %v2440 = vand.u32 %v2439, 127
        %v2441 = vstv %s2438
        %v2442 = vadd.s32 %v2440, %v2441
        %vm2443 = vcmp.lt.s32.totalorder %v2442, 27
        %v2444 = vsel %vm2443, %v2437, %v12
        %s2445 = scalar_lea.vmem [#allocation25], 264
        %v2446 = vpack.c.bf16 0.0, %v2444
        %s2448 = ssub.s32 16, 1
        %2449 = vst [vmem:[%s2445] sm:%s2448] %v2446
        %s2450 = scalar_lea.vmem %s286, 268
        %s2451 = ssub.s32 0, %s39
        %p2452 = scmp.lt.s32.totalorder %s2451, 0
        %s2453 = scalar_select %p2452, 0, 255
        %s2454 = sshrl.u32 %s2453, 1
        %s2455 = sor.u32 %s2453, %s2454
        %s2456 = sand.u32 %s2455, 85
        %s2457 = sshrl.u32 %s2456, 1
        %s2458 = sor.u32 %s2456, %s2457
        %s2459 = sand.u32 51, %s2458
        %s2460 = sshrl.u32 %s2459, 2
        %s2461 = sor.u32 %s2459, %s2460
        %s2462 = sand.u32 15, %s2461
        %v2463 = vld [vmem:[%s2450] sm:%s2462]
        %v2464 = vunpack.c.l.bf16 %v2463
        %v2465 = vunpack.c.h.bf16 %v2463
        %s2466 = ssub.s32 0, %s39
        %v2467 = vstv %s2466
        %vm2468 = vcmp.lt.s32.totalorder %v2467, 0
        %v2469 = vsel %vm2468, %v12, %v2464
        %s2470 = smul.addr %s39, 128
        %v2471 = vlaneseq
        %v2472 = vand.u32 %v2471, 127
        %v2473 = vstv %s2470
        %v2474 = vadd.s32 %v2472, %v2473
        %vm2475 = vcmp.lt.s32.totalorder %v2474, 27
        %v2476 = vsel %vm2475, %v2469, %v12
        %s2477 = scalar_lea.vmem [#allocation25], 268
        %v2478 = vpack.c.bf16 0.0, %v2476
        %s2480 = ssub.s32 16, 1
        %2481 = vst [vmem:[%s2477] sm:%s2480] %v2478
        %s2482 = scalar_lea.vmem %s286, 272
        %s2483 = ssub.s32 0, %s39
        %p2484 = scmp.lt.s32.totalorder %s2483, 0
        %s2485 = scalar_select %p2484, 0, 255
        %s2486 = sshrl.u32 %s2485, 1
        %s2487 = sor.u32 %s2485, %s2486
        %s2488 = sand.u32 %s2487, 85
        %s2489 = sshrl.u32 %s2488, 1
        %s2490 = sor.u32 %s2488, %s2489
        %s2491 = sand.u32 51, %s2490
        %s2492 = sshrl.u32 %s2491, 2
        %s2493 = sor.u32 %s2491, %s2492
        %s2494 = sand.u32 15, %s2493
        %v2495 = vld [vmem:[%s2482] sm:%s2494]
        %v2496 = vunpack.c.l.bf16 %v2495
        %v2497 = vunpack.c.h.bf16 %v2495
        %s2498 = ssub.s32 0, %s39
        %v2499 = vstv %s2498
        %vm2500 = vcmp.lt.s32.totalorder %v2499, 0
        %v2501 = vsel %vm2500, %v12, %v2496
        %s2502 = smul.addr %s39, 128
        %v2503 = vlaneseq
        %v2504 = vand.u32 %v2503, 127
        %v2505 = vstv %s2502
        %v2506 = vadd.s32 %v2504, %v2505
        %vm2507 = vcmp.lt.s32.totalorder %v2506, 27
        %v2508 = vsel %vm2507, %v2501, %v12
        %s2509 = scalar_lea.vmem [#allocation25], 272
        %v2510 = vpack.c.bf16 0.0, %v2508
        %s2512 = ssub.s32 16, 1
        %2513 = vst [vmem:[%s2509] sm:%s2512] %v2510
        %s2514 = scalar_lea.vmem %s286, 276
        %s2515 = ssub.s32 0, %s39
        %p2516 = scmp.lt.s32.totalorder %s2515, 0
        %s2517 = scalar_select %p2516, 0, 255
        %s2518 = sshrl.u32 %s2517, 1
        %s2519 = sor.u32 %s2517, %s2518
        %s2520 = sand.u32 %s2519, 85
        %s2521 = sshrl.u32 %s2520, 1
        %s2522 = sor.u32 %s2520, %s2521
        %s2523 = sand.u32 51, %s2522
        %s2524 = sshrl.u32 %s2523, 2
        %s2525 = sor.u32 %s2523, %s2524
        %s2526 = sand.u32 15, %s2525
        %v2527 = vld [vmem:[%s2514] sm:%s2526]
        %v2528 = vunpack.c.l.bf16 %v2527
        %v2529 = vunpack.c.h.bf16 %v2527
        %s2530 = ssub.s32 0, %s39
        %v2531 = vstv %s2530
        %vm2532 = vcmp.lt.s32.totalorder %v2531, 0
        %v2533 = vsel %vm2532, %v12, %v2528
        %s2534 = smul.addr %s39, 128
        %v2535 = vlaneseq
        %v2536 = vand.u32 %v2535, 127
        %v2537 = vstv %s2534
        %v2538 = vadd.s32 %v2536, %v2537
        %vm2539 = vcmp.lt.s32.totalorder %v2538, 27
        %v2540 = vsel %vm2539, %v2533, %v12
        %s2541 = scalar_lea.vmem [#allocation25], 276
        %v2542 = vpack.c.bf16 0.0, %v2540
        %s2544 = ssub.s32 16, 1
        %2545 = vst [vmem:[%s2541] sm:%s2544] %v2542
        %s2546 = scalar_lea.vmem %s286, 280
        %s2547 = ssub.s32 0, %s39
        %p2548 = scmp.lt.s32.totalorder %s2547, 0
        %s2549 = scalar_select %p2548, 0, 255
        %s2550 = sshrl.u32 %s2549, 1
        %s2551 = sor.u32 %s2549, %s2550
        %s2552 = sand.u32 %s2551, 85
        %s2553 = sshrl.u32 %s2552, 1
        %s2554 = sor.u32 %s2552, %s2553
        %s2555 = sand.u32 51, %s2554
        %s2556 = sshrl.u32 %s2555, 2
        %s2557 = sor.u32 %s2555, %s2556
        %s2558 = sand.u32 15, %s2557
        %v2559 = vld [vmem:[%s2546] sm:%s2558]
        %v2560 = vunpack.c.l.bf16 %v2559
        %v2561 = vunpack.c.h.bf16 %v2559
        %s2562 = ssub.s32 0, %s39
        %v2563 = vstv %s2562
        %vm2564 = vcmp.lt.s32.totalorder %v2563, 0
        %v2565 = vsel %vm2564, %v12, %v2560
        %s2566 = smul.addr %s39, 128
        %v2567 = vlaneseq
        %v2568 = vand.u32 %v2567, 127
        %v2569 = vstv %s2566
        %v2570 = vadd.s32 %v2568, %v2569
        %vm2571 = vcmp.lt.s32.totalorder %v2570, 27
        %v2572 = vsel %vm2571, %v2565, %v12
        %s2573 = scalar_lea.vmem [#allocation25], 280
        %v2574 = vpack.c.bf16 0.0, %v2572
        %s2576 = ssub.s32 16, 1
        %2577 = vst [vmem:[%s2573] sm:%s2576] %v2574
        %s2578 = scalar_lea.vmem %s286, 284
        %s2579 = ssub.s32 0, %s39
        %p2580 = scmp.lt.s32.totalorder %s2579, 0
        %s2581 = scalar_select %p2580, 0, 255
        %s2582 = sshrl.u32 %s2581, 1
        %s2583 = sor.u32 %s2581, %s2582
        %s2584 = sand.u32 %s2583, 85
        %s2585 = sshrl.u32 %s2584, 1
        %s2586 = sor.u32 %s2584, %s2585
        %s2587 = sand.u32 51, %s2586
        %s2588 = sshrl.u32 %s2587, 2
        %s2589 = sor.u32 %s2587, %s2588
        %s2590 = sand.u32 15, %s2589
        %v2591 = vld [vmem:[%s2578] sm:%s2590]
        %v2592 = vunpack.c.l.bf16 %v2591
        %v2593 = vunpack.c.h.bf16 %v2591
        %s2594 = ssub.s32 0, %s39
        %v2595 = vstv %s2594
        %vm2596 = vcmp.lt.s32.totalorder %v2595, 0
        %v2597 = vsel %vm2596, %v12, %v2592
        %s2598 = smul.addr %s39, 128
        %v2599 = vlaneseq
        %v2600 = vand.u32 %v2599, 127
        %v2601 = vstv %s2598
        %v2602 = vadd.s32 %v2600, %v2601
        %vm2603 = vcmp.lt.s32.totalorder %v2602, 27
        %v2604 = vsel %vm2603, %v2597, %v12
        %s2605 = scalar_lea.vmem [#allocation25], 284
        %v2606 = vpack.c.bf16 0.0, %v2604
        %s2608 = ssub.s32 16, 1
        %2609 = vst [vmem:[%s2605] sm:%s2608] %v2606
        %s2610 = scalar_lea.vmem %s286, 288
        %s2611 = ssub.s32 0, %s39
        %p2612 = scmp.lt.s32.totalorder %s2611, 0
        %s2613 = scalar_select %p2612, 0, 255
        %s2614 = sshrl.u32 %s2613, 1
        %s2615 = sor.u32 %s2613, %s2614
        %s2616 = sand.u32 %s2615, 85
        %s2617 = sshrl.u32 %s2616, 1
        %s2618 = sor.u32 %s2616, %s2617
        %s2619 = sand.u32 51, %s2618
        %s2620 = sshrl.u32 %s2619, 2
        %s2621 = sor.u32 %s2619, %s2620
        %s2622 = sand.u32 15, %s2621
        %v2623 = vld [vmem:[%s2610] sm:%s2622]
        %v2624 = vunpack.c.l.bf16 %v2623
        %v2625 = vunpack.c.h.bf16 %v2623
        %s2626 = ssub.s32 0, %s39
        %v2627 = vstv %s2626
        %vm2628 = vcmp.lt.s32.totalorder %v2627, 0
        %v2629 = vsel %vm2628, %v12, %v2624
        %s2630 = smul.addr %s39, 128
        %v2631 = vlaneseq
        %v2632 = vand.u32 %v2631, 127
        %v2633 = vstv %s2630
        %v2634 = vadd.s32 %v2632, %v2633
        %vm2635 = vcmp.lt.s32.totalorder %v2634, 27
        %v2636 = vsel %vm2635, %v2629, %v12
        %s2637 = scalar_lea.vmem [#allocation25], 288
        %v2638 = vpack.c.bf16 0.0, %v2636
        %s2640 = ssub.s32 16, 1
        %2641 = vst [vmem:[%s2637] sm:%s2640] %v2638
        %s2642 = scalar_lea.vmem %s286, 292
        %s2643 = ssub.s32 0, %s39
        %p2644 = scmp.lt.s32.totalorder %s2643, 0
        %s2645 = scalar_select %p2644, 0, 255
        %s2646 = sshrl.u32 %s2645, 1
        %s2647 = sor.u32 %s2645, %s2646
        %s2648 = sand.u32 %s2647, 85
        %s2649 = sshrl.u32 %s2648, 1
        %s2650 = sor.u32 %s2648, %s2649
        %s2651 = sand.u32 51, %s2650
        %s2652 = sshrl.u32 %s2651, 2
        %s2653 = sor.u32 %s2651, %s2652
        %s2654 = sand.u32 15, %s2653
        %v2655 = vld [vmem:[%s2642] sm:%s2654]
        %v2656 = vunpack.c.l.bf16 %v2655
        %v2657 = vunpack.c.h.bf16 %v2655
        %s2658 = ssub.s32 0, %s39
        %v2659 = vstv %s2658
        %vm2660 = vcmp.lt.s32.totalorder %v2659, 0
        %v2661 = vsel %vm2660, %v12, %v2656
        %s2662 = smul.addr %s39, 128
        %v2663 = vlaneseq
        %v2664 = vand.u32 %v2663, 127
        %v2665 = vstv %s2662
        %v2666 = vadd.s32 %v2664, %v2665
        %vm2667 = vcmp.lt.s32.totalorder %v2666, 27
        %v2668 = vsel %vm2667, %v2661, %v12
        %s2669 = scalar_lea.vmem [#allocation25], 292
        %v2670 = vpack.c.bf16 0.0, %v2668
        %s2672 = ssub.s32 16, 1
        %2673 = vst [vmem:[%s2669] sm:%s2672] %v2670
        %s2674 = scalar_lea.vmem %s286, 296
        %s2675 = ssub.s32 0, %s39
        %p2676 = scmp.lt.s32.totalorder %s2675, 0
        %s2677 = scalar_select %p2676, 0, 255
        %s2678 = sshrl.u32 %s2677, 1
        %s2679 = sor.u32 %s2677, %s2678
        %s2680 = sand.u32 %s2679, 85
        %s2681 = sshrl.u32 %s2680, 1
        %s2682 = sor.u32 %s2680, %s2681
        %s2683 = sand.u32 51, %s2682
        %s2684 = sshrl.u32 %s2683, 2
        %s2685 = sor.u32 %s2683, %s2684
        %s2686 = sand.u32 15, %s2685
        %v2687 = vld [vmem:[%s2674] sm:%s2686]
        %v2688 = vunpack.c.l.bf16 %v2687
        %v2689 = vunpack.c.h.bf16 %v2687
        %s2690 = ssub.s32 0, %s39
        %v2691 = vstv %s2690
        %vm2692 = vcmp.lt.s32.totalorder %v2691, 0
        %v2693 = vsel %vm2692, %v12, %v2688
        %s2694 = smul.addr %s39, 128
        %v2695 = vlaneseq
        %v2696 = vand.u32 %v2695, 127
        %v2697 = vstv %s2694
        %v2698 = vadd.s32 %v2696, %v2697
        %vm2699 = vcmp.lt.s32.totalorder %v2698, 27
        %v2700 = vsel %vm2699, %v2693, %v12
        %s2701 = scalar_lea.vmem [#allocation25], 296
        %v2702 = vpack.c.bf16 0.0, %v2700
        %s2704 = ssub.s32 16, 1
        %2705 = vst [vmem:[%s2701] sm:%s2704] %v2702
        %s2706 = scalar_lea.vmem %s286, 300
        %s2707 = ssub.s32 0, %s39
        %p2708 = scmp.lt.s32.totalorder %s2707, 0
        %s2709 = scalar_select %p2708, 0, 255
        %s2710 = sshrl.u32 %s2709, 1
        %s2711 = sor.u32 %s2709, %s2710
        %s2712 = sand.u32 %s2711, 85
        %s2713 = sshrl.u32 %s2712, 1
        %s2714 = sor.u32 %s2712, %s2713
        %s2715 = sand.u32 51, %s2714
        %s2716 = sshrl.u32 %s2715, 2
        %s2717 = sor.u32 %s2715, %s2716
        %s2718 = sand.u32 15, %s2717
        %v2719 = vld [vmem:[%s2706] sm:%s2718]
        %v2720 = vunpack.c.l.bf16 %v2719
        %v2721 = vunpack.c.h.bf16 %v2719
        %s2722 = ssub.s32 0, %s39
        %v2723 = vstv %s2722
        %vm2724 = vcmp.lt.s32.totalorder %v2723, 0
        %v2725 = vsel %vm2724, %v12, %v2720
        %s2726 = smul.addr %s39, 128
        %v2727 = vlaneseq
        %v2728 = vand.u32 %v2727, 127
        %v2729 = vstv %s2726
        %v2730 = vadd.s32 %v2728, %v2729
        %vm2731 = vcmp.lt.s32.totalorder %v2730, 27
        %v2732 = vsel %vm2731, %v2725, %v12
        %s2733 = scalar_lea.vmem [#allocation25], 300
        %v2734 = vpack.c.bf16 0.0, %v2732
        %s2736 = ssub.s32 16, 1
        %2737 = vst [vmem:[%s2733] sm:%s2736] %v2734
        %s2738 = scalar_lea.vmem %s286, 304
        %s2739 = ssub.s32 0, %s39
        %p2740 = scmp.lt.s32.totalorder %s2739, 0
        %s2741 = scalar_select %p2740, 0, 255
        %s2742 = sshrl.u32 %s2741, 1
        %s2743 = sor.u32 %s2741, %s2742
        %s2744 = sand.u32 %s2743, 85
        %s2745 = sshrl.u32 %s2744, 1
        %s2746 = sor.u32 %s2744, %s2745
        %s2747 = sand.u32 51, %s2746
        %s2748 = sshrl.u32 %s2747, 2
        %s2749 = sor.u32 %s2747, %s2748
        %s2750 = sand.u32 15, %s2749
        %v2751 = vld [vmem:[%s2738] sm:%s2750]
        %v2752 = vunpack.c.l.bf16 %v2751
        %v2753 = vunpack.c.h.bf16 %v2751
        %s2754 = ssub.s32 0, %s39
        %v2755 = vstv %s2754
        %vm2756 = vcmp.lt.s32.totalorder %v2755, 0
        %v2757 = vsel %vm2756, %v12, %v2752
        %s2758 = smul.addr %s39, 128
        %v2759 = vlaneseq
        %v2760 = vand.u32 %v2759, 127
        %v2761 = vstv %s2758
        %v2762 = vadd.s32 %v2760, %v2761
        %vm2763 = vcmp.lt.s32.totalorder %v2762, 27
        %v2764 = vsel %vm2763, %v2757, %v12
        %s2765 = scalar_lea.vmem [#allocation25], 304
        %v2766 = vpack.c.bf16 0.0, %v2764
        %s2768 = ssub.s32 16, 1
        %2769 = vst [vmem:[%s2765] sm:%s2768] %v2766
        %s2770 = scalar_lea.vmem %s286, 308
        %s2771 = ssub.s32 0, %s39
        %p2772 = scmp.lt.s32.totalorder %s2771, 0
        %s2773 = scalar_select %p2772, 0, 255
        %s2774 = sshrl.u32 %s2773, 1
        %s2775 = sor.u32 %s2773, %s2774
        %s2776 = sand.u32 %s2775, 85
        %s2777 = sshrl.u32 %s2776, 1
        %s2778 = sor.u32 %s2776, %s2777
        %s2779 = sand.u32 51, %s2778
        %s2780 = sshrl.u32 %s2779, 2
        %s2781 = sor.u32 %s2779, %s2780
        %s2782 = sand.u32 15, %s2781
        %v2783 = vld [vmem:[%s2770] sm:%s2782]
        %v2784 = vunpack.c.l.bf16 %v2783
        %v2785 = vunpack.c.h.bf16 %v2783
        %s2786 = ssub.s32 0, %s39
        %v2787 = vstv %s2786
        %vm2788 = vcmp.lt.s32.totalorder %v2787, 0
        %v2789 = vsel %vm2788, %v12, %v2784
        %s2790 = smul.addr %s39, 128
        %v2791 = vlaneseq
        %v2792 = vand.u32 %v2791, 127
        %v2793 = vstv %s2790
        %v2794 = vadd.s32 %v2792, %v2793
        %vm2795 = vcmp.lt.s32.totalorder %v2794, 27
        %v2796 = vsel %vm2795, %v2789, %v12
        %s2797 = scalar_lea.vmem [#allocation25], 308
        %v2798 = vpack.c.bf16 0.0, %v2796
        %s2800 = ssub.s32 16, 1
        %2801 = vst [vmem:[%s2797] sm:%s2800] %v2798
        %s2802 = scalar_lea.vmem %s286, 312
        %s2803 = ssub.s32 0, %s39
        %p2804 = scmp.lt.s32.totalorder %s2803, 0
        %s2805 = scalar_select %p2804, 0, 255
        %s2806 = sshrl.u32 %s2805, 1
        %s2807 = sor.u32 %s2805, %s2806
        %s2808 = sand.u32 %s2807, 85
        %s2809 = sshrl.u32 %s2808, 1
        %s2810 = sor.u32 %s2808, %s2809
        %s2811 = sand.u32 51, %s2810
        %s2812 = sshrl.u32 %s2811, 2
        %s2813 = sor.u32 %s2811, %s2812
        %s2814 = sand.u32 15, %s2813
        %v2815 = vld [vmem:[%s2802] sm:%s2814]
        %v2816 = vunpack.c.l.bf16 %v2815
        %v2817 = vunpack.c.h.bf16 %v2815
        %s2818 = ssub.s32 0, %s39
        %v2819 = vstv %s2818
        %vm2820 = vcmp.lt.s32.totalorder %v2819, 0
        %v2821 = vsel %vm2820, %v12, %v2816
        %s2822 = smul.addr %s39, 128
        %v2823 = vlaneseq
        %v2824 = vand.u32 %v2823, 127
        %v2825 = vstv %s2822
        %v2826 = vadd.s32 %v2824, %v2825
        %vm2827 = vcmp.lt.s32.totalorder %v2826, 27
        %v2828 = vsel %vm2827, %v2821, %v12
        %s2829 = scalar_lea.vmem [#allocation25], 312
        %v2830 = vpack.c.bf16 0.0, %v2828
        %s2832 = ssub.s32 16, 1
        %2833 = vst [vmem:[%s2829] sm:%s2832] %v2830
        %s2834 = scalar_lea.vmem %s286, 316
        %s2835 = ssub.s32 0, %s39
        %p2836 = scmp.lt.s32.totalorder %s2835, 0
        %s2837 = scalar_select %p2836, 0, 255
        %s2838 = sshrl.u32 %s2837, 1
        %s2839 = sor.u32 %s2837, %s2838
        %s2840 = sand.u32 %s2839, 85
        %s2841 = sshrl.u32 %s2840, 1
        %s2842 = sor.u32 %s2840, %s2841
        %s2843 = sand.u32 51, %s2842
        %s2844 = sshrl.u32 %s2843, 2
        %s2845 = sor.u32 %s2843, %s2844
        %s2846 = sand.u32 15, %s2845
        %v2847 = vld [vmem:[%s2834] sm:%s2846]
        %v2848 = vunpack.c.l.bf16 %v2847
        %v2849 = vunpack.c.h.bf16 %v2847
        %s2850 = ssub.s32 0, %s39
        %v2851 = vstv %s2850
        %vm2852 = vcmp.lt.s32.totalorder %v2851, 0
        %v2853 = vsel %vm2852, %v12, %v2848
        %s2854 = smul.addr %s39, 128
        %v2855 = vlaneseq
        %v2856 = vand.u32 %v2855, 127
        %v2857 = vstv %s2854
        %v2858 = vadd.s32 %v2856, %v2857
        %vm2859 = vcmp.lt.s32.totalorder %v2858, 27
        %v2860 = vsel %vm2859, %v2853, %v12
        %s2861 = scalar_lea.vmem [#allocation25], 316
        %v2862 = vpack.c.bf16 0.0, %v2860
        %s2864 = ssub.s32 16, 1
        %2865 = vst [vmem:[%s2861] sm:%s2864] %v2862
        %s2866 = scalar_lea.vmem %s286, 320
        %s2867 = ssub.s32 0, %s39
        %p2868 = scmp.lt.s32.totalorder %s2867, 0
        %s2869 = scalar_select %p2868, 0, 255
        %s2870 = sshrl.u32 %s2869, 1
        %s2871 = sor.u32 %s2869, %s2870
        %s2872 = sand.u32 %s2871, 85
        %s2873 = sshrl.u32 %s2872, 1
        %s2874 = sor.u32 %s2872, %s2873
        %s2875 = sand.u32 51, %s2874
        %s2876 = sshrl.u32 %s2875, 2
        %s2877 = sor.u32 %s2875, %s2876
        %s2878 = sand.u32 15, %s2877
        %v2879 = vld [vmem:[%s2866] sm:%s2878]
        %v2880 = vunpack.c.l.bf16 %v2879
        %v2881 = vunpack.c.h.bf16 %v2879
        %s2882 = ssub.s32 0, %s39
        %v2883 = vstv %s2882
        %vm2884 = vcmp.lt.s32.totalorder %v2883, 0
        %v2885 = vsel %vm2884, %v12, %v2880
        %s2886 = smul.addr %s39, 128
        %v2887 = vlaneseq
        %v2888 = vand.u32 %v2887, 127
        %v2889 = vstv %s2886
        %v2890 = vadd.s32 %v2888, %v2889
        %vm2891 = vcmp.lt.s32.totalorder %v2890, 27
        %v2892 = vsel %vm2891, %v2885, %v12
        %s2893 = scalar_lea.vmem [#allocation25], 320
        %v2894 = vpack.c.bf16 0.0, %v2892
        %s2896 = ssub.s32 16, 1
        %2897 = vst [vmem:[%s2893] sm:%s2896] %v2894
        %s2898 = scalar_lea.vmem %s286, 324
        %s2899 = ssub.s32 0, %s39
        %p2900 = scmp.lt.s32.totalorder %s2899, 0
        %s2901 = scalar_select %p2900, 0, 255
        %s2902 = sshrl.u32 %s2901, 1
        %s2903 = sor.u32 %s2901, %s2902
        %s2904 = sand.u32 %s2903, 85
        %s2905 = sshrl.u32 %s2904, 1
        %s2906 = sor.u32 %s2904, %s2905
        %s2907 = sand.u32 51, %s2906
        %s2908 = sshrl.u32 %s2907, 2
        %s2909 = sor.u32 %s2907, %s2908
        %s2910 = sand.u32 15, %s2909
        %v2911 = vld [vmem:[%s2898] sm:%s2910]
        %v2912 = vunpack.c.l.bf16 %v2911
        %v2913 = vunpack.c.h.bf16 %v2911
        %s2914 = ssub.s32 0, %s39
        %v2915 = vstv %s2914
        %vm2916 = vcmp.lt.s32.totalorder %v2915, 0
        %v2917 = vsel %vm2916, %v12, %v2912
        %s2918 = smul.addr %s39, 128
        %v2919 = vlaneseq
        %v2920 = vand.u32 %v2919, 127
        %v2921 = vstv %s2918
        %v2922 = vadd.s32 %v2920, %v2921
        %vm2923 = vcmp.lt.s32.totalorder %v2922, 27
        %v2924 = vsel %vm2923, %v2917, %v12
        %s2925 = scalar_lea.vmem [#allocation25], 324
        %v2926 = vpack.c.bf16 0.0, %v2924
        %s2928 = ssub.s32 16, 1
        %2929 = vst [vmem:[%s2925] sm:%s2928] %v2926
        %s2930 = scalar_lea.vmem %s286, 328
        %s2931 = ssub.s32 0, %s39
        %p2932 = scmp.lt.s32.totalorder %s2931, 0
        %s2933 = scalar_select %p2932, 0, 255
        %s2934 = sshrl.u32 %s2933, 1
        %s2935 = sor.u32 %s2933, %s2934
        %s2936 = sand.u32 %s2935, 85
        %s2937 = sshrl.u32 %s2936, 1
        %s2938 = sor.u32 %s2936, %s2937
        %s2939 = sand.u32 51, %s2938
        %s2940 = sshrl.u32 %s2939, 2
        %s2941 = sor.u32 %s2939, %s2940
        %s2942 = sand.u32 15, %s2941
        %v2943 = vld [vmem:[%s2930] sm:%s2942]
        %v2944 = vunpack.c.l.bf16 %v2943
        %v2945 = vunpack.c.h.bf16 %v2943
        %s2946 = ssub.s32 0, %s39
        %v2947 = vstv %s2946
        %vm2948 = vcmp.lt.s32.totalorder %v2947, 0
        %v2949 = vsel %vm2948, %v12, %v2944
        %s2950 = smul.addr %s39, 128
        %v2951 = vlaneseq
        %v2952 = vand.u32 %v2951, 127
        %v2953 = vstv %s2950
        %v2954 = vadd.s32 %v2952, %v2953
        %vm2955 = vcmp.lt.s32.totalorder %v2954, 27
        %v2956 = vsel %vm2955, %v2949, %v12
        %s2957 = scalar_lea.vmem [#allocation25], 328
        %v2958 = vpack.c.bf16 0.0, %v2956
        %s2960 = ssub.s32 16, 1
        %2961 = vst [vmem:[%s2957] sm:%s2960] %v2958
        %s2962 = scalar_lea.vmem %s286, 332
        %s2963 = ssub.s32 0, %s39
        %p2964 = scmp.lt.s32.totalorder %s2963, 0
        %s2965 = scalar_select %p2964, 0, 255
        %s2966 = sshrl.u32 %s2965, 1
        %s2967 = sor.u32 %s2965, %s2966
        %s2968 = sand.u32 %s2967, 85
        %s2969 = sshrl.u32 %s2968, 1
        %s2970 = sor.u32 %s2968, %s2969
        %s2971 = sand.u32 51, %s2970
        %s2972 = sshrl.u32 %s2971, 2
        %s2973 = sor.u32 %s2971, %s2972
        %s2974 = sand.u32 15, %s2973
        %v2975 = vld [vmem:[%s2962] sm:%s2974]
        %v2976 = vunpack.c.l.bf16 %v2975
        %v2977 = vunpack.c.h.bf16 %v2975
        %s2978 = ssub.s32 0, %s39
        %v2979 = vstv %s2978
        %vm2980 = vcmp.lt.s32.totalorder %v2979, 0
        %v2981 = vsel %vm2980, %v12, %v2976
        %s2982 = smul.addr %s39, 128
        %v2983 = vlaneseq
        %v2984 = vand.u32 %v2983, 127
        %v2985 = vstv %s2982
        %v2986 = vadd.s32 %v2984, %v2985
        %vm2987 = vcmp.lt.s32.totalorder %v2986, 27
        %v2988 = vsel %vm2987, %v2981, %v12
        %s2989 = scalar_lea.vmem [#allocation25], 332
        %v2990 = vpack.c.bf16 0.0, %v2988
        %s2992 = ssub.s32 16, 1
        %2993 = vst [vmem:[%s2989] sm:%s2992] %v2990
        %s2994 = scalar_lea.vmem %s286, 336
        %s2995 = ssub.s32 0, %s39
        %p2996 = scmp.lt.s32.totalorder %s2995, 0
        %s2997 = scalar_select %p2996, 0, 255
        %s2998 = sshrl.u32 %s2997, 1
        %s2999 = sor.u32 %s2997, %s2998
        %s3000 = sand.u32 %s2999, 85
        %s3001 = sshrl.u32 %s3000, 1
        %s3002 = sor.u32 %s3000, %s3001
        %s3003 = sand.u32 51, %s3002
        %s3004 = sshrl.u32 %s3003, 2
        %s3005 = sor.u32 %s3003, %s3004
        %s3006 = sand.u32 15, %s3005
        %v3007 = vld [vmem:[%s2994] sm:%s3006]
        %v3008 = vunpack.c.l.bf16 %v3007
        %v3009 = vunpack.c.h.bf16 %v3007
        %s3010 = ssub.s32 0, %s39
        %v3011 = vstv %s3010
        %vm3012 = vcmp.lt.s32.totalorder %v3011, 0
        %v3013 = vsel %vm3012, %v12, %v3008
        %s3014 = smul.addr %s39, 128
        %v3015 = vlaneseq
        %v3016 = vand.u32 %v3015, 127
        %v3017 = vstv %s3014
        %v3018 = vadd.s32 %v3016, %v3017
        %vm3019 = vcmp.lt.s32.totalorder %v3018, 27
        %v3020 = vsel %vm3019, %v3013, %v12
        %s3021 = scalar_lea.vmem [#allocation25], 336
        %v3022 = vpack.c.bf16 0.0, %v3020
        %s3024 = ssub.s32 16, 1
        %3025 = vst [vmem:[%s3021] sm:%s3024] %v3022
        %s3026 = scalar_lea.vmem %s286, 340
        %s3027 = ssub.s32 0, %s39
        %p3028 = scmp.lt.s32.totalorder %s3027, 0
        %s3029 = scalar_select %p3028, 0, 255
        %s3030 = sshrl.u32 %s3029, 1
        %s3031 = sor.u32 %s3029, %s3030
        %s3032 = sand.u32 %s3031, 85
        %s3033 = sshrl.u32 %s3032, 1
        %s3034 = sor.u32 %s3032, %s3033
        %s3035 = sand.u32 51, %s3034
        %s3036 = sshrl.u32 %s3035, 2
        %s3037 = sor.u32 %s3035, %s3036
        %s3038 = sand.u32 15, %s3037
        %v3039 = vld [vmem:[%s3026] sm:%s3038]
        %v3040 = vunpack.c.l.bf16 %v3039
        %v3041 = vunpack.c.h.bf16 %v3039
        %s3042 = ssub.s32 0, %s39
        %v3043 = vstv %s3042
        %vm3044 = vcmp.lt.s32.totalorder %v3043, 0
        %v3045 = vsel %vm3044, %v12, %v3040
        %s3046 = smul.addr %s39, 128
        %v3047 = vlaneseq
        %v3048 = vand.u32 %v3047, 127
        %v3049 = vstv %s3046
        %v3050 = vadd.s32 %v3048, %v3049
        %vm3051 = vcmp.lt.s32.totalorder %v3050, 27
        %v3052 = vsel %vm3051, %v3045, %v12
        %s3053 = scalar_lea.vmem [#allocation25], 340
        %v3054 = vpack.c.bf16 0.0, %v3052
        %s3056 = ssub.s32 16, 1
        %3057 = vst [vmem:[%s3053] sm:%s3056] %v3054
        %s3058 = scalar_lea.vmem %s286, 344
        %s3059 = ssub.s32 0, %s39
        %p3060 = scmp.lt.s32.totalorder %s3059, 0
        %s3061 = scalar_select %p3060, 0, 255
        %s3062 = sshrl.u32 %s3061, 1
        %s3063 = sor.u32 %s3061, %s3062
        %s3064 = sand.u32 %s3063, 85
        %s3065 = sshrl.u32 %s3064, 1
        %s3066 = sor.u32 %s3064, %s3065
        %s3067 = sand.u32 51, %s3066
        %s3068 = sshrl.u32 %s3067, 2
        %s3069 = sor.u32 %s3067, %s3068
        %s3070 = sand.u32 15, %s3069
        %v3071 = vld [vmem:[%s3058] sm:%s3070]
        %v3072 = vunpack.c.l.bf16 %v3071
        %v3073 = vunpack.c.h.bf16 %v3071
        %s3074 = ssub.s32 0, %s39
        %v3075 = vstv %s3074
        %vm3076 = vcmp.lt.s32.totalorder %v3075, 0
        %v3077 = vsel %vm3076, %v12, %v3072
        %s3078 = smul.addr %s39, 128
        %v3079 = vlaneseq
        %v3080 = vand.u32 %v3079, 127
        %v3081 = vstv %s3078
        %v3082 = vadd.s32 %v3080, %v3081
        %vm3083 = vcmp.lt.s32.totalorder %v3082, 27
        %v3084 = vsel %vm3083, %v3077, %v12
        %s3085 = scalar_lea.vmem [#allocation25], 344
        %v3086 = vpack.c.bf16 0.0, %v3084
        %s3088 = ssub.s32 16, 1
        %3089 = vst [vmem:[%s3085] sm:%s3088] %v3086
        %s3090 = scalar_lea.vmem %s286, 348
        %s3091 = ssub.s32 0, %s39
        %p3092 = scmp.lt.s32.totalorder %s3091, 0
        %s3093 = scalar_select %p3092, 0, 255
        %s3094 = sshrl.u32 %s3093, 1
        %s3095 = sor.u32 %s3093, %s3094
        %s3096 = sand.u32 %s3095, 85
        %s3097 = sshrl.u32 %s3096, 1
        %s3098 = sor.u32 %s3096, %s3097
        %s3099 = sand.u32 51, %s3098
        %s3100 = sshrl.u32 %s3099, 2
        %s3101 = sor.u32 %s3099, %s3100
        %s3102 = sand.u32 15, %s3101
        %v3103 = vld [vmem:[%s3090] sm:%s3102]
        %v3104 = vunpack.c.l.bf16 %v3103
        %v3105 = vunpack.c.h.bf16 %v3103
        %s3106 = ssub.s32 0, %s39
        %v3107 = vstv %s3106
        %vm3108 = vcmp.lt.s32.totalorder %v3107, 0
        %v3109 = vsel %vm3108, %v12, %v3104
        %s3110 = smul.addr %s39, 128
        %v3111 = vlaneseq
        %v3112 = vand.u32 %v3111, 127
        %v3113 = vstv %s3110
        %v3114 = vadd.s32 %v3112, %v3113
        %vm3115 = vcmp.lt.s32.totalorder %v3114, 27
        %v3116 = vsel %vm3115, %v3109, %v12
        %s3117 = scalar_lea.vmem [#allocation25], 348
        %v3118 = vpack.c.bf16 0.0, %v3116
        %s3120 = ssub.s32 16, 1
        %3121 = vst [vmem:[%s3117] sm:%s3120] %v3118
        %s3122 = scalar_lea.vmem %s286, 352
        %s3123 = ssub.s32 0, %s39
        %p3124 = scmp.lt.s32.totalorder %s3123, 0
        %s3125 = scalar_select %p3124, 0, 255
        %s3126 = sshrl.u32 %s3125, 1
        %s3127 = sor.u32 %s3125, %s3126
        %s3128 = sand.u32 %s3127, 85
        %s3129 = sshrl.u32 %s3128, 1
        %s3130 = sor.u32 %s3128, %s3129
        %s3131 = sand.u32 51, %s3130
        %s3132 = sshrl.u32 %s3131, 2
        %s3133 = sor.u32 %s3131, %s3132
        %s3134 = sand.u32 15, %s3133
        %v3135 = vld [vmem:[%s3122] sm:%s3134]
        %v3136 = vunpack.c.l.bf16 %v3135
        %v3137 = vunpack.c.h.bf16 %v3135
        %s3138 = ssub.s32 0, %s39
        %v3139 = vstv %s3138
        %vm3140 = vcmp.lt.s32.totalorder %v3139, 0
        %v3141 = vsel %vm3140, %v12, %v3136
        %s3142 = smul.addr %s39, 128
        %v3143 = vlaneseq
        %v3144 = vand.u32 %v3143, 127
        %v3145 = vstv %s3142
        %v3146 = vadd.s32 %v3144, %v3145
        %vm3147 = vcmp.lt.s32.totalorder %v3146, 27
        %v3148 = vsel %vm3147, %v3141, %v12
        %s3149 = scalar_lea.vmem [#allocation25], 352
        %v3150 = vpack.c.bf16 0.0, %v3148
        %s3152 = ssub.s32 16, 1
        %3153 = vst [vmem:[%s3149] sm:%s3152] %v3150
        %s3154 = scalar_lea.vmem %s286, 356
        %s3155 = ssub.s32 0, %s39
        %p3156 = scmp.lt.s32.totalorder %s3155, 0
        %s3157 = scalar_select %p3156, 0, 255
        %s3158 = sshrl.u32 %s3157, 1
        %s3159 = sor.u32 %s3157, %s3158
        %s3160 = sand.u32 %s3159, 85
        %s3161 = sshrl.u32 %s3160, 1
        %s3162 = sor.u32 %s3160, %s3161
        %s3163 = sand.u32 51, %s3162
        %s3164 = sshrl.u32 %s3163, 2
        %s3165 = sor.u32 %s3163, %s3164
        %s3166 = sand.u32 15, %s3165
        %v3167 = vld [vmem:[%s3154] sm:%s3166]
        %v3168 = vunpack.c.l.bf16 %v3167
        %v3169 = vunpack.c.h.bf16 %v3167
        %s3170 = ssub.s32 0, %s39
        %v3171 = vstv %s3170
        %vm3172 = vcmp.lt.s32.totalorder %v3171, 0
        %v3173 = vsel %vm3172, %v12, %v3168
        %s3174 = smul.addr %s39, 128
        %v3175 = vlaneseq
        %v3176 = vand.u32 %v3175, 127
        %v3177 = vstv %s3174
        %v3178 = vadd.s32 %v3176, %v3177
        %vm3179 = vcmp.lt.s32.totalorder %v3178, 27
        %v3180 = vsel %vm3179, %v3173, %v12
        %s3181 = scalar_lea.vmem [#allocation25], 356
        %v3182 = vpack.c.bf16 0.0, %v3180
        %s3184 = ssub.s32 16, 1
        %3185 = vst [vmem:[%s3181] sm:%s3184] %v3182
        %s3186 = scalar_lea.vmem %s286, 360
        %s3187 = ssub.s32 0, %s39
        %p3188 = scmp.lt.s32.totalorder %s3187, 0
        %s3189 = scalar_select %p3188, 0, 255
        %s3190 = sshrl.u32 %s3189, 1
        %s3191 = sor.u32 %s3189, %s3190
        %s3192 = sand.u32 %s3191, 85
        %s3193 = sshrl.u32 %s3192, 1
        %s3194 = sor.u32 %s3192, %s3193
        %s3195 = sand.u32 51, %s3194
        %s3196 = sshrl.u32 %s3195, 2
        %s3197 = sor.u32 %s3195, %s3196
        %s3198 = sand.u32 15, %s3197
        %v3199 = vld [vmem:[%s3186] sm:%s3198]
        %v3200 = vunpack.c.l.bf16 %v3199
        %v3201 = vunpack.c.h.bf16 %v3199
        %s3202 = ssub.s32 0, %s39
        %v3203 = vstv %s3202
        %vm3204 = vcmp.lt.s32.totalorder %v3203, 0
        %v3205 = vsel %vm3204, %v12, %v3200
        %s3206 = smul.addr %s39, 128
        %v3207 = vlaneseq
        %v3208 = vand.u32 %v3207, 127
        %v3209 = vstv %s3206
        %v3210 = vadd.s32 %v3208, %v3209
        %vm3211 = vcmp.lt.s32.totalorder %v3210, 27
        %v3212 = vsel %vm3211, %v3205, %v12
        %s3213 = scalar_lea.vmem [#allocation25], 360
        %v3214 = vpack.c.bf16 0.0, %v3212
        %s3216 = ssub.s32 16, 1
        %3217 = vst [vmem:[%s3213] sm:%s3216] %v3214
        %s3218 = scalar_lea.vmem %s286, 364
        %s3219 = ssub.s32 0, %s39
        %p3220 = scmp.lt.s32.totalorder %s3219, 0
        %s3221 = scalar_select %p3220, 0, 255
        %s3222 = sshrl.u32 %s3221, 1
        %s3223 = sor.u32 %s3221, %s3222
        %s3224 = sand.u32 %s3223, 85
        %s3225 = sshrl.u32 %s3224, 1
        %s3226 = sor.u32 %s3224, %s3225
        %s3227 = sand.u32 51, %s3226
        %s3228 = sshrl.u32 %s3227, 2
        %s3229 = sor.u32 %s3227, %s3228
        %s3230 = sand.u32 15, %s3229
        %v3231 = vld [vmem:[%s3218] sm:%s3230]
        %v3232 = vunpack.c.l.bf16 %v3231
        %v3233 = vunpack.c.h.bf16 %v3231
        %s3234 = ssub.s32 0, %s39
        %v3235 = vstv %s3234
        %vm3236 = vcmp.lt.s32.totalorder %v3235, 0
        %v3237 = vsel %vm3236, %v12, %v3232
        %s3238 = smul.addr %s39, 128
        %v3239 = vlaneseq
        %v3240 = vand.u32 %v3239, 127
        %v3241 = vstv %s3238
        %v3242 = vadd.s32 %v3240, %v3241
        %vm3243 = vcmp.lt.s32.totalorder %v3242, 27
        %v3244 = vsel %vm3243, %v3237, %v12
        %s3245 = scalar_lea.vmem [#allocation25], 364
        %v3246 = vpack.c.bf16 0.0, %v3244
        %s3248 = ssub.s32 16, 1
        %3249 = vst [vmem:[%s3245] sm:%s3248] %v3246
        %s3250 = scalar_lea.vmem %s286, 368
        %s3251 = ssub.s32 0, %s39
        %p3252 = scmp.lt.s32.totalorder %s3251, 0
        %s3253 = scalar_select %p3252, 0, 255
        %s3254 = sshrl.u32 %s3253, 1
        %s3255 = sor.u32 %s3253, %s3254
        %s3256 = sand.u32 %s3255, 85
        %s3257 = sshrl.u32 %s3256, 1
        %s3258 = sor.u32 %s3256, %s3257
        %s3259 = sand.u32 51, %s3258
        %s3260 = sshrl.u32 %s3259, 2
        %s3261 = sor.u32 %s3259, %s3260
        %s3262 = sand.u32 15, %s3261
        %v3263 = vld [vmem:[%s3250] sm:%s3262]
        %v3264 = vunpack.c.l.bf16 %v3263
        %v3265 = vunpack.c.h.bf16 %v3263
        %s3266 = ssub.s32 0, %s39
        %v3267 = vstv %s3266
        %vm3268 = vcmp.lt.s32.totalorder %v3267, 0
        %v3269 = vsel %vm3268, %v12, %v3264
        %s3270 = smul.addr %s39, 128
        %v3271 = vlaneseq
        %v3272 = vand.u32 %v3271, 127
        %v3273 = vstv %s3270
        %v3274 = vadd.s32 %v3272, %v3273
        %vm3275 = vcmp.lt.s32.totalorder %v3274, 27
        %v3276 = vsel %vm3275, %v3269, %v12
        %s3277 = scalar_lea.vmem [#allocation25], 368
        %v3278 = vpack.c.bf16 0.0, %v3276
        %s3280 = ssub.s32 16, 1
        %3281 = vst [vmem:[%s3277] sm:%s3280] %v3278
        %s3282 = scalar_lea.vmem %s286, 372
        %s3283 = ssub.s32 0, %s39
        %p3284 = scmp.lt.s32.totalorder %s3283, 0
        %s3285 = scalar_select %p3284, 0, 255
        %s3286 = sshrl.u32 %s3285, 1
        %s3287 = sor.u32 %s3285, %s3286
        %s3288 = sand.u32 %s3287, 85
        %s3289 = sshrl.u32 %s3288, 1
        %s3290 = sor.u32 %s3288, %s3289
        %s3291 = sand.u32 51, %s3290
        %s3292 = sshrl.u32 %s3291, 2
        %s3293 = sor.u32 %s3291, %s3292
        %s3294 = sand.u32 15, %s3293
        %v3295 = vld [vmem:[%s3282] sm:%s3294]
        %v3296 = vunpack.c.l.bf16 %v3295
        %v3297 = vunpack.c.h.bf16 %v3295
        %s3298 = ssub.s32 0, %s39
        %v3299 = vstv %s3298
        %vm3300 = vcmp.lt.s32.totalorder %v3299, 0
        %v3301 = vsel %vm3300, %v12, %v3296
        %s3302 = smul.addr %s39, 128
        %v3303 = vlaneseq
        %v3304 = vand.u32 %v3303, 127
        %v3305 = vstv %s3302
        %v3306 = vadd.s32 %v3304, %v3305
        %vm3307 = vcmp.lt.s32.totalorder %v3306, 27
        %v3308 = vsel %vm3307, %v3301, %v12
        %s3309 = scalar_lea.vmem [#allocation25], 372
        %v3310 = vpack.c.bf16 0.0, %v3308
        %s3312 = ssub.s32 16, 1
        %3313 = vst [vmem:[%s3309] sm:%s3312] %v3310
        %s3314 = scalar_lea.vmem %s286, 376
        %s3315 = ssub.s32 0, %s39
        %p3316 = scmp.lt.s32.totalorder %s3315, 0
        %s3317 = scalar_select %p3316, 0, 255
        %s3318 = sshrl.u32 %s3317, 1
        %s3319 = sor.u32 %s3317, %s3318
        %s3320 = sand.u32 %s3319, 85
        %s3321 = sshrl.u32 %s3320, 1
        %s3322 = sor.u32 %s3320, %s3321
        %s3323 = sand.u32 51, %s3322
        %s3324 = sshrl.u32 %s3323, 2
        %s3325 = sor.u32 %s3323, %s3324
        %s3326 = sand.u32 15, %s3325
        %v3327 = vld [vmem:[%s3314] sm:%s3326]
        %v3328 = vunpack.c.l.bf16 %v3327
        %v3329 = vunpack.c.h.bf16 %v3327
        %s3330 = ssub.s32 0, %s39
        %v3331 = vstv %s3330
        %vm3332 = vcmp.lt.s32.totalorder %v3331, 0
        %v3333 = vsel %vm3332, %v12, %v3328
        %s3334 = smul.addr %s39, 128
        %v3335 = vlaneseq
        %v3336 = vand.u32 %v3335, 127
        %v3337 = vstv %s3334
        %v3338 = vadd.s32 %v3336, %v3337
        %vm3339 = vcmp.lt.s32.totalorder %v3338, 27
        %v3340 = vsel %vm3339, %v3333, %v12
        %s3341 = scalar_lea.vmem [#allocation25], 376
        %v3342 = vpack.c.bf16 0.0, %v3340
        %s3344 = ssub.s32 16, 1
        %3345 = vst [vmem:[%s3341] sm:%s3344] %v3342
        %s3346 = scalar_lea.vmem %s286, 380
        %s3347 = ssub.s32 0, %s39
        %p3348 = scmp.lt.s32.totalorder %s3347, 0
        %s3349 = scalar_select %p3348, 0, 255
        %s3350 = sshrl.u32 %s3349, 1
        %s3351 = sor.u32 %s3349, %s3350
        %s3352 = sand.u32 %s3351, 85
        %s3353 = sshrl.u32 %s3352, 1
        %s3354 = sor.u32 %s3352, %s3353
        %s3355 = sand.u32 51, %s3354
        %s3356 = sshrl.u32 %s3355, 2
        %s3357 = sor.u32 %s3355, %s3356
        %s3358 = sand.u32 15, %s3357
        %v3359 = vld [vmem:[%s3346] sm:%s3358]
        %v3360 = vunpack.c.l.bf16 %v3359
        %v3361 = vunpack.c.h.bf16 %v3359
        %s3362 = ssub.s32 0, %s39
        %v3363 = vstv %s3362
        %vm3364 = vcmp.lt.s32.totalorder %v3363, 0
        %v3365 = vsel %vm3364, %v12, %v3360
        %s3366 = smul.addr %s39, 128
        %v3367 = vlaneseq
        %v3368 = vand.u32 %v3367, 127
        %v3369 = vstv %s3366
        %v3370 = vadd.s32 %v3368, %v3369
        %vm3371 = vcmp.lt.s32.totalorder %v3370, 27
        %v3372 = vsel %vm3371, %v3365, %v12
        %s3373 = scalar_lea.vmem [#allocation25], 380
        %v3374 = vpack.c.bf16 0.0, %v3372
        %s3376 = ssub.s32 16, 1
        %3377 = vst [vmem:[%s3373] sm:%s3376] %v3374
        %s3378 = scalar_lea.vmem %s286, 384
        %s3379 = ssub.s32 0, %s39
        %p3380 = scmp.lt.s32.totalorder %s3379, 0
        %s3381 = scalar_select %p3380, 0, 255
        %s3382 = sshrl.u32 %s3381, 1
        %s3383 = sor.u32 %s3381, %s3382
        %s3384 = sand.u32 %s3383, 85
        %s3385 = sshrl.u32 %s3384, 1
        %s3386 = sor.u32 %s3384, %s3385
        %s3387 = sand.u32 51, %s3386
        %s3388 = sshrl.u32 %s3387, 2
        %s3389 = sor.u32 %s3387, %s3388
        %s3390 = sand.u32 15, %s3389
        %v3391 = vld [vmem:[%s3378] sm:%s3390]
        %v3392 = vunpack.c.l.bf16 %v3391
        %v3393 = vunpack.c.h.bf16 %v3391
        %s3394 = ssub.s32 0, %s39
        %v3395 = vstv %s3394
        %vm3396 = vcmp.lt.s32.totalorder %v3395, 0
        %v3397 = vsel %vm3396, %v12, %v3392
        %s3398 = smul.addr %s39, 128
        %v3399 = vlaneseq
        %v3400 = vand.u32 %v3399, 127
        %v3401 = vstv %s3398
        %v3402 = vadd.s32 %v3400, %v3401
        %vm3403 = vcmp.lt.s32.totalorder %v3402, 27
        %v3404 = vsel %vm3403, %v3397, %v12
        %s3405 = scalar_lea.vmem [#allocation25], 384
        %v3406 = vpack.c.bf16 0.0, %v3404
        %s3408 = ssub.s32 16, 1
        %3409 = vst [vmem:[%s3405] sm:%s3408] %v3406
        %s3410 = scalar_lea.vmem %s286, 388
        %s3411 = ssub.s32 0, %s39
        %p3412 = scmp.lt.s32.totalorder %s3411, 0
        %s3413 = scalar_select %p3412, 0, 255
        %s3414 = sshrl.u32 %s3413, 1
        %s3415 = sor.u32 %s3413, %s3414
        %s3416 = sand.u32 %s3415, 85
        %s3417 = sshrl.u32 %s3416, 1
        %s3418 = sor.u32 %s3416, %s3417
        %s3419 = sand.u32 51, %s3418
        %s3420 = sshrl.u32 %s3419, 2
        %s3421 = sor.u32 %s3419, %s3420
        %s3422 = sand.u32 15, %s3421
        %v3423 = vld [vmem:[%s3410] sm:%s3422]
        %v3424 = vunpack.c.l.bf16 %v3423
        %v3425 = vunpack.c.h.bf16 %v3423
        %s3426 = ssub.s32 0, %s39
        %v3427 = vstv %s3426
        %vm3428 = vcmp.lt.s32.totalorder %v3427, 0
        %v3429 = vsel %vm3428, %v12, %v3424
        %s3430 = smul.addr %s39, 128
        %v3431 = vlaneseq
        %v3432 = vand.u32 %v3431, 127
        %v3433 = vstv %s3430
        %v3434 = vadd.s32 %v3432, %v3433
        %vm3435 = vcmp.lt.s32.totalorder %v3434, 27
        %v3436 = vsel %vm3435, %v3429, %v12
        %s3437 = scalar_lea.vmem [#allocation25], 388
        %v3438 = vpack.c.bf16 0.0, %v3436
        %s3440 = ssub.s32 16, 1
        %3441 = vst [vmem:[%s3437] sm:%s3440] %v3438
        %s3442 = scalar_lea.vmem %s286, 392
        %s3443 = ssub.s32 0, %s39
        %p3444 = scmp.lt.s32.totalorder %s3443, 0
        %s3445 = scalar_select %p3444, 0, 255
        %s3446 = sshrl.u32 %s3445, 1
        %s3447 = sor.u32 %s3445, %s3446
        %s3448 = sand.u32 %s3447, 85
        %s3449 = sshrl.u32 %s3448, 1
        %s3450 = sor.u32 %s3448, %s3449
        %s3451 = sand.u32 51, %s3450
        %s3452 = sshrl.u32 %s3451, 2
        %s3453 = sor.u32 %s3451, %s3452
        %s3454 = sand.u32 15, %s3453
        %v3455 = vld [vmem:[%s3442] sm:%s3454]
        %v3456 = vunpack.c.l.bf16 %v3455
        %v3457 = vunpack.c.h.bf16 %v3455
        %s3458 = ssub.s32 0, %s39
        %v3459 = vstv %s3458
        %vm3460 = vcmp.lt.s32.totalorder %v3459, 0
        %v3461 = vsel %vm3460, %v12, %v3456
        %s3462 = smul.addr %s39, 128
        %v3463 = vlaneseq
        %v3464 = vand.u32 %v3463, 127
        %v3465 = vstv %s3462
        %v3466 = vadd.s32 %v3464, %v3465
        %vm3467 = vcmp.lt.s32.totalorder %v3466, 27
        %v3468 = vsel %vm3467, %v3461, %v12
        %s3469 = scalar_lea.vmem [#allocation25], 392
        %v3470 = vpack.c.bf16 0.0, %v3468
        %s3472 = ssub.s32 16, 1
        %3473 = vst [vmem:[%s3469] sm:%s3472] %v3470
        %s3474 = scalar_lea.vmem %s286, 396
        %s3475 = ssub.s32 0, %s39
        %p3476 = scmp.lt.s32.totalorder %s3475, 0
        %s3477 = scalar_select %p3476, 0, 255
        %s3478 = sshrl.u32 %s3477, 1
        %s3479 = sor.u32 %s3477, %s3478
        %s3480 = sand.u32 %s3479, 85
        %s3481 = sshrl.u32 %s3480, 1
        %s3482 = sor.u32 %s3480, %s3481
        %s3483 = sand.u32 51, %s3482
        %s3484 = sshrl.u32 %s3483, 2
        %s3485 = sor.u32 %s3483, %s3484
        %s3486 = sand.u32 15, %s3485
        %v3487 = vld [vmem:[%s3474] sm:%s3486]
        %v3488 = vunpack.c.l.bf16 %v3487
        %v3489 = vunpack.c.h.bf16 %v3487
        %s3490 = ssub.s32 0, %s39
        %v3491 = vstv %s3490
        %vm3492 = vcmp.lt.s32.totalorder %v3491, 0
        %v3493 = vsel %vm3492, %v12, %v3488
        %s3494 = smul.addr %s39, 128
        %v3495 = vlaneseq
        %v3496 = vand.u32 %v3495, 127
        %v3497 = vstv %s3494
        %v3498 = vadd.s32 %v3496, %v3497
        %vm3499 = vcmp.lt.s32.totalorder %v3498, 27
        %v3500 = vsel %vm3499, %v3493, %v12
        %s3501 = scalar_lea.vmem [#allocation25], 396
        %v3502 = vpack.c.bf16 0.0, %v3500
        %s3504 = ssub.s32 16, 1
        %3505 = vst [vmem:[%s3501] sm:%s3504] %v3502
        %s3506 = scalar_lea.vmem %s286, 400
        %s3507 = ssub.s32 0, %s39
        %p3508 = scmp.lt.s32.totalorder %s3507, 0
        %s3509 = scalar_select %p3508, 0, 255
        %s3510 = sshrl.u32 %s3509, 1
        %s3511 = sor.u32 %s3509, %s3510
        %s3512 = sand.u32 %s3511, 85
        %s3513 = sshrl.u32 %s3512, 1
        %s3514 = sor.u32 %s3512, %s3513
        %s3515 = sand.u32 51, %s3514
        %s3516 = sshrl.u32 %s3515, 2
        %s3517 = sor.u32 %s3515, %s3516
        %s3518 = sand.u32 15, %s3517
        %v3519 = vld [vmem:[%s3506] sm:%s3518]
        %v3520 = vunpack.c.l.bf16 %v3519
        %v3521 = vunpack.c.h.bf16 %v3519
        %s3522 = ssub.s32 0, %s39
        %v3523 = vstv %s3522
        %vm3524 = vcmp.lt.s32.totalorder %v3523, 0
        %v3525 = vsel %vm3524, %v12, %v3520
        %s3526 = smul.addr %s39, 128
        %v3527 = vlaneseq
        %v3528 = vand.u32 %v3527, 127
        %v3529 = vstv %s3526
        %v3530 = vadd.s32 %v3528, %v3529
        %vm3531 = vcmp.lt.s32.totalorder %v3530, 27
        %v3532 = vsel %vm3531, %v3525, %v12
        %s3533 = scalar_lea.vmem [#allocation25], 400
        %v3534 = vpack.c.bf16 0.0, %v3532
        %s3536 = ssub.s32 16, 1
        %3537 = vst [vmem:[%s3533] sm:%s3536] %v3534
        %s3538 = scalar_lea.vmem %s286, 404
        %s3539 = ssub.s32 0, %s39
        %p3540 = scmp.lt.s32.totalorder %s3539, 0
        %s3541 = scalar_select %p3540, 0, 255
        %s3542 = sshrl.u32 %s3541, 1
        %s3543 = sor.u32 %s3541, %s3542
        %s3544 = sand.u32 %s3543, 85
        %s3545 = sshrl.u32 %s3544, 1
        %s3546 = sor.u32 %s3544, %s3545
        %s3547 = sand.u32 51, %s3546
        %s3548 = sshrl.u32 %s3547, 2
        %s3549 = sor.u32 %s3547, %s3548
        %s3550 = sand.u32 15, %s3549
        %v3551 = vld [vmem:[%s3538] sm:%s3550]
        %v3552 = vunpack.c.l.bf16 %v3551
        %v3553 = vunpack.c.h.bf16 %v3551
        %s3554 = ssub.s32 0, %s39
        %v3555 = vstv %s3554
        %vm3556 = vcmp.lt.s32.totalorder %v3555, 0
        %v3557 = vsel %vm3556, %v12, %v3552
        %s3558 = smul.addr %s39, 128
        %v3559 = vlaneseq
        %v3560 = vand.u32 %v3559, 127
        %v3561 = vstv %s3558
        %v3562 = vadd.s32 %v3560, %v3561
        %vm3563 = vcmp.lt.s32.totalorder %v3562, 27
        %v3564 = vsel %vm3563, %v3557, %v12
        %s3565 = scalar_lea.vmem [#allocation25], 404
        %v3566 = vpack.c.bf16 0.0, %v3564
        %s3568 = ssub.s32 16, 1
        %3569 = vst [vmem:[%s3565] sm:%s3568] %v3566
        %s3570 = scalar_lea.vmem %s286, 408
        %s3571 = ssub.s32 0, %s39
        %p3572 = scmp.lt.s32.totalorder %s3571, 0
        %s3573 = scalar_select %p3572, 0, 255
        %s3574 = sshrl.u32 %s3573, 1
        %s3575 = sor.u32 %s3573, %s3574
        %s3576 = sand.u32 %s3575, 85
        %s3577 = sshrl.u32 %s3576, 1
        %s3578 = sor.u32 %s3576, %s3577
        %s3579 = sand.u32 51, %s3578
        %s3580 = sshrl.u32 %s3579, 2
        %s3581 = sor.u32 %s3579, %s3580
        %s3582 = sand.u32 15, %s3581
        %v3583 = vld [vmem:[%s3570] sm:%s3582]
        %v3584 = vunpack.c.l.bf16 %v3583
        %v3585 = vunpack.c.h.bf16 %v3583
        %s3586 = ssub.s32 0, %s39
        %v3587 = vstv %s3586
        %vm3588 = vcmp.lt.s32.totalorder %v3587, 0
        %v3589 = vsel %vm3588, %v12, %v3584
        %s3590 = smul.addr %s39, 128
        %v3591 = vlaneseq
        %v3592 = vand.u32 %v3591, 127
        %v3593 = vstv %s3590
        %v3594 = vadd.s32 %v3592, %v3593
        %vm3595 = vcmp.lt.s32.totalorder %v3594, 27
        %v3596 = vsel %vm3595, %v3589, %v12
        %s3597 = scalar_lea.vmem [#allocation25], 408
        %v3598 = vpack.c.bf16 0.0, %v3596
        %s3600 = ssub.s32 16, 1
        %3601 = vst [vmem:[%s3597] sm:%s3600] %v3598
        %s3602 = scalar_lea.vmem %s286, 412
        %s3603 = ssub.s32 0, %s39
        %p3604 = scmp.lt.s32.totalorder %s3603, 0
        %s3605 = scalar_select %p3604, 0, 255
        %s3606 = sshrl.u32 %s3605, 1
        %s3607 = sor.u32 %s3605, %s3606
        %s3608 = sand.u32 %s3607, 85
        %s3609 = sshrl.u32 %s3608, 1
        %s3610 = sor.u32 %s3608, %s3609
        %s3611 = sand.u32 51, %s3610
        %s3612 = sshrl.u32 %s3611, 2
        %s3613 = sor.u32 %s3611, %s3612
        %s3614 = sand.u32 15, %s3613
        %v3615 = vld [vmem:[%s3602] sm:%s3614]
        %v3616 = vunpack.c.l.bf16 %v3615
        %v3617 = vunpack.c.h.bf16 %v3615
        %s3618 = ssub.s32 0, %s39
        %v3619 = vstv %s3618
        %vm3620 = vcmp.lt.s32.totalorder %v3619, 0
        %v3621 = vsel %vm3620, %v12, %v3616
        %s3622 = smul.addr %s39, 128
        %v3623 = vlaneseq
        %v3624 = vand.u32 %v3623, 127
        %v3625 = vstv %s3622
        %v3626 = vadd.s32 %v3624, %v3625
        %vm3627 = vcmp.lt.s32.totalorder %v3626, 27
        %v3628 = vsel %vm3627, %v3621, %v12
        %s3629 = scalar_lea.vmem [#allocation25], 412
        %v3630 = vpack.c.bf16 0.0, %v3628
        %s3632 = ssub.s32 16, 1
        %3633 = vst [vmem:[%s3629] sm:%s3632] %v3630
        %s3634 = scalar_lea.vmem %s286, 416
        %s3635 = ssub.s32 0, %s39
        %p3636 = scmp.lt.s32.totalorder %s3635, 0
        %s3637 = scalar_select %p3636, 0, 255
        %s3638 = sshrl.u32 %s3637, 1
        %s3639 = sor.u32 %s3637, %s3638
        %s3640 = sand.u32 %s3639, 85
        %s3641 = sshrl.u32 %s3640, 1
        %s3642 = sor.u32 %s3640, %s3641
        %s3643 = sand.u32 51, %s3642
        %s3644 = sshrl.u32 %s3643, 2
        %s3645 = sor.u32 %s3643, %s3644
        %s3646 = sand.u32 15, %s3645
        %v3647 = vld [vmem:[%s3634] sm:%s3646]
        %v3648 = vunpack.c.l.bf16 %v3647
        %v3649 = vunpack.c.h.bf16 %v3647
        %s3650 = ssub.s32 0, %s39
        %v3651 = vstv %s3650
        %vm3652 = vcmp.lt.s32.totalorder %v3651, 0
        %v3653 = vsel %vm3652, %v12, %v3648
        %s3654 = smul.addr %s39, 128
        %v3655 = vlaneseq
        %v3656 = vand.u32 %v3655, 127
        %v3657 = vstv %s3654
        %v3658 = vadd.s32 %v3656, %v3657
        %vm3659 = vcmp.lt.s32.totalorder %v3658, 27
        %v3660 = vsel %vm3659, %v3653, %v12
        %s3661 = scalar_lea.vmem [#allocation25], 416
        %v3662 = vpack.c.bf16 0.0, %v3660
        %s3664 = ssub.s32 16, 1
        %3665 = vst [vmem:[%s3661] sm:%s3664] %v3662
        %s3666 = scalar_lea.vmem %s286, 420
        %s3667 = ssub.s32 0, %s39
        %p3668 = scmp.lt.s32.totalorder %s3667, 0
        %s3669 = scalar_select %p3668, 0, 255
        %s3670 = sshrl.u32 %s3669, 1
        %s3671 = sor.u32 %s3669, %s3670
        %s3672 = sand.u32 %s3671, 85
        %s3673 = sshrl.u32 %s3672, 1
        %s3674 = sor.u32 %s3672, %s3673
        %s3675 = sand.u32 51, %s3674
        %s3676 = sshrl.u32 %s3675, 2
        %s3677 = sor.u32 %s3675, %s3676
        %s3678 = sand.u32 15, %s3677
        %v3679 = vld [vmem:[%s3666] sm:%s3678]
        %v3680 = vunpack.c.l.bf16 %v3679
        %v3681 = vunpack.c.h.bf16 %v3679
        %s3682 = ssub.s32 0, %s39
        %v3683 = vstv %s3682
        %vm3684 = vcmp.lt.s32.totalorder %v3683, 0
        %v3685 = vsel %vm3684, %v12, %v3680
        %s3686 = smul.addr %s39, 128
        %v3687 = vlaneseq
        %v3688 = vand.u32 %v3687, 127
        %v3689 = vstv %s3686
        %v3690 = vadd.s32 %v3688, %v3689
        %vm3691 = vcmp.lt.s32.totalorder %v3690, 27
        %v3692 = vsel %vm3691, %v3685, %v12
        %s3693 = scalar_lea.vmem [#allocation25], 420
        %v3694 = vpack.c.bf16 0.0, %v3692
        %s3696 = ssub.s32 16, 1
        %3697 = vst [vmem:[%s3693] sm:%s3696] %v3694
        %s3698 = scalar_lea.vmem %s286, 424
        %s3699 = ssub.s32 0, %s39
        %p3700 = scmp.lt.s32.totalorder %s3699, 0
        %s3701 = scalar_select %p3700, 0, 255
        %s3702 = sshrl.u32 %s3701, 1
        %s3703 = sor.u32 %s3701, %s3702
        %s3704 = sand.u32 %s3703, 85
        %s3705 = sshrl.u32 %s3704, 1
        %s3706 = sor.u32 %s3704, %s3705
        %s3707 = sand.u32 51, %s3706
        %s3708 = sshrl.u32 %s3707, 2
        %s3709 = sor.u32 %s3707, %s3708
        %s3710 = sand.u32 15, %s3709
        %v3711 = vld [vmem:[%s3698] sm:%s3710]
        %v3712 = vunpack.c.l.bf16 %v3711
        %v3713 = vunpack.c.h.bf16 %v3711
        %s3714 = ssub.s32 0, %s39
        %v3715 = vstv %s3714
        %vm3716 = vcmp.lt.s32.totalorder %v3715, 0
        %v3717 = vsel %vm3716, %v12, %v3712
        %s3718 = smul.addr %s39, 128
        %v3719 = vlaneseq
        %v3720 = vand.u32 %v3719, 127
        %v3721 = vstv %s3718
        %v3722 = vadd.s32 %v3720, %v3721
        %vm3723 = vcmp.lt.s32.totalorder %v3722, 27
        %v3724 = vsel %vm3723, %v3717, %v12
        %s3725 = scalar_lea.vmem [#allocation25], 424
        %v3726 = vpack.c.bf16 0.0, %v3724
        %s3728 = ssub.s32 16, 1
        %3729 = vst [vmem:[%s3725] sm:%s3728] %v3726
        %s3730 = scalar_lea.vmem %s286, 428
        %s3731 = ssub.s32 0, %s39
        %p3732 = scmp.lt.s32.totalorder %s3731, 0
        %s3733 = scalar_select %p3732, 0, 255
        %s3734 = sshrl.u32 %s3733, 1
        %s3735 = sor.u32 %s3733, %s3734
        %s3736 = sand.u32 %s3735, 85
        %s3737 = sshrl.u32 %s3736, 1
        %s3738 = sor.u32 %s3736, %s3737
        %s3739 = sand.u32 51, %s3738
        %s3740 = sshrl.u32 %s3739, 2
        %s3741 = sor.u32 %s3739, %s3740
        %s3742 = sand.u32 15, %s3741
        %v3743 = vld [vmem:[%s3730] sm:%s3742]
        %v3744 = vunpack.c.l.bf16 %v3743
        %v3745 = vunpack.c.h.bf16 %v3743
        %s3746 = ssub.s32 0, %s39
        %v3747 = vstv %s3746
        %vm3748 = vcmp.lt.s32.totalorder %v3747, 0
        %v3749 = vsel %vm3748, %v12, %v3744
        %s3750 = smul.addr %s39, 128
        %v3751 = vlaneseq
        %v3752 = vand.u32 %v3751, 127
        %v3753 = vstv %s3750
        %v3754 = vadd.s32 %v3752, %v3753
        %vm3755 = vcmp.lt.s32.totalorder %v3754, 27
        %v3756 = vsel %vm3755, %v3749, %v12
        %s3757 = scalar_lea.vmem [#allocation25], 428
        %v3758 = vpack.c.bf16 0.0, %v3756
        %s3760 = ssub.s32 16, 1
        %3761 = vst [vmem:[%s3757] sm:%s3760] %v3758
        %s3762 = scalar_lea.vmem %s286, 432
        %s3763 = ssub.s32 0, %s39
        %p3764 = scmp.lt.s32.totalorder %s3763, 0
        %s3765 = scalar_select %p3764, 0, 255
        %s3766 = sshrl.u32 %s3765, 1
        %s3767 = sor.u32 %s3765, %s3766
        %s3768 = sand.u32 %s3767, 85
        %s3769 = sshrl.u32 %s3768, 1
        %s3770 = sor.u32 %s3768, %s3769
        %s3771 = sand.u32 51, %s3770
        %s3772 = sshrl.u32 %s3771, 2
        %s3773 = sor.u32 %s3771, %s3772
        %s3774 = sand.u32 15, %s3773
        %v3775 = vld [vmem:[%s3762] sm:%s3774]
        %v3776 = vunpack.c.l.bf16 %v3775
        %v3777 = vunpack.c.h.bf16 %v3775
        %s3778 = ssub.s32 0, %s39
        %v3779 = vstv %s3778
        %vm3780 = vcmp.lt.s32.totalorder %v3779, 0
        %v3781 = vsel %vm3780, %v12, %v3776
        %s3782 = smul.addr %s39, 128
        %v3783 = vlaneseq
        %v3784 = vand.u32 %v3783, 127
        %v3785 = vstv %s3782
        %v3786 = vadd.s32 %v3784, %v3785
        %vm3787 = vcmp.lt.s32.totalorder %v3786, 27
        %v3788 = vsel %vm3787, %v3781, %v12
        %s3789 = scalar_lea.vmem [#allocation25], 432
        %v3790 = vpack.c.bf16 0.0, %v3788
        %s3792 = ssub.s32 16, 1
        %3793 = vst [vmem:[%s3789] sm:%s3792] %v3790
        %s3794 = scalar_lea.vmem %s286, 436
        %s3795 = ssub.s32 0, %s39
        %p3796 = scmp.lt.s32.totalorder %s3795, 0
        %s3797 = scalar_select %p3796, 0, 255
        %s3798 = sshrl.u32 %s3797, 1
        %s3799 = sor.u32 %s3797, %s3798
        %s3800 = sand.u32 %s3799, 85
        %s3801 = sshrl.u32 %s3800, 1
        %s3802 = sor.u32 %s3800, %s3801
        %s3803 = sand.u32 51, %s3802
        %s3804 = sshrl.u32 %s3803, 2
        %s3805 = sor.u32 %s3803, %s3804
        %s3806 = sand.u32 15, %s3805
        %v3807 = vld [vmem:[%s3794] sm:%s3806]
        %v3808 = vunpack.c.l.bf16 %v3807
        %v3809 = vunpack.c.h.bf16 %v3807
        %s3810 = ssub.s32 0, %s39
        %v3811 = vstv %s3810
        %vm3812 = vcmp.lt.s32.totalorder %v3811, 0
        %v3813 = vsel %vm3812, %v12, %v3808
        %s3814 = smul.addr %s39, 128
        %v3815 = vlaneseq
        %v3816 = vand.u32 %v3815, 127
        %v3817 = vstv %s3814
        %v3818 = vadd.s32 %v3816, %v3817
        %vm3819 = vcmp.lt.s32.totalorder %v3818, 27
        %v3820 = vsel %vm3819, %v3813, %v12
        %s3821 = scalar_lea.vmem [#allocation25], 436
        %v3822 = vpack.c.bf16 0.0, %v3820
        %s3824 = ssub.s32 16, 1
        %3825 = vst [vmem:[%s3821] sm:%s3824] %v3822
        %s3826 = scalar_lea.vmem %s286, 440
        %s3827 = ssub.s32 0, %s39
        %p3828 = scmp.lt.s32.totalorder %s3827, 0
        %s3829 = scalar_select %p3828, 0, 255
        %s3830 = sshrl.u32 %s3829, 1
        %s3831 = sor.u32 %s3829, %s3830
        %s3832 = sand.u32 %s3831, 85
        %s3833 = sshrl.u32 %s3832, 1
        %s3834 = sor.u32 %s3832, %s3833
        %s3835 = sand.u32 51, %s3834
        %s3836 = sshrl.u32 %s3835, 2
        %s3837 = sor.u32 %s3835, %s3836
        %s3838 = sand.u32 15, %s3837
        %v3839 = vld [vmem:[%s3826] sm:%s3838]
        %v3840 = vunpack.c.l.bf16 %v3839
        %v3841 = vunpack.c.h.bf16 %v3839
        %s3842 = ssub.s32 0, %s39
        %v3843 = vstv %s3842
        %vm3844 = vcmp.lt.s32.totalorder %v3843, 0
        %v3845 = vsel %vm3844, %v12, %v3840
        %s3846 = smul.addr %s39, 128
        %v3847 = vlaneseq
        %v3848 = vand.u32 %v3847, 127
        %v3849 = vstv %s3846
        %v3850 = vadd.s32 %v3848, %v3849
        %vm3851 = vcmp.lt.s32.totalorder %v3850, 27
        %v3852 = vsel %vm3851, %v3845, %v12
        %s3853 = scalar_lea.vmem [#allocation25], 440
        %v3854 = vpack.c.bf16 0.0, %v3852
        %s3856 = ssub.s32 16, 1
        %3857 = vst [vmem:[%s3853] sm:%s3856] %v3854
        %s3858 = scalar_lea.vmem %s286, 444
        %s3859 = ssub.s32 0, %s39
        %p3860 = scmp.lt.s32.totalorder %s3859, 0
        %s3861 = scalar_select %p3860, 0, 255
        %s3862 = sshrl.u32 %s3861, 1
        %s3863 = sor.u32 %s3861, %s3862
        %s3864 = sand.u32 %s3863, 85
        %s3865 = sshrl.u32 %s3864, 1
        %s3866 = sor.u32 %s3864, %s3865
        %s3867 = sand.u32 51, %s3866
        %s3868 = sshrl.u32 %s3867, 2
        %s3869 = sor.u32 %s3867, %s3868
        %s3870 = sand.u32 15, %s3869
        %v3871 = vld [vmem:[%s3858] sm:%s3870]
        %v3872 = vunpack.c.l.bf16 %v3871
        %v3873 = vunpack.c.h.bf16 %v3871
        %s3874 = ssub.s32 0, %s39
        %v3875 = vstv %s3874
        %vm3876 = vcmp.lt.s32.totalorder %v3875, 0
        %v3877 = vsel %vm3876, %v12, %v3872
        %s3878 = smul.addr %s39, 128
        %v3879 = vlaneseq
        %v3880 = vand.u32 %v3879, 127
        %v3881 = vstv %s3878
        %v3882 = vadd.s32 %v3880, %v3881
        %vm3883 = vcmp.lt.s32.totalorder %v3882, 27
        %v3884 = vsel %vm3883, %v3877, %v12
        %s3885 = scalar_lea.vmem [#allocation25], 444
        %v3886 = vpack.c.bf16 0.0, %v3884
        %s3888 = ssub.s32 16, 1
        %3889 = vst [vmem:[%s3885] sm:%s3888] %v3886
        %s3890 = scalar_lea.vmem %s286, 448
        %s3891 = ssub.s32 0, %s39
        %p3892 = scmp.lt.s32.totalorder %s3891, 0
        %s3893 = scalar_select %p3892, 0, 255
        %s3894 = sshrl.u32 %s3893, 1
        %s3895 = sor.u32 %s3893, %s3894
        %s3896 = sand.u32 %s3895, 85
        %s3897 = sshrl.u32 %s3896, 1
        %s3898 = sor.u32 %s3896, %s3897
        %s3899 = sand.u32 51, %s3898
        %s3900 = sshrl.u32 %s3899, 2
        %s3901 = sor.u32 %s3899, %s3900
        %s3902 = sand.u32 15, %s3901
        %v3903 = vld [vmem:[%s3890] sm:%s3902]
        %v3904 = vunpack.c.l.bf16 %v3903
        %v3905 = vunpack.c.h.bf16 %v3903
        %s3906 = ssub.s32 0, %s39
        %v3907 = vstv %s3906
        %vm3908 = vcmp.lt.s32.totalorder %v3907, 0
        %v3909 = vsel %vm3908, %v12, %v3904
        %s3910 = smul.addr %s39, 128
        %v3911 = vlaneseq
        %v3912 = vand.u32 %v3911, 127
        %v3913 = vstv %s3910
        %v3914 = vadd.s32 %v3912, %v3913
        %vm3915 = vcmp.lt.s32.totalorder %v3914, 27
        %v3916 = vsel %vm3915, %v3909, %v12
        %s3917 = scalar_lea.vmem [#allocation25], 448
        %v3918 = vpack.c.bf16 0.0, %v3916
        %s3920 = ssub.s32 16, 1
        %3921 = vst [vmem:[%s3917] sm:%s3920] %v3918
        %s3922 = scalar_lea.vmem %s286, 452
        %s3923 = ssub.s32 0, %s39
        %p3924 = scmp.lt.s32.totalorder %s3923, 0
        %s3925 = scalar_select %p3924, 0, 255
        %s3926 = sshrl.u32 %s3925, 1
        %s3927 = sor.u32 %s3925, %s3926
        %s3928 = sand.u32 %s3927, 85
        %s3929 = sshrl.u32 %s3928, 1
        %s3930 = sor.u32 %s3928, %s3929
        %s3931 = sand.u32 51, %s3930
        %s3932 = sshrl.u32 %s3931, 2
        %s3933 = sor.u32 %s3931, %s3932
        %s3934 = sand.u32 15, %s3933
        %v3935 = vld [vmem:[%s3922] sm:%s3934]
        %v3936 = vunpack.c.l.bf16 %v3935
        %v3937 = vunpack.c.h.bf16 %v3935
        %s3938 = ssub.s32 0, %s39
        %v3939 = vstv %s3938
        %vm3940 = vcmp.lt.s32.totalorder %v3939, 0
        %v3941 = vsel %vm3940, %v12, %v3936
        %s3942 = smul.addr %s39, 128
        %v3943 = vlaneseq
        %v3944 = vand.u32 %v3943, 127
        %v3945 = vstv %s3942
        %v3946 = vadd.s32 %v3944, %v3945
        %vm3947 = vcmp.lt.s32.totalorder %v3946, 27
        %v3948 = vsel %vm3947, %v3941, %v12
        %s3949 = scalar_lea.vmem [#allocation25], 452
        %v3950 = vpack.c.bf16 0.0, %v3948
        %s3952 = ssub.s32 16, 1
        %3953 = vst [vmem:[%s3949] sm:%s3952] %v3950
        %s3954 = scalar_lea.vmem %s286, 456
        %s3955 = ssub.s32 0, %s39
        %p3956 = scmp.lt.s32.totalorder %s3955, 0
        %s3957 = scalar_select %p3956, 0, 255
        %s3958 = sshrl.u32 %s3957, 1
        %s3959 = sor.u32 %s3957, %s3958
        %s3960 = sand.u32 %s3959, 85
        %s3961 = sshrl.u32 %s3960, 1
        %s3962 = sor.u32 %s3960, %s3961
        %s3963 = sand.u32 51, %s3962
        %s3964 = sshrl.u32 %s3963, 2
        %s3965 = sor.u32 %s3963, %s3964
        %s3966 = sand.u32 15, %s3965
        %v3967 = vld [vmem:[%s3954] sm:%s3966]
        %v3968 = vunpack.c.l.bf16 %v3967
        %v3969 = vunpack.c.h.bf16 %v3967
        %s3970 = ssub.s32 0, %s39
        %v3971 = vstv %s3970
        %vm3972 = vcmp.lt.s32.totalorder %v3971, 0
        %v3973 = vsel %vm3972, %v12, %v3968
        %s3974 = smul.addr %s39, 128
        %v3975 = vlaneseq
        %v3976 = vand.u32 %v3975, 127
        %v3977 = vstv %s3974
        %v3978 = vadd.s32 %v3976, %v3977
        %vm3979 = vcmp.lt.s32.totalorder %v3978, 27
        %v3980 = vsel %vm3979, %v3973, %v12
        %s3981 = scalar_lea.vmem [#allocation25], 456
        %v3982 = vpack.c.bf16 0.0, %v3980
        %s3984 = ssub.s32 16, 1
        %3985 = vst [vmem:[%s3981] sm:%s3984] %v3982
        %s3986 = scalar_lea.vmem %s286, 460
        %s3987 = ssub.s32 0, %s39
        %p3988 = scmp.lt.s32.totalorder %s3987, 0
        %s3989 = scalar_select %p3988, 0, 255
        %s3990 = sshrl.u32 %s3989, 1
        %s3991 = sor.u32 %s3989, %s3990
        %s3992 = sand.u32 %s3991, 85
        %s3993 = sshrl.u32 %s3992, 1
        %s3994 = sor.u32 %s3992, %s3993
        %s3995 = sand.u32 51, %s3994
        %s3996 = sshrl.u32 %s3995, 2
        %s3997 = sor.u32 %s3995, %s3996
        %s3998 = sand.u32 15, %s3997
        %v3999 = vld [vmem:[%s3986] sm:%s3998]
        %v4000 = vunpack.c.l.bf16 %v3999
        %v4001 = vunpack.c.h.bf16 %v3999
        %s4002 = ssub.s32 0, %s39
        %v4003 = vstv %s4002
        %vm4004 = vcmp.lt.s32.totalorder %v4003, 0
        %v4005 = vsel %vm4004, %v12, %v4000
        %s4006 = smul.addr %s39, 128
        %v4007 = vlaneseq
        %v4008 = vand.u32 %v4007, 127
        %v4009 = vstv %s4006
        %v4010 = vadd.s32 %v4008, %v4009
        %vm4011 = vcmp.lt.s32.totalorder %v4010, 27
        %v4012 = vsel %vm4011, %v4005, %v12
        %s4013 = scalar_lea.vmem [#allocation25], 460
        %v4014 = vpack.c.bf16 0.0, %v4012
        %s4016 = ssub.s32 16, 1
        %4017 = vst [vmem:[%s4013] sm:%s4016] %v4014
        %s4018 = scalar_lea.vmem %s286, 464
        %s4019 = ssub.s32 0, %s39
        %p4020 = scmp.lt.s32.totalorder %s4019, 0
        %s4021 = scalar_select %p4020, 0, 255
        %s4022 = sshrl.u32 %s4021, 1
        %s4023 = sor.u32 %s4021, %s4022
        %s4024 = sand.u32 %s4023, 85
        %s4025 = sshrl.u32 %s4024, 1
        %s4026 = sor.u32 %s4024, %s4025
        %s4027 = sand.u32 51, %s4026
        %s4028 = sshrl.u32 %s4027, 2
        %s4029 = sor.u32 %s4027, %s4028
        %s4030 = sand.u32 15, %s4029
        %v4031 = vld [vmem:[%s4018] sm:%s4030]
        %v4032 = vunpack.c.l.bf16 %v4031
        %v4033 = vunpack.c.h.bf16 %v4031
        %s4034 = ssub.s32 0, %s39
        %v4035 = vstv %s4034
        %vm4036 = vcmp.lt.s32.totalorder %v4035, 0
        %v4037 = vsel %vm4036, %v12, %v4032
        %s4038 = smul.addr %s39, 128
        %v4039 = vlaneseq
        %v4040 = vand.u32 %v4039, 127
        %v4041 = vstv %s4038
        %v4042 = vadd.s32 %v4040, %v4041
        %vm4043 = vcmp.lt.s32.totalorder %v4042, 27
        %v4044 = vsel %vm4043, %v4037, %v12
        %s4045 = scalar_lea.vmem [#allocation25], 464
        %v4046 = vpack.c.bf16 0.0, %v4044
        %s4048 = ssub.s32 16, 1
        %4049 = vst [vmem:[%s4045] sm:%s4048] %v4046
        %s4050 = scalar_lea.vmem %s286, 468
        %s4051 = ssub.s32 0, %s39
        %p4052 = scmp.lt.s32.totalorder %s4051, 0
        %s4053 = scalar_select %p4052, 0, 255
        %s4054 = sshrl.u32 %s4053, 1
        %s4055 = sor.u32 %s4053, %s4054
        %s4056 = sand.u32 %s4055, 85
        %s4057 = sshrl.u32 %s4056, 1
        %s4058 = sor.u32 %s4056, %s4057
        %s4059 = sand.u32 51, %s4058
        %s4060 = sshrl.u32 %s4059, 2
        %s4061 = sor.u32 %s4059, %s4060
        %s4062 = sand.u32 15, %s4061
        %v4063 = vld [vmem:[%s4050] sm:%s4062]
        %v4064 = vunpack.c.l.bf16 %v4063
        %v4065 = vunpack.c.h.bf16 %v4063
        %s4066 = ssub.s32 0, %s39
        %v4067 = vstv %s4066
        %vm4068 = vcmp.lt.s32.totalorder %v4067, 0
        %v4069 = vsel %vm4068, %v12, %v4064
        %s4070 = smul.addr %s39, 128
        %v4071 = vlaneseq
        %v4072 = vand.u32 %v4071, 127
        %v4073 = vstv %s4070
        %v4074 = vadd.s32 %v4072, %v4073
        %vm4075 = vcmp.lt.s32.totalorder %v4074, 27
        %v4076 = vsel %vm4075, %v4069, %v12
        %s4077 = scalar_lea.vmem [#allocation25], 468
        %v4078 = vpack.c.bf16 0.0, %v4076
        %s4080 = ssub.s32 16, 1
        %4081 = vst [vmem:[%s4077] sm:%s4080] %v4078
        %s4082 = scalar_lea.vmem %s286, 472
        %s4083 = ssub.s32 0, %s39
        %p4084 = scmp.lt.s32.totalorder %s4083, 0
        %s4085 = scalar_select %p4084, 0, 255
        %s4086 = sshrl.u32 %s4085, 1
        %s4087 = sor.u32 %s4085, %s4086
        %s4088 = sand.u32 %s4087, 85
        %s4089 = sshrl.u32 %s4088, 1
        %s4090 = sor.u32 %s4088, %s4089
        %s4091 = sand.u32 51, %s4090
        %s4092 = sshrl.u32 %s4091, 2
        %s4093 = sor.u32 %s4091, %s4092
        %s4094 = sand.u32 15, %s4093
        %v4095 = vld [vmem:[%s4082] sm:%s4094]
        %v4096 = vunpack.c.l.bf16 %v4095
        %v4097 = vunpack.c.h.bf16 %v4095
        %s4098 = ssub.s32 0, %s39
        %v4099 = vstv %s4098
        %vm4100 = vcmp.lt.s32.totalorder %v4099, 0
        %v4101 = vsel %vm4100, %v12, %v4096
        %s4102 = smul.addr %s39, 128
        %v4103 = vlaneseq
        %v4104 = vand.u32 %v4103, 127
        %v4105 = vstv %s4102
        %v4106 = vadd.s32 %v4104, %v4105
        %vm4107 = vcmp.lt.s32.totalorder %v4106, 27
        %v4108 = vsel %vm4107, %v4101, %v12
        %s4109 = scalar_lea.vmem [#allocation25], 472
        %v4110 = vpack.c.bf16 0.0, %v4108
        %s4112 = ssub.s32 16, 1
        %4113 = vst [vmem:[%s4109] sm:%s4112] %v4110
        %s4114 = scalar_lea.vmem %s286, 476
        %s4115 = ssub.s32 0, %s39
        %p4116 = scmp.lt.s32.totalorder %s4115, 0
        %s4117 = scalar_select %p4116, 0, 255
        %s4118 = sshrl.u32 %s4117, 1
        %s4119 = sor.u32 %s4117, %s4118
        %s4120 = sand.u32 %s4119, 85
        %s4121 = sshrl.u32 %s4120, 1
        %s4122 = sor.u32 %s4120, %s4121
        %s4123 = sand.u32 51, %s4122
        %s4124 = sshrl.u32 %s4123, 2
        %s4125 = sor.u32 %s4123, %s4124
        %s4126 = sand.u32 15, %s4125
        %v4127 = vld [vmem:[%s4114] sm:%s4126]
        %v4128 = vunpack.c.l.bf16 %v4127
        %v4129 = vunpack.c.h.bf16 %v4127
        %s4130 = ssub.s32 0, %s39
        %v4131 = vstv %s4130
        %vm4132 = vcmp.lt.s32.totalorder %v4131, 0
        %v4133 = vsel %vm4132, %v12, %v4128
        %s4134 = smul.addr %s39, 128
        %v4135 = vlaneseq
        %v4136 = vand.u32 %v4135, 127
        %v4137 = vstv %s4134
        %v4138 = vadd.s32 %v4136, %v4137
        %vm4139 = vcmp.lt.s32.totalorder %v4138, 27
        %v4140 = vsel %vm4139, %v4133, %v12
        %s4141 = scalar_lea.vmem [#allocation25], 476
        %v4142 = vpack.c.bf16 0.0, %v4140
        %s4144 = ssub.s32 16, 1
        %4145 = vst [vmem:[%s4141] sm:%s4144] %v4142
        %s4146 = scalar_lea.vmem %s286, 480
        %s4147 = ssub.s32 0, %s39
        %p4148 = scmp.lt.s32.totalorder %s4147, 0
        %s4149 = scalar_select %p4148, 0, 255
        %s4150 = sshrl.u32 %s4149, 1
        %s4151 = sor.u32 %s4149, %s4150
        %s4152 = sand.u32 %s4151, 85
        %s4153 = sshrl.u32 %s4152, 1
        %s4154 = sor.u32 %s4152, %s4153
        %s4155 = sand.u32 51, %s4154
        %s4156 = sshrl.u32 %s4155, 2
        %s4157 = sor.u32 %s4155, %s4156
        %s4158 = sand.u32 15, %s4157
        %v4159 = vld [vmem:[%s4146] sm:%s4158]
        %v4160 = vunpack.c.l.bf16 %v4159
        %v4161 = vunpack.c.h.bf16 %v4159
        %s4162 = ssub.s32 0, %s39
        %v4163 = vstv %s4162
        %vm4164 = vcmp.lt.s32.totalorder %v4163, 0
        %v4165 = vsel %vm4164, %v12, %v4160
        %s4166 = smul.addr %s39, 128
        %v4167 = vlaneseq
        %v4168 = vand.u32 %v4167, 127
        %v4169 = vstv %s4166
        %v4170 = vadd.s32 %v4168, %v4169
        %vm4171 = vcmp.lt.s32.totalorder %v4170, 27
        %v4172 = vsel %vm4171, %v4165, %v12
        %s4173 = scalar_lea.vmem [#allocation25], 480
        %v4174 = vpack.c.bf16 0.0, %v4172
        %s4176 = ssub.s32 16, 1
        %4177 = vst [vmem:[%s4173] sm:%s4176] %v4174
        %s4178 = scalar_lea.vmem %s286, 484
        %s4179 = ssub.s32 0, %s39
        %p4180 = scmp.lt.s32.totalorder %s4179, 0
        %s4181 = scalar_select %p4180, 0, 255
        %s4182 = sshrl.u32 %s4181, 1
        %s4183 = sor.u32 %s4181, %s4182
        %s4184 = sand.u32 %s4183, 85
        %s4185 = sshrl.u32 %s4184, 1
        %s4186 = sor.u32 %s4184, %s4185
        %s4187 = sand.u32 51, %s4186
        %s4188 = sshrl.u32 %s4187, 2
        %s4189 = sor.u32 %s4187, %s4188
        %s4190 = sand.u32 15, %s4189
        %v4191 = vld [vmem:[%s4178] sm:%s4190]
        %v4192 = vunpack.c.l.bf16 %v4191
        %v4193 = vunpack.c.h.bf16 %v4191
        %s4194 = ssub.s32 0, %s39
        %v4195 = vstv %s4194
        %vm4196 = vcmp.lt.s32.totalorder %v4195, 0
        %v4197 = vsel %vm4196, %v12, %v4192
        %s4198 = smul.addr %s39, 128
        %v4199 = vlaneseq
        %v4200 = vand.u32 %v4199, 127
        %v4201 = vstv %s4198
        %v4202 = vadd.s32 %v4200, %v4201
        %vm4203 = vcmp.lt.s32.totalorder %v4202, 27
        %v4204 = vsel %vm4203, %v4197, %v12
        %s4205 = scalar_lea.vmem [#allocation25], 484
        %v4206 = vpack.c.bf16 0.0, %v4204
        %s4208 = ssub.s32 16, 1
        %4209 = vst [vmem:[%s4205] sm:%s4208] %v4206
        %s4210 = scalar_lea.vmem %s286, 488
        %s4211 = ssub.s32 0, %s39
        %p4212 = scmp.lt.s32.totalorder %s4211, 0
        %s4213 = scalar_select %p4212, 0, 255
        %s4214 = sshrl.u32 %s4213, 1
        %s4215 = sor.u32 %s4213, %s4214
        %s4216 = sand.u32 %s4215, 85
        %s4217 = sshrl.u32 %s4216, 1
        %s4218 = sor.u32 %s4216, %s4217
        %s4219 = sand.u32 51, %s4218
        %s4220 = sshrl.u32 %s4219, 2
        %s4221 = sor.u32 %s4219, %s4220
        %s4222 = sand.u32 15, %s4221
        %v4223 = vld [vmem:[%s4210] sm:%s4222]
        %v4224 = vunpack.c.l.bf16 %v4223
        %v4225 = vunpack.c.h.bf16 %v4223
        %s4226 = ssub.s32 0, %s39
        %v4227 = vstv %s4226
        %vm4228 = vcmp.lt.s32.totalorder %v4227, 0
        %v4229 = vsel %vm4228, %v12, %v4224
        %s4230 = smul.addr %s39, 128
        %v4231 = vlaneseq
        %v4232 = vand.u32 %v4231, 127
        %v4233 = vstv %s4230
        %v4234 = vadd.s32 %v4232, %v4233
        %vm4235 = vcmp.lt.s32.totalorder %v4234, 27
        %v4236 = vsel %vm4235, %v4229, %v12
        %s4237 = scalar_lea.vmem [#allocation25], 488
        %v4238 = vpack.c.bf16 0.0, %v4236
        %s4240 = ssub.s32 16, 1
        %4241 = vst [vmem:[%s4237] sm:%s4240] %v4238
        %s4242 = scalar_lea.vmem %s286, 492
        %s4243 = ssub.s32 0, %s39
        %p4244 = scmp.lt.s32.totalorder %s4243, 0
        %s4245 = scalar_select %p4244, 0, 255
        %s4246 = sshrl.u32 %s4245, 1
        %s4247 = sor.u32 %s4245, %s4246
        %s4248 = sand.u32 %s4247, 85
        %s4249 = sshrl.u32 %s4248, 1
        %s4250 = sor.u32 %s4248, %s4249
        %s4251 = sand.u32 51, %s4250
        %s4252 = sshrl.u32 %s4251, 2
        %s4253 = sor.u32 %s4251, %s4252
        %s4254 = sand.u32 15, %s4253
        %v4255 = vld [vmem:[%s4242] sm:%s4254]
        %v4256 = vunpack.c.l.bf16 %v4255
        %v4257 = vunpack.c.h.bf16 %v4255
        %s4258 = ssub.s32 0, %s39
        %v4259 = vstv %s4258
        %vm4260 = vcmp.lt.s32.totalorder %v4259, 0
        %v4261 = vsel %vm4260, %v12, %v4256
        %s4262 = smul.addr %s39, 128
        %v4263 = vlaneseq
        %v4264 = vand.u32 %v4263, 127
        %v4265 = vstv %s4262
        %v4266 = vadd.s32 %v4264, %v4265
        %vm4267 = vcmp.lt.s32.totalorder %v4266, 27
        %v4268 = vsel %vm4267, %v4261, %v12
        %s4269 = scalar_lea.vmem [#allocation25], 492
        %v4270 = vpack.c.bf16 0.0, %v4268
        %s4272 = ssub.s32 16, 1
        %4273 = vst [vmem:[%s4269] sm:%s4272] %v4270
        %s4274 = scalar_lea.vmem %s286, 496
        %s4275 = ssub.s32 0, %s39
        %p4276 = scmp.lt.s32.totalorder %s4275, 0
        %s4277 = scalar_select %p4276, 0, 255
        %s4278 = sshrl.u32 %s4277, 1
        %s4279 = sor.u32 %s4277, %s4278
        %s4280 = sand.u32 %s4279, 85
        %s4281 = sshrl.u32 %s4280, 1
        %s4282 = sor.u32 %s4280, %s4281
        %s4283 = sand.u32 51, %s4282
        %s4284 = sshrl.u32 %s4283, 2
        %s4285 = sor.u32 %s4283, %s4284
        %s4286 = sand.u32 15, %s4285
        %v4287 = vld [vmem:[%s4274] sm:%s4286]
        %v4288 = vunpack.c.l.bf16 %v4287
        %v4289 = vunpack.c.h.bf16 %v4287
        %s4290 = ssub.s32 0, %s39
        %v4291 = vstv %s4290
        %vm4292 = vcmp.lt.s32.totalorder %v4291, 0
        %v4293 = vsel %vm4292, %v12, %v4288
        %s4294 = smul.addr %s39, 128
        %v4295 = vlaneseq
        %v4296 = vand.u32 %v4295, 127
        %v4297 = vstv %s4294
        %v4298 = vadd.s32 %v4296, %v4297
        %vm4299 = vcmp.lt.s32.totalorder %v4298, 27
        %v4300 = vsel %vm4299, %v4293, %v12
        %s4301 = scalar_lea.vmem [#allocation25], 496
        %v4302 = vpack.c.bf16 0.0, %v4300
        %s4304 = ssub.s32 16, 1
        %4305 = vst [vmem:[%s4301] sm:%s4304] %v4302
        %s4306 = scalar_lea.vmem %s286, 500
        %s4307 = ssub.s32 0, %s39
        %p4308 = scmp.lt.s32.totalorder %s4307, 0
        %s4309 = scalar_select %p4308, 0, 255
        %s4310 = sshrl.u32 %s4309, 1
        %s4311 = sor.u32 %s4309, %s4310
        %s4312 = sand.u32 %s4311, 85
        %s4313 = sshrl.u32 %s4312, 1
        %s4314 = sor.u32 %s4312, %s4313
        %s4315 = sand.u32 51, %s4314
        %s4316 = sshrl.u32 %s4315, 2
        %s4317 = sor.u32 %s4315, %s4316
        %s4318 = sand.u32 15, %s4317
        %v4319 = vld [vmem:[%s4306] sm:%s4318]
        %v4320 = vunpack.c.l.bf16 %v4319
        %v4321 = vunpack.c.h.bf16 %v4319
        %s4322 = ssub.s32 0, %s39
        %v4323 = vstv %s4322
        %vm4324 = vcmp.lt.s32.totalorder %v4323, 0
        %v4325 = vsel %vm4324, %v12, %v4320
        %s4326 = smul.addr %s39, 128
        %v4327 = vlaneseq
        %v4328 = vand.u32 %v4327, 127
        %v4329 = vstv %s4326
        %v4330 = vadd.s32 %v4328, %v4329
        %vm4331 = vcmp.lt.s32.totalorder %v4330, 27
        %v4332 = vsel %vm4331, %v4325, %v12
        %s4333 = scalar_lea.vmem [#allocation25], 500
        %v4334 = vpack.c.bf16 0.0, %v4332
        %s4336 = ssub.s32 16, 1
        %4337 = vst [vmem:[%s4333] sm:%s4336] %v4334
        %s4338 = scalar_lea.vmem %s286, 504
        %s4339 = ssub.s32 0, %s39
        %p4340 = scmp.lt.s32.totalorder %s4339, 0
        %s4341 = scalar_select %p4340, 0, 255
        %s4342 = sshrl.u32 %s4341, 1
        %s4343 = sor.u32 %s4341, %s4342
        %s4344 = sand.u32 %s4343, 85
        %s4345 = sshrl.u32 %s4344, 1
        %s4346 = sor.u32 %s4344, %s4345
        %s4347 = sand.u32 51, %s4346
        %s4348 = sshrl.u32 %s4347, 2
        %s4349 = sor.u32 %s4347, %s4348
        %s4350 = sand.u32 15, %s4349
        %v4351 = vld [vmem:[%s4338] sm:%s4350]
        %v4352 = vunpack.c.l.bf16 %v4351
        %v4353 = vunpack.c.h.bf16 %v4351
        %s4354 = ssub.s32 0, %s39
        %v4355 = vstv %s4354
        %vm4356 = vcmp.lt.s32.totalorder %v4355, 0
        %v4357 = vsel %vm4356, %v12, %v4352
        %s4358 = smul.addr %s39, 128
        %v4359 = vlaneseq
        %v4360 = vand.u32 %v4359, 127
        %v4361 = vstv %s4358
        %v4362 = vadd.s32 %v4360, %v4361
        %vm4363 = vcmp.lt.s32.totalorder %v4362, 27
        %v4364 = vsel %vm4363, %v4357, %v12
        %s4365 = scalar_lea.vmem [#allocation25], 504
        %v4366 = vpack.c.bf16 0.0, %v4364
        %s4368 = ssub.s32 16, 1
        %4369 = vst [vmem:[%s4365] sm:%s4368] %v4366
        %s4370 = scalar_lea.vmem %s286, 508
        %s4371 = ssub.s32 0, %s39
        %p4372 = scmp.lt.s32.totalorder %s4371, 0
        %s4373 = scalar_select %p4372, 0, 255
        %s4374 = sshrl.u32 %s4373, 1
        %s4375 = sor.u32 %s4373, %s4374
        %s4376 = sand.u32 %s4375, 85
        %s4377 = sshrl.u32 %s4376, 1
        %s4378 = sor.u32 %s4376, %s4377
        %s4379 = sand.u32 51, %s4378
        %s4380 = sshrl.u32 %s4379, 2
        %s4381 = sor.u32 %s4379, %s4380
        %s4382 = sand.u32 15, %s4381
        %v4383 = vld [vmem:[%s4370] sm:%s4382]
        %v4384 = vunpack.c.l.bf16 %v4383
        %v4385 = vunpack.c.h.bf16 %v4383
        %s4386 = ssub.s32 0, %s39
        %v4387 = vstv %s4386
        %vm4388 = vcmp.lt.s32.totalorder %v4387, 0
        %v4389 = vsel %vm4388, %v12, %v4384
        %s4390 = smul.addr %s39, 128
        %v4391 = vlaneseq
        %v4392 = vand.u32 %v4391, 127
        %v4393 = vstv %s4390
        %v4394 = vadd.s32 %v4392, %v4393
        %vm4395 = vcmp.lt.s32.totalorder %v4394, 27
        %v4396 = vsel %vm4395, %v4389, %v12
        %s4397 = scalar_lea.vmem [#allocation25], 508
        %v4398 = vpack.c.bf16 0.0, %v4396
        %s4400 = ssub.s32 16, 1
        %4401 = vst [vmem:[%s4397] sm:%s4400] %v4398
        %s4402 = ssub.s32 0, %s38
        %p4403 = scmp.lt.s32.totalorder %s4402, 0
        %s4404 = scalar_select %p4403, 0, 255
        %s4405 = sshrl.u32 %s4404, 1
        %s4406 = sor.u32 %s4404, %s4405
        %s4407 = sand.u32 %s4406, 85
        %s4408 = sshrl.u32 %s4407, 1
        %s4409 = sor.u32 %s4407, %s4408
        %s4410 = sand.u32 51, %s4409
        %s4411 = sshrl.u32 %s4410, 2
        %s4412 = sor.u32 %s4410, %s4411
        %s4413 = sand.u32 15, %s4412
        %v4414 = vld [vmem:[%s301] sm:%s4413]
        %v4415 = vunpack.c.l.bf16 %v4414
        %v4416 = vunpack.c.h.bf16 %v4414
        %s4417 = ssub.s32 0, %s38
        %v4418 = vstv %s4417
        %vm4419 = vcmp.lt.s32.totalorder %v4418, 0
        %v4420 = vsel %vm4419, %v17, %v4415
        %s4421 = smul.addr %s302, 8
        %v4422 = vlaneseq
        %v4423 = vshrl.u32 %v4422, 7
        %v4424 = vstv %s4421
        %v4425 = vadd.s32 %v4423, %v4424
        %vm4426 = vcmp.lt.s32.totalorder %v4425, 27
        %v4427 = vsel %vm4426, %v4420, %v17
        %s4428 = smul.addr %s38, 128
        %v4429 = vlaneseq
        %v4430 = vand.u32 %v4429, 127
        %v4431 = vstv %s4428
        %v4432 = vadd.s32 %v4430, %v4431
        %vm4433 = vcmp.lt.s32.totalorder %v4432, 64
        %v4434 = vsel %vm4433, %v4427, %v17
        %v4435 = vpack.c.bf16 0.0, %v4434
        %s4437 = ssub.s32 16, 1
        %4438 = vst [vmem:[#allocation26] sm:%s4437] %v4435
        %s4439 = scalar_lea.vmem %s301, 4
        %s4440 = ssub.s32 0, %s38
        %p4441 = scmp.lt.s32.totalorder %s4440, 0
        %s4442 = scalar_select %p4441, 0, 255
        %s4443 = sshrl.u32 %s4442, 1
        %s4444 = sor.u32 %s4442, %s4443
        %s4445 = sand.u32 %s4444, 85
        %s4446 = sshrl.u32 %s4445, 1
        %s4447 = sor.u32 %s4445, %s4446
        %s4448 = sand.u32 51, %s4447
        %s4449 = sshrl.u32 %s4448, 2
        %s4450 = sor.u32 %s4448, %s4449
        %s4451 = sand.u32 15, %s4450
        %v4452 = vld [vmem:[%s4439] sm:%s4451]
        %v4453 = vunpack.c.l.bf16 %v4452
        %v4454 = vunpack.c.h.bf16 %v4452
        %s4455 = ssub.s32 0, %s38
        %v4456 = vstv %s4455
        %vm4457 = vcmp.lt.s32.totalorder %v4456, 0
        %v4458 = vsel %vm4457, %v17, %v4453
        %s4459 = sadd.s32 %s302, 1
        %s4460 = smul.addr %s4459, 8
        %v4461 = vlaneseq
        %v4462 = vshrl.u32 %v4461, 7
        %v4463 = vstv %s4460
        %v4464 = vadd.s32 %v4462, %v4463
        %vm4465 = vcmp.lt.s32.totalorder %v4464, 27
        %v4466 = vsel %vm4465, %v4458, %v17
        %s4467 = smul.addr %s38, 128
        %v4468 = vlaneseq
        %v4469 = vand.u32 %v4468, 127
        %v4470 = vstv %s4467
        %v4471 = vadd.s32 %v4469, %v4470
        %vm4472 = vcmp.lt.s32.totalorder %v4471, 64
        %v4473 = vsel %vm4472, %v4466, %v17
        %s4474 = scalar_lea.vmem [#allocation26], 4
        %v4475 = vpack.c.bf16 0.0, %v4473
        %s4477 = ssub.s32 16, 1
        %4478 = vst [vmem:[%s4474] sm:%s4477] %v4475
        %s4479 = scalar_lea.vmem %s301, 8
        %s4480 = ssub.s32 0, %s38
        %p4481 = scmp.lt.s32.totalorder %s4480, 0
        %s4482 = scalar_select %p4481, 0, 255
        %s4483 = sshrl.u32 %s4482, 1
        %s4484 = sor.u32 %s4482, %s4483
        %s4485 = sand.u32 %s4484, 85
        %s4486 = sshrl.u32 %s4485, 1
        %s4487 = sor.u32 %s4485, %s4486
        %s4488 = sand.u32 51, %s4487
        %s4489 = sshrl.u32 %s4488, 2
        %s4490 = sor.u32 %s4488, %s4489
        %s4491 = sand.u32 15, %s4490
        %v4492 = vld [vmem:[%s4479] sm:%s4491]
        %v4493 = vunpack.c.l.bf16 %v4492
        %v4494 = vunpack.c.h.bf16 %v4492
        %s4495 = ssub.s32 0, %s38
        %v4496 = vstv %s4495
        %vm4497 = vcmp.lt.s32.totalorder %v4496, 0
        %v4498 = vsel %vm4497, %v17, %v4493
        %s4499 = sadd.s32 %s302, 2
        %s4500 = smul.addr %s4499, 8
        %v4501 = vlaneseq
        %v4502 = vshrl.u32 %v4501, 7
        %v4503 = vstv %s4500
        %v4504 = vadd.s32 %v4502, %v4503
        %vm4505 = vcmp.lt.s32.totalorder %v4504, 27
        %v4506 = vsel %vm4505, %v4498, %v17
        %s4507 = smul.addr %s38, 128
        %v4508 = vlaneseq
        %v4509 = vand.u32 %v4508, 127
        %v4510 = vstv %s4507
        %v4511 = vadd.s32 %v4509, %v4510
        %vm4512 = vcmp.lt.s32.totalorder %v4511, 64
        %v4513 = vsel %vm4512, %v4506, %v17
        %s4514 = scalar_lea.vmem [#allocation26], 8
        %v4515 = vpack.c.bf16 0.0, %v4513
        %s4517 = ssub.s32 16, 1
        %4518 = vst [vmem:[%s4514] sm:%s4517] %v4515
        %s4519 = scalar_lea.vmem %s301, 12
        %s4520 = sadd.s32 %s302, 3
        %s4521 = ssub.s32 3, %s4520
        %s4522 = ssub.s32 0, %s38
        %s4523 = sor.u32 %s4521, %s4522
        %p4524 = scmp.lt.s32.totalorder %s4523, 0
        %s4525 = scalar_select %p4524, 0, 255
        %s4526 = sshrl.u32 %s4525, 1
        %s4527 = sor.u32 %s4525, %s4526
        %s4528 = sand.u32 %s4527, 85
        %s4529 = sshrl.u32 %s4528, 1
        %s4530 = sor.u32 %s4528, %s4529
        %s4531 = sand.u32 51, %s4530
        %s4532 = sshrl.u32 %s4531, 2
        %s4533 = sor.u32 %s4531, %s4532
        %s4534 = sand.u32 15, %s4533
        %v4535 = vld [vmem:[%s4519] sm:%s4534]
        %v4536 = vunpack.c.l.bf16 %v4535
        %v4537 = vunpack.c.h.bf16 %v4535
        %s4538 = sadd.s32 %s302, 3
        %s4539 = ssub.s32 3, %s4538
        %s4540 = ssub.s32 0, %s38
        %s4541 = sor.u32 %s4539, %s4540
        %v4542 = vstv %s4541
        %vm4543 = vcmp.lt.s32.totalorder %v4542, 0
        %v4544 = vsel %vm4543, %v17, %v4536
        %s4545 = sadd.s32 %s302, 3
        %s4546 = smul.addr %s4545, 8
        %v4547 = vlaneseq
        %v4548 = vshrl.u32 %v4547, 7
        %v4549 = vstv %s4546
        %v4550 = vadd.s32 %v4548, %v4549
        %vm4551 = vcmp.lt.s32.totalorder %v4550, 27
        %v4552 = vsel %vm4551, %v4544, %v17
        %s4553 = smul.addr %s38, 128
        %v4554 = vlaneseq
        %v4555 = vand.u32 %v4554, 127
        %v4556 = vstv %s4553
        %v4557 = vadd.s32 %v4555, %v4556
        %vm4558 = vcmp.lt.s32.totalorder %v4557, 64
        %v4559 = vsel %vm4558, %v4552, %v17
        %s4560 = scalar_lea.vmem [#allocation26], 12
        %v4561 = vpack.c.bf16 0.0, %v4559
        %s4563 = ssub.s32 16, 1
        %4564 = vst [vmem:[%s4560] sm:%s4563] %v4561
        %v4565 = vld [vmem:[%s5] sm:$0x1]
        %v4566 = vlaneseq
        %vm4568 = vcmp.lt.s32.totalorder %v4566, 64
        %v4569 = vsel %vm4568, %v4565, %v21
        %s4571 = ssub.s32 2, 1
        %4572 = vst [vmem:[#allocation27] sm:%s4571] %v4569
        %v4573 = vld [vmem:[%s3] sm:$0x1]
        %v4574 = vlaneseq
        %vm4576 = vcmp.lt.s32.totalorder %v4574, 64
        %v4577 = vsel %vm4576, %v4573, %v22
        %s4579 = ssub.s32 2, 1
        %4580 = vst [vmem:[#allocation28] sm:%s4579] %v4577
        %p4582 = scmp.eq.s32.totalorder %s39, 0
        // Predicated region
        $region37: #{conv_bn_act.2} parent=35 // pred_check
          %p4583 = pneg %p4582
        $region38: #{conv_bn_act.2} parent=35 // pred_check_branch
          %4585 = sbr.rel (%p4583) target = $region40
        $region39: #{conv_bn_act.2} parent=35 // pred_region
          %v4586 = vld [vmem:[#allocation25] sm:$0xf]
          %v4587 = vld [vmem:[#allocation25 + $0x4] sm:$0xf]
          %v4588 = vld [vmem:[#allocation25 + $0x8] sm:$0xf]
          %v4589 = vld [vmem:[#allocation25 + $0xc] sm:$0xf]
          %v4590 = vld [vmem:[#allocation25 + $0x10] sm:$0xf]
          %v4591 = vld [vmem:[#allocation25 + $0x14] sm:$0xf]
          %v4592 = vld [vmem:[#allocation25 + $0x18] sm:$0xf]
          %v4593 = vld [vmem:[#allocation25 + $0x1c] sm:$0xf]
          %v4594 = vld [vmem:[#allocation25 + $0x20] sm:$0xf]
          %v4595 = vld [vmem:[#allocation25 + $0x24] sm:$0xf]
          %v4596 = vld [vmem:[#allocation25 + $0x28] sm:$0xf]
          %v4597 = vld [vmem:[#allocation25 + $0x2c] sm:$0xf]
          %v4598 = vld [vmem:[#allocation25 + $0x30] sm:$0xf]
          %v4599 = vld [vmem:[#allocation25 + $0x34] sm:$0xf]
          %v4600 = vld [vmem:[#allocation25 + $0x38] sm:$0xf]
          %v4601 = vld [vmem:[#allocation25 + $0x3c] sm:$0xf]
          %v4602 = vld [vmem:[#allocation25 + $0x40] sm:$0xf]
          %v4603 = vld [vmem:[#allocation25 + $0x44] sm:$0xf]
          %v4604 = vld [vmem:[#allocation25 + $0x48] sm:$0xf]
          %v4605 = vld [vmem:[#allocation25 + $0x4c] sm:$0xf]
          %v4606 = vld [vmem:[#allocation25 + $0x50] sm:$0xf]
          %v4607 = vld [vmem:[#allocation25 + $0x54] sm:$0xf]
          %v4608 = vld [vmem:[#allocation25 + $0x58] sm:$0xf]
          %v4609 = vld [vmem:[#allocation25 + $0x5c] sm:$0xf]
          %v4610 = vld [vmem:[#allocation25 + $0x60] sm:$0xf]
          %v4611 = vld [vmem:[#allocation25 + $0x64] sm:$0xf]
          %v4612 = vld [vmem:[#allocation25 + $0x68] sm:$0xf]
          %v4613 = vld [vmem:[#allocation25 + $0x6c] sm:$0xf]
          %v4614 = vld [vmem:[#allocation25 + $0x70] sm:$0xf]
          %v4615 = vld [vmem:[#allocation25 + $0x74] sm:$0xf]
          %v4616 = vld [vmem:[#allocation25 + $0x78] sm:$0xf]
          %v4617 = vld [vmem:[#allocation25 + $0x7c] sm:$0xf]
          %v4618 = vld [vmem:[#allocation25 + $0x80] sm:$0xf]
          %v4619 = vld [vmem:[#allocation25 + $0x84] sm:$0xf]
          %v4620 = vld [vmem:[#allocation25 + $0x88] sm:$0xf]
          %v4621 = vld [vmem:[#allocation25 + $0x8c] sm:$0xf]
          %v4622 = vld [vmem:[#allocation25 + $0x90] sm:$0xf]
          %v4623 = vld [vmem:[#allocation25 + $0x94] sm:$0xf]
          %v4624 = vld [vmem:[#allocation25 + $0x98] sm:$0xf]
          %v4625 = vld [vmem:[#allocation25 + $0x9c] sm:$0xf]
          %v4626 = vld [vmem:[#allocation25 + $0xa0] sm:$0xf]
          %v4627 = vld [vmem:[#allocation25 + $0xa4] sm:$0xf]
          %v4628 = vld [vmem:[#allocation25 + $0xa8] sm:$0xf]
          %v4629 = vld [vmem:[#allocation25 + $0xac] sm:$0xf]
          %v4630 = vld [vmem:[#allocation25 + $0xb0] sm:$0xf]
          %v4631 = vld [vmem:[#allocation25 + $0xb4] sm:$0xf]
          %v4632 = vld [vmem:[#allocation25 + $0xb8] sm:$0xf]
          %v4633 = vld [vmem:[#allocation25 + $0xbc] sm:$0xf]
          %v4634 = vld [vmem:[#allocation25 + $0xc0] sm:$0xf]
          %v4635 = vld [vmem:[#allocation25 + $0xc4] sm:$0xf]
          %v4636 = vld [vmem:[#allocation25 + $0xc8] sm:$0xf]
          %v4637 = vld [vmem:[#allocation25 + $0xcc] sm:$0xf]
          %v4638 = vld [vmem:[#allocation25 + $0xd0] sm:$0xf]
          %v4639 = vld [vmem:[#allocation25 + $0xd4] sm:$0xf]
          %v4640 = vld [vmem:[#allocation25 + $0xd8] sm:$0xf]
          %v4641 = vld [vmem:[#allocation25 + $0xdc] sm:$0xf]
          %v4642 = vld [vmem:[#allocation25 + $0xe0] sm:$0xf]
          %v4643 = vld [vmem:[#allocation25 + $0xe4] sm:$0xf]
          %v4644 = vld [vmem:[#allocation25 + $0xe8] sm:$0xf]
          %v4645 = vld [vmem:[#allocation25 + $0xec] sm:$0xf]
          %v4646 = vld [vmem:[#allocation25 + $0xf0] sm:$0xf]
          %v4647 = vld [vmem:[#allocation25 + $0xf4] sm:$0xf]
          %v4648 = vld [vmem:[#allocation25 + $0xf8] sm:$0xf]
          %v4649 = vld [vmem:[#allocation25 + $0xfc] sm:$0xf]
          %v4650 = vld [vmem:[#allocation25 + $0x100] sm:$0xf]
          %v4651 = vld [vmem:[#allocation25 + $0x104] sm:$0xf]
          %v4652 = vld [vmem:[#allocation25 + $0x108] sm:$0xf]
          %v4653 = vld [vmem:[#allocation25 + $0x10c] sm:$0xf]
          %v4654 = vld [vmem:[#allocation25 + $0x110] sm:$0xf]
          %v4655 = vld [vmem:[#allocation25 + $0x114] sm:$0xf]
          %v4656 = vld [vmem:[#allocation25 + $0x118] sm:$0xf]
          %v4657 = vld [vmem:[#allocation25 + $0x11c] sm:$0xf]
          %v4658 = vld [vmem:[#allocation25 + $0x120] sm:$0xf]
          %v4659 = vld [vmem:[#allocation25 + $0x124] sm:$0xf]
          %v4660 = vld [vmem:[#allocation25 + $0x128] sm:$0xf]
          %v4661 = vld [vmem:[#allocation25 + $0x12c] sm:$0xf]
          %v4662 = vld [vmem:[#allocation25 + $0x130] sm:$0xf]
          %v4663 = vld [vmem:[#allocation25 + $0x134] sm:$0xf]
          %v4664 = vld [vmem:[#allocation25 + $0x138] sm:$0xf]
          %v4665 = vld [vmem:[#allocation25 + $0x13c] sm:$0xf]
          %v4666 = vld [vmem:[#allocation25 + $0x140] sm:$0xf]
          %v4667 = vld [vmem:[#allocation25 + $0x144] sm:$0xf]
          %v4668 = vld [vmem:[#allocation25 + $0x148] sm:$0xf]
          %v4669 = vld [vmem:[#allocation25 + $0x14c] sm:$0xf]
          %v4670 = vld [vmem:[#allocation25 + $0x150] sm:$0xf]
          %v4671 = vld [vmem:[#allocation25 + $0x154] sm:$0xf]
          %v4672 = vld [vmem:[#allocation25 + $0x158] sm:$0xf]
          %v4673 = vld [vmem:[#allocation25 + $0x15c] sm:$0xf]
          %v4674 = vld [vmem:[#allocation25 + $0x160] sm:$0xf]
          %v4675 = vld [vmem:[#allocation25 + $0x164] sm:$0xf]
          %v4676 = vld [vmem:[#allocation25 + $0x168] sm:$0xf]
          %v4677 = vld [vmem:[#allocation25 + $0x16c] sm:$0xf]
          %v4678 = vld [vmem:[#allocation25 + $0x170] sm:$0xf]
          %v4679 = vld [vmem:[#allocation25 + $0x174] sm:$0xf]
          %v4680 = vld [vmem:[#allocation25 + $0x178] sm:$0xf]
          %v4681 = vld [vmem:[#allocation25 + $0x17c] sm:$0xf]
          %v4682 = vld [vmem:[#allocation25 + $0x180] sm:$0xf]
          %v4683 = vld [vmem:[#allocation25 + $0x184] sm:$0xf]
          %v4684 = vld [vmem:[#allocation25 + $0x188] sm:$0xf]
          %v4685 = vld [vmem:[#allocation25 + $0x18c] sm:$0xf]
          %v4686 = vld [vmem:[#allocation25 + $0x190] sm:$0xf]
          %v4687 = vld [vmem:[#allocation25 + $0x194] sm:$0xf]
          %v4688 = vld [vmem:[#allocation25 + $0x198] sm:$0xf]
          %v4689 = vld [vmem:[#allocation25 + $0x19c] sm:$0xf]
          %v4690 = vld [vmem:[#allocation25 + $0x1a0] sm:$0xf]
          %v4691 = vld [vmem:[#allocation25 + $0x1a4] sm:$0xf]
          %v4692 = vld [vmem:[#allocation25 + $0x1a8] sm:$0xf]
          %v4693 = vld [vmem:[#allocation25 + $0x1ac] sm:$0xf]
          %v4694 = vld [vmem:[#allocation25 + $0x1b0] sm:$0xf]
          %v4695 = vld [vmem:[#allocation25 + $0x1b4] sm:$0xf]
          %v4696 = vld [vmem:[#allocation25 + $0x1b8] sm:$0xf]
          %v4697 = vld [vmem:[#allocation25 + $0x1bc] sm:$0xf]
          %v4698 = vld [vmem:[#allocation25 + $0x1c0] sm:$0xf]
          %v4699 = vld [vmem:[#allocation25 + $0x1c4] sm:$0xf]
          %v4700 = vld [vmem:[#allocation25 + $0x1c8] sm:$0xf]
          %v4701 = vld [vmem:[#allocation25 + $0x1cc] sm:$0xf]
          %v4702 = vld [vmem:[#allocation25 + $0x1d0] sm:$0xf]
          %v4703 = vld [vmem:[#allocation25 + $0x1d4] sm:$0xf]
          %v4704 = vld [vmem:[#allocation25 + $0x1d8] sm:$0xf]
          %v4705 = vld [vmem:[#allocation25 + $0x1dc] sm:$0xf]
          %v4706 = vld [vmem:[#allocation25 + $0x1e0] sm:$0xf]
          %v4707 = vld [vmem:[#allocation25 + $0x1e4] sm:$0xf]
          %v4708 = vld [vmem:[#allocation25 + $0x1e8] sm:$0xf]
          %v4709 = vld [vmem:[#allocation25 + $0x1ec] sm:$0xf]
          %v4710 = vld [vmem:[#allocation25 + $0x1f0] sm:$0xf]
          %v4711 = vld [vmem:[#allocation25 + $0x1f4] sm:$0xf]
          %v4712 = vld [vmem:[#allocation25 + $0x1f8] sm:$0xf]
          %v4713 = vld [vmem:[#allocation25 + $0x1fc] sm:$0xf]
          %v4714 = vld [vmem:[#allocation26] sm:$0xf]
          %v4715 = vld [vmem:[#allocation26 + $0x4] sm:$0xf]
          %v4716 = vld [vmem:[#allocation26 + $0x8] sm:$0xf]
          %v4717 = vld [vmem:[#allocation26 + $0xc] sm:$0xf]
          %v4846 = vunpack.c.l.b16 %v4586
          %v4847 = vunpack.c.l.b16 %v4587
          %v4848 = vunpack.c.l.b16 %v4588
          %v4849 = vunpack.c.l.b16 %v4589
          %v4850 = vunpack.c.l.b16 %v4590
          %v4851 = vunpack.c.l.b16 %v4591
          %v4852 = vunpack.c.l.b16 %v4592
          %v4853 = vunpack.c.l.b16 %v4593
          %v4854 = vunpack.c.l.b16 %v4594
          %v4855 = vunpack.c.l.b16 %v4595
          %v4856 = vunpack.c.l.b16 %v4596
          %v4857 = vunpack.c.l.b16 %v4597
          %v4858 = vunpack.c.l.b16 %v4598
          %v4859 = vunpack.c.l.b16 %v4599
          %v4860 = vunpack.c.l.b16 %v4600
          %v4861 = vunpack.c.l.b16 %v4601
          %v4862 = vunpack.c.l.b16 %v4602
          %v4863 = vunpack.c.l.b16 %v4603
          %v4864 = vunpack.c.l.b16 %v4604
          %v4865 = vunpack.c.l.b16 %v4605
          %v4866 = vunpack.c.l.b16 %v4606
          %v4867 = vunpack.c.l.b16 %v4607
          %v4868 = vunpack.c.l.b16 %v4608
          %v4869 = vunpack.c.l.b16 %v4609
          %v4870 = vunpack.c.l.b16 %v4610
          %v4871 = vunpack.c.l.b16 %v4611
          %v4872 = vunpack.c.l.b16 %v4612
          %v4873 = vunpack.c.l.b16 %v4613
          %v4874 = vunpack.c.l.b16 %v4614
          %v4875 = vunpack.c.l.b16 %v4615
          %v4876 = vunpack.c.l.b16 %v4616
          %v4877 = vunpack.c.l.b16 %v4617
          %v4878 = vunpack.c.l.b16 %v4618
          %v4879 = vunpack.c.l.b16 %v4619
          %v4880 = vunpack.c.l.b16 %v4620
          %v4881 = vunpack.c.l.b16 %v4621
          %v4882 = vunpack.c.l.b16 %v4622
          %v4883 = vunpack.c.l.b16 %v4623
          %v4884 = vunpack.c.l.b16 %v4624
          %v4885 = vunpack.c.l.b16 %v4625
          %v4886 = vunpack.c.l.b16 %v4626
          %v4887 = vunpack.c.l.b16 %v4627
          %v4888 = vunpack.c.l.b16 %v4628
          %v4889 = vunpack.c.l.b16 %v4629
          %v4890 = vunpack.c.l.b16 %v4630
          %v4891 = vunpack.c.l.b16 %v4631
          %v4892 = vunpack.c.l.b16 %v4632
          %v4893 = vunpack.c.l.b16 %v4633
          %v4894 = vunpack.c.l.b16 %v4634
          %v4895 = vunpack.c.l.b16 %v4635
          %v4896 = vunpack.c.l.b16 %v4636
          %v4897 = vunpack.c.l.b16 %v4637
          %v4898 = vunpack.c.l.b16 %v4638
          %v4899 = vunpack.c.l.b16 %v4639
          %v4900 = vunpack.c.l.b16 %v4640
          %v4901 = vunpack.c.l.b16 %v4641
          %v4902 = vunpack.c.l.b16 %v4642
          %v4903 = vunpack.c.l.b16 %v4643
          %v4904 = vunpack.c.l.b16 %v4644
          %v4905 = vunpack.c.l.b16 %v4645
          %v4906 = vunpack.c.l.b16 %v4646
          %v4907 = vunpack.c.l.b16 %v4647
          %v4908 = vunpack.c.l.b16 %v4648
          %v4909 = vunpack.c.l.b16 %v4649
          %v4910 = vunpack.c.l.b16 %v4650
          %v4911 = vunpack.c.l.b16 %v4651
          %v4912 = vunpack.c.l.b16 %v4652
          %v4913 = vunpack.c.l.b16 %v4653
          %v4914 = vunpack.c.l.b16 %v4654
          %v4915 = vunpack.c.l.b16 %v4655
          %v4916 = vunpack.c.l.b16 %v4656
          %v4917 = vunpack.c.l.b16 %v4657
          %v4918 = vunpack.c.l.b16 %v4658
          %v4919 = vunpack.c.l.b16 %v4659
          %v4920 = vunpack.c.l.b16 %v4660
          %v4921 = vunpack.c.l.b16 %v4661
          %v4922 = vunpack.c.l.b16 %v4662
          %v4923 = vunpack.c.l.b16 %v4663
          %v4924 = vunpack.c.l.b16 %v4664
          %v4925 = vunpack.c.l.b16 %v4665
          %v4926 = vunpack.c.l.b16 %v4666
          %v4927 = vunpack.c.l.b16 %v4667
          %v4928 = vunpack.c.l.b16 %v4668
          %v4929 = vunpack.c.l.b16 %v4669
          %v4930 = vunpack.c.l.b16 %v4670
          %v4931 = vunpack.c.l.b16 %v4671
          %v4932 = vunpack.c.l.b16 %v4672
          %v4933 = vunpack.c.l.b16 %v4673
          %v4934 = vunpack.c.l.b16 %v4674
          %v4935 = vunpack.c.l.b16 %v4675
          %v4936 = vunpack.c.l.b16 %v4676
          %v4937 = vunpack.c.l.b16 %v4677
          %v4938 = vunpack.c.l.b16 %v4678
          %v4939 = vunpack.c.l.b16 %v4679
          %v4940 = vunpack.c.l.b16 %v4680
          %v4941 = vunpack.c.l.b16 %v4681
          %v4942 = vunpack.c.l.b16 %v4682
          %v4943 = vunpack.c.l.b16 %v4683
          %v4944 = vunpack.c.l.b16 %v4684
          %v4945 = vunpack.c.l.b16 %v4685
          %v4946 = vunpack.c.l.b16 %v4686
          %v4947 = vunpack.c.l.b16 %v4687
          %v4948 = vunpack.c.l.b16 %v4688
          %v4949 = vunpack.c.l.b16 %v4689
          %v4950 = vunpack.c.l.b16 %v4690
          %v4951 = vunpack.c.l.b16 %v4691
          %v4952 = vunpack.c.l.b16 %v4692
          %v4953 = vunpack.c.l.b16 %v4693
          %v4954 = vunpack.c.l.b16 %v4694
          %v4955 = vunpack.c.l.b16 %v4695
          %v4956 = vunpack.c.l.b16 %v4696
          %v4957 = vunpack.c.l.b16 %v4697
          %v4958 = vunpack.c.l.b16 %v4698
          %v4959 = vunpack.c.l.b16 %v4699
          %v4960 = vunpack.c.l.b16 %v4700
          %v4961 = vunpack.c.l.b16 %v4701
          %v4962 = vunpack.c.l.b16 %v4702
          %v4963 = vunpack.c.l.b16 %v4703
          %v4964 = vunpack.c.l.b16 %v4704
          %v4965 = vunpack.c.l.b16 %v4705
          %v4966 = vunpack.c.l.b16 %v4706
          %v4967 = vunpack.c.l.b16 %v4707
          %v4968 = vunpack.c.l.b16 %v4708
          %v4969 = vunpack.c.l.b16 %v4709
          %v4970 = vunpack.c.l.b16 %v4710
          %v4971 = vunpack.c.l.b16 %v4711
          %v4972 = vunpack.c.l.b16 %v4712
          %v4973 = vunpack.c.l.b16 %v4713
          %v4974 = vpack.c.b16 %v4847, %v4846
          %v4975 = vpack.c.b16 %v4849, %v4848
          %v4976 = vpack.c.b16 %v4851, %v4850
          %v4977 = vpack.c.b16 %v4853, %v4852
          %v4978 = vpack.c.b16 %v4855, %v4854
          %v4979 = vpack.c.b16 %v4857, %v4856
          %v4980 = vpack.c.b16 %v4859, %v4858
          %v4981 = vpack.c.b16 %v4861, %v4860
          %v4982 = vpack.c.b16 %v4863, %v4862
          %v4983 = vpack.c.b16 %v4865, %v4864
          %v4984 = vpack.c.b16 %v4867, %v4866
          %v4985 = vpack.c.b16 %v4869, %v4868
          %v4986 = vpack.c.b16 %v4871, %v4870
          %v4987 = vpack.c.b16 %v4873, %v4872
          %v4988 = vpack.c.b16 %v4875, %v4874
          %v4989 = vpack.c.b16 %v4877, %v4876
          %v4990 = vpack.c.b16 %v4879, %v4878
          %v4991 = vpack.c.b16 %v4881, %v4880
          %v4992 = vpack.c.b16 %v4883, %v4882
          %v4993 = vpack.c.b16 %v4885, %v4884
          %v4994 = vpack.c.b16 %v4887, %v4886
          %v4995 = vpack.c.b16 %v4889, %v4888
          %v4996 = vpack.c.b16 %v4891, %v4890
          %v4997 = vpack.c.b16 %v4893, %v4892
          %v4998 = vpack.c.b16 %v4895, %v4894
          %v4999 = vpack.c.b16 %v4897, %v4896
          %v5000 = vpack.c.b16 %v4899, %v4898
          %v5001 = vpack.c.b16 %v4901, %v4900
          %v5002 = vpack.c.b16 %v4903, %v4902
          %v5003 = vpack.c.b16 %v4905, %v4904
          %v5004 = vpack.c.b16 %v4907, %v4906
          %v5005 = vpack.c.b16 %v4909, %v4908
          %v5006 = vpack.c.b16 %v4911, %v4910
          %v5007 = vpack.c.b16 %v4913, %v4912
          %v5008 = vpack.c.b16 %v4915, %v4914
          %v5009 = vpack.c.b16 %v4917, %v4916
          %v5010 = vpack.c.b16 %v4919, %v4918
          %v5011 = vpack.c.b16 %v4921, %v4920
          %v5012 = vpack.c.b16 %v4923, %v4922
          %v5013 = vpack.c.b16 %v4925, %v4924
          %v5014 = vpack.c.b16 %v4927, %v4926
          %v5015 = vpack.c.b16 %v4929, %v4928
          %v5016 = vpack.c.b16 %v4931, %v4930
          %v5017 = vpack.c.b16 %v4933, %v4932
          %v5018 = vpack.c.b16 %v4935, %v4934
          %v5019 = vpack.c.b16 %v4937, %v4936
          %v5020 = vpack.c.b16 %v4939, %v4938
          %v5021 = vpack.c.b16 %v4941, %v4940
          %v5022 = vpack.c.b16 %v4943, %v4942
          %v5023 = vpack.c.b16 %v4945, %v4944
          %v5024 = vpack.c.b16 %v4947, %v4946
          %v5025 = vpack.c.b16 %v4949, %v4948
          %v5026 = vpack.c.b16 %v4951, %v4950
          %v5027 = vpack.c.b16 %v4953, %v4952
          %v5028 = vpack.c.b16 %v4955, %v4954
          %v5029 = vpack.c.b16 %v4957, %v4956
          %v5030 = vpack.c.b16 %v4959, %v4958
          %v5031 = vpack.c.b16 %v4961, %v4960
          %v5032 = vpack.c.b16 %v4963, %v4962
          %v5033 = vpack.c.b16 %v4965, %v4964
          %v5034 = vpack.c.b16 %v4967, %v4966
          %v5035 = vpack.c.b16 %v4969, %v4968
          %v5036 = vpack.c.b16 %v4971, %v4970
          %v5037 = vpack.c.b16 %v4973, %v4972
          %v5042 = vunpack.c.l.b16 %v4714
          %v5043 = vunpack.c.l.b16 %v4715
          %v5044 = vunpack.c.l.b16 %v4716
          %v5045 = vunpack.c.l.b16 %v4717
          %v5046 = vpack.c.b16 %v5043, %v5042
          %v5047 = vpack.c.b16 %v5045, %v5044
          %vm5050 = vcmask 261120
          %v5052 = vsel %vm5050, %v4974, 0
          %v5055 = vsel %vm5050, %v4975, 0
          %v5058 = vsel %vm5050, %v4976, 0
          %v5061 = vsel %vm5050, %v4977, 0
          %v5064 = vsel %vm5050, %v4978, 0
          %v5067 = vsel %vm5050, %v4979, 0
          %v5070 = vsel %vm5050, %v4980, 0
          %v5073 = vsel %vm5050, %v4981, 0
          %v5076 = vsel %vm5050, %v4982, 0
          %v5079 = vsel %vm5050, %v4983, 0
          %v5082 = vsel %vm5050, %v4984, 0
          %v5085 = vsel %vm5050, %v4985, 0
          %v5088 = vsel %vm5050, %v4986, 0
          %v5091 = vsel %vm5050, %v4987, 0
          %v5094 = vsel %vm5050, %v4988, 0
          %v5097 = vsel %vm5050, %v4989, 0
          %v5100 = vsel %vm5050, %v4990, 0
          %v5103 = vsel %vm5050, %v4991, 0
          %v5106 = vsel %vm5050, %v4992, 0
          %v5109 = vsel %vm5050, %v4993, 0
          %v5112 = vsel %vm5050, %v4994, 0
          %v5115 = vsel %vm5050, %v4995, 0
          %v5118 = vsel %vm5050, %v4996, 0
          %v5121 = vsel %vm5050, %v4997, 0
          %v5124 = vsel %vm5050, %v4998, 0
          %v5127 = vsel %vm5050, %v4999, 0
          %v5130 = vsel %vm5050, %v5000, 0
          %v5133 = vsel %vm5050, %v5001, 0
          %v5136 = vsel %vm5050, %v5002, 0
          %v5139 = vsel %vm5050, %v5003, 0
          %v5142 = vsel %vm5050, %v5004, 0
          %v5145 = vsel %vm5050, %v5005, 0
          %v5148 = vsel %vm5050, %v5006, 0
          %v5151 = vsel %vm5050, %v5007, 0
          %v5154 = vsel %vm5050, %v5008, 0
          %v5157 = vsel %vm5050, %v5009, 0
          %v5160 = vsel %vm5050, %v5010, 0
          %v5163 = vsel %vm5050, %v5011, 0
          %v5166 = vsel %vm5050, %v5012, 0
          %v5169 = vsel %vm5050, %v5013, 0
          %v5172 = vsel %vm5050, %v5014, 0
          %v5175 = vsel %vm5050, %v5015, 0
          %v5178 = vsel %vm5050, %v5016, 0
          %v5181 = vsel %vm5050, %v5017, 0
          %v5184 = vsel %vm5050, %v5018, 0
          %v5187 = vsel %vm5050, %v5019, 0
          %v5190 = vsel %vm5050, %v5020, 0
          %v5193 = vsel %vm5050, %v5021, 0
          %v5196 = vsel %vm5050, %v5022, 0
          %v5199 = vsel %vm5050, %v5023, 0
          %v5202 = vsel %vm5050, %v5024, 0
          %v5205 = vsel %vm5050, %v5025, 0
          %v5208 = vsel %vm5050, %v5026, 0
          %v5211 = vsel %vm5050, %v5027, 0
          %v5214 = vsel %vm5050, %v5028, 0
          %v5217 = vsel %vm5050, %v5029, 0
          %v5220 = vsel %vm5050, %v5030, 0
          %v5223 = vsel %vm5050, %v5031, 0
          %v5226 = vsel %vm5050, %v5032, 0
          %v5229 = vsel %vm5050, %v5033, 0
          %v5232 = vsel %vm5050, %v5034, 0
          %v5235 = vsel %vm5050, %v5035, 0
          %v5238 = vsel %vm5050, %v5036, 0
          %v5241 = vsel %vm5050, %v5037, 0
          %5243 = vmatpush.bf16.msra.mxu0 0
          %5244 = vmatpush.bf16.msra.mxu0 0
          %5245 = vmatpush.bf16.msra.mxu0 0
          %5246 = vmatpush.bf16.msra.mxu0 0
          %5247 = vmatpush.bf16.msra.mxu0 0
          %5248 = vmatpush.bf16.msra.mxu0 0
          %5249 = vmatpush.bf16.msra.mxu0 %v5047
          %5250 = vmatpush.bf16.msra.mxu0 %v5046
          %5251 = vmatmul.bf16.gmra.mxu0 %v5052
          %v5252 = vpop.f32.mrf.mxu0
          %v5253 = vadd.f32 0.0, %v5252
          %v5254 = vpop.f32.mrf.mxu0
          %v5255 = vadd.f32 0.0, %v5254
          %5256 = vmatmul.bf16.gmra.mxu0 %v5055
          %v5257 = vpop.f32.mrf.mxu0
          %v5258 = vadd.f32 0.0, %v5257
          %v5259 = vpop.f32.mrf.mxu0
          %v5260 = vadd.f32 0.0, %v5259
          %5261 = vmatmul.bf16.gmra.mxu0 %v5058
          %v5262 = vpop.f32.mrf.mxu0
          %v5263 = vadd.f32 0.0, %v5262
          %v5264 = vpop.f32.mrf.mxu0
          %v5265 = vadd.f32 0.0, %v5264
          %5266 = vmatmul.bf16.gmra.mxu0 %v5061
          %v5267 = vpop.f32.mrf.mxu0
          %v5268 = vadd.f32 0.0, %v5267
          %v5269 = vpop.f32.mrf.mxu0
          %v5270 = vadd.f32 0.0, %v5269
          %5271 = vmatmul.bf16.gmra.mxu0 %v5064
          %v5272 = vpop.f32.mrf.mxu0
          %v5273 = vadd.f32 0.0, %v5272
          %v5274 = vpop.f32.mrf.mxu0
          %v5275 = vadd.f32 0.0, %v5274
          %5276 = vmatmul.bf16.gmra.mxu0 %v5067
          %v5277 = vpop.f32.mrf.mxu0
          %v5278 = vadd.f32 0.0, %v5277
          %v5279 = vpop.f32.mrf.mxu0
          %v5280 = vadd.f32 0.0, %v5279
          %5281 = vmatmul.bf16.gmra.mxu0 %v5070
          %v5282 = vpop.f32.mrf.mxu0
          %v5283 = vadd.f32 0.0, %v5282
          %v5284 = vpop.f32.mrf.mxu0
          %v5285 = vadd.f32 0.0, %v5284
          %5286 = vmatmul.bf16.gmra.mxu0 %v5073
          %v5287 = vpop.f32.mrf.mxu0
          %v5288 = vadd.f32 0.0, %v5287
          %v5289 = vpop.f32.mrf.mxu0
          %v5290 = vadd.f32 0.0, %v5289
          %5291 = vmatmul.bf16.gmra.mxu0 %v5076
          %v5292 = vpop.f32.mrf.mxu0
          %v5293 = vadd.f32 0.0, %v5292
          %v5294 = vpop.f32.mrf.mxu0
          %v5295 = vadd.f32 0.0, %v5294
          %5296 = vmatmul.bf16.gmra.mxu0 %v5079
          %v5297 = vpop.f32.mrf.mxu0
          %v5298 = vadd.f32 0.0, %v5297
          %v5299 = vpop.f32.mrf.mxu0
          %v5300 = vadd.f32 0.0, %v5299
          %5301 = vmatmul.bf16.gmra.mxu0 %v5082
          %v5302 = vpop.f32.mrf.mxu0
          %v5303 = vadd.f32 0.0, %v5302
          %v5304 = vpop.f32.mrf.mxu0
          %v5305 = vadd.f32 0.0, %v5304
          %5306 = vmatmul.bf16.gmra.mxu0 %v5085
          %v5307 = vpop.f32.mrf.mxu0
          %v5308 = vadd.f32 0.0, %v5307
          %v5309 = vpop.f32.mrf.mxu0
          %v5310 = vadd.f32 0.0, %v5309
          %5311 = vmatmul.bf16.gmra.mxu0 %v5088
          %v5312 = vpop.f32.mrf.mxu0
          %v5313 = vadd.f32 0.0, %v5312
          %v5314 = vpop.f32.mrf.mxu0
          %v5315 = vadd.f32 0.0, %v5314
          %5316 = vmatmul.bf16.gmra.mxu0 %v5091
          %v5317 = vpop.f32.mrf.mxu0
          %v5318 = vadd.f32 0.0, %v5317
          %v5319 = vpop.f32.mrf.mxu0
          %v5320 = vadd.f32 0.0, %v5319
          %5321 = vmatmul.bf16.gmra.mxu0 %v5094
          %v5322 = vpop.f32.mrf.mxu0
          %v5323 = vadd.f32 0.0, %v5322
          %v5324 = vpop.f32.mrf.mxu0
          %v5325 = vadd.f32 0.0, %v5324
          %5326 = vmatmul.bf16.gmra.mxu0 %v5097
          %v5327 = vpop.f32.mrf.mxu0
          %v5328 = vadd.f32 0.0, %v5327
          %v5329 = vpop.f32.mrf.mxu0
          %v5330 = vadd.f32 0.0, %v5329
          %5331 = vmatmul.bf16.gmra.mxu0 %v5100
          %v5332 = vpop.f32.mrf.mxu0
          %v5333 = vadd.f32 0.0, %v5332
          %v5334 = vpop.f32.mrf.mxu0
          %v5335 = vadd.f32 0.0, %v5334
          %5336 = vmatmul.bf16.gmra.mxu0 %v5103
          %v5337 = vpop.f32.mrf.mxu0
          %v5338 = vadd.f32 0.0, %v5337
          %v5339 = vpop.f32.mrf.mxu0
          %v5340 = vadd.f32 0.0, %v5339
          %5341 = vmatmul.bf16.gmra.mxu0 %v5106
          %v5342 = vpop.f32.mrf.mxu0
          %v5343 = vadd.f32 0.0, %v5342
          %v5344 = vpop.f32.mrf.mxu0
          %v5345 = vadd.f32 0.0, %v5344
          %5346 = vmatmul.bf16.gmra.mxu0 %v5109
          %v5347 = vpop.f32.mrf.mxu0
          %v5348 = vadd.f32 0.0, %v5347
          %v5349 = vpop.f32.mrf.mxu0
          %v5350 = vadd.f32 0.0, %v5349
          %5351 = vmatmul.bf16.gmra.mxu0 %v5112
          %v5352 = vpop.f32.mrf.mxu0
          %v5353 = vadd.f32 0.0, %v5352
          %v5354 = vpop.f32.mrf.mxu0
          %v5355 = vadd.f32 0.0, %v5354
          %5356 = vmatmul.bf16.gmra.mxu0 %v5115
          %v5357 = vpop.f32.mrf.mxu0
          %v5358 = vadd.f32 0.0, %v5357
          %v5359 = vpop.f32.mrf.mxu0
          %v5360 = vadd.f32 0.0, %v5359
          %5361 = vmatmul.bf16.gmra.mxu0 %v5118
          %v5362 = vpop.f32.mrf.mxu0
          %v5363 = vadd.f32 0.0, %v5362
          %v5364 = vpop.f32.mrf.mxu0
          %v5365 = vadd.f32 0.0, %v5364
          %5366 = vmatmul.bf16.gmra.mxu0 %v5121
          %v5367 = vpop.f32.mrf.mxu0
          %v5368 = vadd.f32 0.0, %v5367
          %v5369 = vpop.f32.mrf.mxu0
          %v5370 = vadd.f32 0.0, %v5369
          %5371 = vmatmul.bf16.gmra.mxu0 %v5124
          %v5372 = vpop.f32.mrf.mxu0
          %v5373 = vadd.f32 0.0, %v5372
          %v5374 = vpop.f32.mrf.mxu0
          %v5375 = vadd.f32 0.0, %v5374
          %5376 = vmatmul.bf16.gmra.mxu0 %v5127
          %v5377 = vpop.f32.mrf.mxu0
          %v5378 = vadd.f32 0.0, %v5377
          %v5379 = vpop.f32.mrf.mxu0
          %v5380 = vadd.f32 0.0, %v5379
          %5381 = vmatmul.bf16.gmra.mxu0 %v5130
          %v5382 = vpop.f32.mrf.mxu0
          %v5383 = vadd.f32 0.0, %v5382
          %v5384 = vpop.f32.mrf.mxu0
          %v5385 = vadd.f32 0.0, %v5384
          %5386 = vmatmul.bf16.gmra.mxu0 %v5133
          %v5387 = vpop.f32.mrf.mxu0
          %v5388 = vadd.f32 0.0, %v5387
          %v5389 = vpop.f32.mrf.mxu0
          %v5390 = vadd.f32 0.0, %v5389
          %5391 = vmatmul.bf16.gmra.mxu0 %v5136
          %v5392 = vpop.f32.mrf.mxu0
          %v5393 = vadd.f32 0.0, %v5392
          %v5394 = vpop.f32.mrf.mxu0
          %v5395 = vadd.f32 0.0, %v5394
          %5396 = vmatmul.bf16.gmra.mxu0 %v5139
          %v5397 = vpop.f32.mrf.mxu0
          %v5398 = vadd.f32 0.0, %v5397
          %v5399 = vpop.f32.mrf.mxu0
          %v5400 = vadd.f32 0.0, %v5399
          %5401 = vmatmul.bf16.gmra.mxu0 %v5142
          %v5402 = vpop.f32.mrf.mxu0
          %v5403 = vadd.f32 0.0, %v5402
          %v5404 = vpop.f32.mrf.mxu0
          %v5405 = vadd.f32 0.0, %v5404
          %5406 = vmatmul.bf16.gmra.mxu0 %v5145
          %v5407 = vpop.f32.mrf.mxu0
          %v5408 = vadd.f32 0.0, %v5407
          %v5409 = vpop.f32.mrf.mxu0
          %v5410 = vadd.f32 0.0, %v5409
          %5411 = vmatmul.bf16.gmra.mxu0 %v5148
          %v5412 = vpop.f32.mrf.mxu0
          %v5413 = vadd.f32 0.0, %v5412
          %v5414 = vpop.f32.mrf.mxu0
          %v5415 = vadd.f32 0.0, %v5414
          %5416 = vmatmul.bf16.gmra.mxu0 %v5151
          %v5417 = vpop.f32.mrf.mxu0
          %v5418 = vadd.f32 0.0, %v5417
          %v5419 = vpop.f32.mrf.mxu0
          %v5420 = vadd.f32 0.0, %v5419
          %5421 = vmatmul.bf16.gmra.mxu0 %v5154
          %v5422 = vpop.f32.mrf.mxu0
          %v5423 = vadd.f32 0.0, %v5422
          %v5424 = vpop.f32.mrf.mxu0
          %v5425 = vadd.f32 0.0, %v5424
          %5426 = vmatmul.bf16.gmra.mxu0 %v5157
          %v5427 = vpop.f32.mrf.mxu0
          %v5428 = vadd.f32 0.0, %v5427
          %v5429 = vpop.f32.mrf.mxu0
          %v5430 = vadd.f32 0.0, %v5429
          %5431 = vmatmul.bf16.gmra.mxu0 %v5160
          %v5432 = vpop.f32.mrf.mxu0
          %v5433 = vadd.f32 0.0, %v5432
          %v5434 = vpop.f32.mrf.mxu0
          %v5435 = vadd.f32 0.0, %v5434
          %5436 = vmatmul.bf16.gmra.mxu0 %v5163
          %v5437 = vpop.f32.mrf.mxu0
          %v5438 = vadd.f32 0.0, %v5437
          %v5439 = vpop.f32.mrf.mxu0
          %v5440 = vadd.f32 0.0, %v5439
          %5441 = vmatmul.bf16.gmra.mxu0 %v5166
          %v5442 = vpop.f32.mrf.mxu0
          %v5443 = vadd.f32 0.0, %v5442
          %v5444 = vpop.f32.mrf.mxu0
          %v5445 = vadd.f32 0.0, %v5444
          %5446 = vmatmul.bf16.gmra.mxu0 %v5169
          %v5447 = vpop.f32.mrf.mxu0
          %v5448 = vadd.f32 0.0, %v5447
          %v5449 = vpop.f32.mrf.mxu0
          %v5450 = vadd.f32 0.0, %v5449
          %5451 = vmatmul.bf16.gmra.mxu0 %v5172
          %v5452 = vpop.f32.mrf.mxu0
          %v5453 = vadd.f32 0.0, %v5452
          %v5454 = vpop.f32.mrf.mxu0
          %v5455 = vadd.f32 0.0, %v5454
          %5456 = vmatmul.bf16.gmra.mxu0 %v5175
          %v5457 = vpop.f32.mrf.mxu0
          %v5458 = vadd.f32 0.0, %v5457
          %v5459 = vpop.f32.mrf.mxu0
          %v5460 = vadd.f32 0.0, %v5459
          %5461 = vmatmul.bf16.gmra.mxu0 %v5178
          %v5462 = vpop.f32.mrf.mxu0
          %v5463 = vadd.f32 0.0, %v5462
          %v5464 = vpop.f32.mrf.mxu0
          %v5465 = vadd.f32 0.0, %v5464
          %5466 = vmatmul.bf16.gmra.mxu0 %v5181
          %v5467 = vpop.f32.mrf.mxu0
          %v5468 = vadd.f32 0.0, %v5467
          %v5469 = vpop.f32.mrf.mxu0
          %v5470 = vadd.f32 0.0, %v5469
          %5471 = vmatmul.bf16.gmra.mxu0 %v5184
          %v5472 = vpop.f32.mrf.mxu0
          %v5473 = vadd.f32 0.0, %v5472
          %v5474 = vpop.f32.mrf.mxu0
          %v5475 = vadd.f32 0.0, %v5474
          %5476 = vmatmul.bf16.gmra.mxu0 %v5187
          %v5477 = vpop.f32.mrf.mxu0
          %v5478 = vadd.f32 0.0, %v5477
          %v5479 = vpop.f32.mrf.mxu0
          %v5480 = vadd.f32 0.0, %v5479
          %5481 = vmatmul.bf16.gmra.mxu0 %v5190
          %v5482 = vpop.f32.mrf.mxu0
          %v5483 = vadd.f32 0.0, %v5482
          %v5484 = vpop.f32.mrf.mxu0
          %v5485 = vadd.f32 0.0, %v5484
          %5486 = vmatmul.bf16.gmra.mxu0 %v5193
          %v5487 = vpop.f32.mrf.mxu0
          %v5488 = vadd.f32 0.0, %v5487
          %v5489 = vpop.f32.mrf.mxu0
          %v5490 = vadd.f32 0.0, %v5489
          %5491 = vmatmul.bf16.gmra.mxu0 %v5196
          %v5492 = vpop.f32.mrf.mxu0
          %v5493 = vadd.f32 0.0, %v5492
          %v5494 = vpop.f32.mrf.mxu0
          %v5495 = vadd.f32 0.0, %v5494
          %5496 = vmatmul.bf16.gmra.mxu0 %v5199
          %v5497 = vpop.f32.mrf.mxu0
          %v5498 = vadd.f32 0.0, %v5497
          %v5499 = vpop.f32.mrf.mxu0
          %v5500 = vadd.f32 0.0, %v5499
          %5501 = vmatmul.bf16.gmra.mxu0 %v5202
          %v5502 = vpop.f32.mrf.mxu0
          %v5503 = vadd.f32 0.0, %v5502
          %v5504 = vpop.f32.mrf.mxu0
          %v5505 = vadd.f32 0.0, %v5504
          %5506 = vmatmul.bf16.gmra.mxu0 %v5205
          %v5507 = vpop.f32.mrf.mxu0
          %v5508 = vadd.f32 0.0, %v5507
          %v5509 = vpop.f32.mrf.mxu0
          %v5510 = vadd.f32 0.0, %v5509
          %5511 = vmatmul.bf16.gmra.mxu0 %v5208
          %v5512 = vpop.f32.mrf.mxu0
          %v5513 = vadd.f32 0.0, %v5512
          %v5514 = vpop.f32.mrf.mxu0
          %v5515 = vadd.f32 0.0, %v5514
          %5516 = vmatmul.bf16.gmra.mxu0 %v5211
          %v5517 = vpop.f32.mrf.mxu0
          %v5518 = vadd.f32 0.0, %v5517
          %v5519 = vpop.f32.mrf.mxu0
          %v5520 = vadd.f32 0.0, %v5519
          %5521 = vmatmul.bf16.gmra.mxu0 %v5214
          %v5522 = vpop.f32.mrf.mxu0
          %v5523 = vadd.f32 0.0, %v5522
          %v5524 = vpop.f32.mrf.mxu0
          %v5525 = vadd.f32 0.0, %v5524
          %5526 = vmatmul.bf16.gmra.mxu0 %v5217
          %v5527 = vpop.f32.mrf.mxu0
          %v5528 = vadd.f32 0.0, %v5527
          %v5529 = vpop.f32.mrf.mxu0
          %v5530 = vadd.f32 0.0, %v5529
          %5531 = vmatmul.bf16.gmra.mxu0 %v5220
          %v5532 = vpop.f32.mrf.mxu0
          %v5533 = vadd.f32 0.0, %v5532
          %v5534 = vpop.f32.mrf.mxu0
          %v5535 = vadd.f32 0.0, %v5534
          %5536 = vmatmul.bf16.gmra.mxu0 %v5223
          %v5537 = vpop.f32.mrf.mxu0
          %v5538 = vadd.f32 0.0, %v5537
          %v5539 = vpop.f32.mrf.mxu0
          %v5540 = vadd.f32 0.0, %v5539
          %5541 = vmatmul.bf16.gmra.mxu0 %v5226
          %v5542 = vpop.f32.mrf.mxu0
          %v5543 = vadd.f32 0.0, %v5542
          %v5544 = vpop.f32.mrf.mxu0
          %v5545 = vadd.f32 0.0, %v5544
          %5546 = vmatmul.bf16.gmra.mxu0 %v5229
          %v5547 = vpop.f32.mrf.mxu0
          %v5548 = vadd.f32 0.0, %v5547
          %v5549 = vpop.f32.mrf.mxu0
          %v5550 = vadd.f32 0.0, %v5549
          %5551 = vmatmul.bf16.gmra.mxu0 %v5232
          %v5552 = vpop.f32.mrf.mxu0
          %v5553 = vadd.f32 0.0, %v5552
          %v5554 = vpop.f32.mrf.mxu0
          %v5555 = vadd.f32 0.0, %v5554
          %5556 = vmatmul.bf16.gmra.mxu0 %v5235
          %v5557 = vpop.f32.mrf.mxu0
          %v5558 = vadd.f32 0.0, %v5557
          %v5559 = vpop.f32.mrf.mxu0
          %v5560 = vadd.f32 0.0, %v5559
          %5561 = vmatmul.bf16.gmra.mxu0 %v5238
          %v5562 = vpop.f32.mrf.mxu0
          %v5563 = vadd.f32 0.0, %v5562
          %v5564 = vpop.f32.mrf.mxu0
          %v5565 = vadd.f32 0.0, %v5564
          %5566 = vmatmul.bf16.gmra.mxu0 %v5241
          %v5567 = vpop.f32.mrf.mxu0
          %v5568 = vadd.f32 0.0, %v5567
          %v5569 = vpop.f32.mrf.mxu0
          %v5570 = vadd.f32 0.0, %v5569
          %5571 = vdwg.mxu0
          %5572 = vst [vmem:[#allocation2] sm:$0xff] %v5253
          %5573 = vst [vmem:[#allocation2 + $0x8] sm:$0xff] %v5255
          %5574 = vst [vmem:[#allocation2 + $0x10] sm:$0xff] %v5258
          %5575 = vst [vmem:[#allocation2 + $0x18] sm:$0xff] %v5260
          %5576 = vst [vmem:[#allocation2 + $0x20] sm:$0xff] %v5263
          %5577 = vst [vmem:[#allocation2 + $0x28] sm:$0xff] %v5265
          %5578 = vst [vmem:[#allocation2 + $0x30] sm:$0xff] %v5268
          %5579 = vst [vmem:[#allocation2 + $0x38] sm:$0xff] %v5270
          %5580 = vst [vmem:[#allocation2 + $0x40] sm:$0xff] %v5273
          %5581 = vst [vmem:[#allocation2 + $0x48] sm:$0xff] %v5275
          %5582 = vst [vmem:[#allocation2 + $0x50] sm:$0xff] %v5278
          %5583 = vst [vmem:[#allocation2 + $0x58] sm:$0xff] %v5280
          %5584 = vst [vmem:[#allocation2 + $0x60] sm:$0xff] %v5283
          %5585 = vst [vmem:[#allocation2 + $0x68] sm:$0xff] %v5285
          %5586 = vst [vmem:[#allocation2 + $0x70] sm:$0xff] %v5288
          %5587 = vst [vmem:[#allocation2 + $0x78] sm:$0xff] %v5290
          %5588 = vst [vmem:[#allocation2 + $0x80] sm:$0xff] %v5293
          %5589 = vst [vmem:[#allocation2 + $0x88] sm:$0xff] %v5295
          %5590 = vst [vmem:[#allocation2 + $0x90] sm:$0xff] %v5298
          %5591 = vst [vmem:[#allocation2 + $0x98] sm:$0xff] %v5300
          %5592 = vst [vmem:[#allocation2 + $0xa0] sm:$0xff] %v5303
          %5593 = vst [vmem:[#allocation2 + $0xa8] sm:$0xff] %v5305
          %5594 = vst [vmem:[#allocation2 + $0xb0] sm:$0xff] %v5308
          %5595 = vst [vmem:[#allocation2 + $0xb8] sm:$0xff] %v5310
          %5596 = vst [vmem:[#allocation2 + $0xc0] sm:$0xff] %v5313
          %5597 = vst [vmem:[#allocation2 + $0xc8] sm:$0xff] %v5315
          %5598 = vst [vmem:[#allocation2 + $0xd0] sm:$0xff] %v5318
          %5599 = vst [vmem:[#allocation2 + $0xd8] sm:$0xff] %v5320
          %5600 = vst [vmem:[#allocation2 + $0xe0] sm:$0xff] %v5323
          %5601 = vst [vmem:[#allocation2 + $0xe8] sm:$0xff] %v5325
          %5602 = vst [vmem:[#allocation2 + $0xf0] sm:$0xff] %v5328
          %5603 = vst [vmem:[#allocation2 + $0xf8] sm:$0xff] %v5330
          %5604 = vst [vmem:[#allocation2 + $0x100] sm:$0xff] %v5333
          %5605 = vst [vmem:[#allocation2 + $0x108] sm:$0xff] %v5335
          %5606 = vst [vmem:[#allocation2 + $0x110] sm:$0xff] %v5338
          %5607 = vst [vmem:[#allocation2 + $0x118] sm:$0xff] %v5340
          %5608 = vst [vmem:[#allocation2 + $0x120] sm:$0xff] %v5343
          %5609 = vst [vmem:[#allocation2 + $0x128] sm:$0xff] %v5345
          %5610 = vst [vmem:[#allocation2 + $0x130] sm:$0xff] %v5348
          %5611 = vst [vmem:[#allocation2 + $0x138] sm:$0xff] %v5350
          %5612 = vst [vmem:[#allocation2 + $0x140] sm:$0xff] %v5353
          %5613 = vst [vmem:[#allocation2 + $0x148] sm:$0xff] %v5355
          %5614 = vst [vmem:[#allocation2 + $0x150] sm:$0xff] %v5358
          %5615 = vst [vmem:[#allocation2 + $0x158] sm:$0xff] %v5360
          %5616 = vst [vmem:[#allocation2 + $0x160] sm:$0xff] %v5363
          %5617 = vst [vmem:[#allocation2 + $0x168] sm:$0xff] %v5365
          %5618 = vst [vmem:[#allocation2 + $0x170] sm:$0xff] %v5368
          %5619 = vst [vmem:[#allocation2 + $0x178] sm:$0xff] %v5370
          %5620 = vst [vmem:[#allocation2 + $0x180] sm:$0xff] %v5373
          %5621 = vst [vmem:[#allocation2 + $0x188] sm:$0xff] %v5375
          %5622 = vst [vmem:[#allocation2 + $0x190] sm:$0xff] %v5378
          %5623 = vst [vmem:[#allocation2 + $0x198] sm:$0xff] %v5380
          %5624 = vst [vmem:[#allocation2 + $0x1a0] sm:$0xff] %v5383
          %5625 = vst [vmem:[#allocation2 + $0x1a8] sm:$0xff] %v5385
          %5626 = vst [vmem:[#allocation2 + $0x1b0] sm:$0xff] %v5388
          %5627 = vst [vmem:[#allocation2 + $0x1b8] sm:$0xff] %v5390
          %5628 = vst [vmem:[#allocation2 + $0x1c0] sm:$0xff] %v5393
          %5629 = vst [vmem:[#allocation2 + $0x1c8] sm:$0xff] %v5395
          %5630 = vst [vmem:[#allocation2 + $0x1d0] sm:$0xff] %v5398
          %5631 = vst [vmem:[#allocation2 + $0x1d8] sm:$0xff] %v5400
          %5632 = vst [vmem:[#allocation2 + $0x1e0] sm:$0xff] %v5403
          %5633 = vst [vmem:[#allocation2 + $0x1e8] sm:$0xff] %v5405
          %5634 = vst [vmem:[#allocation2 + $0x1f0] sm:$0xff] %v5408
          %5635 = vst [vmem:[#allocation2 + $0x1f8] sm:$0xff] %v5410
          %5636 = vst [vmem:[#allocation2 + $0x200] sm:$0xff] %v5413
          %5637 = vst [vmem:[#allocation2 + $0x208] sm:$0xff] %v5415
          %5638 = vst [vmem:[#allocation2 + $0x210] sm:$0xff] %v5418
          %5639 = vst [vmem:[#allocation2 + $0x218] sm:$0xff] %v5420
          %5640 = vst [vmem:[#allocation2 + $0x220] sm:$0xff] %v5423
          %5641 = vst [vmem:[#allocation2 + $0x228] sm:$0xff] %v5425
          %5642 = vst [vmem:[#allocation2 + $0x230] sm:$0xff] %v5428
          %5643 = vst [vmem:[#allocation2 + $0x238] sm:$0xff] %v5430
          %5644 = vst [vmem:[#allocation2 + $0x240] sm:$0xff] %v5433
          %5645 = vst [vmem:[#allocation2 + $0x248] sm:$0xff] %v5435
          %5646 = vst [vmem:[#allocation2 + $0x250] sm:$0xff] %v5438
          %5647 = vst [vmem:[#allocation2 + $0x258] sm:$0xff] %v5440
          %5648 = vst [vmem:[#allocation2 + $0x260] sm:$0xff] %v5443
          %5649 = vst [vmem:[#allocation2 + $0x268] sm:$0xff] %v5445
          %5650 = vst [vmem:[#allocation2 + $0x270] sm:$0xff] %v5448
          %5651 = vst [vmem:[#allocation2 + $0x278] sm:$0xff] %v5450
          %5652 = vst [vmem:[#allocation2 + $0x280] sm:$0xff] %v5453
          %5653 = vst [vmem:[#allocation2 + $0x288] sm:$0xff] %v5455
          %5654 = vst [vmem:[#allocation2 + $0x290] sm:$0xff] %v5458
          %5655 = vst [vmem:[#allocation2 + $0x298] sm:$0xff] %v5460
          %5656 = vst [vmem:[#allocation2 + $0x2a0] sm:$0xff] %v5463
          %5657 = vst [vmem:[#allocation2 + $0x2a8] sm:$0xff] %v5465
          %5658 = vst [vmem:[#allocation2 + $0x2b0] sm:$0xff] %v5468
          %5659 = vst [vmem:[#allocation2 + $0x2b8] sm:$0xff] %v5470
          %5660 = vst [vmem:[#allocation2 + $0x2c0] sm:$0xff] %v5473
          %5661 = vst [vmem:[#allocation2 + $0x2c8] sm:$0xff] %v5475
          %5662 = vst [vmem:[#allocation2 + $0x2d0] sm:$0xff] %v5478
          %5663 = vst [vmem:[#allocation2 + $0x2d8] sm:$0xff] %v5480
          %5664 = vst [vmem:[#allocation2 + $0x2e0] sm:$0xff] %v5483
          %5665 = vst [vmem:[#allocation2 + $0x2e8] sm:$0xff] %v5485
          %5666 = vst [vmem:[#allocation2 + $0x2f0] sm:$0xff] %v5488
          %5667 = vst [vmem:[#allocation2 + $0x2f8] sm:$0xff] %v5490
          %5668 = vst [vmem:[#allocation2 + $0x300] sm:$0xff] %v5493
          %5669 = vst [vmem:[#allocation2 + $0x308] sm:$0xff] %v5495
          %5670 = vst [vmem:[#allocation2 + $0x310] sm:$0xff] %v5498
          %5671 = vst [vmem:[#allocation2 + $0x318] sm:$0xff] %v5500
          %5672 = vst [vmem:[#allocation2 + $0x320] sm:$0xff] %v5503
          %5673 = vst [vmem:[#allocation2 + $0x328] sm:$0xff] %v5505
          %5674 = vst [vmem:[#allocation2 + $0x330] sm:$0xff] %v5508
          %5675 = vst [vmem:[#allocation2 + $0x338] sm:$0xff] %v5510
          %5676 = vst [vmem:[#allocation2 + $0x340] sm:$0xff] %v5513
          %5677 = vst [vmem:[#allocation2 + $0x348] sm:$0xff] %v5515
          %5678 = vst [vmem:[#allocation2 + $0x350] sm:$0xff] %v5518
          %5679 = vst [vmem:[#allocation2 + $0x358] sm:$0xff] %v5520
          %5680 = vst [vmem:[#allocation2 + $0x360] sm:$0xff] %v5523
          %5681 = vst [vmem:[#allocation2 + $0x368] sm:$0xff] %v5525
          %5682 = vst [vmem:[#allocation2 + $0x370] sm:$0xff] %v5528
          %5683 = vst [vmem:[#allocation2 + $0x378] sm:$0xff] %v5530
          %5684 = vst [vmem:[#allocation2 + $0x380] sm:$0xff] %v5533
          %5685 = vst [vmem:[#allocation2 + $0x388] sm:$0xff] %v5535
          %5686 = vst [vmem:[#allocation2 + $0x390] sm:$0xff] %v5538
          %5687 = vst [vmem:[#allocation2 + $0x398] sm:$0xff] %v5540
          %5688 = vst [vmem:[#allocation2 + $0x3a0] sm:$0xff] %v5543
          %5689 = vst [vmem:[#allocation2 + $0x3a8] sm:$0xff] %v5545
          %5690 = vst [vmem:[#allocation2 + $0x3b0] sm:$0xff] %v5548
          %5691 = vst [vmem:[#allocation2 + $0x3b8] sm:$0xff] %v5550
          %5692 = vst [vmem:[#allocation2 + $0x3c0] sm:$0xff] %v5553
          %5693 = vst [vmem:[#allocation2 + $0x3c8] sm:$0xff] %v5555
          %5694 = vst [vmem:[#allocation2 + $0x3d0] sm:$0xff] %v5558
          %5695 = vst [vmem:[#allocation2 + $0x3d8] sm:$0xff] %v5560
          %5696 = vst [vmem:[#allocation2 + $0x3e0] sm:$0xff] %v5563
          %5697 = vst [vmem:[#allocation2 + $0x3e8] sm:$0xff] %v5565
          %5698 = vst [vmem:[#allocation2 + $0x3f0] sm:$0xff] %v5568
          %5699 = vst [vmem:[#allocation2 + $0x3f8] sm:$0xff] %v5570
        $region40: #{conv_bn_act.2} parent=35 // pred_fallthru
          _
        %p5700 = scmp.gt.s32.totalorder %s39, 0
        // Predicated region
        $region41: #{conv_bn_act.2} parent=35 // pred_check
          %p5701 = pneg %p5700
        $region42: #{conv_bn_act.2} parent=35 // pred_check_branch
          %5703 = sbr.rel (%p5701) target = $region44
        $region43: #{conv_bn_act.2} parent=35 // pred_region
          %v5704 = vld [vmem:[#allocation2] sm:$0xff]
          %v5705 = vld [vmem:[#allocation2 + $0x8] sm:$0xff]
          %v5706 = vld [vmem:[#allocation2 + $0x10] sm:$0xff]
          %v5707 = vld [vmem:[#allocation2 + $0x18] sm:$0xff]
          %v5708 = vld [vmem:[#allocation2 + $0x20] sm:$0xff]
          %v5709 = vld [vmem:[#allocation2 + $0x28] sm:$0xff]
          %v5710 = vld [vmem:[#allocation2 + $0x30] sm:$0xff]
          %v5711 = vld [vmem:[#allocation2 + $0x38] sm:$0xff]
          %v5712 = vld [vmem:[#allocation2 + $0x40] sm:$0xff]
          %v5713 = vld [vmem:[#allocation2 + $0x48] sm:$0xff]
          %v5714 = vld [vmem:[#allocation2 + $0x50] sm:$0xff]
          %v5715 = vld [vmem:[#allocation2 + $0x58] sm:$0xff]
          %v5716 = vld [vmem:[#allocation2 + $0x60] sm:$0xff]
          %v5717 = vld [vmem:[#allocation2 + $0x68] sm:$0xff]
          %v5718 = vld [vmem:[#allocation2 + $0x70] sm:$0xff]
          %v5719 = vld [vmem:[#allocation2 + $0x78] sm:$0xff]
          %v5720 = vld [vmem:[#allocation2 + $0x80] sm:$0xff]
          %v5721 = vld [vmem:[#allocation2 + $0x88] sm:$0xff]
          %v5722 = vld [vmem:[#allocation2 + $0x90] sm:$0xff]
          %v5723 = vld [vmem:[#allocation2 + $0x98] sm:$0xff]
          %v5724 = vld [vmem:[#allocation2 + $0xa0] sm:$0xff]
          %v5725 = vld [vmem:[#allocation2 + $0xa8] sm:$0xff]
          %v5726 = vld [vmem:[#allocation2 + $0xb0] sm:$0xff]
          %v5727 = vld [vmem:[#allocation2 + $0xb8] sm:$0xff]
          %v5728 = vld [vmem:[#allocation2 + $0xc0] sm:$0xff]
          %v5729 = vld [vmem:[#allocation2 + $0xc8] sm:$0xff]
          %v5730 = vld [vmem:[#allocation2 + $0xd0] sm:$0xff]
          %v5731 = vld [vmem:[#allocation2 + $0xd8] sm:$0xff]
          %v5732 = vld [vmem:[#allocation2 + $0xe0] sm:$0xff]
          %v5733 = vld [vmem:[#allocation2 + $0xe8] sm:$0xff]
          %v5734 = vld [vmem:[#allocation2 + $0xf0] sm:$0xff]
          %v5735 = vld [vmem:[#allocation2 + $0xf8] sm:$0xff]
          %v5736 = vld [vmem:[#allocation2 + $0x100] sm:$0xff]
          %v5737 = vld [vmem:[#allocation2 + $0x108] sm:$0xff]
          %v5738 = vld [vmem:[#allocation2 + $0x110] sm:$0xff]
          %v5739 = vld [vmem:[#allocation2 + $0x118] sm:$0xff]
          %v5740 = vld [vmem:[#allocation2 + $0x120] sm:$0xff]
          %v5741 = vld [vmem:[#allocation2 + $0x128] sm:$0xff]
          %v5742 = vld [vmem:[#allocation2 + $0x130] sm:$0xff]
          %v5743 = vld [vmem:[#allocation2 + $0x138] sm:$0xff]
          %v5744 = vld [vmem:[#allocation2 + $0x140] sm:$0xff]
          %v5745 = vld [vmem:[#allocation2 + $0x148] sm:$0xff]
          %v5746 = vld [vmem:[#allocation2 + $0x150] sm:$0xff]
          %v5747 = vld [vmem:[#allocation2 + $0x158] sm:$0xff]
          %v5748 = vld [vmem:[#allocation2 + $0x160] sm:$0xff]
          %v5749 = vld [vmem:[#allocation2 + $0x168] sm:$0xff]
          %v5750 = vld [vmem:[#allocation2 + $0x170] sm:$0xff]
          %v5751 = vld [vmem:[#allocation2 + $0x178] sm:$0xff]
          %v5752 = vld [vmem:[#allocation2 + $0x180] sm:$0xff]
          %v5753 = vld [vmem:[#allocation2 + $0x188] sm:$0xff]
          %v5754 = vld [vmem:[#allocation2 + $0x190] sm:$0xff]
          %v5755 = vld [vmem:[#allocation2 + $0x198] sm:$0xff]
          %v5756 = vld [vmem:[#allocation2 + $0x1a0] sm:$0xff]
          %v5757 = vld [vmem:[#allocation2 + $0x1a8] sm:$0xff]
          %v5758 = vld [vmem:[#allocation2 + $0x1b0] sm:$0xff]
          %v5759 = vld [vmem:[#allocation2 + $0x1b8] sm:$0xff]
          %v5760 = vld [vmem:[#allocation2 + $0x1c0] sm:$0xff]
          %v5761 = vld [vmem:[#allocation2 + $0x1c8] sm:$0xff]
          %v5762 = vld [vmem:[#allocation2 + $0x1d0] sm:$0xff]
          %v5763 = vld [vmem:[#allocation2 + $0x1d8] sm:$0xff]
          %v5764 = vld [vmem:[#allocation2 + $0x1e0] sm:$0xff]
          %v5765 = vld [vmem:[#allocation2 + $0x1e8] sm:$0xff]
          %v5766 = vld [vmem:[#allocation2 + $0x1f0] sm:$0xff]
          %v5767 = vld [vmem:[#allocation2 + $0x1f8] sm:$0xff]
          %v5768 = vld [vmem:[#allocation2 + $0x200] sm:$0xff]
          %v5769 = vld [vmem:[#allocation2 + $0x208] sm:$0xff]
          %v5770 = vld [vmem:[#allocation2 + $0x210] sm:$0xff]
          %v5771 = vld [vmem:[#allocation2 + $0x218] sm:$0xff]
          %v5772 = vld [vmem:[#allocation2 + $0x220] sm:$0xff]
          %v5773 = vld [vmem:[#allocation2 + $0x228] sm:$0xff]
          %v5774 = vld [vmem:[#allocation2 + $0x230] sm:$0xff]
          %v5775 = vld [vmem:[#allocation2 + $0x238] sm:$0xff]
          %v5776 = vld [vmem:[#allocation2 + $0x240] sm:$0xff]
          %v5777 = vld [vmem:[#allocation2 + $0x248] sm:$0xff]
          %v5778 = vld [vmem:[#allocation2 + $0x250] sm:$0xff]
          %v5779 = vld [vmem:[#allocation2 + $0x258] sm:$0xff]
          %v5780 = vld [vmem:[#allocation2 + $0x260] sm:$0xff]
          %v5781 = vld [vmem:[#allocation2 + $0x268] sm:$0xff]
          %v5782 = vld [vmem:[#allocation2 + $0x270] sm:$0xff]
          %v5783 = vld [vmem:[#allocation2 + $0x278] sm:$0xff]
          %v5784 = vld [vmem:[#allocation2 + $0x280] sm:$0xff]
          %v5785 = vld [vmem:[#allocation2 + $0x288] sm:$0xff]
          %v5786 = vld [vmem:[#allocation2 + $0x290] sm:$0xff]
          %v5787 = vld [vmem:[#allocation2 + $0x298] sm:$0xff]
          %v5788 = vld [vmem:[#allocation2 + $0x2a0] sm:$0xff]
          %v5789 = vld [vmem:[#allocation2 + $0x2a8] sm:$0xff]
          %v5790 = vld [vmem:[#allocation2 + $0x2b0] sm:$0xff]
          %v5791 = vld [vmem:[#allocation2 + $0x2b8] sm:$0xff]
          %v5792 = vld [vmem:[#allocation2 + $0x2c0] sm:$0xff]
          %v5793 = vld [vmem:[#allocation2 + $0x2c8] sm:$0xff]
          %v5794 = vld [vmem:[#allocation2 + $0x2d0] sm:$0xff]
          %v5795 = vld [vmem:[#allocation2 + $0x2d8] sm:$0xff]
          %v5796 = vld [vmem:[#allocation2 + $0x2e0] sm:$0xff]
          %v5797 = vld [vmem:[#allocation2 + $0x2e8] sm:$0xff]
          %v5798 = vld [vmem:[#allocation2 + $0x2f0] sm:$0xff]
          %v5799 = vld [vmem:[#allocation2 + $0x2f8] sm:$0xff]
          %v5800 = vld [vmem:[#allocation2 + $0x300] sm:$0xff]
          %v5801 = vld [vmem:[#allocation2 + $0x308] sm:$0xff]
          %v5802 = vld [vmem:[#allocation2 + $0x310] sm:$0xff]
          %v5803 = vld [vmem:[#allocation2 + $0x318] sm:$0xff]
          %v5804 = vld [vmem:[#allocation2 + $0x320] sm:$0xff]
          %v5805 = vld [vmem:[#allocation2 + $0x328] sm:$0xff]
          %v5806 = vld [vmem:[#allocation2 + $0x330] sm:$0xff]
          %v5807 = vld [vmem:[#allocation2 + $0x338] sm:$0xff]
          %v5808 = vld [vmem:[#allocation2 + $0x340] sm:$0xff]
          %v5809 = vld [vmem:[#allocation2 + $0x348] sm:$0xff]
          %v5810 = vld [vmem:[#allocation2 + $0x350] sm:$0xff]
          %v5811 = vld [vmem:[#allocation2 + $0x358] sm:$0xff]
          %v5812 = vld [vmem:[#allocation2 + $0x360] sm:$0xff]
          %v5813 = vld [vmem:[#allocation2 + $0x368] sm:$0xff]
          %v5814 = vld [vmem:[#allocation2 + $0x370] sm:$0xff]
          %v5815 = vld [vmem:[#allocation2 + $0x378] sm:$0xff]
          %v5816 = vld [vmem:[#allocation2 + $0x380] sm:$0xff]
          %v5817 = vld [vmem:[#allocation2 + $0x388] sm:$0xff]
          %v5818 = vld [vmem:[#allocation2 + $0x390] sm:$0xff]
          %v5819 = vld [vmem:[#allocation2 + $0x398] sm:$0xff]
          %v5820 = vld [vmem:[#allocation2 + $0x3a0] sm:$0xff]
          %v5821 = vld [vmem:[#allocation2 + $0x3a8] sm:$0xff]
          %v5822 = vld [vmem:[#allocation2 + $0x3b0] sm:$0xff]
          %v5823 = vld [vmem:[#allocation2 + $0x3b8] sm:$0xff]
          %v5824 = vld [vmem:[#allocation2 + $0x3c0] sm:$0xff]
          %v5825 = vld [vmem:[#allocation2 + $0x3c8] sm:$0xff]
          %v5826 = vld [vmem:[#allocation2 + $0x3d0] sm:$0xff]
          %v5827 = vld [vmem:[#allocation2 + $0x3d8] sm:$0xff]
          %v5828 = vld [vmem:[#allocation2 + $0x3e0] sm:$0xff]
          %v5829 = vld [vmem:[#allocation2 + $0x3e8] sm:$0xff]
          %v5830 = vld [vmem:[#allocation2 + $0x3f0] sm:$0xff]
          %v5831 = vld [vmem:[#allocation2 + $0x3f8] sm:$0xff]
          %v5832 = vld [vmem:[#allocation25] sm:$0xf]
          %v5833 = vld [vmem:[#allocation25 + $0x4] sm:$0xf]
          %v5834 = vld [vmem:[#allocation25 + $0x8] sm:$0xf]
          %v5835 = vld [vmem:[#allocation25 + $0xc] sm:$0xf]
          %v5836 = vld [vmem:[#allocation25 + $0x10] sm:$0xf]
          %v5837 = vld [vmem:[#allocation25 + $0x14] sm:$0xf]
          %v5838 = vld [vmem:[#allocation25 + $0x18] sm:$0xf]
          %v5839 = vld [vmem:[#allocation25 + $0x1c] sm:$0xf]
          %v5840 = vld [vmem:[#allocation25 + $0x20] sm:$0xf]
          %v5841 = vld [vmem:[#allocation25 + $0x24] sm:$0xf]
          %v5842 = vld [vmem:[#allocation25 + $0x28] sm:$0xf]
          %v5843 = vld [vmem:[#allocation25 + $0x2c] sm:$0xf]
          %v5844 = vld [vmem:[#allocation25 + $0x30] sm:$0xf]
          %v5845 = vld [vmem:[#allocation25 + $0x34] sm:$0xf]
          %v5846 = vld [vmem:[#allocation25 + $0x38] sm:$0xf]
          %v5847 = vld [vmem:[#allocation25 + $0x3c] sm:$0xf]
          %v5848 = vld [vmem:[#allocation25 + $0x40] sm:$0xf]
          %v5849 = vld [vmem:[#allocation25 + $0x44] sm:$0xf]
          %v5850 = vld [vmem:[#allocation25 + $0x48] sm:$0xf]
          %v5851 = vld [vmem:[#allocation25 + $0x4c] sm:$0xf]
          %v5852 = vld [vmem:[#allocation25 + $0x50] sm:$0xf]
          %v5853 = vld [vmem:[#allocation25 + $0x54] sm:$0xf]
          %v5854 = vld [vmem:[#allocation25 + $0x58] sm:$0xf]
          %v5855 = vld [vmem:[#allocation25 + $0x5c] sm:$0xf]
          %v5856 = vld [vmem:[#allocation25 + $0x60] sm:$0xf]
          %v5857 = vld [vmem:[#allocation25 + $0x64] sm:$0xf]
          %v5858 = vld [vmem:[#allocation25 + $0x68] sm:$0xf]
          %v5859 = vld [vmem:[#allocation25 + $0x6c] sm:$0xf]
          %v5860 = vld [vmem:[#allocation25 + $0x70] sm:$0xf]
          %v5861 = vld [vmem:[#allocation25 + $0x74] sm:$0xf]
          %v5862 = vld [vmem:[#allocation25 + $0x78] sm:$0xf]
          %v5863 = vld [vmem:[#allocation25 + $0x7c] sm:$0xf]
          %v5864 = vld [vmem:[#allocation25 + $0x80] sm:$0xf]
          %v5865 = vld [vmem:[#allocation25 + $0x84] sm:$0xf]
          %v5866 = vld [vmem:[#allocation25 + $0x88] sm:$0xf]
          %v5867 = vld [vmem:[#allocation25 + $0x8c] sm:$0xf]
          %v5868 = vld [vmem:[#allocation25 + $0x90] sm:$0xf]
          %v5869 = vld [vmem:[#allocation25 + $0x94] sm:$0xf]
          %v5870 = vld [vmem:[#allocation25 + $0x98] sm:$0xf]
          %v5871 = vld [vmem:[#allocation25 + $0x9c] sm:$0xf]
          %v5872 = vld [vmem:[#allocation25 + $0xa0] sm:$0xf]
          %v5873 = vld [vmem:[#allocation25 + $0xa4] sm:$0xf]
          %v5874 = vld [vmem:[#allocation25 + $0xa8] sm:$0xf]
          %v5875 = vld [vmem:[#allocation25 + $0xac] sm:$0xf]
          %v5876 = vld [vmem:[#allocation25 + $0xb0] sm:$0xf]
          %v5877 = vld [vmem:[#allocation25 + $0xb4] sm:$0xf]
          %v5878 = vld [vmem:[#allocation25 + $0xb8] sm:$0xf]
          %v5879 = vld [vmem:[#allocation25 + $0xbc] sm:$0xf]
          %v5880 = vld [vmem:[#allocation25 + $0xc0] sm:$0xf]
          %v5881 = vld [vmem:[#allocation25 + $0xc4] sm:$0xf]
          %v5882 = vld [vmem:[#allocation25 + $0xc8] sm:$0xf]
          %v5883 = vld [vmem:[#allocation25 + $0xcc] sm:$0xf]
          %v5884 = vld [vmem:[#allocation25 + $0xd0] sm:$0xf]
          %v5885 = vld [vmem:[#allocation25 + $0xd4] sm:$0xf]
          %v5886 = vld [vmem:[#allocation25 + $0xd8] sm:$0xf]
          %v5887 = vld [vmem:[#allocation25 + $0xdc] sm:$0xf]
          %v5888 = vld [vmem:[#allocation25 + $0xe0] sm:$0xf]
          %v5889 = vld [vmem:[#allocation25 + $0xe4] sm:$0xf]
          %v5890 = vld [vmem:[#allocation25 + $0xe8] sm:$0xf]
          %v5891 = vld [vmem:[#allocation25 + $0xec] sm:$0xf]
          %v5892 = vld [vmem:[#allocation25 + $0xf0] sm:$0xf]
          %v5893 = vld [vmem:[#allocation25 + $0xf4] sm:$0xf]
          %v5894 = vld [vmem:[#allocation25 + $0xf8] sm:$0xf]
          %v5895 = vld [vmem:[#allocation25 + $0xfc] sm:$0xf]
          %v5896 = vld [vmem:[#allocation25 + $0x100] sm:$0xf]
          %v5897 = vld [vmem:[#allocation25 + $0x104] sm:$0xf]
          %v5898 = vld [vmem:[#allocation25 + $0x108] sm:$0xf]
          %v5899 = vld [vmem:[#allocation25 + $0x10c] sm:$0xf]
          %v5900 = vld [vmem:[#allocation25 + $0x110] sm:$0xf]
          %v5901 = vld [vmem:[#allocation25 + $0x114] sm:$0xf]
          %v5902 = vld [vmem:[#allocation25 + $0x118] sm:$0xf]
          %v5903 = vld [vmem:[#allocation25 + $0x11c] sm:$0xf]
          %v5904 = vld [vmem:[#allocation25 + $0x120] sm:$0xf]
          %v5905 = vld [vmem:[#allocation25 + $0x124] sm:$0xf]
          %v5906 = vld [vmem:[#allocation25 + $0x128] sm:$0xf]
          %v5907 = vld [vmem:[#allocation25 + $0x12c] sm:$0xf]
          %v5908 = vld [vmem:[#allocation25 + $0x130] sm:$0xf]
          %v5909 = vld [vmem:[#allocation25 + $0x134] sm:$0xf]
          %v5910 = vld [vmem:[#allocation25 + $0x138] sm:$0xf]
          %v5911 = vld [vmem:[#allocation25 + $0x13c] sm:$0xf]
          %v5912 = vld [vmem:[#allocation25 + $0x140] sm:$0xf]
          %v5913 = vld [vmem:[#allocation25 + $0x144] sm:$0xf]
          %v5914 = vld [vmem:[#allocation25 + $0x148] sm:$0xf]
          %v5915 = vld [vmem:[#allocation25 + $0x14c] sm:$0xf]
          %v5916 = vld [vmem:[#allocation25 + $0x150] sm:$0xf]
          %v5917 = vld [vmem:[#allocation25 + $0x154] sm:$0xf]
          %v5918 = vld [vmem:[#allocation25 + $0x158] sm:$0xf]
          %v5919 = vld [vmem:[#allocation25 + $0x15c] sm:$0xf]
          %v5920 = vld [vmem:[#allocation25 + $0x160] sm:$0xf]
          %v5921 = vld [vmem:[#allocation25 + $0x164] sm:$0xf]
          %v5922 = vld [vmem:[#allocation25 + $0x168] sm:$0xf]
          %v5923 = vld [vmem:[#allocation25 + $0x16c] sm:$0xf]
          %v5924 = vld [vmem:[#allocation25 + $0x170] sm:$0xf]
          %v5925 = vld [vmem:[#allocation25 + $0x174] sm:$0xf]
          %v5926 = vld [vmem:[#allocation25 + $0x178] sm:$0xf]
          %v5927 = vld [vmem:[#allocation25 + $0x17c] sm:$0xf]
          %v5928 = vld [vmem:[#allocation25 + $0x180] sm:$0xf]
          %v5929 = vld [vmem:[#allocation25 + $0x184] sm:$0xf]
          %v5930 = vld [vmem:[#allocation25 + $0x188] sm:$0xf]
          %v5931 = vld [vmem:[#allocation25 + $0x18c] sm:$0xf]
          %v5932 = vld [vmem:[#allocation25 + $0x190] sm:$0xf]
          %v5933 = vld [vmem:[#allocation25 + $0x194] sm:$0xf]
          %v5934 = vld [vmem:[#allocation25 + $0x198] sm:$0xf]
          %v5935 = vld [vmem:[#allocation25 + $0x19c] sm:$0xf]
          %v5936 = vld [vmem:[#allocation25 + $0x1a0] sm:$0xf]
          %v5937 = vld [vmem:[#allocation25 + $0x1a4] sm:$0xf]
          %v5938 = vld [vmem:[#allocation25 + $0x1a8] sm:$0xf]
          %v5939 = vld [vmem:[#allocation25 + $0x1ac] sm:$0xf]
          %v5940 = vld [vmem:[#allocation25 + $0x1b0] sm:$0xf]
          %v5941 = vld [vmem:[#allocation25 + $0x1b4] sm:$0xf]
          %v5942 = vld [vmem:[#allocation25 + $0x1b8] sm:$0xf]
          %v5943 = vld [vmem:[#allocation25 + $0x1bc] sm:$0xf]
          %v5944 = vld [vmem:[#allocation25 + $0x1c0] sm:$0xf]
          %v5945 = vld [vmem:[#allocation25 + $0x1c4] sm:$0xf]
          %v5946 = vld [vmem:[#allocation25 + $0x1c8] sm:$0xf]
          %v5947 = vld [vmem:[#allocation25 + $0x1cc] sm:$0xf]
          %v5948 = vld [vmem:[#allocation25 + $0x1d0] sm:$0xf]
          %v5949 = vld [vmem:[#allocation25 + $0x1d4] sm:$0xf]
          %v5950 = vld [vmem:[#allocation25 + $0x1d8] sm:$0xf]
          %v5951 = vld [vmem:[#allocation25 + $0x1dc] sm:$0xf]
          %v5952 = vld [vmem:[#allocation25 + $0x1e0] sm:$0xf]
          %v5953 = vld [vmem:[#allocation25 + $0x1e4] sm:$0xf]
          %v5954 = vld [vmem:[#allocation25 + $0x1e8] sm:$0xf]
          %v5955 = vld [vmem:[#allocation25 + $0x1ec] sm:$0xf]
          %v5956 = vld [vmem:[#allocation25 + $0x1f0] sm:$0xf]
          %v5957 = vld [vmem:[#allocation25 + $0x1f4] sm:$0xf]
          %v5958 = vld [vmem:[#allocation25 + $0x1f8] sm:$0xf]
          %v5959 = vld [vmem:[#allocation25 + $0x1fc] sm:$0xf]
          %v5960 = vld [vmem:[#allocation26] sm:$0xf]
          %v5961 = vld [vmem:[#allocation26 + $0x4] sm:$0xf]
          %v5962 = vld [vmem:[#allocation26 + $0x8] sm:$0xf]
          %v5963 = vld [vmem:[#allocation26 + $0xc] sm:$0xf]
          %v6092 = vunpack.c.l.b16 %v5832
          %v6093 = vunpack.c.l.b16 %v5833
          %v6094 = vunpack.c.l.b16 %v5834
          %v6095 = vunpack.c.l.b16 %v5835
          %v6096 = vunpack.c.l.b16 %v5836
          %v6097 = vunpack.c.l.b16 %v5837
          %v6098 = vunpack.c.l.b16 %v5838
          %v6099 = vunpack.c.l.b16 %v5839
          %v6100 = vunpack.c.l.b16 %v5840
          %v6101 = vunpack.c.l.b16 %v5841
          %v6102 = vunpack.c.l.b16 %v5842
          %v6103 = vunpack.c.l.b16 %v5843
          %v6104 = vunpack.c.l.b16 %v5844
          %v6105 = vunpack.c.l.b16 %v5845
          %v6106 = vunpack.c.l.b16 %v5846
          %v6107 = vunpack.c.l.b16 %v5847
          %v6108 = vunpack.c.l.b16 %v5848
          %v6109 = vunpack.c.l.b16 %v5849
          %v6110 = vunpack.c.l.b16 %v5850
          %v6111 = vunpack.c.l.b16 %v5851
          %v6112 = vunpack.c.l.b16 %v5852
          %v6113 = vunpack.c.l.b16 %v5853
          %v6114 = vunpack.c.l.b16 %v5854
          %v6115 = vunpack.c.l.b16 %v5855
          %v6116 = vunpack.c.l.b16 %v5856
          %v6117 = vunpack.c.l.b16 %v5857
          %v6118 = vunpack.c.l.b16 %v5858
          %v6119 = vunpack.c.l.b16 %v5859
          %v6120 = vunpack.c.l.b16 %v5860
          %v6121 = vunpack.c.l.b16 %v5861
          %v6122 = vunpack.c.l.b16 %v5862
          %v6123 = vunpack.c.l.b16 %v5863
          %v6124 = vunpack.c.l.b16 %v5864
          %v6125 = vunpack.c.l.b16 %v5865
          %v6126 = vunpack.c.l.b16 %v5866
          %v6127 = vunpack.c.l.b16 %v5867
          %v6128 = vunpack.c.l.b16 %v5868
          %v6129 = vunpack.c.l.b16 %v5869
          %v6130 = vunpack.c.l.b16 %v5870
          %v6131 = vunpack.c.l.b16 %v5871
          %v6132 = vunpack.c.l.b16 %v5872
          %v6133 = vunpack.c.l.b16 %v5873
          %v6134 = vunpack.c.l.b16 %v5874
          %v6135 = vunpack.c.l.b16 %v5875
          %v6136 = vunpack.c.l.b16 %v5876
          %v6137 = vunpack.c.l.b16 %v5877
          %v6138 = vunpack.c.l.b16 %v5878
          %v6139 = vunpack.c.l.b16 %v5879
          %v6140 = vunpack.c.l.b16 %v5880
          %v6141 = vunpack.c.l.b16 %v5881
          %v6142 = vunpack.c.l.b16 %v5882
          %v6143 = vunpack.c.l.b16 %v5883
          %v6144 = vunpack.c.l.b16 %v5884
          %v6145 = vunpack.c.l.b16 %v5885
          %v6146 = vunpack.c.l.b16 %v5886
          %v6147 = vunpack.c.l.b16 %v5887
          %v6148 = vunpack.c.l.b16 %v5888
          %v6149 = vunpack.c.l.b16 %v5889
          %v6150 = vunpack.c.l.b16 %v5890
          %v6151 = vunpack.c.l.b16 %v5891
          %v6152 = vunpack.c.l.b16 %v5892
          %v6153 = vunpack.c.l.b16 %v5893
          %v6154 = vunpack.c.l.b16 %v5894
          %v6155 = vunpack.c.l.b16 %v5895
          %v6156 = vunpack.c.l.b16 %v5896
          %v6157 = vunpack.c.l.b16 %v5897
          %v6158 = vunpack.c.l.b16 %v5898
          %v6159 = vunpack.c.l.b16 %v5899
          %v6160 = vunpack.c.l.b16 %v5900
          %v6161 = vunpack.c.l.b16 %v5901
          %v6162 = vunpack.c.l.b16 %v5902
          %v6163 = vunpack.c.l.b16 %v5903
          %v6164 = vunpack.c.l.b16 %v5904
          %v6165 = vunpack.c.l.b16 %v5905
          %v6166 = vunpack.c.l.b16 %v5906
          %v6167 = vunpack.c.l.b16 %v5907
          %v6168 = vunpack.c.l.b16 %v5908
          %v6169 = vunpack.c.l.b16 %v5909
          %v6170 = vunpack.c.l.b16 %v5910
          %v6171 = vunpack.c.l.b16 %v5911
          %v6172 = vunpack.c.l.b16 %v5912
          %v6173 = vunpack.c.l.b16 %v5913
          %v6174 = vunpack.c.l.b16 %v5914
          %v6175 = vunpack.c.l.b16 %v5915
          %v6176 = vunpack.c.l.b16 %v5916
          %v6177 = vunpack.c.l.b16 %v5917
          %v6178 = vunpack.c.l.b16 %v5918
          %v6179 = vunpack.c.l.b16 %v5919
          %v6180 = vunpack.c.l.b16 %v5920
          %v6181 = vunpack.c.l.b16 %v5921
          %v6182 = vunpack.c.l.b16 %v5922
          %v6183 = vunpack.c.l.b16 %v5923
          %v6184 = vunpack.c.l.b16 %v5924
          %v6185 = vunpack.c.l.b16 %v5925
          %v6186 = vunpack.c.l.b16 %v5926
          %v6187 = vunpack.c.l.b16 %v5927
          %v6188 = vunpack.c.l.b16 %v5928
          %v6189 = vunpack.c.l.b16 %v5929
          %v6190 = vunpack.c.l.b16 %v5930
          %v6191 = vunpack.c.l.b16 %v5931
          %v6192 = vunpack.c.l.b16 %v5932
          %v6193 = vunpack.c.l.b16 %v5933
          %v6194 = vunpack.c.l.b16 %v5934
          %v6195 = vunpack.c.l.b16 %v5935
          %v6196 = vunpack.c.l.b16 %v5936
          %v6197 = vunpack.c.l.b16 %v5937
          %v6198 = vunpack.c.l.b16 %v5938
          %v6199 = vunpack.c.l.b16 %v5939
          %v6200 = vunpack.c.l.b16 %v5940
          %v6201 = vunpack.c.l.b16 %v5941
          %v6202 = vunpack.c.l.b16 %v5942
          %v6203 = vunpack.c.l.b16 %v5943
          %v6204 = vunpack.c.l.b16 %v5944
          %v6205 = vunpack.c.l.b16 %v5945
          %v6206 = vunpack.c.l.b16 %v5946
          %v6207 = vunpack.c.l.b16 %v5947
          %v6208 = vunpack.c.l.b16 %v5948
          %v6209 = vunpack.c.l.b16 %v5949
          %v6210 = vunpack.c.l.b16 %v5950
          %v6211 = vunpack.c.l.b16 %v5951
          %v6212 = vunpack.c.l.b16 %v5952
          %v6213 = vunpack.c.l.b16 %v5953
          %v6214 = vunpack.c.l.b16 %v5954
          %v6215 = vunpack.c.l.b16 %v5955
          %v6216 = vunpack.c.l.b16 %v5956
          %v6217 = vunpack.c.l.b16 %v5957
          %v6218 = vunpack.c.l.b16 %v5958
          %v6219 = vunpack.c.l.b16 %v5959
          %v6220 = vpack.c.b16 %v6093, %v6092
          %v6221 = vpack.c.b16 %v6095, %v6094
          %v6222 = vpack.c.b16 %v6097, %v6096
          %v6223 = vpack.c.b16 %v6099, %v6098
          %v6224 = vpack.c.b16 %v6101, %v6100
          %v6225 = vpack.c.b16 %v6103, %v6102
          %v6226 = vpack.c.b16 %v6105, %v6104
          %v6227 = vpack.c.b16 %v6107, %v6106
          %v6228 = vpack.c.b16 %v6109, %v6108
          %v6229 = vpack.c.b16 %v6111, %v6110
          %v6230 = vpack.c.b16 %v6113, %v6112
          %v6231 = vpack.c.b16 %v6115, %v6114
          %v6232 = vpack.c.b16 %v6117, %v6116
          %v6233 = vpack.c.b16 %v6119, %v6118
          %v6234 = vpack.c.b16 %v6121, %v6120
          %v6235 = vpack.c.b16 %v6123, %v6122
          %v6236 = vpack.c.b16 %v6125, %v6124
          %v6237 = vpack.c.b16 %v6127, %v6126
          %v6238 = vpack.c.b16 %v6129, %v6128
          %v6239 = vpack.c.b16 %v6131, %v6130
          %v6240 = vpack.c.b16 %v6133, %v6132
          %v6241 = vpack.c.b16 %v6135, %v6134
          %v6242 = vpack.c.b16 %v6137, %v6136
          %v6243 = vpack.c.b16 %v6139, %v6138
          %v6244 = vpack.c.b16 %v6141, %v6140
          %v6245 = vpack.c.b16 %v6143, %v6142
          %v6246 = vpack.c.b16 %v6145, %v6144
          %v6247 = vpack.c.b16 %v6147, %v6146
          %v6248 = vpack.c.b16 %v6149, %v6148
          %v6249 = vpack.c.b16 %v6151, %v6150
          %v6250 = vpack.c.b16 %v6153, %v6152
          %v6251 = vpack.c.b16 %v6155, %v6154
          %v6252 = vpack.c.b16 %v6157, %v6156
          %v6253 = vpack.c.b16 %v6159, %v6158
          %v6254 = vpack.c.b16 %v6161, %v6160
          %v6255 = vpack.c.b16 %v6163, %v6162
          %v6256 = vpack.c.b16 %v6165, %v6164
          %v6257 = vpack.c.b16 %v6167, %v6166
          %v6258 = vpack.c.b16 %v6169, %v6168
          %v6259 = vpack.c.b16 %v6171, %v6170
          %v6260 = vpack.c.b16 %v6173, %v6172
          %v6261 = vpack.c.b16 %v6175, %v6174
          %v6262 = vpack.c.b16 %v6177, %v6176
          %v6263 = vpack.c.b16 %v6179, %v6178
          %v6264 = vpack.c.b16 %v6181, %v6180
          %v6265 = vpack.c.b16 %v6183, %v6182
          %v6266 = vpack.c.b16 %v6185, %v6184
          %v6267 = vpack.c.b16 %v6187, %v6186
          %v6268 = vpack.c.b16 %v6189, %v6188
          %v6269 = vpack.c.b16 %v6191, %v6190
          %v6270 = vpack.c.b16 %v6193, %v6192
          %v6271 = vpack.c.b16 %v6195, %v6194
          %v6272 = vpack.c.b16 %v6197, %v6196
          %v6273 = vpack.c.b16 %v6199, %v6198
          %v6274 = vpack.c.b16 %v6201, %v6200
          %v6275 = vpack.c.b16 %v6203, %v6202
          %v6276 = vpack.c.b16 %v6205, %v6204
          %v6277 = vpack.c.b16 %v6207, %v6206
          %v6278 = vpack.c.b16 %v6209, %v6208
          %v6279 = vpack.c.b16 %v6211, %v6210
          %v6280 = vpack.c.b16 %v6213, %v6212
          %v6281 = vpack.c.b16 %v6215, %v6214
          %v6282 = vpack.c.b16 %v6217, %v6216
          %v6283 = vpack.c.b16 %v6219, %v6218
          %v6288 = vunpack.c.l.b16 %v5960
          %v6289 = vunpack.c.l.b16 %v5961
          %v6290 = vunpack.c.l.b16 %v5962
          %v6291 = vunpack.c.l.b16 %v5963
          %v6292 = vpack.c.b16 %v6289, %v6288
          %v6293 = vpack.c.b16 %v6291, %v6290
          %vm6296 = vcmask 261120
          %v6298 = vsel %vm6296, %v6220, 0
          %v6301 = vsel %vm6296, %v6221, 0
          %v6304 = vsel %vm6296, %v6222, 0
          %v6307 = vsel %vm6296, %v6223, 0
          %v6310 = vsel %vm6296, %v6224, 0
          %v6313 = vsel %vm6296, %v6225, 0
          %v6316 = vsel %vm6296, %v6226, 0
          %v6319 = vsel %vm6296, %v6227, 0
          %v6322 = vsel %vm6296, %v6228, 0
          %v6325 = vsel %vm6296, %v6229, 0
          %v6328 = vsel %vm6296, %v6230, 0
          %v6331 = vsel %vm6296, %v6231, 0
          %v6334 = vsel %vm6296, %v6232, 0
          %v6337 = vsel %vm6296, %v6233, 0
          %v6340 = vsel %vm6296, %v6234, 0
          %v6343 = vsel %vm6296, %v6235, 0
          %v6346 = vsel %vm6296, %v6236, 0
          %v6349 = vsel %vm6296, %v6237, 0
          %v6352 = vsel %vm6296, %v6238, 0
          %v6355 = vsel %vm6296, %v6239, 0
          %v6358 = vsel %vm6296, %v6240, 0
          %v6361 = vsel %vm6296, %v6241, 0
          %v6364 = vsel %vm6296, %v6242, 0
          %v6367 = vsel %vm6296, %v6243, 0
          %v6370 = vsel %vm6296, %v6244, 0
          %v6373 = vsel %vm6296, %v6245, 0
          %v6376 = vsel %vm6296, %v6246, 0
          %v6379 = vsel %vm6296, %v6247, 0
          %v6382 = vsel %vm6296, %v6248, 0
          %v6385 = vsel %vm6296, %v6249, 0
          %v6388 = vsel %vm6296, %v6250, 0
          %v6391 = vsel %vm6296, %v6251, 0
          %v6394 = vsel %vm6296, %v6252, 0
          %v6397 = vsel %vm6296, %v6253, 0
          %v6400 = vsel %vm6296, %v6254, 0
          %v6403 = vsel %vm6296, %v6255, 0
          %v6406 = vsel %vm6296, %v6256, 0
          %v6409 = vsel %vm6296, %v6257, 0
          %v6412 = vsel %vm6296, %v6258, 0
          %v6415 = vsel %vm6296, %v6259, 0
          %v6418 = vsel %vm6296, %v6260, 0
          %v6421 = vsel %vm6296, %v6261, 0
          %v6424 = vsel %vm6296, %v6262, 0
          %v6427 = vsel %vm6296, %v6263, 0
          %v6430 = vsel %vm6296, %v6264, 0
          %v6433 = vsel %vm6296, %v6265, 0
          %v6436 = vsel %vm6296, %v6266, 0
          %v6439 = vsel %vm6296, %v6267, 0
          %v6442 = vsel %vm6296, %v6268, 0
          %v6445 = vsel %vm6296, %v6269, 0
          %v6448 = vsel %vm6296, %v6270, 0
          %v6451 = vsel %vm6296, %v6271, 0
          %v6454 = vsel %vm6296, %v6272, 0
          %v6457 = vsel %vm6296, %v6273, 0
          %v6460 = vsel %vm6296, %v6274, 0
          %v6463 = vsel %vm6296, %v6275, 0
          %v6466 = vsel %vm6296, %v6276, 0
          %v6469 = vsel %vm6296, %v6277, 0
          %v6472 = vsel %vm6296, %v6278, 0
          %v6475 = vsel %vm6296, %v6279, 0
          %v6478 = vsel %vm6296, %v6280, 0
          %v6481 = vsel %vm6296, %v6281, 0
          %v6484 = vsel %vm6296, %v6282, 0
          %v6487 = vsel %vm6296, %v6283, 0
          %6489 = vmatpush.bf16.msra.mxu0 0
          %6490 = vmatpush.bf16.msra.mxu0 0
          %6491 = vmatpush.bf16.msra.mxu0 0
          %6492 = vmatpush.bf16.msra.mxu0 0
          %6493 = vmatpush.bf16.msra.mxu0 0
          %6494 = vmatpush.bf16.msra.mxu0 0
          %6495 = vmatpush.bf16.msra.mxu0 %v6293
          %6496 = vmatpush.bf16.msra.mxu0 %v6292
          %6497 = vmatmul.bf16.gmra.mxu0 %v6298
          %v6498 = vpop.f32.mrf.mxu0
          %v6499 = vadd.f32 0.0, %v6498
          %v6500 = vpop.f32.mrf.mxu0
          %v6501 = vadd.f32 0.0, %v6500
          %6502 = vmatmul.bf16.gmra.mxu0 %v6301
          %v6503 = vpop.f32.mrf.mxu0
          %v6504 = vadd.f32 0.0, %v6503
          %v6505 = vpop.f32.mrf.mxu0
          %v6506 = vadd.f32 0.0, %v6505
          %6507 = vmatmul.bf16.gmra.mxu0 %v6304
          %v6508 = vpop.f32.mrf.mxu0
          %v6509 = vadd.f32 0.0, %v6508
          %v6510 = vpop.f32.mrf.mxu0
          %v6511 = vadd.f32 0.0, %v6510
          %6512 = vmatmul.bf16.gmra.mxu0 %v6307
          %v6513 = vpop.f32.mrf.mxu0
          %v6514 = vadd.f32 0.0, %v6513
          %v6515 = vpop.f32.mrf.mxu0
          %v6516 = vadd.f32 0.0, %v6515
          %6517 = vmatmul.bf16.gmra.mxu0 %v6310
          %v6518 = vpop.f32.mrf.mxu0
          %v6519 = vadd.f32 0.0, %v6518
          %v6520 = vpop.f32.mrf.mxu0
          %v6521 = vadd.f32 0.0, %v6520
          %6522 = vmatmul.bf16.gmra.mxu0 %v6313
          %v6523 = vpop.f32.mrf.mxu0
          %v6524 = vadd.f32 0.0, %v6523
          %v6525 = vpop.f32.mrf.mxu0
          %v6526 = vadd.f32 0.0, %v6525
          %6527 = vmatmul.bf16.gmra.mxu0 %v6316
          %v6528 = vpop.f32.mrf.mxu0
          %v6529 = vadd.f32 0.0, %v6528
          %v6530 = vpop.f32.mrf.mxu0
          %v6531 = vadd.f32 0.0, %v6530
          %6532 = vmatmul.bf16.gmra.mxu0 %v6319
          %v6533 = vpop.f32.mrf.mxu0
          %v6534 = vadd.f32 0.0, %v6533
          %v6535 = vpop.f32.mrf.mxu0
          %v6536 = vadd.f32 0.0, %v6535
          %6537 = vmatmul.bf16.gmra.mxu0 %v6322
          %v6538 = vpop.f32.mrf.mxu0
          %v6539 = vadd.f32 0.0, %v6538
          %v6540 = vpop.f32.mrf.mxu0
          %v6541 = vadd.f32 0.0, %v6540
          %6542 = vmatmul.bf16.gmra.mxu0 %v6325
          %v6543 = vpop.f32.mrf.mxu0
          %v6544 = vadd.f32 0.0, %v6543
          %v6545 = vpop.f32.mrf.mxu0
          %v6546 = vadd.f32 0.0, %v6545
          %6547 = vmatmul.bf16.gmra.mxu0 %v6328
          %v6548 = vpop.f32.mrf.mxu0
          %v6549 = vadd.f32 0.0, %v6548
          %v6550 = vpop.f32.mrf.mxu0
          %v6551 = vadd.f32 0.0, %v6550
          %6552 = vmatmul.bf16.gmra.mxu0 %v6331
          %v6553 = vpop.f32.mrf.mxu0
          %v6554 = vadd.f32 0.0, %v6553
          %v6555 = vpop.f32.mrf.mxu0
          %v6556 = vadd.f32 0.0, %v6555
          %6557 = vmatmul.bf16.gmra.mxu0 %v6334
          %v6558 = vpop.f32.mrf.mxu0
          %v6559 = vadd.f32 0.0, %v6558
          %v6560 = vpop.f32.mrf.mxu0
          %v6561 = vadd.f32 0.0, %v6560
          %6562 = vmatmul.bf16.gmra.mxu0 %v6337
          %v6563 = vpop.f32.mrf.mxu0
          %v6564 = vadd.f32 0.0, %v6563
          %v6565 = vpop.f32.mrf.mxu0
          %v6566 = vadd.f32 0.0, %v6565
          %6567 = vmatmul.bf16.gmra.mxu0 %v6340
          %v6568 = vpop.f32.mrf.mxu0
          %v6569 = vadd.f32 0.0, %v6568
          %v6570 = vpop.f32.mrf.mxu0
          %v6571 = vadd.f32 0.0, %v6570
          %6572 = vmatmul.bf16.gmra.mxu0 %v6343
          %v6573 = vpop.f32.mrf.mxu0
          %v6574 = vadd.f32 0.0, %v6573
          %v6575 = vpop.f32.mrf.mxu0
          %v6576 = vadd.f32 0.0, %v6575
          %6577 = vmatmul.bf16.gmra.mxu0 %v6346
          %v6578 = vpop.f32.mrf.mxu0
          %v6579 = vadd.f32 0.0, %v6578
          %v6580 = vpop.f32.mrf.mxu0
          %v6581 = vadd.f32 0.0, %v6580
          %6582 = vmatmul.bf16.gmra.mxu0 %v6349
          %v6583 = vpop.f32.mrf.mxu0
          %v6584 = vadd.f32 0.0, %v6583
          %v6585 = vpop.f32.mrf.mxu0
          %v6586 = vadd.f32 0.0, %v6585
          %6587 = vmatmul.bf16.gmra.mxu0 %v6352
          %v6588 = vpop.f32.mrf.mxu0
          %v6589 = vadd.f32 0.0, %v6588
          %v6590 = vpop.f32.mrf.mxu0
          %v6591 = vadd.f32 0.0, %v6590
          %6592 = vmatmul.bf16.gmra.mxu0 %v6355
          %v6593 = vpop.f32.mrf.mxu0
          %v6594 = vadd.f32 0.0, %v6593
          %v6595 = vpop.f32.mrf.mxu0
          %v6596 = vadd.f32 0.0, %v6595
          %6597 = vmatmul.bf16.gmra.mxu0 %v6358
          %v6598 = vpop.f32.mrf.mxu0
          %v6599 = vadd.f32 0.0, %v6598
          %v6600 = vpop.f32.mrf.mxu0
          %v6601 = vadd.f32 0.0, %v6600
          %6602 = vmatmul.bf16.gmra.mxu0 %v6361
          %v6603 = vpop.f32.mrf.mxu0
          %v6604 = vadd.f32 0.0, %v6603
          %v6605 = vpop.f32.mrf.mxu0
          %v6606 = vadd.f32 0.0, %v6605
          %6607 = vmatmul.bf16.gmra.mxu0 %v6364
          %v6608 = vpop.f32.mrf.mxu0
          %v6609 = vadd.f32 0.0, %v6608
          %v6610 = vpop.f32.mrf.mxu0
          %v6611 = vadd.f32 0.0, %v6610
          %6612 = vmatmul.bf16.gmra.mxu0 %v6367
          %v6613 = vpop.f32.mrf.mxu0
          %v6614 = vadd.f32 0.0, %v6613
          %v6615 = vpop.f32.mrf.mxu0
          %v6616 = vadd.f32 0.0, %v6615
          %6617 = vmatmul.bf16.gmra.mxu0 %v6370
          %v6618 = vpop.f32.mrf.mxu0
          %v6619 = vadd.f32 0.0, %v6618
          %v6620 = vpop.f32.mrf.mxu0
          %v6621 = vadd.f32 0.0, %v6620
          %6622 = vmatmul.bf16.gmra.mxu0 %v6373
          %v6623 = vpop.f32.mrf.mxu0
          %v6624 = vadd.f32 0.0, %v6623
          %v6625 = vpop.f32.mrf.mxu0
          %v6626 = vadd.f32 0.0, %v6625
          %6627 = vmatmul.bf16.gmra.mxu0 %v6376
          %v6628 = vpop.f32.mrf.mxu0
          %v6629 = vadd.f32 0.0, %v6628
          %v6630 = vpop.f32.mrf.mxu0
          %v6631 = vadd.f32 0.0, %v6630
          %6632 = vmatmul.bf16.gmra.mxu0 %v6379
          %v6633 = vpop.f32.mrf.mxu0
          %v6634 = vadd.f32 0.0, %v6633
          %v6635 = vpop.f32.mrf.mxu0
          %v6636 = vadd.f32 0.0, %v6635
          %6637 = vmatmul.bf16.gmra.mxu0 %v6382
          %v6638 = vpop.f32.mrf.mxu0
          %v6639 = vadd.f32 0.0, %v6638
          %v6640 = vpop.f32.mrf.mxu0
          %v6641 = vadd.f32 0.0, %v6640
          %6642 = vmatmul.bf16.gmra.mxu0 %v6385
          %v6643 = vpop.f32.mrf.mxu0
          %v6644 = vadd.f32 0.0, %v6643
          %v6645 = vpop.f32.mrf.mxu0
          %v6646 = vadd.f32 0.0, %v6645
          %6647 = vmatmul.bf16.gmra.mxu0 %v6388
          %v6648 = vpop.f32.mrf.mxu0
          %v6649 = vadd.f32 0.0, %v6648
          %v6650 = vpop.f32.mrf.mxu0
          %v6651 = vadd.f32 0.0, %v6650
          %6652 = vmatmul.bf16.gmra.mxu0 %v6391
          %v6653 = vpop.f32.mrf.mxu0
          %v6654 = vadd.f32 0.0, %v6653
          %v6655 = vpop.f32.mrf.mxu0
          %v6656 = vadd.f32 0.0, %v6655
          %6657 = vmatmul.bf16.gmra.mxu0 %v6394
          %v6658 = vpop.f32.mrf.mxu0
          %v6659 = vadd.f32 0.0, %v6658
          %v6660 = vpop.f32.mrf.mxu0
          %v6661 = vadd.f32 0.0, %v6660
          %6662 = vmatmul.bf16.gmra.mxu0 %v6397
          %v6663 = vpop.f32.mrf.mxu0
          %v6664 = vadd.f32 0.0, %v6663
          %v6665 = vpop.f32.mrf.mxu0
          %v6666 = vadd.f32 0.0, %v6665
          %6667 = vmatmul.bf16.gmra.mxu0 %v6400
          %v6668 = vpop.f32.mrf.mxu0
          %v6669 = vadd.f32 0.0, %v6668
          %v6670 = vpop.f32.mrf.mxu0
          %v6671 = vadd.f32 0.0, %v6670
          %6672 = vmatmul.bf16.gmra.mxu0 %v6403
          %v6673 = vpop.f32.mrf.mxu0
          %v6674 = vadd.f32 0.0, %v6673
          %v6675 = vpop.f32.mrf.mxu0
          %v6676 = vadd.f32 0.0, %v6675
          %6677 = vmatmul.bf16.gmra.mxu0 %v6406
          %v6678 = vpop.f32.mrf.mxu0
          %v6679 = vadd.f32 0.0, %v6678
          %v6680 = vpop.f32.mrf.mxu0
          %v6681 = vadd.f32 0.0, %v6680
          %6682 = vmatmul.bf16.gmra.mxu0 %v6409
          %v6683 = vpop.f32.mrf.mxu0
          %v6684 = vadd.f32 0.0, %v6683
          %v6685 = vpop.f32.mrf.mxu0
          %v6686 = vadd.f32 0.0, %v6685
          %6687 = vmatmul.bf16.gmra.mxu0 %v6412
          %v6688 = vpop.f32.mrf.mxu0
          %v6689 = vadd.f32 0.0, %v6688
          %v6690 = vpop.f32.mrf.mxu0
          %v6691 = vadd.f32 0.0, %v6690
          %6692 = vmatmul.bf16.gmra.mxu0 %v6415
          %v6693 = vpop.f32.mrf.mxu0
          %v6694 = vadd.f32 0.0, %v6693
          %v6695 = vpop.f32.mrf.mxu0
          %v6696 = vadd.f32 0.0, %v6695
          %6697 = vmatmul.bf16.gmra.mxu0 %v6418
          %v6698 = vpop.f32.mrf.mxu0
          %v6699 = vadd.f32 0.0, %v6698
          %v6700 = vpop.f32.mrf.mxu0
          %v6701 = vadd.f32 0.0, %v6700
          %6702 = vmatmul.bf16.gmra.mxu0 %v6421
          %v6703 = vpop.f32.mrf.mxu0
          %v6704 = vadd.f32 0.0, %v6703
          %v6705 = vpop.f32.mrf.mxu0
          %v6706 = vadd.f32 0.0, %v6705
          %6707 = vmatmul.bf16.gmra.mxu0 %v6424
          %v6708 = vpop.f32.mrf.mxu0
          %v6709 = vadd.f32 0.0, %v6708
          %v6710 = vpop.f32.mrf.mxu0
          %v6711 = vadd.f32 0.0, %v6710
          %6712 = vmatmul.bf16.gmra.mxu0 %v6427
          %v6713 = vpop.f32.mrf.mxu0
          %v6714 = vadd.f32 0.0, %v6713
          %v6715 = vpop.f32.mrf.mxu0
          %v6716 = vadd.f32 0.0, %v6715
          %6717 = vmatmul.bf16.gmra.mxu0 %v6430
          %v6718 = vpop.f32.mrf.mxu0
          %v6719 = vadd.f32 0.0, %v6718
          %v6720 = vpop.f32.mrf.mxu0
          %v6721 = vadd.f32 0.0, %v6720
          %6722 = vmatmul.bf16.gmra.mxu0 %v6433
          %v6723 = vpop.f32.mrf.mxu0
          %v6724 = vadd.f32 0.0, %v6723
          %v6725 = vpop.f32.mrf.mxu0
          %v6726 = vadd.f32 0.0, %v6725
          %6727 = vmatmul.bf16.gmra.mxu0 %v6436
          %v6728 = vpop.f32.mrf.mxu0
          %v6729 = vadd.f32 0.0, %v6728
          %v6730 = vpop.f32.mrf.mxu0
          %v6731 = vadd.f32 0.0, %v6730
          %6732 = vmatmul.bf16.gmra.mxu0 %v6439
          %v6733 = vpop.f32.mrf.mxu0
          %v6734 = vadd.f32 0.0, %v6733
          %v6735 = vpop.f32.mrf.mxu0
          %v6736 = vadd.f32 0.0, %v6735
          %6737 = vmatmul.bf16.gmra.mxu0 %v6442
          %v6738 = vpop.f32.mrf.mxu0
          %v6739 = vadd.f32 0.0, %v6738
          %v6740 = vpop.f32.mrf.mxu0
          %v6741 = vadd.f32 0.0, %v6740
          %6742 = vmatmul.bf16.gmra.mxu0 %v6445
          %v6743 = vpop.f32.mrf.mxu0
          %v6744 = vadd.f32 0.0, %v6743
          %v6745 = vpop.f32.mrf.mxu0
          %v6746 = vadd.f32 0.0, %v6745
          %6747 = vmatmul.bf16.gmra.mxu0 %v6448
          %v6748 = vpop.f32.mrf.mxu0
          %v6749 = vadd.f32 0.0, %v6748
          %v6750 = vpop.f32.mrf.mxu0
          %v6751 = vadd.f32 0.0, %v6750
          %6752 = vmatmul.bf16.gmra.mxu0 %v6451
          %v6753 = vpop.f32.mrf.mxu0
          %v6754 = vadd.f32 0.0, %v6753
          %v6755 = vpop.f32.mrf.mxu0
          %v6756 = vadd.f32 0.0, %v6755
          %6757 = vmatmul.bf16.gmra.mxu0 %v6454
          %v6758 = vpop.f32.mrf.mxu0
          %v6759 = vadd.f32 0.0, %v6758
          %v6760 = vpop.f32.mrf.mxu0
          %v6761 = vadd.f32 0.0, %v6760
          %6762 = vmatmul.bf16.gmra.mxu0 %v6457
          %v6763 = vpop.f32.mrf.mxu0
          %v6764 = vadd.f32 0.0, %v6763
          %v6765 = vpop.f32.mrf.mxu0
          %v6766 = vadd.f32 0.0, %v6765
          %6767 = vmatmul.bf16.gmra.mxu0 %v6460
          %v6768 = vpop.f32.mrf.mxu0
          %v6769 = vadd.f32 0.0, %v6768
          %v6770 = vpop.f32.mrf.mxu0
          %v6771 = vadd.f32 0.0, %v6770
          %6772 = vmatmul.bf16.gmra.mxu0 %v6463
          %v6773 = vpop.f32.mrf.mxu0
          %v6774 = vadd.f32 0.0, %v6773
          %v6775 = vpop.f32.mrf.mxu0
          %v6776 = vadd.f32 0.0, %v6775
          %6777 = vmatmul.bf16.gmra.mxu0 %v6466
          %v6778 = vpop.f32.mrf.mxu0
          %v6779 = vadd.f32 0.0, %v6778
          %v6780 = vpop.f32.mrf.mxu0
          %v6781 = vadd.f32 0.0, %v6780
          %6782 = vmatmul.bf16.gmra.mxu0 %v6469
          %v6783 = vpop.f32.mrf.mxu0
          %v6784 = vadd.f32 0.0, %v6783
          %v6785 = vpop.f32.mrf.mxu0
          %v6786 = vadd.f32 0.0, %v6785
          %6787 = vmatmul.bf16.gmra.mxu0 %v6472
          %v6788 = vpop.f32.mrf.mxu0
          %v6789 = vadd.f32 0.0, %v6788
          %v6790 = vpop.f32.mrf.mxu0
          %v6791 = vadd.f32 0.0, %v6790
          %6792 = vmatmul.bf16.gmra.mxu0 %v6475
          %v6793 = vpop.f32.mrf.mxu0
          %v6794 = vadd.f32 0.0, %v6793
          %v6795 = vpop.f32.mrf.mxu0
          %v6796 = vadd.f32 0.0, %v6795
          %6797 = vmatmul.bf16.gmra.mxu0 %v6478
          %v6798 = vpop.f32.mrf.mxu0
          %v6799 = vadd.f32 0.0, %v6798
          %v6800 = vpop.f32.mrf.mxu0
          %v6801 = vadd.f32 0.0, %v6800
          %6802 = vmatmul.bf16.gmra.mxu0 %v6481
          %v6803 = vpop.f32.mrf.mxu0
          %v6804 = vadd.f32 0.0, %v6803
          %v6805 = vpop.f32.mrf.mxu0
          %v6806 = vadd.f32 0.0, %v6805
          %6807 = vmatmul.bf16.gmra.mxu0 %v6484
          %v6808 = vpop.f32.mrf.mxu0
          %v6809 = vadd.f32 0.0, %v6808
          %v6810 = vpop.f32.mrf.mxu0
          %v6811 = vadd.f32 0.0, %v6810
          %6812 = vmatmul.bf16.gmra.mxu0 %v6487
          %v6813 = vpop.f32.mrf.mxu0
          %v6814 = vadd.f32 0.0, %v6813
          %v6815 = vpop.f32.mrf.mxu0
          %v6816 = vadd.f32 0.0, %v6815
          %6817 = vdwg.mxu0
          %v6818 = vadd.f32 %v5704, %v6499
          %v6819 = vadd.f32 %v5705, %v6501
          %v6820 = vadd.f32 %v5706, %v6504
          %v6821 = vadd.f32 %v5707, %v6506
          %v6822 = vadd.f32 %v5708, %v6509
          %v6823 = vadd.f32 %v5709, %v6511
          %v6824 = vadd.f32 %v5710, %v6514
          %v6825 = vadd.f32 %v5711, %v6516
          %v6826 = vadd.f32 %v5712, %v6519
          %v6827 = vadd.f32 %v5713, %v6521
          %v6828 = vadd.f32 %v5714, %v6524
          %v6829 = vadd.f32 %v5715, %v6526
          %v6830 = vadd.f32 %v5716, %v6529
          %v6831 = vadd.f32 %v5717, %v6531
          %v6832 = vadd.f32 %v5718, %v6534
          %v6833 = vadd.f32 %v5719, %v6536
          %v6834 = vadd.f32 %v5720, %v6539
          %v6835 = vadd.f32 %v5721, %v6541
          %v6836 = vadd.f32 %v5722, %v6544
          %v6837 = vadd.f32 %v5723, %v6546
          %v6838 = vadd.f32 %v5724, %v6549
          %v6839 = vadd.f32 %v5725, %v6551
          %v6840 = vadd.f32 %v5726, %v6554
          %v6841 = vadd.f32 %v5727, %v6556
          %v6842 = vadd.f32 %v5728, %v6559
          %v6843 = vadd.f32 %v5729, %v6561
          %v6844 = vadd.f32 %v5730, %v6564
          %v6845 = vadd.f32 %v5731, %v6566
          %v6846 = vadd.f32 %v5732, %v6569
          %v6847 = vadd.f32 %v5733, %v6571
          %v6848 = vadd.f32 %v5734, %v6574
          %v6849 = vadd.f32 %v5735, %v6576
          %v6850 = vadd.f32 %v5736, %v6579
          %v6851 = vadd.f32 %v5737, %v6581
          %v6852 = vadd.f32 %v5738, %v6584
          %v6853 = vadd.f32 %v5739, %v6586
          %v6854 = vadd.f32 %v5740, %v6589
          %v6855 = vadd.f32 %v5741, %v6591
          %v6856 = vadd.f32 %v5742, %v6594
          %v6857 = vadd.f32 %v5743, %v6596
          %v6858 = vadd.f32 %v5744, %v6599
          %v6859 = vadd.f32 %v5745, %v6601
          %v6860 = vadd.f32 %v5746, %v6604
          %v6861 = vadd.f32 %v5747, %v6606
          %v6862 = vadd.f32 %v5748, %v6609
          %v6863 = vadd.f32 %v5749, %v6611
          %v6864 = vadd.f32 %v5750, %v6614
          %v6865 = vadd.f32 %v5751, %v6616
          %v6866 = vadd.f32 %v5752, %v6619
          %v6867 = vadd.f32 %v5753, %v6621
          %v6868 = vadd.f32 %v5754, %v6624
          %v6869 = vadd.f32 %v5755, %v6626
          %v6870 = vadd.f32 %v5756, %v6629
          %v6871 = vadd.f32 %v5757, %v6631
          %v6872 = vadd.f32 %v5758, %v6634
          %v6873 = vadd.f32 %v5759, %v6636
          %v6874 = vadd.f32 %v5760, %v6639
          %v6875 = vadd.f32 %v5761, %v6641
          %v6876 = vadd.f32 %v5762, %v6644
          %v6877 = vadd.f32 %v5763, %v6646
          %v6878 = vadd.f32 %v5764, %v6649
          %v6879 = vadd.f32 %v5765, %v6651
          %v6880 = vadd.f32 %v5766, %v6654
          %v6881 = vadd.f32 %v5767, %v6656
          %v6882 = vadd.f32 %v5768, %v6659
          %v6883 = vadd.f32 %v5769, %v6661
          %v6884 = vadd.f32 %v5770, %v6664
          %v6885 = vadd.f32 %v5771, %v6666
          %v6886 = vadd.f32 %v5772, %v6669
          %v6887 = vadd.f32 %v5773, %v6671
          %v6888 = vadd.f32 %v5774, %v6674
          %v6889 = vadd.f32 %v5775, %v6676
          %v6890 = vadd.f32 %v5776, %v6679
          %v6891 = vadd.f32 %v5777, %v6681
          %v6892 = vadd.f32 %v5778, %v6684
          %v6893 = vadd.f32 %v5779, %v6686
          %v6894 = vadd.f32 %v5780, %v6689
          %v6895 = vadd.f32 %v5781, %v6691
          %v6896 = vadd.f32 %v5782, %v6694
          %v6897 = vadd.f32 %v5783, %v6696
          %v6898 = vadd.f32 %v5784, %v6699
          %v6899 = vadd.f32 %v5785, %v6701
          %v6900 = vadd.f32 %v5786, %v6704
          %v6901 = vadd.f32 %v5787, %v6706
          %v6902 = vadd.f32 %v5788, %v6709
          %v6903 = vadd.f32 %v5789, %v6711
          %v6904 = vadd.f32 %v5790, %v6714
          %v6905 = vadd.f32 %v5791, %v6716
          %v6906 = vadd.f32 %v5792, %v6719
          %v6907 = vadd.f32 %v5793, %v6721
          %v6908 = vadd.f32 %v5794, %v6724
          %v6909 = vadd.f32 %v5795, %v6726
          %v6910 = vadd.f32 %v5796, %v6729
          %v6911 = vadd.f32 %v5797, %v6731
          %v6912 = vadd.f32 %v5798, %v6734
          %v6913 = vadd.f32 %v5799, %v6736
          %v6914 = vadd.f32 %v5800, %v6739
          %v6915 = vadd.f32 %v5801, %v6741
          %v6916 = vadd.f32 %v5802, %v6744
          %v6917 = vadd.f32 %v5803, %v6746
          %v6918 = vadd.f32 %v5804, %v6749
          %v6919 = vadd.f32 %v5805, %v6751
          %v6920 = vadd.f32 %v5806, %v6754
          %v6921 = vadd.f32 %v5807, %v6756
          %v6922 = vadd.f32 %v5808, %v6759
          %v6923 = vadd.f32 %v5809, %v6761
          %v6924 = vadd.f32 %v5810, %v6764
          %v6925 = vadd.f32 %v5811, %v6766
          %v6926 = vadd.f32 %v5812, %v6769
          %v6927 = vadd.f32 %v5813, %v6771
          %v6928 = vadd.f32 %v5814, %v6774
          %v6929 = vadd.f32 %v5815, %v6776
          %v6930 = vadd.f32 %v5816, %v6779
          %v6931 = vadd.f32 %v5817, %v6781
          %v6932 = vadd.f32 %v5818, %v6784
          %v6933 = vadd.f32 %v5819, %v6786
          %v6934 = vadd.f32 %v5820, %v6789
          %v6935 = vadd.f32 %v5821, %v6791
          %v6936 = vadd.f32 %v5822, %v6794
          %v6937 = vadd.f32 %v5823, %v6796
          %v6938 = vadd.f32 %v5824, %v6799
          %v6939 = vadd.f32 %v5825, %v6801
          %v6940 = vadd.f32 %v5826, %v6804
          %v6941 = vadd.f32 %v5827, %v6806
          %v6942 = vadd.f32 %v5828, %v6809
          %v6943 = vadd.f32 %v5829, %v6811
          %v6944 = vadd.f32 %v5830, %v6814
          %v6945 = vadd.f32 %v5831, %v6816
          %6946 = vst [vmem:[#allocation2] sm:$0xff] %v6818
          %6947 = vst [vmem:[#allocation2 + $0x8] sm:$0xff] %v6819
          %6948 = vst [vmem:[#allocation2 + $0x10] sm:$0xff] %v6820
          %6949 = vst [vmem:[#allocation2 + $0x18] sm:$0xff] %v6821
          %6950 = vst [vmem:[#allocation2 + $0x20] sm:$0xff] %v6822
          %6951 = vst [vmem:[#allocation2 + $0x28] sm:$0xff] %v6823
          %6952 = vst [vmem:[#allocation2 + $0x30] sm:$0xff] %v6824
          %6953 = vst [vmem:[#allocation2 + $0x38] sm:$0xff] %v6825
          %6954 = vst [vmem:[#allocation2 + $0x40] sm:$0xff] %v6826
          %6955 = vst [vmem:[#allocation2 + $0x48] sm:$0xff] %v6827
          %6956 = vst [vmem:[#allocation2 + $0x50] sm:$0xff] %v6828
          %6957 = vst [vmem:[#allocation2 + $0x58] sm:$0xff] %v6829
          %6958 = vst [vmem:[#allocation2 + $0x60] sm:$0xff] %v6830
          %6959 = vst [vmem:[#allocation2 + $0x68] sm:$0xff] %v6831
          %6960 = vst [vmem:[#allocation2 + $0x70] sm:$0xff] %v6832
          %6961 = vst [vmem:[#allocation2 + $0x78] sm:$0xff] %v6833
          %6962 = vst [vmem:[#allocation2 + $0x80] sm:$0xff] %v6834
          %6963 = vst [vmem:[#allocation2 + $0x88] sm:$0xff] %v6835
          %6964 = vst [vmem:[#allocation2 + $0x90] sm:$0xff] %v6836
          %6965 = vst [vmem:[#allocation2 + $0x98] sm:$0xff] %v6837
          %6966 = vst [vmem:[#allocation2 + $0xa0] sm:$0xff] %v6838
          %6967 = vst [vmem:[#allocation2 + $0xa8] sm:$0xff] %v6839
          %6968 = vst [vmem:[#allocation2 + $0xb0] sm:$0xff] %v6840
          %6969 = vst [vmem:[#allocation2 + $0xb8] sm:$0xff] %v6841
          %6970 = vst [vmem:[#allocation2 + $0xc0] sm:$0xff] %v6842
          %6971 = vst [vmem:[#allocation2 + $0xc8] sm:$0xff] %v6843
          %6972 = vst [vmem:[#allocation2 + $0xd0] sm:$0xff] %v6844
          %6973 = vst [vmem:[#allocation2 + $0xd8] sm:$0xff] %v6845
          %6974 = vst [vmem:[#allocation2 + $0xe0] sm:$0xff] %v6846
          %6975 = vst [vmem:[#allocation2 + $0xe8] sm:$0xff] %v6847
          %6976 = vst [vmem:[#allocation2 + $0xf0] sm:$0xff] %v6848
          %6977 = vst [vmem:[#allocation2 + $0xf8] sm:$0xff] %v6849
          %6978 = vst [vmem:[#allocation2 + $0x100] sm:$0xff] %v6850
          %6979 = vst [vmem:[#allocation2 + $0x108] sm:$0xff] %v6851
          %6980 = vst [vmem:[#allocation2 + $0x110] sm:$0xff] %v6852
          %6981 = vst [vmem:[#allocation2 + $0x118] sm:$0xff] %v6853
          %6982 = vst [vmem:[#allocation2 + $0x120] sm:$0xff] %v6854
          %6983 = vst [vmem:[#allocation2 + $0x128] sm:$0xff] %v6855
          %6984 = vst [vmem:[#allocation2 + $0x130] sm:$0xff] %v6856
          %6985 = vst [vmem:[#allocation2 + $0x138] sm:$0xff] %v6857
          %6986 = vst [vmem:[#allocation2 + $0x140] sm:$0xff] %v6858
          %6987 = vst [vmem:[#allocation2 + $0x148] sm:$0xff] %v6859
          %6988 = vst [vmem:[#allocation2 + $0x150] sm:$0xff] %v6860
          %6989 = vst [vmem:[#allocation2 + $0x158] sm:$0xff] %v6861
          %6990 = vst [vmem:[#allocation2 + $0x160] sm:$0xff] %v6862
          %6991 = vst [vmem:[#allocation2 + $0x168] sm:$0xff] %v6863
          %6992 = vst [vmem:[#allocation2 + $0x170] sm:$0xff] %v6864
          %6993 = vst [vmem:[#allocation2 + $0x178] sm:$0xff] %v6865
          %6994 = vst [vmem:[#allocation2 + $0x180] sm:$0xff] %v6866
          %6995 = vst [vmem:[#allocation2 + $0x188] sm:$0xff] %v6867
          %6996 = vst [vmem:[#allocation2 + $0x190] sm:$0xff] %v6868
          %6997 = vst [vmem:[#allocation2 + $0x198] sm:$0xff] %v6869
          %6998 = vst [vmem:[#allocation2 + $0x1a0] sm:$0xff] %v6870
          %6999 = vst [vmem:[#allocation2 + $0x1a8] sm:$0xff] %v6871
          %7000 = vst [vmem:[#allocation2 + $0x1b0] sm:$0xff] %v6872
          %7001 = vst [vmem:[#allocation2 + $0x1b8] sm:$0xff] %v6873
          %7002 = vst [vmem:[#allocation2 + $0x1c0] sm:$0xff] %v6874
          %7003 = vst [vmem:[#allocation2 + $0x1c8] sm:$0xff] %v6875
          %7004 = vst [vmem:[#allocation2 + $0x1d0] sm:$0xff] %v6876
          %7005 = vst [vmem:[#allocation2 + $0x1d8] sm:$0xff] %v6877
          %7006 = vst [vmem:[#allocation2 + $0x1e0] sm:$0xff] %v6878
          %7007 = vst [vmem:[#allocation2 + $0x1e8] sm:$0xff] %v6879
          %7008 = vst [vmem:[#allocation2 + $0x1f0] sm:$0xff] %v6880
          %7009 = vst [vmem:[#allocation2 + $0x1f8] sm:$0xff] %v6881
          %7010 = vst [vmem:[#allocation2 + $0x200] sm:$0xff] %v6882
          %7011 = vst [vmem:[#allocation2 + $0x208] sm:$0xff] %v6883
          %7012 = vst [vmem:[#allocation2 + $0x210] sm:$0xff] %v6884
          %7013 = vst [vmem:[#allocation2 + $0x218] sm:$0xff] %v6885
          %7014 = vst [vmem:[#allocation2 + $0x220] sm:$0xff] %v6886
          %7015 = vst [vmem:[#allocation2 + $0x228] sm:$0xff] %v6887
          %7016 = vst [vmem:[#allocation2 + $0x230] sm:$0xff] %v6888
          %7017 = vst [vmem:[#allocation2 + $0x238] sm:$0xff] %v6889
          %7018 = vst [vmem:[#allocation2 + $0x240] sm:$0xff] %v6890
          %7019 = vst [vmem:[#allocation2 + $0x248] sm:$0xff] %v6891
          %7020 = vst [vmem:[#allocation2 + $0x250] sm:$0xff] %v6892
          %7021 = vst [vmem:[#allocation2 + $0x258] sm:$0xff] %v6893
          %7022 = vst [vmem:[#allocation2 + $0x260] sm:$0xff] %v6894
          %7023 = vst [vmem:[#allocation2 + $0x268] sm:$0xff] %v6895
          %7024 = vst [vmem:[#allocation2 + $0x270] sm:$0xff] %v6896
          %7025 = vst [vmem:[#allocation2 + $0x278] sm:$0xff] %v6897
          %7026 = vst [vmem:[#allocation2 + $0x280] sm:$0xff] %v6898
          %7027 = vst [vmem:[#allocation2 + $0x288] sm:$0xff] %v6899
          %7028 = vst [vmem:[#allocation2 + $0x290] sm:$0xff] %v6900
          %7029 = vst [vmem:[#allocation2 + $0x298] sm:$0xff] %v6901
          %7030 = vst [vmem:[#allocation2 + $0x2a0] sm:$0xff] %v6902
          %7031 = vst [vmem:[#allocation2 + $0x2a8] sm:$0xff] %v6903
          %7032 = vst [vmem:[#allocation2 + $0x2b0] sm:$0xff] %v6904
          %7033 = vst [vmem:[#allocation2 + $0x2b8] sm:$0xff] %v6905
          %7034 = vst [vmem:[#allocation2 + $0x2c0] sm:$0xff] %v6906
          %7035 = vst [vmem:[#allocation2 + $0x2c8] sm:$0xff] %v6907
          %7036 = vst [vmem:[#allocation2 + $0x2d0] sm:$0xff] %v6908
          %7037 = vst [vmem:[#allocation2 + $0x2d8] sm:$0xff] %v6909
          %7038 = vst [vmem:[#allocation2 + $0x2e0] sm:$0xff] %v6910
          %7039 = vst [vmem:[#allocation2 + $0x2e8] sm:$0xff] %v6911
          %7040 = vst [vmem:[#allocation2 + $0x2f0] sm:$0xff] %v6912
          %7041 = vst [vmem:[#allocation2 + $0x2f8] sm:$0xff] %v6913
          %7042 = vst [vmem:[#allocation2 + $0x300] sm:$0xff] %v6914
          %7043 = vst [vmem:[#allocation2 + $0x308] sm:$0xff] %v6915
          %7044 = vst [vmem:[#allocation2 + $0x310] sm:$0xff] %v6916
          %7045 = vst [vmem:[#allocation2 + $0x318] sm:$0xff] %v6917
          %7046 = vst [vmem:[#allocation2 + $0x320] sm:$0xff] %v6918
          %7047 = vst [vmem:[#allocation2 + $0x328] sm:$0xff] %v6919
          %7048 = vst [vmem:[#allocation2 + $0x330] sm:$0xff] %v6920
          %7049 = vst [vmem:[#allocation2 + $0x338] sm:$0xff] %v6921
          %7050 = vst [vmem:[#allocation2 + $0x340] sm:$0xff] %v6922
          %7051 = vst [vmem:[#allocation2 + $0x348] sm:$0xff] %v6923
          %7052 = vst [vmem:[#allocation2 + $0x350] sm:$0xff] %v6924
          %7053 = vst [vmem:[#allocation2 + $0x358] sm:$0xff] %v6925
          %7054 = vst [vmem:[#allocation2 + $0x360] sm:$0xff] %v6926
          %7055 = vst [vmem:[#allocation2 + $0x368] sm:$0xff] %v6927
          %7056 = vst [vmem:[#allocation2 + $0x370] sm:$0xff] %v6928
          %7057 = vst [vmem:[#allocation2 + $0x378] sm:$0xff] %v6929
          %7058 = vst [vmem:[#allocation2 + $0x380] sm:$0xff] %v6930
          %7059 = vst [vmem:[#allocation2 + $0x388] sm:$0xff] %v6931
          %7060 = vst [vmem:[#allocation2 + $0x390] sm:$0xff] %v6932
          %7061 = vst [vmem:[#allocation2 + $0x398] sm:$0xff] %v6933
          %7062 = vst [vmem:[#allocation2 + $0x3a0] sm:$0xff] %v6934
          %7063 = vst [vmem:[#allocation2 + $0x3a8] sm:$0xff] %v6935
          %7064 = vst [vmem:[#allocation2 + $0x3b0] sm:$0xff] %v6936
          %7065 = vst [vmem:[#allocation2 + $0x3b8] sm:$0xff] %v6937
          %7066 = vst [vmem:[#allocation2 + $0x3c0] sm:$0xff] %v6938
          %7067 = vst [vmem:[#allocation2 + $0x3c8] sm:$0xff] %v6939
          %7068 = vst [vmem:[#allocation2 + $0x3d0] sm:$0xff] %v6940
          %7069 = vst [vmem:[#allocation2 + $0x3d8] sm:$0xff] %v6941
          %7070 = vst [vmem:[#allocation2 + $0x3e0] sm:$0xff] %v6942
          %7071 = vst [vmem:[#allocation2 + $0x3e8] sm:$0xff] %v6943
          %7072 = vst [vmem:[#allocation2 + $0x3f0] sm:$0xff] %v6944
          %7073 = vst [vmem:[#allocation2 + $0x3f8] sm:$0xff] %v6945
        $region44: #{conv_bn_act.2} parent=35 // pred_fallthru
          _
        // Predicated region
        $region45: #{conv_bn_act.2} parent=35 // pred_check
          %p7074 = pneg %p4582
        $region46: #{conv_bn_act.2} parent=35 // pred_check_branch
          %7076 = sbr.rel (%p7074) target = $region48
        $region47: #{conv_bn_act.2} parent=35 // pred_region
          %v7077 = vld [vmem:[#allocation2] sm:$0xff]
          %v7078 = vld [vmem:[#allocation2 + $0x8] sm:$0xff]
          %v7079 = vld [vmem:[#allocation2 + $0x10] sm:$0xff]
          %v7080 = vld [vmem:[#allocation2 + $0x18] sm:$0xff]
          %v7081 = vld [vmem:[#allocation2 + $0x20] sm:$0xff]
          %v7082 = vld [vmem:[#allocation2 + $0x28] sm:$0xff]
          %v7083 = vld [vmem:[#allocation2 + $0x30] sm:$0xff]
          %v7084 = vld [vmem:[#allocation2 + $0x38] sm:$0xff]
          %v7085 = vld [vmem:[#allocation2 + $0x40] sm:$0xff]
          %v7086 = vld [vmem:[#allocation2 + $0x48] sm:$0xff]
          %v7087 = vld [vmem:[#allocation2 + $0x50] sm:$0xff]
          %v7088 = vld [vmem:[#allocation2 + $0x58] sm:$0xff]
          %v7089 = vld [vmem:[#allocation2 + $0x60] sm:$0xff]
          %v7090 = vld [vmem:[#allocation2 + $0x68] sm:$0xff]
          %v7091 = vld [vmem:[#allocation2 + $0x70] sm:$0xff]
          %v7092 = vld [vmem:[#allocation2 + $0x78] sm:$0xff]
          %v7093 = vld [vmem:[#allocation2 + $0x80] sm:$0xff]
          %v7094 = vld [vmem:[#allocation2 + $0x88] sm:$0xff]
          %v7095 = vld [vmem:[#allocation2 + $0x90] sm:$0xff]
          %v7096 = vld [vmem:[#allocation2 + $0x98] sm:$0xff]
          %v7097 = vld [vmem:[#allocation2 + $0xa0] sm:$0xff]
          %v7098 = vld [vmem:[#allocation2 + $0xa8] sm:$0xff]
          %v7099 = vld [vmem:[#allocation2 + $0xb0] sm:$0xff]
          %v7100 = vld [vmem:[#allocation2 + $0xb8] sm:$0xff]
          %v7101 = vld [vmem:[#allocation2 + $0xc0] sm:$0xff]
          %v7102 = vld [vmem:[#allocation2 + $0xc8] sm:$0xff]
          %v7103 = vld [vmem:[#allocation2 + $0xd0] sm:$0xff]
          %v7104 = vld [vmem:[#allocation2 + $0xd8] sm:$0xff]
          %v7105 = vld [vmem:[#allocation2 + $0xe0] sm:$0xff]
          %v7106 = vld [vmem:[#allocation2 + $0xe8] sm:$0xff]
          %v7107 = vld [vmem:[#allocation2 + $0xf0] sm:$0xff]
          %v7108 = vld [vmem:[#allocation2 + $0xf8] sm:$0xff]
          %v7109 = vld [vmem:[#allocation2 + $0x100] sm:$0xff]
          %v7110 = vld [vmem:[#allocation2 + $0x108] sm:$0xff]
          %v7111 = vld [vmem:[#allocation2 + $0x110] sm:$0xff]
          %v7112 = vld [vmem:[#allocation2 + $0x118] sm:$0xff]
          %v7113 = vld [vmem:[#allocation2 + $0x120] sm:$0xff]
          %v7114 = vld [vmem:[#allocation2 + $0x128] sm:$0xff]
          %v7115 = vld [vmem:[#allocation2 + $0x130] sm:$0xff]
          %v7116 = vld [vmem:[#allocation2 + $0x138] sm:$0xff]
          %v7117 = vld [vmem:[#allocation2 + $0x140] sm:$0xff]
          %v7118 = vld [vmem:[#allocation2 + $0x148] sm:$0xff]
          %v7119 = vld [vmem:[#allocation2 + $0x150] sm:$0xff]
          %v7120 = vld [vmem:[#allocation2 + $0x158] sm:$0xff]
          %v7121 = vld [vmem:[#allocation2 + $0x160] sm:$0xff]
          %v7122 = vld [vmem:[#allocation2 + $0x168] sm:$0xff]
          %v7123 = vld [vmem:[#allocation2 + $0x170] sm:$0xff]
          %v7124 = vld [vmem:[#allocation2 + $0x178] sm:$0xff]
          %v7125 = vld [vmem:[#allocation2 + $0x180] sm:$0xff]
          %v7126 = vld [vmem:[#allocation2 + $0x188] sm:$0xff]
          %v7127 = vld [vmem:[#allocation2 + $0x190] sm:$0xff]
          %v7128 = vld [vmem:[#allocation2 + $0x198] sm:$0xff]
          %v7129 = vld [vmem:[#allocation2 + $0x1a0] sm:$0xff]
          %v7130 = vld [vmem:[#allocation2 + $0x1a8] sm:$0xff]
          %v7131 = vld [vmem:[#allocation2 + $0x1b0] sm:$0xff]
          %v7132 = vld [vmem:[#allocation2 + $0x1b8] sm:$0xff]
          %v7133 = vld [vmem:[#allocation2 + $0x1c0] sm:$0xff]
          %v7134 = vld [vmem:[#allocation2 + $0x1c8] sm:$0xff]
          %v7135 = vld [vmem:[#allocation2 + $0x1d0] sm:$0xff]
          %v7136 = vld [vmem:[#allocation2 + $0x1d8] sm:$0xff]
          %v7137 = vld [vmem:[#allocation2 + $0x1e0] sm:$0xff]
          %v7138 = vld [vmem:[#allocation2 + $0x1e8] sm:$0xff]
          %v7139 = vld [vmem:[#allocation2 + $0x1f0] sm:$0xff]
          %v7140 = vld [vmem:[#allocation2 + $0x1f8] sm:$0xff]
          %v7141 = vld [vmem:[#allocation2 + $0x200] sm:$0xff]
          %v7142 = vld [vmem:[#allocation2 + $0x208] sm:$0xff]
          %v7143 = vld [vmem:[#allocation2 + $0x210] sm:$0xff]
          %v7144 = vld [vmem:[#allocation2 + $0x218] sm:$0xff]
          %v7145 = vld [vmem:[#allocation2 + $0x220] sm:$0xff]
          %v7146 = vld [vmem:[#allocation2 + $0x228] sm:$0xff]
          %v7147 = vld [vmem:[#allocation2 + $0x230] sm:$0xff]
          %v7148 = vld [vmem:[#allocation2 + $0x238] sm:$0xff]
          %v7149 = vld [vmem:[#allocation2 + $0x240] sm:$0xff]
          %v7150 = vld [vmem:[#allocation2 + $0x248] sm:$0xff]
          %v7151 = vld [vmem:[#allocation2 + $0x250] sm:$0xff]
          %v7152 = vld [vmem:[#allocation2 + $0x258] sm:$0xff]
          %v7153 = vld [vmem:[#allocation2 + $0x260] sm:$0xff]
          %v7154 = vld [vmem:[#allocation2 + $0x268] sm:$0xff]
          %v7155 = vld [vmem:[#allocation2 + $0x270] sm:$0xff]
          %v7156 = vld [vmem:[#allocation2 + $0x278] sm:$0xff]
          %v7157 = vld [vmem:[#allocation2 + $0x280] sm:$0xff]
          %v7158 = vld [vmem:[#allocation2 + $0x288] sm:$0xff]
          %v7159 = vld [vmem:[#allocation2 + $0x290] sm:$0xff]
          %v7160 = vld [vmem:[#allocation2 + $0x298] sm:$0xff]
          %v7161 = vld [vmem:[#allocation2 + $0x2a0] sm:$0xff]
          %v7162 = vld [vmem:[#allocation2 + $0x2a8] sm:$0xff]
          %v7163 = vld [vmem:[#allocation2 + $0x2b0] sm:$0xff]
          %v7164 = vld [vmem:[#allocation2 + $0x2b8] sm:$0xff]
          %v7165 = vld [vmem:[#allocation2 + $0x2c0] sm:$0xff]
          %v7166 = vld [vmem:[#allocation2 + $0x2c8] sm:$0xff]
          %v7167 = vld [vmem:[#allocation2 + $0x2d0] sm:$0xff]
          %v7168 = vld [vmem:[#allocation2 + $0x2d8] sm:$0xff]
          %v7169 = vld [vmem:[#allocation2 + $0x2e0] sm:$0xff]
          %v7170 = vld [vmem:[#allocation2 + $0x2e8] sm:$0xff]
          %v7171 = vld [vmem:[#allocation2 + $0x2f0] sm:$0xff]
          %v7172 = vld [vmem:[#allocation2 + $0x2f8] sm:$0xff]
          %v7173 = vld [vmem:[#allocation2 + $0x300] sm:$0xff]
          %v7174 = vld [vmem:[#allocation2 + $0x308] sm:$0xff]
          %v7175 = vld [vmem:[#allocation2 + $0x310] sm:$0xff]
          %v7176 = vld [vmem:[#allocation2 + $0x318] sm:$0xff]
          %v7177 = vld [vmem:[#allocation2 + $0x320] sm:$0xff]
          %v7178 = vld [vmem:[#allocation2 + $0x328] sm:$0xff]
          %v7179 = vld [vmem:[#allocation2 + $0x330] sm:$0xff]
          %v7180 = vld [vmem:[#allocation2 + $0x338] sm:$0xff]
          %v7181 = vld [vmem:[#allocation2 + $0x340] sm:$0xff]
          %v7182 = vld [vmem:[#allocation2 + $0x348] sm:$0xff]
          %v7183 = vld [vmem:[#allocation2 + $0x350] sm:$0xff]
          %v7184 = vld [vmem:[#allocation2 + $0x358] sm:$0xff]
          %v7185 = vld [vmem:[#allocation2 + $0x360] sm:$0xff]
          %v7186 = vld [vmem:[#allocation2 + $0x368] sm:$0xff]
          %v7187 = vld [vmem:[#allocation2 + $0x370] sm:$0xff]
          %v7188 = vld [vmem:[#allocation2 + $0x378] sm:$0xff]
          %v7189 = vld [vmem:[#allocation2 + $0x380] sm:$0xff]
          %v7190 = vld [vmem:[#allocation2 + $0x388] sm:$0xff]
          %v7191 = vld [vmem:[#allocation2 + $0x390] sm:$0xff]
          %v7192 = vld [vmem:[#allocation2 + $0x398] sm:$0xff]
          %v7193 = vld [vmem:[#allocation2 + $0x3a0] sm:$0xff]
          %v7194 = vld [vmem:[#allocation2 + $0x3a8] sm:$0xff]
          %v7195 = vld [vmem:[#allocation2 + $0x3b0] sm:$0xff]
          %v7196 = vld [vmem:[#allocation2 + $0x3b8] sm:$0xff]
          %v7197 = vld [vmem:[#allocation2 + $0x3c0] sm:$0xff]
          %v7198 = vld [vmem:[#allocation2 + $0x3c8] sm:$0xff]
          %v7199 = vld [vmem:[#allocation2 + $0x3d0] sm:$0xff]
          %v7200 = vld [vmem:[#allocation2 + $0x3d8] sm:$0xff]
          %v7201 = vld [vmem:[#allocation2 + $0x3e0] sm:$0xff]
          %v7202 = vld [vmem:[#allocation2 + $0x3e8] sm:$0xff]
          %v7203 = vld [vmem:[#allocation2 + $0x3f0] sm:$0xff]
          %v7204 = vld [vmem:[#allocation2 + $0x3f8] sm:$0xff]
          %v7205 = vld [vmem:[#allocation27] sm:$0x1]
          %v7207 = vperm.slane %v7205, 0
          %v7209 = vmul.f32 %v7077, %v7207
          %v7210 = vmul.f32 %v7078, %v7207
          %v7211 = vmul.f32 %v7079, %v7207
          %v7212 = vmul.f32 %v7080, %v7207
          %v7213 = vmul.f32 %v7081, %v7207
          %v7214 = vmul.f32 %v7082, %v7207
          %v7215 = vmul.f32 %v7083, %v7207
          %v7216 = vmul.f32 %v7084, %v7207
          %v7217 = vmul.f32 %v7085, %v7207
          %v7218 = vmul.f32 %v7086, %v7207
          %v7219 = vmul.f32 %v7087, %v7207
          %v7220 = vmul.f32 %v7088, %v7207
          %v7221 = vmul.f32 %v7089, %v7207
          %v7222 = vmul.f32 %v7090, %v7207
          %v7223 = vmul.f32 %v7091, %v7207
          %v7224 = vmul.f32 %v7092, %v7207
          %v7225 = vmul.f32 %v7093, %v7207
          %v7226 = vmul.f32 %v7094, %v7207
          %v7227 = vmul.f32 %v7095, %v7207
          %v7228 = vmul.f32 %v7096, %v7207
          %v7229 = vmul.f32 %v7097, %v7207
          %v7230 = vmul.f32 %v7098, %v7207
          %v7231 = vmul.f32 %v7099, %v7207
          %v7232 = vmul.f32 %v7100, %v7207
          %v7233 = vmul.f32 %v7101, %v7207
          %v7234 = vmul.f32 %v7102, %v7207
          %v7235 = vmul.f32 %v7103, %v7207
          %v7236 = vmul.f32 %v7104, %v7207
          %v7237 = vmul.f32 %v7105, %v7207
          %v7238 = vmul.f32 %v7106, %v7207
          %v7239 = vmul.f32 %v7107, %v7207
          %v7240 = vmul.f32 %v7108, %v7207
          %v7241 = vmul.f32 %v7109, %v7207
          %v7242 = vmul.f32 %v7110, %v7207
          %v7243 = vmul.f32 %v7111, %v7207
          %v7244 = vmul.f32 %v7112, %v7207
          %v7245 = vmul.f32 %v7113, %v7207
          %v7246 = vmul.f32 %v7114, %v7207
          %v7247 = vmul.f32 %v7115, %v7207
          %v7248 = vmul.f32 %v7116, %v7207
          %v7249 = vmul.f32 %v7117, %v7207
          %v7250 = vmul.f32 %v7118, %v7207
          %v7251 = vmul.f32 %v7119, %v7207
          %v7252 = vmul.f32 %v7120, %v7207
          %v7253 = vmul.f32 %v7121, %v7207
          %v7254 = vmul.f32 %v7122, %v7207
          %v7255 = vmul.f32 %v7123, %v7207
          %v7256 = vmul.f32 %v7124, %v7207
          %v7257 = vmul.f32 %v7125, %v7207
          %v7258 = vmul.f32 %v7126, %v7207
          %v7259 = vmul.f32 %v7127, %v7207
          %v7260 = vmul.f32 %v7128, %v7207
          %v7261 = vmul.f32 %v7129, %v7207
          %v7262 = vmul.f32 %v7130, %v7207
          %v7263 = vmul.f32 %v7131, %v7207
          %v7264 = vmul.f32 %v7132, %v7207
          %v7265 = vmul.f32 %v7133, %v7207
          %v7266 = vmul.f32 %v7134, %v7207
          %v7267 = vmul.f32 %v7135, %v7207
          %v7268 = vmul.f32 %v7136, %v7207
          %v7269 = vmul.f32 %v7137, %v7207
          %v7270 = vmul.f32 %v7138, %v7207
          %v7271 = vmul.f32 %v7139, %v7207
          %v7272 = vmul.f32 %v7140, %v7207
          %v7273 = vmul.f32 %v7141, %v7207
          %v7274 = vmul.f32 %v7142, %v7207
          %v7275 = vmul.f32 %v7143, %v7207
          %v7276 = vmul.f32 %v7144, %v7207
          %v7277 = vmul.f32 %v7145, %v7207
          %v7278 = vmul.f32 %v7146, %v7207
          %v7279 = vmul.f32 %v7147, %v7207
          %v7280 = vmul.f32 %v7148, %v7207
          %v7281 = vmul.f32 %v7149, %v7207
          %v7282 = vmul.f32 %v7150, %v7207
          %v7283 = vmul.f32 %v7151, %v7207
          %v7284 = vmul.f32 %v7152, %v7207
          %v7285 = vmul.f32 %v7153, %v7207
          %v7286 = vmul.f32 %v7154, %v7207
          %v7287 = vmul.f32 %v7155, %v7207
          %v7288 = vmul.f32 %v7156, %v7207
          %v7289 = vmul.f32 %v7157, %v7207
          %v7290 = vmul.f32 %v7158, %v7207
          %v7291 = vmul.f32 %v7159, %v7207
          %v7292 = vmul.f32 %v7160, %v7207
          %v7293 = vmul.f32 %v7161, %v7207
          %v7294 = vmul.f32 %v7162, %v7207
          %v7295 = vmul.f32 %v7163, %v7207
          %v7296 = vmul.f32 %v7164, %v7207
          %v7297 = vmul.f32 %v7165, %v7207
          %v7298 = vmul.f32 %v7166, %v7207
          %v7299 = vmul.f32 %v7167, %v7207
          %v7300 = vmul.f32 %v7168, %v7207
          %v7301 = vmul.f32 %v7169, %v7207
          %v7302 = vmul.f32 %v7170, %v7207
          %v7303 = vmul.f32 %v7171, %v7207
          %v7304 = vmul.f32 %v7172, %v7207
          %v7305 = vmul.f32 %v7173, %v7207
          %v7306 = vmul.f32 %v7174, %v7207
          %v7307 = vmul.f32 %v7175, %v7207
          %v7308 = vmul.f32 %v7176, %v7207
          %v7309 = vmul.f32 %v7177, %v7207
          %v7310 = vmul.f32 %v7178, %v7207
          %v7311 = vmul.f32 %v7179, %v7207
          %v7312 = vmul.f32 %v7180, %v7207
          %v7313 = vmul.f32 %v7181, %v7207
          %v7314 = vmul.f32 %v7182, %v7207
          %v7315 = vmul.f32 %v7183, %v7207
          %v7316 = vmul.f32 %v7184, %v7207
          %v7317 = vmul.f32 %v7185, %v7207
          %v7318 = vmul.f32 %v7186, %v7207
          %v7319 = vmul.f32 %v7187, %v7207
          %v7320 = vmul.f32 %v7188, %v7207
          %v7321 = vmul.f32 %v7189, %v7207
          %v7322 = vmul.f32 %v7190, %v7207
          %v7323 = vmul.f32 %v7191, %v7207
          %v7324 = vmul.f32 %v7192, %v7207
          %v7325 = vmul.f32 %v7193, %v7207
          %v7326 = vmul.f32 %v7194, %v7207
          %v7327 = vmul.f32 %v7195, %v7207
          %v7328 = vmul.f32 %v7196, %v7207
          %v7329 = vmul.f32 %v7197, %v7207
          %v7330 = vmul.f32 %v7198, %v7207
          %v7331 = vmul.f32 %v7199, %v7207
          %v7332 = vmul.f32 %v7200, %v7207
          %v7333 = vmul.f32 %v7201, %v7207
          %v7334 = vmul.f32 %v7202, %v7207
          %v7335 = vmul.f32 %v7203, %v7207
          %v7336 = vmul.f32 %v7204, %v7207
          %v7337 = vld [vmem:[#allocation28] sm:$0x1]
          %v7339 = vperm.slane %v7337, 0
          %v7341 = vadd.f32 %v7209, %v7339
          %v7342 = vadd.f32 %v7210, %v7339
          %v7343 = vadd.f32 %v7211, %v7339
          %v7344 = vadd.f32 %v7212, %v7339
          %v7345 = vadd.f32 %v7213, %v7339
          %v7346 = vadd.f32 %v7214, %v7339
          %v7347 = vadd.f32 %v7215, %v7339
          %v7348 = vadd.f32 %v7216, %v7339
          %v7349 = vadd.f32 %v7217, %v7339
          %v7350 = vadd.f32 %v7218, %v7339
          %v7351 = vadd.f32 %v7219, %v7339
          %v7352 = vadd.f32 %v7220, %v7339
          %v7353 = vadd.f32 %v7221, %v7339
          %v7354 = vadd.f32 %v7222, %v7339
          %v7355 = vadd.f32 %v7223, %v7339
          %v7356 = vadd.f32 %v7224, %v7339
          %v7357 = vadd.f32 %v7225, %v7339
          %v7358 = vadd.f32 %v7226, %v7339
          %v7359 = vadd.f32 %v7227, %v7339
          %v7360 = vadd.f32 %v7228, %v7339
          %v7361 = vadd.f32 %v7229, %v7339
          %v7362 = vadd.f32 %v7230, %v7339
          %v7363 = vadd.f32 %v7231, %v7339
          %v7364 = vadd.f32 %v7232, %v7339
          %v7365 = vadd.f32 %v7233, %v7339
          %v7366 = vadd.f32 %v7234, %v7339
          %v7367 = vadd.f32 %v7235, %v7339
          %v7368 = vadd.f32 %v7236, %v7339
          %v7369 = vadd.f32 %v7237, %v7339
          %v7370 = vadd.f32 %v7238, %v7339
          %v7371 = vadd.f32 %v7239, %v7339
          %v7372 = vadd.f32 %v7240, %v7339
          %v7373 = vadd.f32 %v7241, %v7339
          %v7374 = vadd.f32 %v7242, %v7339
          %v7375 = vadd.f32 %v7243, %v7339
          %v7376 = vadd.f32 %v7244, %v7339
          %v7377 = vadd.f32 %v7245, %v7339
          %v7378 = vadd.f32 %v7246, %v7339
          %v7379 = vadd.f32 %v7247, %v7339
          %v7380 = vadd.f32 %v7248, %v7339
          %v7381 = vadd.f32 %v7249, %v7339
          %v7382 = vadd.f32 %v7250, %v7339
          %v7383 = vadd.f32 %v7251, %v7339
          %v7384 = vadd.f32 %v7252, %v7339
          %v7385 = vadd.f32 %v7253, %v7339
          %v7386 = vadd.f32 %v7254, %v7339
          %v7387 = vadd.f32 %v7255, %v7339
          %v7388 = vadd.f32 %v7256, %v7339
          %v7389 = vadd.f32 %v7257, %v7339
          %v7390 = vadd.f32 %v7258, %v7339
          %v7391 = vadd.f32 %v7259, %v7339
          %v7392 = vadd.f32 %v7260, %v7339
          %v7393 = vadd.f32 %v7261, %v7339
          %v7394 = vadd.f32 %v7262, %v7339
          %v7395 = vadd.f32 %v7263, %v7339
          %v7396 = vadd.f32 %v7264, %v7339
          %v7397 = vadd.f32 %v7265, %v7339
          %v7398 = vadd.f32 %v7266, %v7339
          %v7399 = vadd.f32 %v7267, %v7339
          %v7400 = vadd.f32 %v7268, %v7339
          %v7401 = vadd.f32 %v7269, %v7339
          %v7402 = vadd.f32 %v7270, %v7339
          %v7403 = vadd.f32 %v7271, %v7339
          %v7404 = vadd.f32 %v7272, %v7339
          %v7405 = vadd.f32 %v7273, %v7339
          %v7406 = vadd.f32 %v7274, %v7339
          %v7407 = vadd.f32 %v7275, %v7339
          %v7408 = vadd.f32 %v7276, %v7339
          %v7409 = vadd.f32 %v7277, %v7339
          %v7410 = vadd.f32 %v7278, %v7339
          %v7411 = vadd.f32 %v7279, %v7339
          %v7412 = vadd.f32 %v7280, %v7339
          %v7413 = vadd.f32 %v7281, %v7339
          %v7414 = vadd.f32 %v7282, %v7339
          %v7415 = vadd.f32 %v7283, %v7339
          %v7416 = vadd.f32 %v7284, %v7339
          %v7417 = vadd.f32 %v7285, %v7339
          %v7418 = vadd.f32 %v7286, %v7339
          %v7419 = vadd.f32 %v7287, %v7339
          %v7420 = vadd.f32 %v7288, %v7339
          %v7421 = vadd.f32 %v7289, %v7339
          %v7422 = vadd.f32 %v7290, %v7339
          %v7423 = vadd.f32 %v7291, %v7339
          %v7424 = vadd.f32 %v7292, %v7339
          %v7425 = vadd.f32 %v7293, %v7339
          %v7426 = vadd.f32 %v7294, %v7339
          %v7427 = vadd.f32 %v7295, %v7339
          %v7428 = vadd.f32 %v7296, %v7339
          %v7429 = vadd.f32 %v7297, %v7339
          %v7430 = vadd.f32 %v7298, %v7339
          %v7431 = vadd.f32 %v7299, %v7339
          %v7432 = vadd.f32 %v7300, %v7339
          %v7433 = vadd.f32 %v7301, %v7339
          %v7434 = vadd.f32 %v7302, %v7339
          %v7435 = vadd.f32 %v7303, %v7339
          %v7436 = vadd.f32 %v7304, %v7339
          %v7437 = vadd.f32 %v7305, %v7339
          %v7438 = vadd.f32 %v7306, %v7339
          %v7439 = vadd.f32 %v7307, %v7339
          %v7440 = vadd.f32 %v7308, %v7339
          %v7441 = vadd.f32 %v7309, %v7339
          %v7442 = vadd.f32 %v7310, %v7339
          %v7443 = vadd.f32 %v7311, %v7339
          %v7444 = vadd.f32 %v7312, %v7339
          %v7445 = vadd.f32 %v7313, %v7339
          %v7446 = vadd.f32 %v7314, %v7339
          %v7447 = vadd.f32 %v7315, %v7339
          %v7448 = vadd.f32 %v7316, %v7339
          %v7449 = vadd.f32 %v7317, %v7339
          %v7450 = vadd.f32 %v7318, %v7339
          %v7451 = vadd.f32 %v7319, %v7339
          %v7452 = vadd.f32 %v7320, %v7339
          %v7453 = vadd.f32 %v7321, %v7339
          %v7454 = vadd.f32 %v7322, %v7339
          %v7455 = vadd.f32 %v7323, %v7339
          %v7456 = vadd.f32 %v7324, %v7339
          %v7457 = vadd.f32 %v7325, %v7339
          %v7458 = vadd.f32 %v7326, %v7339
          %v7459 = vadd.f32 %v7327, %v7339
          %v7460 = vadd.f32 %v7328, %v7339
          %v7461 = vadd.f32 %v7329, %v7339
          %v7462 = vadd.f32 %v7330, %v7339
          %v7463 = vadd.f32 %v7331, %v7339
          %v7464 = vadd.f32 %v7332, %v7339
          %v7465 = vadd.f32 %v7333, %v7339
          %v7466 = vadd.f32 %v7334, %v7339
          %v7467 = vadd.f32 %v7335, %v7339
          %v7468 = vadd.f32 %v7336, %v7339
          %v7469 = vmax.f32 %v7341, 0.0
          %v7470 = vmax.f32 %v7342, 0.0
          %v7471 = vmax.f32 %v7343, 0.0
          %v7472 = vmax.f32 %v7344, 0.0
          %v7473 = vmax.f32 %v7345, 0.0
          %v7474 = vmax.f32 %v7346, 0.0
          %v7475 = vmax.f32 %v7347, 0.0
          %v7476 = vmax.f32 %v7348, 0.0
          %v7477 = vmax.f32 %v7349, 0.0
          %v7478 = vmax.f32 %v7350, 0.0
          %v7479 = vmax.f32 %v7351, 0.0
          %v7480 = vmax.f32 %v7352, 0.0
          %v7481 = vmax.f32 %v7353, 0.0
          %v7482 = vmax.f32 %v7354, 0.0
          %v7483 = vmax.f32 %v7355, 0.0
          %v7484 = vmax.f32 %v7356, 0.0
          %v7485 = vmax.f32 %v7357, 0.0
          %v7486 = vmax.f32 %v7358, 0.0
          %v7487 = vmax.f32 %v7359, 0.0
          %v7488 = vmax.f32 %v7360, 0.0
          %v7489 = vmax.f32 %v7361, 0.0
          %v7490 = vmax.f32 %v7362, 0.0
          %v7491 = vmax.f32 %v7363, 0.0
          %v7492 = vmax.f32 %v7364, 0.0
          %v7493 = vmax.f32 %v7365, 0.0
          %v7494 = vmax.f32 %v7366, 0.0
          %v7495 = vmax.f32 %v7367, 0.0
          %v7496 = vmax.f32 %v7368, 0.0
          %v7497 = vmax.f32 %v7369, 0.0
          %v7498 = vmax.f32 %v7370, 0.0
          %v7499 = vmax.f32 %v7371, 0.0
          %v7500 = vmax.f32 %v7372, 0.0
          %v7501 = vmax.f32 %v7373, 0.0
          %v7502 = vmax.f32 %v7374, 0.0
          %v7503 = vmax.f32 %v7375, 0.0
          %v7504 = vmax.f32 %v7376, 0.0
          %v7505 = vmax.f32 %v7377, 0.0
          %v7506 = vmax.f32 %v7378, 0.0
          %v7507 = vmax.f32 %v7379, 0.0
          %v7508 = vmax.f32 %v7380, 0.0
          %v7509 = vmax.f32 %v7381, 0.0
          %v7510 = vmax.f32 %v7382, 0.0
          %v7511 = vmax.f32 %v7383, 0.0
          %v7512 = vmax.f32 %v7384, 0.0
          %v7513 = vmax.f32 %v7385, 0.0
          %v7514 = vmax.f32 %v7386, 0.0
          %v7515 = vmax.f32 %v7387, 0.0
          %v7516 = vmax.f32 %v7388, 0.0
          %v7517 = vmax.f32 %v7389, 0.0
          %v7518 = vmax.f32 %v7390, 0.0
          %v7519 = vmax.f32 %v7391, 0.0
          %v7520 = vmax.f32 %v7392, 0.0
          %v7521 = vmax.f32 %v7393, 0.0
          %v7522 = vmax.f32 %v7394, 0.0
          %v7523 = vmax.f32 %v7395, 0.0
          %v7524 = vmax.f32 %v7396, 0.0
          %v7525 = vmax.f32 %v7397, 0.0
          %v7526 = vmax.f32 %v7398, 0.0
          %v7527 = vmax.f32 %v7399, 0.0
          %v7528 = vmax.f32 %v7400, 0.0
          %v7529 = vmax.f32 %v7401, 0.0
          %v7530 = vmax.f32 %v7402, 0.0
          %v7531 = vmax.f32 %v7403, 0.0
          %v7532 = vmax.f32 %v7404, 0.0
          %v7533 = vmax.f32 %v7405, 0.0
          %v7534 = vmax.f32 %v7406, 0.0
          %v7535 = vmax.f32 %v7407, 0.0
          %v7536 = vmax.f32 %v7408, 0.0
          %v7537 = vmax.f32 %v7409, 0.0
          %v7538 = vmax.f32 %v7410, 0.0
          %v7539 = vmax.f32 %v7411, 0.0
          %v7540 = vmax.f32 %v7412, 0.0
          %v7541 = vmax.f32 %v7413, 0.0
          %v7542 = vmax.f32 %v7414, 0.0
          %v7543 = vmax.f32 %v7415, 0.0
          %v7544 = vmax.f32 %v7416, 0.0
          %v7545 = vmax.f32 %v7417, 0.0
          %v7546 = vmax.f32 %v7418, 0.0
          %v7547 = vmax.f32 %v7419, 0.0
          %v7548 = vmax.f32 %v7420, 0.0
          %v7549 = vmax.f32 %v7421, 0.0
          %v7550 = vmax.f32 %v7422, 0.0
          %v7551 = vmax.f32 %v7423, 0.0
          %v7552 = vmax.f32 %v7424, 0.0
          %v7553 = vmax.f32 %v7425, 0.0
          %v7554 = vmax.f32 %v7426, 0.0
          %v7555 = vmax.f32 %v7427, 0.0
          %v7556 = vmax.f32 %v7428, 0.0
          %v7557 = vmax.f32 %v7429, 0.0
          %v7558 = vmax.f32 %v7430, 0.0
          %v7559 = vmax.f32 %v7431, 0.0
          %v7560 = vmax.f32 %v7432, 0.0
          %v7561 = vmax.f32 %v7433, 0.0
          %v7562 = vmax.f32 %v7434, 0.0
          %v7563 = vmax.f32 %v7435, 0.0
          %v7564 = vmax.f32 %v7436, 0.0
          %v7565 = vmax.f32 %v7437, 0.0
          %v7566 = vmax.f32 %v7438, 0.0
          %v7567 = vmax.f32 %v7439, 0.0
          %v7568 = vmax.f32 %v7440, 0.0
          %v7569 = vmax.f32 %v7441, 0.0
          %v7570 = vmax.f32 %v7442, 0.0
          %v7571 = vmax.f32 %v7443, 0.0
          %v7572 = vmax.f32 %v7444, 0.0
          %v7573 = vmax.f32 %v7445, 0.0
          %v7574 = vmax.f32 %v7446, 0.0
          %v7575 = vmax.f32 %v7447, 0.0
          %v7576 = vmax.f32 %v7448, 0.0
          %v7577 = vmax.f32 %v7449, 0.0
          %v7578 = vmax.f32 %v7450, 0.0
          %v7579 = vmax.f32 %v7451, 0.0
          %v7580 = vmax.f32 %v7452, 0.0
          %v7581 = vmax.f32 %v7453, 0.0
          %v7582 = vmax.f32 %v7454, 0.0
          %v7583 = vmax.f32 %v7455, 0.0
          %v7584 = vmax.f32 %v7456, 0.0
          %v7585 = vmax.f32 %v7457, 0.0
          %v7586 = vmax.f32 %v7458, 0.0
          %v7587 = vmax.f32 %v7459, 0.0
          %v7588 = vmax.f32 %v7460, 0.0
          %v7589 = vmax.f32 %v7461, 0.0
          %v7590 = vmax.f32 %v7462, 0.0
          %v7591 = vmax.f32 %v7463, 0.0
          %v7592 = vmax.f32 %v7464, 0.0
          %v7593 = vmax.f32 %v7465, 0.0
          %v7594 = vmax.f32 %v7466, 0.0
          %v7595 = vmax.f32 %v7467, 0.0
          %v7596 = vmax.f32 %v7468, 0.0
          %v7597 = vpack.c.bf16 %v7469, %v7469
          %v7598 = vpack.c.bf16 %v7470, %v7470
          %v7599 = vpack.c.bf16 %v7471, %v7471
          %v7600 = vpack.c.bf16 %v7472, %v7472
          %v7601 = vpack.c.bf16 %v7473, %v7473
          %v7602 = vpack.c.bf16 %v7474, %v7474
          %v7603 = vpack.c.bf16 %v7475, %v7475
          %v7604 = vpack.c.bf16 %v7476, %v7476
          %v7605 = vpack.c.bf16 %v7477, %v7477
          %v7606 = vpack.c.bf16 %v7478, %v7478
          %v7607 = vpack.c.bf16 %v7479, %v7479
          %v7608 = vpack.c.bf16 %v7480, %v7480
          %v7609 = vpack.c.bf16 %v7481, %v7481
          %v7610 = vpack.c.bf16 %v7482, %v7482
          %v7611 = vpack.c.bf16 %v7483, %v7483
          %v7612 = vpack.c.bf16 %v7484, %v7484
          %v7613 = vpack.c.bf16 %v7485, %v7485
          %v7614 = vpack.c.bf16 %v7486, %v7486
          %v7615 = vpack.c.bf16 %v7487, %v7487
          %v7616 = vpack.c.bf16 %v7488, %v7488
          %v7617 = vpack.c.bf16 %v7489, %v7489
          %v7618 = vpack.c.bf16 %v7490, %v7490
          %v7619 = vpack.c.bf16 %v7491, %v7491
          %v7620 = vpack.c.bf16 %v7492, %v7492
          %v7621 = vpack.c.bf16 %v7493, %v7493
          %v7622 = vpack.c.bf16 %v7494, %v7494
          %v7623 = vpack.c.bf16 %v7495, %v7495
          %v7624 = vpack.c.bf16 %v7496, %v7496
          %v7625 = vpack.c.bf16 %v7497, %v7497
          %v7626 = vpack.c.bf16 %v7498, %v7498
          %v7627 = vpack.c.bf16 %v7499, %v7499
          %v7628 = vpack.c.bf16 %v7500, %v7500
          %v7629 = vpack.c.bf16 %v7501, %v7501
          %v7630 = vpack.c.bf16 %v7502, %v7502
          %v7631 = vpack.c.bf16 %v7503, %v7503
          %v7632 = vpack.c.bf16 %v7504, %v7504
          %v7633 = vpack.c.bf16 %v7505, %v7505
          %v7634 = vpack.c.bf16 %v7506, %v7506
          %v7635 = vpack.c.bf16 %v7507, %v7507
          %v7636 = vpack.c.bf16 %v7508, %v7508
          %v7637 = vpack.c.bf16 %v7509, %v7509
          %v7638 = vpack.c.bf16 %v7510, %v7510
          %v7639 = vpack.c.bf16 %v7511, %v7511
          %v7640 = vpack.c.bf16 %v7512, %v7512
          %v7641 = vpack.c.bf16 %v7513, %v7513
          %v7642 = vpack.c.bf16 %v7514, %v7514
          %v7643 = vpack.c.bf16 %v7515, %v7515
          %v7644 = vpack.c.bf16 %v7516, %v7516
          %v7645 = vpack.c.bf16 %v7517, %v7517
          %v7646 = vpack.c.bf16 %v7518, %v7518
          %v7647 = vpack.c.bf16 %v7519, %v7519
          %v7648 = vpack.c.bf16 %v7520, %v7520
          %v7649 = vpack.c.bf16 %v7521, %v7521
          %v7650 = vpack.c.bf16 %v7522, %v7522
          %v7651 = vpack.c.bf16 %v7523, %v7523
          %v7652 = vpack.c.bf16 %v7524, %v7524
          %v7653 = vpack.c.bf16 %v7525, %v7525
          %v7654 = vpack.c.bf16 %v7526, %v7526
          %v7655 = vpack.c.bf16 %v7527, %v7527
          %v7656 = vpack.c.bf16 %v7528, %v7528
          %v7657 = vpack.c.bf16 %v7529, %v7529
          %v7658 = vpack.c.bf16 %v7530, %v7530
          %v7659 = vpack.c.bf16 %v7531, %v7531
          %v7660 = vpack.c.bf16 %v7532, %v7532
          %v7661 = vpack.c.bf16 %v7533, %v7533
          %v7662 = vpack.c.bf16 %v7534, %v7534
          %v7663 = vpack.c.bf16 %v7535, %v7535
          %v7664 = vpack.c.bf16 %v7536, %v7536
          %v7665 = vpack.c.bf16 %v7537, %v7537
          %v7666 = vpack.c.bf16 %v7538, %v7538
          %v7667 = vpack.c.bf16 %v7539, %v7539
          %v7668 = vpack.c.bf16 %v7540, %v7540
          %v7669 = vpack.c.bf16 %v7541, %v7541
          %v7670 = vpack.c.bf16 %v7542, %v7542
          %v7671 = vpack.c.bf16 %v7543, %v7543
          %v7672 = vpack.c.bf16 %v7544, %v7544
          %v7673 = vpack.c.bf16 %v7545, %v7545
          %v7674 = vpack.c.bf16 %v7546, %v7546
          %v7675 = vpack.c.bf16 %v7547, %v7547
          %v7676 = vpack.c.bf16 %v7548, %v7548
          %v7677 = vpack.c.bf16 %v7549, %v7549
          %v7678 = vpack.c.bf16 %v7550, %v7550
          %v7679 = vpack.c.bf16 %v7551, %v7551
          %v7680 = vpack.c.bf16 %v7552, %v7552
          %v7681 = vpack.c.bf16 %v7553, %v7553
          %v7682 = vpack.c.bf16 %v7554, %v7554
          %v7683 = vpack.c.bf16 %v7555, %v7555
          %v7684 = vpack.c.bf16 %v7556, %v7556
          %v7685 = vpack.c.bf16 %v7557, %v7557
          %v7686 = vpack.c.bf16 %v7558, %v7558
          %v7687 = vpack.c.bf16 %v7559, %v7559
          %v7688 = vpack.c.bf16 %v7560, %v7560
          %v7689 = vpack.c.bf16 %v7561, %v7561
          %v7690 = vpack.c.bf16 %v7562, %v7562
          %v7691 = vpack.c.bf16 %v7563, %v7563
          %v7692 = vpack.c.bf16 %v7564, %v7564
          %v7693 = vpack.c.bf16 %v7565, %v7565
          %v7694 = vpack.c.bf16 %v7566, %v7566
          %v7695 = vpack.c.bf16 %v7567, %v7567
          %v7696 = vpack.c.bf16 %v7568, %v7568
          %v7697 = vpack.c.bf16 %v7569, %v7569
          %v7698 = vpack.c.bf16 %v7570, %v7570
          %v7699 = vpack.c.bf16 %v7571, %v7571
          %v7700 = vpack.c.bf16 %v7572, %v7572
          %v7701 = vpack.c.bf16 %v7573, %v7573
          %v7702 = vpack.c.bf16 %v7574, %v7574
          %v7703 = vpack.c.bf16 %v7575, %v7575
          %v7704 = vpack.c.bf16 %v7576, %v7576
          %v7705 = vpack.c.bf16 %v7577, %v7577
          %v7706 = vpack.c.bf16 %v7578, %v7578
          %v7707 = vpack.c.bf16 %v7579, %v7579
          %v7708 = vpack.c.bf16 %v7580, %v7580
          %v7709 = vpack.c.bf16 %v7581, %v7581
          %v7710 = vpack.c.bf16 %v7582, %v7582
          %v7711 = vpack.c.bf16 %v7583, %v7583
          %v7712 = vpack.c.bf16 %v7584, %v7584
          %v7713 = vpack.c.bf16 %v7585, %v7585
          %v7714 = vpack.c.bf16 %v7586, %v7586
          %v7715 = vpack.c.bf16 %v7587, %v7587
          %v7716 = vpack.c.bf16 %v7588, %v7588
          %v7717 = vpack.c.bf16 %v7589, %v7589
          %v7718 = vpack.c.bf16 %v7590, %v7590
          %v7719 = vpack.c.bf16 %v7591, %v7591
          %v7720 = vpack.c.bf16 %v7592, %v7592
          %v7721 = vpack.c.bf16 %v7593, %v7593
          %v7722 = vpack.c.bf16 %v7594, %v7594
          %v7723 = vpack.c.bf16 %v7595, %v7595
          %v7724 = vpack.c.bf16 %v7596, %v7596
          %7725 = vst [vmem:[%s276] sm:$0xf] %v7597
          %7726 = vst [vmem:[%s276 + $0x4] sm:$0xf] %v7598
          %7727 = vst [vmem:[%s276 + $0x8] sm:$0xf] %v7599
          %7728 = vst [vmem:[%s276 + $0xc] sm:$0xf] %v7600
          %7729 = vst [vmem:[%s276 + $0x10] sm:$0xf] %v7601
          %7730 = vst [vmem:[%s276 + $0x14] sm:$0xf] %v7602
          %7731 = vst [vmem:[%s276 + $0x18] sm:$0xf] %v7603
          %7732 = vst [vmem:[%s276 + $0x1c] sm:$0xf] %v7604
          %7733 = vst [vmem:[%s276 + $0x20] sm:$0xf] %v7605
          %7734 = vst [vmem:[%s276 + $0x24] sm:$0xf] %v7606
          %7735 = vst [vmem:[%s276 + $0x28] sm:$0xf] %v7607
          %7736 = vst [vmem:[%s276 + $0x2c] sm:$0xf] %v7608
          %7737 = vst [vmem:[%s276 + $0x30] sm:$0xf] %v7609
          %7738 = vst [vmem:[%s276 + $0x34] sm:$0xf] %v7610
          %7739 = vst [vmem:[%s276 + $0x38] sm:$0xf] %v7611
          %7740 = vst [vmem:[%s276 + $0x3c] sm:$0xf] %v7612
          %7741 = vst [vmem:[%s276 + $0x40] sm:$0xf] %v7613
          %7742 = vst [vmem:[%s276 + $0x44] sm:$0xf] %v7614
          %7743 = vst [vmem:[%s276 + $0x48] sm:$0xf] %v7615
          %7744 = vst [vmem:[%s276 + $0x4c] sm:$0xf] %v7616
          %7745 = vst [vmem:[%s276 + $0x50] sm:$0xf] %v7617
          %7746 = vst [vmem:[%s276 + $0x54] sm:$0xf] %v7618
          %7747 = vst [vmem:[%s276 + $0x58] sm:$0xf] %v7619
          %7748 = vst [vmem:[%s276 + $0x5c] sm:$0xf] %v7620
          %7749 = vst [vmem:[%s276 + $0x60] sm:$0xf] %v7621
          %7750 = vst [vmem:[%s276 + $0x64] sm:$0xf] %v7622
          %7751 = vst [vmem:[%s276 + $0x68] sm:$0xf] %v7623
          %7752 = vst [vmem:[%s276 + $0x6c] sm:$0xf] %v7624
          %7753 = vst [vmem:[%s276 + $0x70] sm:$0xf] %v7625
          %7754 = vst [vmem:[%s276 + $0x74] sm:$0xf] %v7626
          %7755 = vst [vmem:[%s276 + $0x78] sm:$0xf] %v7627
          %7756 = vst [vmem:[%s276 + $0x7c] sm:$0xf] %v7628
          %7757 = vst [vmem:[%s276 + $0x80] sm:$0xf] %v7629
          %7758 = vst [vmem:[%s276 + $0x84] sm:$0xf] %v7630
          %7759 = vst [vmem:[%s276 + $0x88] sm:$0xf] %v7631
          %7760 = vst [vmem:[%s276 + $0x8c] sm:$0xf] %v7632
          %7761 = vst [vmem:[%s276 + $0x90] sm:$0xf] %v7633
          %7762 = vst [vmem:[%s276 + $0x94] sm:$0xf] %v7634
          %7763 = vst [vmem:[%s276 + $0x98] sm:$0xf] %v7635
          %7764 = vst [vmem:[%s276 + $0x9c] sm:$0xf] %v7636
          %7765 = vst [vmem:[%s276 + $0xa0] sm:$0xf] %v7637
          %7766 = vst [vmem:[%s276 + $0xa4] sm:$0xf] %v7638
          %7767 = vst [vmem:[%s276 + $0xa8] sm:$0xf] %v7639
          %7768 = vst [vmem:[%s276 + $0xac] sm:$0xf] %v7640
          %7769 = vst [vmem:[%s276 + $0xb0] sm:$0xf] %v7641
          %7770 = vst [vmem:[%s276 + $0xb4] sm:$0xf] %v7642
          %7771 = vst [vmem:[%s276 + $0xb8] sm:$0xf] %v7643
          %7772 = vst [vmem:[%s276 + $0xbc] sm:$0xf] %v7644
          %7773 = vst [vmem:[%s276 + $0xc0] sm:$0xf] %v7645
          %7774 = vst [vmem:[%s276 + $0xc4] sm:$0xf] %v7646
          %7775 = vst [vmem:[%s276 + $0xc8] sm:$0xf] %v7647
          %7776 = vst [vmem:[%s276 + $0xcc] sm:$0xf] %v7648
          %7777 = vst [vmem:[%s276 + $0xd0] sm:$0xf] %v7649
          %7778 = vst [vmem:[%s276 + $0xd4] sm:$0xf] %v7650
          %7779 = vst [vmem:[%s276 + $0xd8] sm:$0xf] %v7651
          %7780 = vst [vmem:[%s276 + $0xdc] sm:$0xf] %v7652
          %7781 = vst [vmem:[%s276 + $0xe0] sm:$0xf] %v7653
          %7782 = vst [vmem:[%s276 + $0xe4] sm:$0xf] %v7654
          %7783 = vst [vmem:[%s276 + $0xe8] sm:$0xf] %v7655
          %7784 = vst [vmem:[%s276 + $0xec] sm:$0xf] %v7656
          %7785 = vst [vmem:[%s276 + $0xf0] sm:$0xf] %v7657
          %7786 = vst [vmem:[%s276 + $0xf4] sm:$0xf] %v7658
          %7787 = vst [vmem:[%s276 + $0xf8] sm:$0xf] %v7659
          %7788 = vst [vmem:[%s276 + $0xfc] sm:$0xf] %v7660
          %7789 = vst [vmem:[%s276 + $0x100] sm:$0xf] %v7661
          %7790 = vst [vmem:[%s276 + $0x104] sm:$0xf] %v7662
          %7791 = vst [vmem:[%s276 + $0x108] sm:$0xf] %v7663
          %7792 = vst [vmem:[%s276 + $0x10c] sm:$0xf] %v7664
          %7793 = vst [vmem:[%s276 + $0x110] sm:$0xf] %v7665
          %7794 = vst [vmem:[%s276 + $0x114] sm:$0xf] %v7666
          %7795 = vst [vmem:[%s276 + $0x118] sm:$0xf] %v7667
          %7796 = vst [vmem:[%s276 + $0x11c] sm:$0xf] %v7668
          %7797 = vst [vmem:[%s276 + $0x120] sm:$0xf] %v7669
          %7798 = vst [vmem:[%s276 + $0x124] sm:$0xf] %v7670
          %7799 = vst [vmem:[%s276 + $0x128] sm:$0xf] %v7671
          %7800 = vst [vmem:[%s276 + $0x12c] sm:$0xf] %v7672
          %7801 = vst [vmem:[%s276 + $0x130] sm:$0xf] %v7673
          %7802 = vst [vmem:[%s276 + $0x134] sm:$0xf] %v7674
          %7803 = vst [vmem:[%s276 + $0x138] sm:$0xf] %v7675
          %7804 = vst [vmem:[%s276 + $0x13c] sm:$0xf] %v7676
          %7805 = vst [vmem:[%s276 + $0x140] sm:$0xf] %v7677
          %7806 = vst [vmem:[%s276 + $0x144] sm:$0xf] %v7678
          %7807 = vst [vmem:[%s276 + $0x148] sm:$0xf] %v7679
          %7808 = vst [vmem:[%s276 + $0x14c] sm:$0xf] %v7680
          %7809 = vst [vmem:[%s276 + $0x150] sm:$0xf] %v7681
          %7810 = vst [vmem:[%s276 + $0x154] sm:$0xf] %v7682
          %7811 = vst [vmem:[%s276 + $0x158] sm:$0xf] %v7683
          %7812 = vst [vmem:[%s276 + $0x15c] sm:$0xf] %v7684
          %7813 = vst [vmem:[%s276 + $0x160] sm:$0xf] %v7685
          %7814 = vst [vmem:[%s276 + $0x164] sm:$0xf] %v7686
          %7815 = vst [vmem:[%s276 + $0x168] sm:$0xf] %v7687
          %7816 = vst [vmem:[%s276 + $0x16c] sm:$0xf] %v7688
          %7817 = vst [vmem:[%s276 + $0x170] sm:$0xf] %v7689
          %7818 = vst [vmem:[%s276 + $0x174] sm:$0xf] %v7690
          %7819 = vst [vmem:[%s276 + $0x178] sm:$0xf] %v7691
          %7820 = vst [vmem:[%s276 + $0x17c] sm:$0xf] %v7692
          %7821 = vst [vmem:[%s276 + $0x180] sm:$0xf] %v7693
          %7822 = vst [vmem:[%s276 + $0x184] sm:$0xf] %v7694
          %7823 = vst [vmem:[%s276 + $0x188] sm:$0xf] %v7695
          %7824 = vst [vmem:[%s276 + $0x18c] sm:$0xf] %v7696
          %7825 = vst [vmem:[%s276 + $0x190] sm:$0xf] %v7697
          %7826 = vst [vmem:[%s276 + $0x194] sm:$0xf] %v7698
          %7827 = vst [vmem:[%s276 + $0x198] sm:$0xf] %v7699
          %7828 = vst [vmem:[%s276 + $0x19c] sm:$0xf] %v7700
          %7829 = vst [vmem:[%s276 + $0x1a0] sm:$0xf] %v7701
          %7830 = vst [vmem:[%s276 + $0x1a4] sm:$0xf] %v7702
          %7831 = vst [vmem:[%s276 + $0x1a8] sm:$0xf] %v7703
          %7832 = vst [vmem:[%s276 + $0x1ac] sm:$0xf] %v7704
          %7833 = vst [vmem:[%s276 + $0x1b0] sm:$0xf] %v7705
          %7834 = vst [vmem:[%s276 + $0x1b4] sm:$0xf] %v7706
          %7835 = vst [vmem:[%s276 + $0x1b8] sm:$0xf] %v7707
          %7836 = vst [vmem:[%s276 + $0x1bc] sm:$0xf] %v7708
          %7837 = vst [vmem:[%s276 + $0x1c0] sm:$0xf] %v7709
          %7838 = vst [vmem:[%s276 + $0x1c4] sm:$0xf] %v7710
          %7839 = vst [vmem:[%s276 + $0x1c8] sm:$0xf] %v7711
          %7840 = vst [vmem:[%s276 + $0x1cc] sm:$0xf] %v7712
          %7841 = vst [vmem:[%s276 + $0x1d0] sm:$0xf] %v7713
          %7842 = vst [vmem:[%s276 + $0x1d4] sm:$0xf] %v7714
          %7843 = vst [vmem:[%s276 + $0x1d8] sm:$0xf] %v7715
          %7844 = vst [vmem:[%s276 + $0x1dc] sm:$0xf] %v7716
          %7845 = vst [vmem:[%s276 + $0x1e0] sm:$0xf] %v7717
          %7846 = vst [vmem:[%s276 + $0x1e4] sm:$0xf] %v7718
          %7847 = vst [vmem:[%s276 + $0x1e8] sm:$0xf] %v7719
          %7848 = vst [vmem:[%s276 + $0x1ec] sm:$0xf] %v7720
          %7849 = vst [vmem:[%s276 + $0x1f0] sm:$0xf] %v7721
          %7850 = vst [vmem:[%s276 + $0x1f4] sm:$0xf] %v7722
          %7851 = vst [vmem:[%s276 + $0x1f8] sm:$0xf] %v7723
          %7852 = vst [vmem:[%s276 + $0x1fc] sm:$0xf] %v7724
        $region48: #{conv_bn_act.2} parent=35 // pred_fallthru
          _
        %s7853 = sand.u32 %s159, 1
        %s7854 = scalar_lea.sflag [#allocation24], %s7853
        %s7855 = sand.u32 %s159, 1
        %s7856 = smul.addr %s7855, 512
        %s7857 = scalar_lea.vmem [#allocation23], %s7856
        // Predicated region
        $region49: #{conv_bn_act.2} parent=35 // pred_check
          %p7858 = pneg %p169
        $region50: #{conv_bn_act.2} parent=35 // pred_check_branch
          %7860 = sbr.rel (%p7858) target = $region52
        $region51: #{conv_bn_act.2} parent=35 // pred_region
          %s7861 = smul.u32 128, %s37
          %7863 = vsyncadd %s7854, 0
          %s7864 = sadd.s32 %s38, %s7861
          %s7865 = smul.addr %s7864, 4
          %s7866 = scalar_lea.hbm %s6, %s7865
          %s7867 = sshll.u32 %s7857, 4
          %s7868 = int_to_ptr.vmem [resolvable:$true] %s7867
          %s7869 = sshll.u32 %s7866, 4
          %s7870 = int_to_ptr.hbm [resolvable:$true] %s7869
          %7875 = dma.vmem_to_hbm [thread:$0]  %s7868, 8192, %s7870, %s7854, 64, 64, 4
        $region52: #{conv_bn_act.2} parent=35 // pred_fallthru
          _
      $region36: #{conv_bn_act.2} parent=5 // pred_fallthru
        _
      %p7876 = scmp.le.s32.totalorder 2, %s27
      // Predicated region
      $region53: #{conv_bn_act.2} parent=5 // pred_check
        %p7877 = pneg %p7876
      $region54: #{conv_bn_act.2} parent=5 // pred_check_branch
        %7879 = sbr.rel (%p7877) target = $region56
      $region55: #{conv_bn_act.2} parent=5 // pred_region
        %s7880 = ssub.s32 %s27, 2
        // Predicated region
        $region57: #{conv_bn_act.2} parent=55 // pred_check
          %p7881 = pneg %p175
        $region58: #{conv_bn_act.2} parent=55 // pred_check_branch
          %7883 = sbr.rel (%p7881) target = $region60
        $region59: #{conv_bn_act.2} parent=55 // pred_region
          %s7884 = sand.u32 %s160, 1
          %s7885 = scalar_lea.sflag [#allocation24], %s7884
          %s7886 = sand.u32 %s160, 1
          %s7887 = smul.addr %s7886, 512
          %s7888 = scalar_lea.vmem [#allocation23], %s7887
          %7890 = dma.done %s7885, 8192
        $region60: #{conv_bn_act.2} parent=55 // pred_fallthru
          _
      $region56: #{conv_bn_act.2} parent=5 // pred_fallthru
        _
    $region6: #{conv_bn_act.2} parent=1 // loop_footer
      %s31 = sadd.s32 1, %s27
    $region7: #{conv_bn_act.2} parent=1 // loop_footer_branch
      %26 = sbr.rel target = $region3
    $region8: #{conv_bn_act.2} parent=1 // loop_exit
      _
    %7891 = vsyncpa [#allocation24], 1
    %s7892 = scalar_lea.sflag [#allocation24], 1
    %7893 = vsyncpa %s7892, 1

</llo_original>
